<compile_context>
chip_gen: v6e
topology: v6e:2x2x1
jax: 0.10.0
libtpu: 0.0.40
codegen_flags: <defaults>
</compile_context>

<pallas_src>
import jax
import jax.numpy as jnp
from jax.experimental import pallas as pl
from jax.experimental.pallas import tpu as pltpu


def _round_up(x, m):
    return (x + m - 1) // m * m


def downsample_block(x_nchw, w, b, gamma, beta, running_mean, running_var,
                     eps=1e-5, compute_dtype=jnp.bfloat16):
    """Eval-mode forward of DownsampleBlock (dropout = identity).

    Returns NCHW in `compute_dtype` (bf16) to avoid an f32 writeback pass;
    cast at the call site if the consumer genuinely needs f32.
    """
    N, Cin, H, W = x_nchw.shape
    Cout = w.shape[0]
    Ho = (H + 2 * 1 - 3) // 2 + 1
    Wo = (W + 2 * 1 - 3) // 2 + 1
    M_img = Ho * Wo                         # output pixels per image
    Cout_p = _round_up(Cout, 128)           # lane-dense output channels

    # ---- Cout tiling policy -------------------------------------------------
    w_bytes_full = 9 * Cin * Cout_p * 2
    if w_bytes_full <= (8 << 20) and (N >= 2 or Cout_p <= 128):
        TN = Cout_p                         # whole weight slab grid-resident
    elif Cout_p % 256 == 0:
        TN = 256                            # v6e/v7x MXU is 2x256x256 wide
    else:
        TN = 128
    J = Cout_p // TN

    # ---- VMEM budget (generation aware) -------------------------------------
    x_blk = (Ho + 1) * 2 * (Wo + 1) * 2 * Cin * 2     # bf16 input block
    w_blk = 9 * Cin * TN * 2
    o_blk = M_img * TN * 2
    sb_blk = 2 * TN * 4
    acc_b = M_img * TN * 4                            # f32 accumulator
    vmem_needed = 2 * (x_blk + w_blk + o_blk + sb_blk) + acc_b
    try:
        vmem_cap = int(pltpu.get_tpu_info().vmem_capacity_bytes)
    except Exception:
        vmem_cap = 64 << 20                           # conservative: v7x VMEM
    vmem_limit = min(max(2 * vmem_needed, 32 << 20), (vmem_cap * 3) // 4)
    # TODO(synk): if one padded image (+ f32 accumulator) ever exceeds this
    # budget (huge spatial extents at batch 1), add output-row tiling with a
    # one-row halo (pass `xs` twice with a shifted index_map) instead of
    # whole-image blocks.

    # ---- glue (plain JAX, all bf16): NCHW -> padded NHWC -> s2d view --------
    x = jnp.transpose(x_nchw.astype(compute_dtype), (0, 2, 3, 1))   # NHWC bf16
    Hp, Wp = 2 * (Ho + 1), 2 * (Wo + 1)               # even padded extents
    xp = jnp.pad(x, ((0, 0), (1, Hp - H - 1), (1, Wp - W - 1), (0, 0)))
    # metadata-only reshape (no data movement):
    #   xp[n, 2r+sh, 2c+sw, ci] == xs[n*(Ho+1)+r, sh, c, sw, ci]
    xs = xp.reshape(N * (Ho + 1), 2, Wo + 1, 2, Cin)

    # conv weight (Cout, Cin, 3, 3) -> (3, 3, Cin, Cout_p) bf16
    w_t = jnp.transpose(w, (2, 3, 1, 0))
    w_t = jnp.pad(w_t, ((0, 0), (0, 0), (0, 0), (0, Cout_p - Cout)))
    w_t = w_t.astype(compute_dtype)

    # fold conv bias + BatchNorm (eval, running stats) into one f32 affine,
    # packed as a single (2, Cout_p) operand: row 0 = scale, row 1 = bias.
    scale = (gamma / jnp.sqrt(running_var + eps)).astype(jnp.float32)
    bias = (beta + (b - running_mean) * scale).astype(jnp.float32)
    sb = jnp.pad(jnp.stack([scale, bias]), ((0, 0), (0, Cout_p - Cout)))

    # ---- kernel --------------------------------------------------------------
    def kernel(x_ref, w_ref, sb_ref, o_ref):
        # x_ref : (Ho+1, 2, Wo+1, 2, Cin)  bf16  space-to-depth padded image
        # w_ref : (3, 3, Cin, TN)          bf16  conv weights
        # sb_ref: (2, TN)                  f32   BN scale / bias
        # o_ref : (1, M_img, TN)           bf16
        acc = jnp.zeros((M_img, TN), jnp.float32)
        for kh in range(3):
            dh, sh = kh // 2, kh % 2
            for kw in range(3):
                dw, sw = kw // 2, kw % 2
                # tap (kh, kw): padded rows 2r+kh, cols 2c+kw  (all in VMEM)
                xt = x_ref[dh:dh + Ho, sh, dw:dw + Wo, sw, :]     # (Ho, Wo, Cin)
                xt = xt.reshape(M_img, Cin)
                acc = acc + jnp.dot(xt, w_ref[kh, kw],
                                    preferred_element_type=jnp.float32)
        sb_v = sb_ref[...]
        y = acc * sb_v[0:1, :] + sb_v[1:2, :]          # fused BatchNorm (eval)
        o_ref[0] = jnp.maximum(y, 0.0).astype(o_ref.dtype)        # ReLU

    bytes_accessed = (xs.size * 2                              # input (once/img)
                      + w_t.size * 2 * (1 if J == 1 else N)    # weight refetch
                      + sb.size * 4
                      + N * M_img * Cout_p * 2)                # bf16 output
    cost = pl.CostEstimate(flops=2 * N * M_img * 9 * Cin * Cout_p,
                           transcendentals=0,
                           bytes_accessed=int(bytes_accessed))

    out = pl.pallas_call(
        kernel,
        out_shape=jax.ShapeDtypeStruct((N, M_img, Cout_p), compute_dtype),
        grid=(N, J),
        in_specs=[
            pl.BlockSpec((Ho + 1, 2, Wo + 1, 2, Cin),
                         lambda n, j: (n, 0, 0, 0, 0)),        # per-image block
            pl.BlockSpec((3, 3, Cin, TN), lambda n, j: (0, 0, 0, j)),
            pl.BlockSpec((2, TN), lambda n, j: (0, j)),
        ],
        out_specs=pl.BlockSpec((1, M_img, TN), lambda n, j: (n, 0, j)),
        compiler_params=pltpu.CompilerParams(
            dimension_semantics=("parallel", "parallel"),
            vmem_limit_bytes=int(vmem_limit)),
        cost_estimate=cost,
    )(xs, w_t, sb)

    # Layout epilogue (bf16): drop channel padding, restore NCHW contract.
    # TODO(synk): keep NHWC here when the consumer accepts it; this transpose
    # is a pure-layout extra pass over the (bf16) output.
    out = out[:, :, :Cout].reshape(N, Ho, Wo, Cout)
    # TODO(synk): training-mode nn.Dropout RNG cannot be matched to torch;
    # eval-mode dropout is the identity, so nothing to do here.
    return jnp.transpose(out, (0, 3, 1, 2))                     # back to NCHW


def reference(x, w, b, gamma, beta, rm, rv, eps=1e-5):
    """Pure-JAX f32 reference of the same eval-mode forward."""
    y = jax.lax.conv_general_dilated(
        x, w, window_strides=(2, 2), padding=((1, 1), (1, 1)),
        dimension_numbers=("NCHW", "OIHW", "NCHW"))
    y = y + b.reshape(1, -1, 1, 1)
    y = (y - rm.reshape(1, -1, 1, 1)) / jnp.sqrt(rv.reshape(1, -1, 1, 1) + eps)
    y = y * gamma.reshape(1, -1, 1, 1) + beta.reshape(1, -1, 1, 1)
    return jnp.maximum(y, 0.0)


if __name__ == "__main__":
    key = jax.random.PRNGKey(0)
    k_x, k_w, k_b, k_g, k_be, k_rm, k_rv = jax.random.split(key, 7)

    N, Cin, Cout, H, W = 2, 4, 8, 16, 16
    x = jax.random.normal(k_x, (N, Cin, H, W), jnp.float32)

    # deterministic synthetic parameters (shapes per nn.Conv2d / nn.BatchNorm2d)
    w = jax.random.normal(k_w, (Cout, Cin, 3, 3), jnp.float32) * 0.1
    b = jax.random.normal(k_b, (Cout,), jnp.float32) * 0.1
    gamma = 1.0 + 0.1 * jax.random.normal(k_g, (Cout,), jnp.float32)
    beta = 0.1 * jax.random.normal(k_be, (Cout,), jnp.float32)
    running_mean = 0.1 * jax.random.normal(k_rm, (Cout,), jnp.float32)
    running_var = 1.0 + 0.1 * jnp.abs(jax.random.normal(k_rv, (Cout,),
                                                        jnp.float32))

    out = downsample_block(x, w, b, gamma, beta, running_mean, running_var)
    out = jax.block_until_ready(out)

    ref = reference(x, w, b, gamma, beta, running_mean, running_var)
    assert out.shape == (N, Cout, H // 2, W // 2), out.shape
    # bf16 MXU inputs and bf16 output (f32 accumulation / epilogue) ->
    # tolerance sized for bf16 rounding.
    assert jnp.allclose(out.astype(jnp.float32), ref, atol=3e-2, rtol=3e-2), \
        "mismatch vs reference"

    print("KERNEL_OK")
</pallas_src>

<mosaic_0001>
module attributes {stable_mosaic.version = 11 : i64} {
  func.func @kernel(%arg0: i32, %arg1: i32, %arg2: memref<9x2x9x2x4xbf16, #tpu.memory_space<vmem>>, %arg3: memref<3x3x4x128xbf16, #tpu.memory_space<vmem>>, %arg4: memref<2x128xf32, #tpu.memory_space<vmem>>, %arg5: memref<1x64x128xbf16, #tpu.memory_space<vmem>>) attributes {dimension_semantics = [#tpu.dimension_semantics<parallel>, #tpu.dimension_semantics<parallel>], iteration_bounds = array<i64: 2, 1>, scalar_prefetch = 0 : i64, scratch_operands = 0 : i64, tpu.core_type = #tpu.core_type<tc>, window_params = [{transform_indices = @transform_0, window_bounds = array<i64: 9, 2, 9, 2, 4>}, {transform_indices = @transform_1, window_bounds = array<i64: 3, 3, 4, 128>}, {transform_indices = @transform_2, window_bounds = array<i64: 2, 128>}, {transform_indices = @transform_3, window_bounds = array<i64: 1, 64, 128>}]} {
    %cst = arith.constant 0.000000e+00 : f32
    %0 = vector.broadcast %cst : f32 to vector<64x128xf32>
    %c0 = arith.constant 0 : index
    %c0_0 = arith.constant 0 : index
    %c0_1 = arith.constant 0 : index
    %c0_2 = arith.constant 0 : index
    %c0_3 = arith.constant 0 : index
    %1 = vector.load %arg2[%c0, %c0_0, %c0_1, %c0_2, %c0_3] : memref<9x2x9x2x4xbf16, #tpu.memory_space<vmem>>, vector<8x1x8x1x4xbf16>
    %2 = vector.shape_cast %1 : vector<8x1x8x1x4xbf16> to vector<8x8x4xbf16>
    %3 = vector.shape_cast %2 : vector<8x8x4xbf16> to vector<64x4xbf16>
    %c0_4 = arith.constant 0 : index
    %c0_5 = arith.constant 0 : index
    %c0_6 = arith.constant 0 : index
    %c0_7 = arith.constant 0 : index
    %4 = vector.load %arg3[%c0_4, %c0_5, %c0_6, %c0_7] : memref<3x3x4x128xbf16, #tpu.memory_space<vmem>>, vector<1x1x4x128xbf16>
    %5 = vector.shape_cast %4 : vector<1x1x4x128xbf16> to vector<4x128xbf16>
    %cst_8 = arith.constant dense<0.000000e+00> : vector<64x128xf32>
    %6 = tpu.matmul %3, %5, %cst_8 {dimension_numbers = #tpu.dot_dimension_numbers<[1], [0], [0], [1], [0, 0, 1, 1], [], []>} : vector<64x4xbf16>, vector<4x128xbf16>, vector<64x128xf32> -> vector<64x128xf32>
    %7 = arith.addf %0, %6 : vector<64x128xf32>
    %c0_9 = arith.constant 0 : index
    %c0_10 = arith.constant 0 : index
    %c0_11 = arith.constant 0 : index
    %c1 = arith.constant 1 : index
    %c0_12 = arith.constant 0 : index
    %8 = vector.load %arg2[%c0_9, %c0_10, %c0_11, %c1, %c0_12] : memref<9x2x9x2x4xbf16, #tpu.memory_space<vmem>>, vector<8x1x8x1x4xbf16>
    %9 = vector.shape_cast %8 : vector<8x1x8x1x4xbf16> to vector<8x8x4xbf16>
    %10 = vector.shape_cast %9 : vector<8x8x4xbf16> to vector<64x4xbf16>
    %c0_13 = arith.constant 0 : index
    %c1_14 = arith.constant 1 : index
    %c0_15 = arith.constant 0 : index
    %c0_16 = arith.constant 0 : index
    %11 = vector.load %arg3[%c0_13, %c1_14, %c0_15, %c0_16] : memref<3x3x4x128xbf16, #tpu.memory_space<vmem>>, vector<1x1x4x128xbf16>
    %12 = vector.shape_cast %11 : vector<1x1x4x128xbf16> to vector<4x128xbf16>
    %cst_17 = arith.constant dense<0.000000e+00> : vector<64x128xf32>
    %13 = tpu.matmul %10, %12, %cst_17 {dimension_numbers = #tpu.dot_dimension_numbers<[1], [0], [0], [1], [0, 0, 1, 1], [], []>} : vector<64x4xbf16>, vector<4x128xbf16>, vector<64x128xf32> -> vector<64x128xf32>
    %14 = arith.addf %7, %13 : vector<64x128xf32>
    %c0_18 = arith.constant 0 : index
    %c0_19 = arith.constant 0 : index
    %c1_20 = arith.constant 1 : index
    %c0_21 = arith.constant 0 : index
    %c0_22 = arith.constant 0 : index
    %15 = vector.load %arg2[%c0_18, %c0_19, %c1_20, %c0_21, %c0_22] : memref<9x2x9x2x4xbf16, #tpu.memory_space<vmem>>, vector<8x1x8x1x4xbf16>
    %16 = vector.shape_cast %15 : vector<8x1x8x1x4xbf16> to vector<8x8x4xbf16>
    %17 = vector.shape_cast %16 : vector<8x8x4xbf16> to vector<64x4xbf16>
    %c0_23 = arith.constant 0 : index
    %c2 = arith.constant 2 : index
    %c0_24 = arith.constant 0 : index
    %c0_25 = arith.constant 0 : index
    %18 = vector.load %arg3[%c0_23, %c2, %c0_24, %c0_25] : memref<3x3x4x128xbf16, #tpu.memory_space<vmem>>, vector<1x1x4x128xbf16>
    %19 = vector.shape_cast %18 : vector<1x1x4x128xbf16> to vector<4x128xbf16>
    %cst_26 = arith.constant dense<0.000000e+00> : vector<64x128xf32>
    %20 = tpu.matmul %17, %19, %cst_26 {dimension_numbers = #tpu.dot_dimension_numbers<[1], [0], [0], [1], [0, 0, 1, 1], [], []>} : vector<64x4xbf16>, vector<4x128xbf16>, vector<64x128xf32> -> vector<64x128xf32>
    %21 = arith.addf %14, %20 : vector<64x128xf32>
    %c0_27 = arith.constant 0 : index
    %c1_28 = arith.constant 1 : index
    %c0_29 = arith.constant 0 : index
    %c0_30 = arith.constant 0 : index
    %c0_31 = arith.constant 0 : index
    %22 = vector.load %arg2[%c0_27, %c1_28, %c0_29, %c0_30, %c0_31] : memref<9x2x9x2x4xbf16, #tpu.memory_space<vmem>>, vector<8x1x8x1x4xbf16>
    %23 = vector.shape_cast %22 : vector<8x1x8x1x4xbf16> to vector<8x8x4xbf16>
    %24 = vector.shape_cast %23 : vector<8x8x4xbf16> to vector<64x4xbf16>
    %c1_32 = arith.constant 1 : index
    %c0_33 = arith.constant 0 : index
    %c0_34 = arith.constant 0 : index
    %c0_35 = arith.constant 0 : index
    %25 = vector.load %arg3[%c1_32, %c0_33, %c0_34, %c0_35] : memref<3x3x4x128xbf16, #tpu.memory_space<vmem>>, vector<1x1x4x128xbf16>
    %26 = vector.shape_cast %25 : vector<1x1x4x128xbf16> to vector<4x128xbf16>
    %cst_36 = arith.constant dense<0.000000e+00> : vector<64x128xf32>
    %27 = tpu.matmul %24, %26, %cst_36 {dimension_numbers = #tpu.dot_dimension_numbers<[1], [0], [0], [1], [0, 0, 1, 1], [], []>} : vector<64x4xbf16>, vector<4x128xbf16>, vector<64x128xf32> -> vector<64x128xf32>
    %28 = arith.addf %21, %27 : vector<64x128xf32>
    %c0_37 = arith.constant 0 : index
    %c1_38 = arith.constant 1 : index
    %c0_39 = arith.constant 0 : index
    %c1_40 = arith.constant 1 : index
    %c0_41 = arith.constant 0 : index
    %29 = vector.load %arg2[%c0_37, %c1_38, %c0_39, %c1_40, %c0_41] : memref<9x2x9x2x4xbf16, #tpu.memory_space<vmem>>, vector<8x1x8x1x4xbf16>
    %30 = vector.shape_cast %29 : vector<8x1x8x1x4xbf16> to vector<8x8x4xbf16>
    %31 = vector.shape_cast %30 : vector<8x8x4xbf16> to vector<64x4xbf16>
    %c1_42 = arith.constant 1 : index
    %c1_43 = arith.constant 1 : index
    %c0_44 = arith.constant 0 : index
    %c0_45 = arith.constant 0 : index
    %32 = vector.load %arg3[%c1_42, %c1_43, %c0_44, %c0_45] : memref<3x3x4x128xbf16, #tpu.memory_space<vmem>>, vector<1x1x4x128xbf16>
    %33 = vector.shape_cast %32 : vector<1x1x4x128xbf16> to vector<4x128xbf16>
    %cst_46 = arith.constant dense<0.000000e+00> : vector<64x128xf32>
    %34 = tpu.matmul %31, %33, %cst_46 {dimension_numbers = #tpu.dot_dimension_numbers<[1], [0], [0], [1], [0, 0, 1, 1], [], []>} : vector<64x4xbf16>, vector<4x128xbf16>, vector<64x128xf32> -> vector<64x128xf32>
    %35 = arith.addf %28, %34 : vector<64x128xf32>
    %c0_47 = arith.constant 0 : index
    %c1_48 = arith.constant 1 : index
    %c1_49 = arith.constant 1 : index
    %c0_50 = arith.constant 0 : index
    %c0_51 = arith.constant 0 : index
    %36 = vector.load %arg2[%c0_47, %c1_48, %c1_49, %c0_50, %c0_51] : memref<9x2x9x2x4xbf16, #tpu.memory_space<vmem>>, vector<8x1x8x1x4xbf16>
    %37 = vector.shape_cast %36 : vector<8x1x8x1x4xbf16> to vector<8x8x4xbf16>
    %38 = vector.shape_cast %37 : vector<8x8x4xbf16> to vector<64x4xbf16>
    %c1_52 = arith.constant 1 : index
    %c2_53 = arith.constant 2 : index
    %c0_54 = arith.constant 0 : index
    %c0_55 = arith.constant 0 : index
    %39 = vector.load %arg3[%c1_52, %c2_53, %c0_54, %c0_55] : memref<3x3x4x128xbf16, #tpu.memory_space<vmem>>, vector<1x1x4x128xbf16>
    %40 = vector.shape_cast %39 : vector<1x1x4x128xbf16> to vector<4x128xbf16>
    %cst_56 = arith.constant dense<0.000000e+00> : vector<64x128xf32>
    %41 = tpu.matmul %38, %40, %cst_56 {dimension_numbers = #tpu.dot_dimension_numbers<[1], [0], [0], [1], [0, 0, 1, 1], [], []>} : vector<64x4xbf16>, vector<4x128xbf16>, vector<64x128xf32> -> vector<64x128xf32>
    %42 = arith.addf %35, %41 : vector<64x128xf32>
    %c1_57 = arith.constant 1 : index
    %c0_58 = arith.constant 0 : index
    %c0_59 = arith.constant 0 : index
    %c0_60 = arith.constant 0 : index
    %c0_61 = arith.constant 0 : index
    %43 = vector.load %arg2[%c1_57, %c0_58, %c0_59, %c0_60, %c0_61] : memref<9x2x9x2x4xbf16, #tpu.memory_space<vmem>>, vector<8x1x8x1x4xbf16>
    %44 = vector.shape_cast %43 : vector<8x1x8x1x4xbf16> to vector<8x8x4xbf16>
    %45 = vector.shape_cast %44 : vector<8x8x4xbf16> to vector<64x4xbf16>
    %c2_62 = arith.constant 2 : index
    %c0_63 = arith.constant 0 : index
    %c0_64 = arith.constant 0 : index
    %c0_65 = arith.constant 0 : index
    %46 = vector.load %arg3[%c2_62, %c0_63, %c0_64, %c0_65] : memref<3x3x4x128xbf16, #tpu.memory_space<vmem>>, vector<1x1x4x128xbf16>
    %47 = vector.shape_cast %46 : vector<1x1x4x128xbf16> to vector<4x128xbf16>
    %cst_66 = arith.constant dense<0.000000e+00> : vector<64x128xf32>
    %48 = tpu.matmul %45, %47, %cst_66 {dimension_numbers = #tpu.dot_dimension_numbers<[1], [0], [0], [1], [0, 0, 1, 1], [], []>} : vector<64x4xbf16>, vector<4x128xbf16>, vector<64x128xf32> -> vector<64x128xf32>
    %49 = arith.addf %42, %48 : vector<64x128xf32>
    %c1_67 = arith.constant 1 : index
    %c0_68 = arith.constant 0 : index
    %c0_69 = arith.constant 0 : index
    %c1_70 = arith.constant 1 : index
    %c0_71 = arith.constant 0 : index
    %50 = vector.load %arg2[%c1_67, %c0_68, %c0_69, %c1_70, %c0_71] : memref<9x2x9x2x4xbf16, #tpu.memory_space<vmem>>, vector<8x1x8x1x4xbf16>
    %51 = vector.shape_cast %50 : vector<8x1x8x1x4xbf16> to vector<8x8x4xbf16>
    %52 = vector.shape_cast %51 : vector<8x8x4xbf16> to vector<64x4xbf16>
    %c2_72 = arith.constant 2 : index
    %c1_73 = arith.constant 1 : index
    %c0_74 = arith.constant 0 : index
    %c0_75 = arith.constant 0 : index
    %53 = vector.load %arg3[%c2_72, %c1_73, %c0_74, %c0_75] : memref<3x3x4x128xbf16, #tpu.memory_space<vmem>>, vector<1x1x4x128xbf16>
    %54 = vector.shape_cast %53 : vector<1x1x4x128xbf16> to vector<4x128xbf16>
    %cst_76 = arith.constant dense<0.000000e+00> : vector<64x128xf32>
    %55 = tpu.matmul %52, %54, %cst_76 {dimension_numbers = #tpu.dot_dimension_numbers<[1], [0], [0], [1], [0, 0, 1, 1], [], []>} : vector<64x4xbf16>, vector<4x128xbf16>, vector<64x128xf32> -> vector<64x128xf32>
    %56 = arith.addf %49, %55 : vector<64x128xf32>
    %c1_77 = arith.constant 1 : index
    %c0_78 = arith.constant 0 : index
    %c1_79 = arith.constant 1 : index
    %c0_80 = arith.constant 0 : index
    %c0_81 = arith.constant 0 : index
    %57 = vector.load %arg2[%c1_77, %c0_78, %c1_79, %c0_80, %c0_81] : memref<9x2x9x2x4xbf16, #tpu.memory_space<vmem>>, vector<8x1x8x1x4xbf16>
    %58 = vector.shape_cast %57 : vector<8x1x8x1x4xbf16> to vector<8x8x4xbf16>
    %59 = vector.shape_cast %58 : vector<8x8x4xbf16> to vector<64x4xbf16>
    %c2_82 = arith.constant 2 : index
    %c2_83 = arith.constant 2 : index
    %c0_84 = arith.constant 0 : index
    %c0_85 = arith.constant 0 : index
    %60 = vector.load %arg3[%c2_82, %c2_83, %c0_84, %c0_85] : memref<3x3x4x128xbf16, #tpu.memory_space<vmem>>, vector<1x1x4x128xbf16>
    %61 = vector.shape_cast %60 : vector<1x1x4x128xbf16> to vector<4x128xbf16>
    %cst_86 = arith.constant dense<0.000000e+00> : vector<64x128xf32>
    %62 = tpu.matmul %59, %61, %cst_86 {dimension_numbers = #tpu.dot_dimension_numbers<[1], [0], [0], [1], [0, 0, 1, 1], [], []>} : vector<64x4xbf16>, vector<4x128xbf16>, vector<64x128xf32> -> vector<64x128xf32>
    %63 = arith.addf %56, %62 : vector<64x128xf32>
    %c0_87 = arith.constant 0 : index
    %c0_88 = arith.constant 0 : index
    %64 = vector.load %arg4[%c0_87, %c0_88] : memref<2x128xf32, #tpu.memory_space<vmem>>, vector<2x128xf32>
    %65 = vector.extract_strided_slice %64 {offsets = [0, 0], sizes = [1, 128], strides = [1, 1]} : vector<2x128xf32> to vector<1x128xf32>
    %66 = vector.broadcast %65 : vector<1x128xf32> to vector<64x128xf32>
    %67 = arith.mulf %63, %66 : vector<64x128xf32>
    %68 = vector.extract_strided_slice %64 {offsets = [1, 0], sizes = [1, 128], strides = [1, 1]} : vector<2x128xf32> to vector<1x128xf32>
    %69 = vector.broadcast %68 : vector<1x128xf32> to vector<64x128xf32>
    %70 = arith.addf %67, %69 : vector<64x128xf32>
    %cst_89 = arith.constant 0.000000e+00 : f32
    %71 = vector.broadcast %cst_89 : f32 to vector<64x128xf32>
    %72 = arith.maximumf %70, %71 : vector<64x128xf32>
    %73 = arith.truncf %72 : vector<64x128xf32> to vector<64x128xbf16>
    %c0_90 = arith.constant 0 : index
    %c0_91 = arith.constant 0 : index
    %c0_92 = arith.constant 0 : index
    %74 = vector.load %arg5[%c0_90, %c0_91, %c0_92] : memref<1x64x128xbf16, #tpu.memory_space<vmem>>, vector<1x64x128xbf16>
    %75 = vector.shape_cast %74 : vector<1x64x128xbf16> to vector<64x128xbf16>
    %76 = vector.shape_cast %73 : vector<64x128xbf16> to vector<1x64x128xbf16>
    tpu.vector_store %arg5[%c0_90, %c0_91, %c0_92], %76 {strides = array<i32>} : memref<1x64x128xbf16, #tpu.memory_space<vmem>>, vector<1x64x128xbf16>,
    return
  }
  func.func @transform_0(%arg0: i32, %arg1: i32) -> (i32, i32, i32, i32, i32) {
    %c0_i32 = arith.constant 0 : i32
    %c0_i32_0 = arith.constant 0 : i32
    %c0_i32_1 = arith.constant 0 : i32
    %c0_i32_2 = arith.constant 0 : i32
    %c0_i32_3 = arith.constant 0 : i32
    return %arg0, %c0_i32, %c0_i32_0, %c0_i32_1, %c0_i32_2 : i32, i32, i32, i32, i32
  }
  func.func @transform_1(%arg0: i32, %arg1: i32) -> (i32, i32, i32, i32) {
    %c0_i32 = arith.constant 0 : i32
    %c0_i32_0 = arith.constant 0 : i32
    %c0_i32_1 = arith.constant 0 : i32
    %c0_i32_2 = arith.constant 0 : i32
    return %c0_i32, %c0_i32_0, %c0_i32_1, %arg1 : i32, i32, i32, i32
  }
  func.func @transform_2(%arg0: i32, %arg1: i32) -> (i32, i32) {
    %c0_i32 = arith.constant 0 : i32
    %c0_i32_0 = arith.constant 0 : i32
    return %c0_i32, %arg1 : i32, i32
  }
  func.func @transform_3(%arg0: i32, %arg1: i32) -> (i32, i32, i32) {
    %c0_i32 = arith.constant 0 : i32
    %c0_i32_0 = arith.constant 0 : i32
    return %arg0, %c0_i32, %arg1 : i32, i32, i32
  }
}

</mosaic_0001>

<llo_original>
// kernel: tpu_custom_call.1
$region0: #{tpu_custom_call.1}
  #allocation0 [shape = 'u32[]', space=smem, size = 0x4, offset = 0x4, fixed_abs, tag = 'smem constant byte address 0x4 - core index']
  #allocation1 [shape = 'u32[144,128]{1,0:T(1,128)}', space=vmem, size = 0x12000, scoped, tag = 'internal scratch']
  %s0 = inlined_call_operand.vmem [shape: bf16[18,2,9,2,4], index: 0, kind: input, shape index: {}]
  %s1 = inlined_call_operand.vmem [shape: bf16[3,3,4,128], index: 1, kind: input, shape index: {}]
  %s2 = inlined_call_operand.vmem [shape: f32[2,128], index: 2, kind: input, shape index: {}]
  %s3 = inlined_call_operand.hbm [shape: bf16[2,64,128], index: 3, kind: output, shape index: {}]
  %s4 = sld [smem:[#allocation0]]
  $region45: #{tpu_custom_call.1} parent=0
    _
  %s6 = ssub.s32 1, %s4
  %s7 = scalar_select 0, %s6, %s4
  $region1: #{tpu_custom_call.1} parent=0
    #allocation2 [shape = 'u8[32768]{0}', space=vmem, size = 0x8000, scoped, tag = 'output window, operand 0']
    #allocation3 [shape = 's32[2]{0}', space=sflag, size = 0x8, scoped, tag = 'scoped memory for tpu_custom_call.1']
    %8 = vsyncpa [#allocation3], 0
    %s9 = scalar_lea.sflag [#allocation3], 1
    %10 = vsyncpa %s9, 0
    loop: start=0, step=1, limit=4
    $region2: #{tpu_custom_call.1} parent=1 // loop_pre_header
      _
    $region3: #{tpu_custom_call.1} parent=1 // loop_header
      %s12 = sphi 0, %s16
      %p13 = scmp.ge.s32.totalorder %s12, 4
      %s19 = sphi 0, %s31
      %s20 = sphi 0, %s27
      %s21 = sphi 0, %s19
      %s22 = sphi 0, %s20
      %s23 = sphi 0, %s21
      %s24 = sphi 0, %s22
      %s34 = sphi 0, %s36
      %s37 = sphi 0, %s34
      %s38 = sphi 0, %s37
      %s54 = sphi 0, %s38
      %s60 = sphi 0, %s62
      %s63 = sphi 0, %s60
      %s64 = sphi 0, %s63
      %s80 = sphi 0, %s64
      %s86 = sphi 0, %s88
      %s89 = sphi 0, %s86
      %s90 = sphi 0, %s89
      %s106 = sphi 0, %s90
      %s114 = sphi 0, %s116
      %s117 = sphi 0, %s114
      %s118 = sphi 0, %s117
      %s134 = sphi 0, %s118
    $region4: #{tpu_custom_call.1} parent=1 // loop_header_branch
      %15 = sbr.rel (%p13) target = $region8
    $region5: #{tpu_custom_call.1} parent=1 // loop_body
      %s17 = ssub.s32 %s12, 1
      %s18 = ssub.s32 %s12, 2
      %s25 = sadd.s32 1, %s20
      %p26 = scmp.ge.s32.totalorder %s25, 1
      %s27 = scalar_select %p26, 0, %s25
      %s28 = sadd.s32 1, %s19
      %s29 = scalar_select %p26, %s28, %s19
      %p30 = scmp.ge.s32.totalorder %s29, 2
      %s31 = scalar_select %p30, 0, %s29
      %s32 = ssub.s32 %s19, %s31
      %p33 = scmp.eq.s32.totalorder %s32, 0
      %s35 = sadd.s32 %s34, 1
      %s36 = scalar_select %p33, %s34, %s35
      %p39 = pneg %p33
      %p40 = scmp.eq.s32.totalorder %s12, 1
      %p41 = por %p39, %p40
      %p42 = scmp.ne.s32.totalorder %s34, %s37
      %p43 = scmp.eq.s32.totalorder %s12, 0
      %p44 = por %p42, %p43
      %p45 = scmp.ne.s32.totalorder %s34, %s37
      %p46 = scmp.eq.s32.totalorder %s17, 1
      %p47 = por %p45, %p46
      %p48 = scmp.ne.s32.totalorder %s37, %s38
      %p49 = scmp.eq.s32.totalorder %s17, 0
      %p50 = por %p48, %p49
      %p51 = scmp.ne.s32.totalorder %s37, %s38
      %p52 = scmp.eq.s32.totalorder %s18, 1
      %p53 = por %p51, %p52
      %p55 = scmp.ne.s32.totalorder %s38, %s54
      %p56 = scmp.eq.s32.totalorder %s18, 0
      %p57 = por %p55, %p56
      %s58 = ssub.s32 %s20, %s27
      %p59 = scmp.eq.s32.totalorder %s58, 0
      %s61 = sadd.s32 %s60, 1
      %s62 = scalar_select %p59, %s60, %s61
      %p65 = pneg %p59
      %p66 = scmp.eq.s32.totalorder %s12, 1
      %p67 = por %p65, %p66
      %p68 = scmp.ne.s32.totalorder %s60, %s63
      %p69 = scmp.eq.s32.totalorder %s12, 0
      %p70 = por %p68, %p69
      %p71 = scmp.ne.s32.totalorder %s60, %s63
      %p72 = scmp.eq.s32.totalorder %s17, 1
      %p73 = por %p71, %p72
      %p74 = scmp.ne.s32.totalorder %s63, %s64
      %p75 = scmp.eq.s32.totalorder %s17, 0
      %p76 = por %p74, %p75
      %p77 = scmp.ne.s32.totalorder %s63, %s64
      %p78 = scmp.eq.s32.totalorder %s18, 1
      %p79 = por %p77, %p78
      %p81 = scmp.ne.s32.totalorder %s64, %s80
      %p82 = scmp.eq.s32.totalorder %s18, 0
      %p83 = por %p81, %p82
      %s84 = ssub.s32 %s20, %s27
      %p85 = scmp.eq.s32.totalorder %s84, 0
      %s87 = sadd.s32 %s86, 1
      %s88 = scalar_select %p85, %s86, %s87
      %p91 = pneg %p85
      %p92 = scmp.eq.s32.totalorder %s12, 1
      %p93 = por %p91, %p92
      %p94 = scmp.ne.s32.totalorder %s86, %s89
      %p95 = scmp.eq.s32.totalorder %s12, 0
      %p96 = por %p94, %p95
      %p97 = scmp.ne.s32.totalorder %s86, %s89
      %p98 = scmp.eq.s32.totalorder %s17, 1
      %p99 = por %p97, %p98
      %p100 = scmp.ne.s32.totalorder %s89, %s90
      %p101 = scmp.eq.s32.totalorder %s17, 0
      %p102 = por %p100, %p101
      %p103 = scmp.ne.s32.totalorder %s89, %s90
      %p104 = scmp.eq.s32.totalorder %s18, 1
      %p105 = por %p103, %p104
      %p107 = scmp.ne.s32.totalorder %s90, %s106
      %p108 = scmp.eq.s32.totalorder %s18, 0
      %p109 = por %p107, %p108
      %s110 = ssub.s32 %s19, %s31
      %s111 = ssub.s32 %s20, %s27
      %s112 = sor.u32 %s110, %s111
      %p113 = scmp.eq.s32.totalorder %s112, 0
      %s115 = sadd.s32 %s114, 1
      %s116 = scalar_select %p113, %s114, %s115
      %p119 = pneg %p113
      %p120 = scmp.eq.s32.totalorder %s12, 1
      %p121 = por %p119, %p120
      %p122 = scmp.ne.s32.totalorder %s114, %s117
      %p123 = scmp.eq.s32.totalorder %s12, 0
      %p124 = por %p122, %p123
      %p125 = scmp.ne.s32.totalorder %s114, %s117
      %p126 = scmp.eq.s32.totalorder %s17, 1
      %p127 = por %p125, %p126
      %p128 = scmp.ne.s32.totalorder %s117, %s118
      %p129 = scmp.eq.s32.totalorder %s17, 0
      %p130 = por %p128, %p129
      %p131 = scmp.ne.s32.totalorder %s117, %s118
      %p132 = scmp.eq.s32.totalorder %s18, 1
      %p133 = por %p131, %p132
      %p135 = scmp.ne.s32.totalorder %s118, %s134
      %p136 = scmp.eq.s32.totalorder %s18, 0
      %p137 = por %p135, %p136
      %p138 = scmp.le.s32.totalorder 1, %s12
      %p139 = scmp.lt.s32.totalorder %s12, 3
      %p140 = pnand %p138, %p139
      %p141 = pneg %p140
      // Predicated region
      $region9: #{tpu_custom_call.1} parent=5 // pred_check
        _
      $region10: #{tpu_custom_call.1} parent=5 // pred_check_branch
        %143 = sbr.rel (%p140) target = $region12
      $region11: #{tpu_custom_call.1} parent=5 // pred_region
        %s144 = ssub.s32 %s12, 1
        // Predicated region
        $region13: #{tpu_custom_call.1} parent=11 // pred_check
          %p145 = pneg %p76
        $region14: #{tpu_custom_call.1} parent=11 // pred_check_branch
          %147 = sbr.rel (%p145) target = $region16
        $region15: #{tpu_custom_call.1} parent=11 // pred_region
          %p148 = scmp.lt.s32.totalorder %s22, 0
          %s149 = scalar_select %p148, %s22, 0
          %s150 = smul.addr %s149, 2
          %s151 = scalar_lea.vmem %s1, %s150
        $region16: #{tpu_custom_call.1} parent=11 // pred_fallthru
          _
        // Predicated region
        $region17: #{tpu_custom_call.1} parent=11 // pred_check
          %p152 = pneg %p102
        $region18: #{tpu_custom_call.1} parent=11 // pred_check_branch
          %154 = sbr.rel (%p152) target = $region20
        $region19: #{tpu_custom_call.1} parent=11 // pred_region
          %p155 = scmp.lt.s32.totalorder %s22, 0
          %s156 = scalar_select %p155, %s22, 0
          %s157 = smul.addr %s156, 2
          %s158 = scalar_lea.vmem %s2, %s157
        $region20: #{tpu_custom_call.1} parent=11 // pred_fallthru
          _
      $region12: #{tpu_custom_call.1} parent=5 // pred_fallthru
        _
      %p159 = scmp.lt.s32.totalorder %s12, 2
      // Predicated region
      $region21: #{tpu_custom_call.1} parent=5 // pred_check
        %p160 = pneg %p159
      $region22: #{tpu_custom_call.1} parent=5 // pred_check_branch
        %162 = sbr.rel (%p160) target = $region24
      $region23: #{tpu_custom_call.1} parent=5 // pred_region
        // Predicated region
        $region25: #{tpu_custom_call.1} parent=23 // pred_check
          %p163 = pneg %p44
        $region26: #{tpu_custom_call.1} parent=23 // pred_check_branch
          %165 = sbr.rel (%p163) target = $region28
        $region27: #{tpu_custom_call.1} parent=23 // pred_region
          %s166 = smul.u32 9, %s19
          %p167 = scmp.lt.s32.totalorder %s166, 17
          %s168 = scalar_select %p167, %s166, 17
          %s169 = smul.addr %s168, 18
          %s170 = scalar_lea.vmem %s0, %s169
          %s171 = smul.u32 9, %s19
        $region28: #{tpu_custom_call.1} parent=23 // pred_fallthru
          _
      $region24: #{tpu_custom_call.1} parent=5 // pred_fallthru
        _
      %p172 = scmp.le.s32.totalorder 1, %s12
      %p173 = scmp.lt.s32.totalorder %s12, 3
      %p174 = pnand %p172, %p173
      %p175 = pneg %p174
      // Predicated region
      $region29: #{tpu_custom_call.1} parent=5 // pred_check
        _
      $region30: #{tpu_custom_call.1} parent=5 // pred_check_branch
        %177 = sbr.rel (%p174) target = $region32
      $region31: #{tpu_custom_call.1} parent=5 // pred_region
        %s178 = ssub.s32 %s12, 1
        %s179 = smul.u32 9, %s21
        %p180 = scmp.lt.s32.totalorder %s179, 17
        %s181 = scalar_select %p180, %s179, 17
        %s182 = smul.addr %s181, 18
        %s183 = scalar_lea.vmem %s0, %s182
        %p184 = pneg %p50
        %p185 = pneg %p47
        %p186 = scmp.lt.s32.totalorder %s22, 0
        %s187 = scalar_select %p186, %s22, 0
        %s188 = smul.addr %s187, 2
        %s189 = scalar_lea.vmem %s1, %s188
        %p190 = pneg %p76
        %p191 = pneg %p73
        %p192 = scmp.lt.s32.totalorder %s22, 0
        %s193 = scalar_select %p192, %s22, 0
        %s194 = smul.addr %s193, 2
        %s195 = scalar_lea.vmem %s2, %s194
        %p196 = pneg %p102
        %p197 = pneg %p99
        %p198 = pneg %p130
        %p199 = pneg %p127
        %s200 = sand.u32 %s117, 1
        %s201 = scalar_lea.sflag [#allocation3], %s200
        %s202 = sand.u32 %s117, 1
        %s203 = smul.addr %s202, 32
        %s204 = scalar_lea.vmem [#allocation2], %s203
        %s205 = smul.u32 9, %s21
        %p206 = scmp.lt.s32.totalorder %s205, 17
        %s207 = scalar_select %p206, %s205, 17
        %s208 = smul.addr %s207, 18
        %s209 = scalar_lea.vmem %s0, %s208
        %s210 = smul.u32 9, %s21
        %p211 = scmp.lt.s32.totalorder %s22, 0
        %s212 = scalar_select %p211, %s22, 0
        %s213 = smul.addr %s212, 2
        %s214 = scalar_lea.vmem %s1, %s213
        %p215 = scmp.lt.s32.totalorder %s22, 0
        %s216 = scalar_select %p215, %s22, 0
        %s217 = smul.addr %s216, 2
        %s218 = scalar_lea.vmem %s2, %s217
        %v220 = vld [vmem:[%s209] sm:$0x1]
        %v221 = vld [vmem:[%s209 + $0x1] sm:$0x1]
        %v222 = vld [vmem:[%s209 + $0x2] sm:$0x1]
        %v223 = vld [vmem:[%s209 + $0x3] sm:$0x1]
        %v224 = vld [vmem:[%s209 + $0x4] sm:$0x1]
        %v225 = vld [vmem:[%s209 + $0x5] sm:$0x1]
        %v226 = vld [vmem:[%s209 + $0x6] sm:$0x1]
        %v227 = vld [vmem:[%s209 + $0x7] sm:$0x1]
        %v228 = vld [vmem:[%s209 + $0x12] sm:$0x1]
        %v229 = vld [vmem:[%s209 + $0x13] sm:$0x1]
        %v230 = vld [vmem:[%s209 + $0x14] sm:$0x1]
        %v231 = vld [vmem:[%s209 + $0x15] sm:$0x1]
        %v232 = vld [vmem:[%s209 + $0x16] sm:$0x1]
        %v233 = vld [vmem:[%s209 + $0x17] sm:$0x1]
        %v234 = vld [vmem:[%s209 + $0x18] sm:$0x1]
        %v235 = vld [vmem:[%s209 + $0x19] sm:$0x1]
        %v236 = vld [vmem:[%s209 + $0x24] sm:$0x1]
        %v237 = vld [vmem:[%s209 + $0x25] sm:$0x1]
        %v238 = vld [vmem:[%s209 + $0x26] sm:$0x1]
        %v239 = vld [vmem:[%s209 + $0x27] sm:$0x1]
        %v240 = vld [vmem:[%s209 + $0x28] sm:$0x1]
        %v241 = vld [vmem:[%s209 + $0x29] sm:$0x1]
        %v242 = vld [vmem:[%s209 + $0x2a] sm:$0x1]
        %v243 = vld [vmem:[%s209 + $0x2b] sm:$0x1]
        %v244 = vld [vmem:[%s209 + $0x36] sm:$0x1]
        %v245 = vld [vmem:[%s209 + $0x37] sm:$0x1]
        %v246 = vld [vmem:[%s209 + $0x38] sm:$0x1]
        %v247 = vld [vmem:[%s209 + $0x39] sm:$0x1]
        %v248 = vld [vmem:[%s209 + $0x3a] sm:$0x1]
        %v249 = vld [vmem:[%s209 + $0x3b] sm:$0x1]
        %v250 = vld [vmem:[%s209 + $0x3c] sm:$0x1]
        %v251 = vld [vmem:[%s209 + $0x3d] sm:$0x1]
        %v252 = vld [vmem:[%s209 + $0x48] sm:$0x1]
        %v253 = vld [vmem:[%s209 + $0x49] sm:$0x1]
        %v254 = vld [vmem:[%s209 + $0x4a] sm:$0x1]
        %v255 = vld [vmem:[%s209 + $0x4b] sm:$0x1]
        %v256 = vld [vmem:[%s209 + $0x4c] sm:$0x1]
        %v257 = vld [vmem:[%s209 + $0x4d] sm:$0x1]
        %v258 = vld [vmem:[%s209 + $0x4e] sm:$0x1]
        %v259 = vld [vmem:[%s209 + $0x4f] sm:$0x1]
        %v260 = vld [vmem:[%s209 + $0x5a] sm:$0x1]
        %v261 = vld [vmem:[%s209 + $0x5b] sm:$0x1]
        %v262 = vld [vmem:[%s209 + $0x5c] sm:$0x1]
        %v263 = vld [vmem:[%s209 + $0x5d] sm:$0x1]
        %v264 = vld [vmem:[%s209 + $0x5e] sm:$0x1]
        %v265 = vld [vmem:[%s209 + $0x5f] sm:$0x1]
        %v266 = vld [vmem:[%s209 + $0x60] sm:$0x1]
        %v267 = vld [vmem:[%s209 + $0x61] sm:$0x1]
        %v268 = vld [vmem:[%s209 + $0x6c] sm:$0x1]
        %v269 = vld [vmem:[%s209 + $0x6d] sm:$0x1]
        %v270 = vld [vmem:[%s209 + $0x6e] sm:$0x1]
        %v271 = vld [vmem:[%s209 + $0x6f] sm:$0x1]
        %v272 = vld [vmem:[%s209 + $0x70] sm:$0x1]
        %v273 = vld [vmem:[%s209 + $0x71] sm:$0x1]
        %v274 = vld [vmem:[%s209 + $0x72] sm:$0x1]
        %v275 = vld [vmem:[%s209 + $0x73] sm:$0x1]
        %v276 = vld [vmem:[%s209 + $0x7e] sm:$0x1]
        %v277 = vld [vmem:[%s209 + $0x7f] sm:$0x1]
        %v278 = vld [vmem:[%s209 + $0x80] sm:$0x1]
        %v279 = vld [vmem:[%s209 + $0x81] sm:$0x1]
        %v280 = vld [vmem:[%s209 + $0x82] sm:$0x1]
        %v281 = vld [vmem:[%s209 + $0x83] sm:$0x1]
        %v282 = vld [vmem:[%s209 + $0x84] sm:$0x1]
        %v283 = vld [vmem:[%s209 + $0x85] sm:$0x1]
        %v284 = vld [vmem:[%s214] sm:$0x3]
        %s285 = scalar_lea.vmem %s214, 2
        %v286 = vld [vmem:[%s285] sm:$0x3]
        %v352 = vunpack.c.l.s4 1966171168
        %v353 = vunpack.c.0.s8 %v352
        %v354 = vlaneseq
        %v355 = vshrl.u32 %v354, 7
        %v356 = vsub.s32 %v353, %v355
        %v357 = vrot.slane %v220, %v356
        %v359 = vunpack.c.l.s4 1966171168
        %v360 = vunpack.c.0.s8 %v359
        %v361 = vlaneseq
        %v362 = vshrl.u32 %v361, 7
        %v363 = vsub.s32 %v360, %v362
        %v364 = vrot.slane %v357, %v363
        %v366 = vunpack.c.l.s4 1966171168
        %v367 = vunpack.c.0.s8 %v366
        %v368 = vlaneseq
        %v369 = vshrl.u32 %v368, 7
        %v370 = vsub.s32 %v367, %v369
        %v371 = vrot.slane %v221, %v370
        %v373 = vunpack.c.l.s4 1966171168
        %v374 = vunpack.c.0.s8 %v373
        %v375 = vlaneseq
        %v376 = vshrl.u32 %v375, 7
        %v377 = vsub.s32 %v374, %v376
        %v378 = vrot.slane %v371, %v377
        %v380 = vunpack.c.l.s4 1966171168
        %v381 = vunpack.c.0.s8 %v380
        %v382 = vlaneseq
        %v383 = vshrl.u32 %v382, 7
        %v384 = vsub.s32 %v381, %v383
        %v385 = vrot.slane %v222, %v384
        %v387 = vunpack.c.l.s4 1966171168
        %v388 = vunpack.c.0.s8 %v387
        %v389 = vlaneseq
        %v390 = vshrl.u32 %v389, 7
        %v391 = vsub.s32 %v388, %v390
        %v392 = vrot.slane %v385, %v391
        %v394 = vunpack.c.l.s4 1966171168
        %v395 = vunpack.c.0.s8 %v394
        %v396 = vlaneseq
        %v397 = vshrl.u32 %v396, 7
        %v398 = vsub.s32 %v395, %v397
        %v399 = vrot.slane %v223, %v398
        %v401 = vunpack.c.l.s4 1966171168
        %v402 = vunpack.c.0.s8 %v401
        %v403 = vlaneseq
        %v404 = vshrl.u32 %v403, 7
        %v405 = vsub.s32 %v402, %v404
        %v406 = vrot.slane %v399, %v405
        %v408 = vunpack.c.l.s4 1966171168
        %v409 = vunpack.c.0.s8 %v408
        %v410 = vlaneseq
        %v411 = vshrl.u32 %v410, 7
        %v412 = vsub.s32 %v409, %v411
        %v413 = vrot.slane %v224, %v412
        %v415 = vunpack.c.l.s4 1966171168
        %v416 = vunpack.c.0.s8 %v415
        %v417 = vlaneseq
        %v418 = vshrl.u32 %v417, 7
        %v419 = vsub.s32 %v416, %v418
        %v420 = vrot.slane %v413, %v419
        %v422 = vunpack.c.l.s4 1966171168
        %v423 = vunpack.c.0.s8 %v422
        %v424 = vlaneseq
        %v425 = vshrl.u32 %v424, 7
        %v426 = vsub.s32 %v423, %v425
        %v427 = vrot.slane %v225, %v426
        %v429 = vunpack.c.l.s4 1966171168
        %v430 = vunpack.c.0.s8 %v429
        %v431 = vlaneseq
        %v432 = vshrl.u32 %v431, 7
        %v433 = vsub.s32 %v430, %v432
        %v434 = vrot.slane %v427, %v433
        %v436 = vunpack.c.l.s4 1966171168
        %v437 = vunpack.c.0.s8 %v436
        %v438 = vlaneseq
        %v439 = vshrl.u32 %v438, 7
        %v440 = vsub.s32 %v437, %v439
        %v441 = vrot.slane %v226, %v440
        %v443 = vunpack.c.l.s4 1966171168
        %v444 = vunpack.c.0.s8 %v443
        %v445 = vlaneseq
        %v446 = vshrl.u32 %v445, 7
        %v447 = vsub.s32 %v444, %v446
        %v448 = vrot.slane %v441, %v447
        %v450 = vunpack.c.l.s4 1966171168
        %v451 = vunpack.c.0.s8 %v450
        %v452 = vlaneseq
        %v453 = vshrl.u32 %v452, 7
        %v454 = vsub.s32 %v451, %v453
        %v455 = vrot.slane %v227, %v454
        %v457 = vunpack.c.l.s4 1966171168
        %v458 = vunpack.c.0.s8 %v457
        %v459 = vlaneseq
        %v460 = vshrl.u32 %v459, 7
        %v461 = vsub.s32 %v458, %v460
        %v462 = vrot.slane %v455, %v461
        %v464 = vunpack.c.l.s4 1966171168
        %v465 = vunpack.c.0.s8 %v464
        %v466 = vlaneseq
        %v467 = vshrl.u32 %v466, 7
        %v468 = vsub.s32 %v465, %v467
        %v469 = vrot.slane %v228, %v468
        %v471 = vunpack.c.l.s4 1966171168
        %v472 = vunpack.c.0.s8 %v471
        %v473 = vlaneseq
        %v474 = vshrl.u32 %v473, 7
        %v475 = vsub.s32 %v472, %v474
        %v476 = vrot.slane %v469, %v475
        %v478 = vunpack.c.l.s4 1966171168
        %v479 = vunpack.c.0.s8 %v478
        %v480 = vlaneseq
        %v481 = vshrl.u32 %v480, 7
        %v482 = vsub.s32 %v479, %v481
        %v483 = vrot.slane %v229, %v482
        %v485 = vunpack.c.l.s4 1966171168
        %v486 = vunpack.c.0.s8 %v485
        %v487 = vlaneseq
        %v488 = vshrl.u32 %v487, 7
        %v489 = vsub.s32 %v486, %v488
        %v490 = vrot.slane %v483, %v489
        %v492 = vunpack.c.l.s4 1966171168
        %v493 = vunpack.c.0.s8 %v492
        %v494 = vlaneseq
        %v495 = vshrl.u32 %v494, 7
        %v496 = vsub.s32 %v493, %v495
        %v497 = vrot.slane %v230, %v496
        %v499 = vunpack.c.l.s4 1966171168
        %v500 = vunpack.c.0.s8 %v499
        %v501 = vlaneseq
        %v502 = vshrl.u32 %v501, 7
        %v503 = vsub.s32 %v500, %v502
        %v504 = vrot.slane %v497, %v503
        %v506 = vunpack.c.l.s4 1966171168
        %v507 = vunpack.c.0.s8 %v506
        %v508 = vlaneseq
        %v509 = vshrl.u32 %v508, 7
        %v510 = vsub.s32 %v507, %v509
        %v511 = vrot.slane %v231, %v510
        %v513 = vunpack.c.l.s4 1966171168
        %v514 = vunpack.c.0.s8 %v513
        %v515 = vlaneseq
        %v516 = vshrl.u32 %v515, 7
        %v517 = vsub.s32 %v514, %v516
        %v518 = vrot.slane %v511, %v517
        %v520 = vunpack.c.l.s4 1966171168
        %v521 = vunpack.c.0.s8 %v520
        %v522 = vlaneseq
        %v523 = vshrl.u32 %v522, 7
        %v524 = vsub.s32 %v521, %v523
        %v525 = vrot.slane %v232, %v524
        %v527 = vunpack.c.l.s4 1966171168
        %v528 = vunpack.c.0.s8 %v527
        %v529 = vlaneseq
        %v530 = vshrl.u32 %v529, 7
        %v531 = vsub.s32 %v528, %v530
        %v532 = vrot.slane %v525, %v531
        %v534 = vunpack.c.l.s4 1966171168
        %v535 = vunpack.c.0.s8 %v534
        %v536 = vlaneseq
        %v537 = vshrl.u32 %v536, 7
        %v538 = vsub.s32 %v535, %v537
        %v539 = vrot.slane %v233, %v538
        %v541 = vunpack.c.l.s4 1966171168
        %v542 = vunpack.c.0.s8 %v541
        %v543 = vlaneseq
        %v544 = vshrl.u32 %v543, 7
        %v545 = vsub.s32 %v542, %v544
        %v546 = vrot.slane %v539, %v545
        %v548 = vunpack.c.l.s4 1966171168
        %v549 = vunpack.c.0.s8 %v548
        %v550 = vlaneseq
        %v551 = vshrl.u32 %v550, 7
        %v552 = vsub.s32 %v549, %v551
        %v553 = vrot.slane %v234, %v552
        %v555 = vunpack.c.l.s4 1966171168
        %v556 = vunpack.c.0.s8 %v555
        %v557 = vlaneseq
        %v558 = vshrl.u32 %v557, 7
        %v559 = vsub.s32 %v556, %v558
        %v560 = vrot.slane %v553, %v559
        %v562 = vunpack.c.l.s4 1966171168
        %v563 = vunpack.c.0.s8 %v562
        %v564 = vlaneseq
        %v565 = vshrl.u32 %v564, 7
        %v566 = vsub.s32 %v563, %v565
        %v567 = vrot.slane %v235, %v566
        %v569 = vunpack.c.l.s4 1966171168
        %v570 = vunpack.c.0.s8 %v569
        %v571 = vlaneseq
        %v572 = vshrl.u32 %v571, 7
        %v573 = vsub.s32 %v570, %v572
        %v574 = vrot.slane %v567, %v573
        %v576 = vunpack.c.l.s4 1966171168
        %v577 = vunpack.c.0.s8 %v576
        %v578 = vlaneseq
        %v579 = vshrl.u32 %v578, 7
        %v580 = vsub.s32 %v577, %v579
        %v581 = vrot.slane %v236, %v580
        %v583 = vunpack.c.l.s4 1966171168
        %v584 = vunpack.c.0.s8 %v583
        %v585 = vlaneseq
        %v586 = vshrl.u32 %v585, 7
        %v587 = vsub.s32 %v584, %v586
        %v588 = vrot.slane %v581, %v587
        %v590 = vunpack.c.l.s4 1966171168
        %v591 = vunpack.c.0.s8 %v590
        %v592 = vlaneseq
        %v593 = vshrl.u32 %v592, 7
        %v594 = vsub.s32 %v591, %v593
        %v595 = vrot.slane %v237, %v594
        %v597 = vunpack.c.l.s4 1966171168
        %v598 = vunpack.c.0.s8 %v597
        %v599 = vlaneseq
        %v600 = vshrl.u32 %v599, 7
        %v601 = vsub.s32 %v598, %v600
        %v602 = vrot.slane %v595, %v601
        %v604 = vunpack.c.l.s4 1966171168
        %v605 = vunpack.c.0.s8 %v604
        %v606 = vlaneseq
        %v607 = vshrl.u32 %v606, 7
        %v608 = vsub.s32 %v605, %v607
        %v609 = vrot.slane %v238, %v608
        %v611 = vunpack.c.l.s4 1966171168
        %v612 = vunpack.c.0.s8 %v611
        %v613 = vlaneseq
        %v614 = vshrl.u32 %v613, 7
        %v615 = vsub.s32 %v612, %v614
        %v616 = vrot.slane %v609, %v615
        %v618 = vunpack.c.l.s4 1966171168
        %v619 = vunpack.c.0.s8 %v618
        %v620 = vlaneseq
        %v621 = vshrl.u32 %v620, 7
        %v622 = vsub.s32 %v619, %v621
        %v623 = vrot.slane %v239, %v622
        %v625 = vunpack.c.l.s4 1966171168
        %v626 = vunpack.c.0.s8 %v625
        %v627 = vlaneseq
        %v628 = vshrl.u32 %v627, 7
        %v629 = vsub.s32 %v626, %v628
        %v630 = vrot.slane %v623, %v629
        %v632 = vunpack.c.l.s4 1966171168
        %v633 = vunpack.c.0.s8 %v632
        %v634 = vlaneseq
        %v635 = vshrl.u32 %v634, 7
        %v636 = vsub.s32 %v633, %v635
        %v637 = vrot.slane %v240, %v636
        %v639 = vunpack.c.l.s4 1966171168
        %v640 = vunpack.c.0.s8 %v639
        %v641 = vlaneseq
        %v642 = vshrl.u32 %v641, 7
        %v643 = vsub.s32 %v640, %v642
        %v644 = vrot.slane %v637, %v643
        %v646 = vunpack.c.l.s4 1966171168
        %v647 = vunpack.c.0.s8 %v646
        %v648 = vlaneseq
        %v649 = vshrl.u32 %v648, 7
        %v650 = vsub.s32 %v647, %v649
        %v651 = vrot.slane %v241, %v650
        %v653 = vunpack.c.l.s4 1966171168
        %v654 = vunpack.c.0.s8 %v653
        %v655 = vlaneseq
        %v656 = vshrl.u32 %v655, 7
        %v657 = vsub.s32 %v654, %v656
        %v658 = vrot.slane %v651, %v657
        %v660 = vunpack.c.l.s4 1966171168
        %v661 = vunpack.c.0.s8 %v660
        %v662 = vlaneseq
        %v663 = vshrl.u32 %v662, 7
        %v664 = vsub.s32 %v661, %v663
        %v665 = vrot.slane %v242, %v664
        %v667 = vunpack.c.l.s4 1966171168
        %v668 = vunpack.c.0.s8 %v667
        %v669 = vlaneseq
        %v670 = vshrl.u32 %v669, 7
        %v671 = vsub.s32 %v668, %v670
        %v672 = vrot.slane %v665, %v671
        %v674 = vunpack.c.l.s4 1966171168
        %v675 = vunpack.c.0.s8 %v674
        %v676 = vlaneseq
        %v677 = vshrl.u32 %v676, 7
        %v678 = vsub.s32 %v675, %v677
        %v679 = vrot.slane %v243, %v678
        %v681 = vunpack.c.l.s4 1966171168
        %v682 = vunpack.c.0.s8 %v681
        %v683 = vlaneseq
        %v684 = vshrl.u32 %v683, 7
        %v685 = vsub.s32 %v682, %v684
        %v686 = vrot.slane %v679, %v685
        %v688 = vunpack.c.l.s4 1966171168
        %v689 = vunpack.c.0.s8 %v688
        %v690 = vlaneseq
        %v691 = vshrl.u32 %v690, 7
        %v692 = vsub.s32 %v689, %v691
        %v693 = vrot.slane %v244, %v692
        %v695 = vunpack.c.l.s4 1966171168
        %v696 = vunpack.c.0.s8 %v695
        %v697 = vlaneseq
        %v698 = vshrl.u32 %v697, 7
        %v699 = vsub.s32 %v696, %v698
        %v700 = vrot.slane %v693, %v699
        %v702 = vunpack.c.l.s4 1966171168
        %v703 = vunpack.c.0.s8 %v702
        %v704 = vlaneseq
        %v705 = vshrl.u32 %v704, 7
        %v706 = vsub.s32 %v703, %v705
        %v707 = vrot.slane %v245, %v706
        %v709 = vunpack.c.l.s4 1966171168
        %v710 = vunpack.c.0.s8 %v709
        %v711 = vlaneseq
        %v712 = vshrl.u32 %v711, 7
        %v713 = vsub.s32 %v710, %v712
        %v714 = vrot.slane %v707, %v713
        %v716 = vunpack.c.l.s4 1966171168
        %v717 = vunpack.c.0.s8 %v716
        %v718 = vlaneseq
        %v719 = vshrl.u32 %v718, 7
        %v720 = vsub.s32 %v717, %v719
        %v721 = vrot.slane %v246, %v720
        %v723 = vunpack.c.l.s4 1966171168
        %v724 = vunpack.c.0.s8 %v723
        %v725 = vlaneseq
        %v726 = vshrl.u32 %v725, 7
        %v727 = vsub.s32 %v724, %v726
        %v728 = vrot.slane %v721, %v727
        %v730 = vunpack.c.l.s4 1966171168
        %v731 = vunpack.c.0.s8 %v730
        %v732 = vlaneseq
        %v733 = vshrl.u32 %v732, 7
        %v734 = vsub.s32 %v731, %v733
        %v735 = vrot.slane %v247, %v734
        %v737 = vunpack.c.l.s4 1966171168
        %v738 = vunpack.c.0.s8 %v737
        %v739 = vlaneseq
        %v740 = vshrl.u32 %v739, 7
        %v741 = vsub.s32 %v738, %v740
        %v742 = vrot.slane %v735, %v741
        %v744 = vunpack.c.l.s4 1966171168
        %v745 = vunpack.c.0.s8 %v744
        %v746 = vlaneseq
        %v747 = vshrl.u32 %v746, 7
        %v748 = vsub.s32 %v745, %v747
        %v749 = vrot.slane %v248, %v748
        %v751 = vunpack.c.l.s4 1966171168
        %v752 = vunpack.c.0.s8 %v751
        %v753 = vlaneseq
        %v754 = vshrl.u32 %v753, 7
        %v755 = vsub.s32 %v752, %v754
        %v756 = vrot.slane %v749, %v755
        %v758 = vunpack.c.l.s4 1966171168
        %v759 = vunpack.c.0.s8 %v758
        %v760 = vlaneseq
        %v761 = vshrl.u32 %v760, 7
        %v762 = vsub.s32 %v759, %v761
        %v763 = vrot.slane %v249, %v762
        %v765 = vunpack.c.l.s4 1966171168
        %v766 = vunpack.c.0.s8 %v765
        %v767 = vlaneseq
        %v768 = vshrl.u32 %v767, 7
        %v769 = vsub.s32 %v766, %v768
        %v770 = vrot.slane %v763, %v769
        %v772 = vunpack.c.l.s4 1966171168
        %v773 = vunpack.c.0.s8 %v772
        %v774 = vlaneseq
        %v775 = vshrl.u32 %v774, 7
        %v776 = vsub.s32 %v773, %v775
        %v777 = vrot.slane %v250, %v776
        %v779 = vunpack.c.l.s4 1966171168
        %v780 = vunpack.c.0.s8 %v779
        %v781 = vlaneseq
        %v782 = vshrl.u32 %v781, 7
        %v783 = vsub.s32 %v780, %v782
        %v784 = vrot.slane %v777, %v783
        %v786 = vunpack.c.l.s4 1966171168
        %v787 = vunpack.c.0.s8 %v786
        %v788 = vlaneseq
        %v789 = vshrl.u32 %v788, 7
        %v790 = vsub.s32 %v787, %v789
        %v791 = vrot.slane %v251, %v790
        %v793 = vunpack.c.l.s4 1966171168
        %v794 = vunpack.c.0.s8 %v793
        %v795 = vlaneseq
        %v796 = vshrl.u32 %v795, 7
        %v797 = vsub.s32 %v794, %v796
        %v798 = vrot.slane %v791, %v797
        %v800 = vunpack.c.l.s4 1966171168
        %v801 = vunpack.c.0.s8 %v800
        %v802 = vlaneseq
        %v803 = vshrl.u32 %v802, 7
        %v804 = vsub.s32 %v801, %v803
        %v805 = vrot.slane %v252, %v804
        %v807 = vunpack.c.l.s4 1966171168
        %v808 = vunpack.c.0.s8 %v807
        %v809 = vlaneseq
        %v810 = vshrl.u32 %v809, 7
        %v811 = vsub.s32 %v808, %v810
        %v812 = vrot.slane %v805, %v811
        %v814 = vunpack.c.l.s4 1966171168
        %v815 = vunpack.c.0.s8 %v814
        %v816 = vlaneseq
        %v817 = vshrl.u32 %v816, 7
        %v818 = vsub.s32 %v815, %v817
        %v819 = vrot.slane %v253, %v818
        %v821 = vunpack.c.l.s4 1966171168
        %v822 = vunpack.c.0.s8 %v821
        %v823 = vlaneseq
        %v824 = vshrl.u32 %v823, 7
        %v825 = vsub.s32 %v822, %v824
        %v826 = vrot.slane %v819, %v825
        %v828 = vunpack.c.l.s4 1966171168
        %v829 = vunpack.c.0.s8 %v828
        %v830 = vlaneseq
        %v831 = vshrl.u32 %v830, 7
        %v832 = vsub.s32 %v829, %v831
        %v833 = vrot.slane %v254, %v832
        %v835 = vunpack.c.l.s4 1966171168
        %v836 = vunpack.c.0.s8 %v835
        %v837 = vlaneseq
        %v838 = vshrl.u32 %v837, 7
        %v839 = vsub.s32 %v836, %v838
        %v840 = vrot.slane %v833, %v839
        %v842 = vunpack.c.l.s4 1966171168
        %v843 = vunpack.c.0.s8 %v842
        %v844 = vlaneseq
        %v845 = vshrl.u32 %v844, 7
        %v846 = vsub.s32 %v843, %v845
        %v847 = vrot.slane %v255, %v846
        %v849 = vunpack.c.l.s4 1966171168
        %v850 = vunpack.c.0.s8 %v849
        %v851 = vlaneseq
        %v852 = vshrl.u32 %v851, 7
        %v853 = vsub.s32 %v850, %v852
        %v854 = vrot.slane %v847, %v853
        %v856 = vunpack.c.l.s4 1966171168
        %v857 = vunpack.c.0.s8 %v856
        %v858 = vlaneseq
        %v859 = vshrl.u32 %v858, 7
        %v860 = vsub.s32 %v857, %v859
        %v861 = vrot.slane %v256, %v860
        %v863 = vunpack.c.l.s4 1966171168
        %v864 = vunpack.c.0.s8 %v863
        %v865 = vlaneseq
        %v866 = vshrl.u32 %v865, 7
        %v867 = vsub.s32 %v864, %v866
        %v868 = vrot.slane %v861, %v867
        %v870 = vunpack.c.l.s4 1966171168
        %v871 = vunpack.c.0.s8 %v870
        %v872 = vlaneseq
        %v873 = vshrl.u32 %v872, 7
        %v874 = vsub.s32 %v871, %v873
        %v875 = vrot.slane %v257, %v874
        %v877 = vunpack.c.l.s4 1966171168
        %v878 = vunpack.c.0.s8 %v877
        %v879 = vlaneseq
        %v880 = vshrl.u32 %v879, 7
        %v881 = vsub.s32 %v878, %v880
        %v882 = vrot.slane %v875, %v881
        %v884 = vunpack.c.l.s4 1966171168
        %v885 = vunpack.c.0.s8 %v884
        %v886 = vlaneseq
        %v887 = vshrl.u32 %v886, 7
        %v888 = vsub.s32 %v885, %v887
        %v889 = vrot.slane %v258, %v888
        %v891 = vunpack.c.l.s4 1966171168
        %v892 = vunpack.c.0.s8 %v891
        %v893 = vlaneseq
        %v894 = vshrl.u32 %v893, 7
        %v895 = vsub.s32 %v892, %v894
        %v896 = vrot.slane %v889, %v895
        %v898 = vunpack.c.l.s4 1966171168
        %v899 = vunpack.c.0.s8 %v898
        %v900 = vlaneseq
        %v901 = vshrl.u32 %v900, 7
        %v902 = vsub.s32 %v899, %v901
        %v903 = vrot.slane %v259, %v902
        %v905 = vunpack.c.l.s4 1966171168
        %v906 = vunpack.c.0.s8 %v905
        %v907 = vlaneseq
        %v908 = vshrl.u32 %v907, 7
        %v909 = vsub.s32 %v906, %v908
        %v910 = vrot.slane %v903, %v909
        %v912 = vunpack.c.l.s4 1966171168
        %v913 = vunpack.c.0.s8 %v912
        %v914 = vlaneseq
        %v915 = vshrl.u32 %v914, 7
        %v916 = vsub.s32 %v913, %v915
        %v917 = vrot.slane %v260, %v916
        %v919 = vunpack.c.l.s4 1966171168
        %v920 = vunpack.c.0.s8 %v919
        %v921 = vlaneseq
        %v922 = vshrl.u32 %v921, 7
        %v923 = vsub.s32 %v920, %v922
        %v924 = vrot.slane %v917, %v923
        %v926 = vunpack.c.l.s4 1966171168
        %v927 = vunpack.c.0.s8 %v926
        %v928 = vlaneseq
        %v929 = vshrl.u32 %v928, 7
        %v930 = vsub.s32 %v927, %v929
        %v931 = vrot.slane %v261, %v930
        %v933 = vunpack.c.l.s4 1966171168
        %v934 = vunpack.c.0.s8 %v933
        %v935 = vlaneseq
        %v936 = vshrl.u32 %v935, 7
        %v937 = vsub.s32 %v934, %v936
        %v938 = vrot.slane %v931, %v937
        %v940 = vunpack.c.l.s4 1966171168
        %v941 = vunpack.c.0.s8 %v940
        %v942 = vlaneseq
        %v943 = vshrl.u32 %v942, 7
        %v944 = vsub.s32 %v941, %v943
        %v945 = vrot.slane %v262, %v944
        %v947 = vunpack.c.l.s4 1966171168
        %v948 = vunpack.c.0.s8 %v947
        %v949 = vlaneseq
        %v950 = vshrl.u32 %v949, 7
        %v951 = vsub.s32 %v948, %v950
        %v952 = vrot.slane %v945, %v951
        %v954 = vunpack.c.l.s4 1966171168
        %v955 = vunpack.c.0.s8 %v954
        %v956 = vlaneseq
        %v957 = vshrl.u32 %v956, 7
        %v958 = vsub.s32 %v955, %v957
        %v959 = vrot.slane %v263, %v958
        %v961 = vunpack.c.l.s4 1966171168
        %v962 = vunpack.c.0.s8 %v961
        %v963 = vlaneseq
        %v964 = vshrl.u32 %v963, 7
        %v965 = vsub.s32 %v962, %v964
        %v966 = vrot.slane %v959, %v965
        %v968 = vunpack.c.l.s4 1966171168
        %v969 = vunpack.c.0.s8 %v968
        %v970 = vlaneseq
        %v971 = vshrl.u32 %v970, 7
        %v972 = vsub.s32 %v969, %v971
        %v973 = vrot.slane %v264, %v972
        %v975 = vunpack.c.l.s4 1966171168
        %v976 = vunpack.c.0.s8 %v975
        %v977 = vlaneseq
        %v978 = vshrl.u32 %v977, 7
        %v979 = vsub.s32 %v976, %v978
        %v980 = vrot.slane %v973, %v979
        %v982 = vunpack.c.l.s4 1966171168
        %v983 = vunpack.c.0.s8 %v982
        %v984 = vlaneseq
        %v985 = vshrl.u32 %v984, 7
        %v986 = vsub.s32 %v983, %v985
        %v987 = vrot.slane %v265, %v986
        %v989 = vunpack.c.l.s4 1966171168
        %v990 = vunpack.c.0.s8 %v989
        %v991 = vlaneseq
        %v992 = vshrl.u32 %v991, 7
        %v993 = vsub.s32 %v990, %v992
        %v994 = vrot.slane %v987, %v993
        %v996 = vunpack.c.l.s4 1966171168
        %v997 = vunpack.c.0.s8 %v996
        %v998 = vlaneseq
        %v999 = vshrl.u32 %v998, 7
        %v1000 = vsub.s32 %v997, %v999
        %v1001 = vrot.slane %v266, %v1000
        %v1003 = vunpack.c.l.s4 1966171168
        %v1004 = vunpack.c.0.s8 %v1003
        %v1005 = vlaneseq
        %v1006 = vshrl.u32 %v1005, 7
        %v1007 = vsub.s32 %v1004, %v1006
        %v1008 = vrot.slane %v1001, %v1007
        %v1010 = vunpack.c.l.s4 1966171168
        %v1011 = vunpack.c.0.s8 %v1010
        %v1012 = vlaneseq
        %v1013 = vshrl.u32 %v1012, 7
        %v1014 = vsub.s32 %v1011, %v1013
        %v1015 = vrot.slane %v267, %v1014
        %v1017 = vunpack.c.l.s4 1966171168
        %v1018 = vunpack.c.0.s8 %v1017
        %v1019 = vlaneseq
        %v1020 = vshrl.u32 %v1019, 7
        %v1021 = vsub.s32 %v1018, %v1020
        %v1022 = vrot.slane %v1015, %v1021
        %v1024 = vunpack.c.l.s4 1966171168
        %v1025 = vunpack.c.0.s8 %v1024
        %v1026 = vlaneseq
        %v1027 = vshrl.u32 %v1026, 7
        %v1028 = vsub.s32 %v1025, %v1027
        %v1029 = vrot.slane %v268, %v1028
        %v1031 = vunpack.c.l.s4 1966171168
        %v1032 = vunpack.c.0.s8 %v1031
        %v1033 = vlaneseq
        %v1034 = vshrl.u32 %v1033, 7
        %v1035 = vsub.s32 %v1032, %v1034
        %v1036 = vrot.slane %v1029, %v1035
        %v1038 = vunpack.c.l.s4 1966171168
        %v1039 = vunpack.c.0.s8 %v1038
        %v1040 = vlaneseq
        %v1041 = vshrl.u32 %v1040, 7
        %v1042 = vsub.s32 %v1039, %v1041
        %v1043 = vrot.slane %v269, %v1042
        %v1045 = vunpack.c.l.s4 1966171168
        %v1046 = vunpack.c.0.s8 %v1045
        %v1047 = vlaneseq
        %v1048 = vshrl.u32 %v1047, 7
        %v1049 = vsub.s32 %v1046, %v1048
        %v1050 = vrot.slane %v1043, %v1049
        %v1052 = vunpack.c.l.s4 1966171168
        %v1053 = vunpack.c.0.s8 %v1052
        %v1054 = vlaneseq
        %v1055 = vshrl.u32 %v1054, 7
        %v1056 = vsub.s32 %v1053, %v1055
        %v1057 = vrot.slane %v270, %v1056
        %v1059 = vunpack.c.l.s4 1966171168
        %v1060 = vunpack.c.0.s8 %v1059
        %v1061 = vlaneseq
        %v1062 = vshrl.u32 %v1061, 7
        %v1063 = vsub.s32 %v1060, %v1062
        %v1064 = vrot.slane %v1057, %v1063
        %v1066 = vunpack.c.l.s4 1966171168
        %v1067 = vunpack.c.0.s8 %v1066
        %v1068 = vlaneseq
        %v1069 = vshrl.u32 %v1068, 7
        %v1070 = vsub.s32 %v1067, %v1069
        %v1071 = vrot.slane %v271, %v1070
        %v1073 = vunpack.c.l.s4 1966171168
        %v1074 = vunpack.c.0.s8 %v1073
        %v1075 = vlaneseq
        %v1076 = vshrl.u32 %v1075, 7
        %v1077 = vsub.s32 %v1074, %v1076
        %v1078 = vrot.slane %v1071, %v1077
        %v1080 = vunpack.c.l.s4 1966171168
        %v1081 = vunpack.c.0.s8 %v1080
        %v1082 = vlaneseq
        %v1083 = vshrl.u32 %v1082, 7
        %v1084 = vsub.s32 %v1081, %v1083
        %v1085 = vrot.slane %v272, %v1084
        %v1087 = vunpack.c.l.s4 1966171168
        %v1088 = vunpack.c.0.s8 %v1087
        %v1089 = vlaneseq
        %v1090 = vshrl.u32 %v1089, 7
        %v1091 = vsub.s32 %v1088, %v1090
        %v1092 = vrot.slane %v1085, %v1091
        %v1094 = vunpack.c.l.s4 1966171168
        %v1095 = vunpack.c.0.s8 %v1094
        %v1096 = vlaneseq
        %v1097 = vshrl.u32 %v1096, 7
        %v1098 = vsub.s32 %v1095, %v1097
        %v1099 = vrot.slane %v273, %v1098
        %v1101 = vunpack.c.l.s4 1966171168
        %v1102 = vunpack.c.0.s8 %v1101
        %v1103 = vlaneseq
        %v1104 = vshrl.u32 %v1103, 7
        %v1105 = vsub.s32 %v1102, %v1104
        %v1106 = vrot.slane %v1099, %v1105
        %v1108 = vunpack.c.l.s4 1966171168
        %v1109 = vunpack.c.0.s8 %v1108
        %v1110 = vlaneseq
        %v1111 = vshrl.u32 %v1110, 7
        %v1112 = vsub.s32 %v1109, %v1111
        %v1113 = vrot.slane %v274, %v1112
        %v1115 = vunpack.c.l.s4 1966171168
        %v1116 = vunpack.c.0.s8 %v1115
        %v1117 = vlaneseq
        %v1118 = vshrl.u32 %v1117, 7
        %v1119 = vsub.s32 %v1116, %v1118
        %v1120 = vrot.slane %v1113, %v1119
        %v1122 = vunpack.c.l.s4 1966171168
        %v1123 = vunpack.c.0.s8 %v1122
        %v1124 = vlaneseq
        %v1125 = vshrl.u32 %v1124, 7
        %v1126 = vsub.s32 %v1123, %v1125
        %v1127 = vrot.slane %v275, %v1126
        %v1129 = vunpack.c.l.s4 1966171168
        %v1130 = vunpack.c.0.s8 %v1129
        %v1131 = vlaneseq
        %v1132 = vshrl.u32 %v1131, 7
        %v1133 = vsub.s32 %v1130, %v1132
        %v1134 = vrot.slane %v1127, %v1133
        %v1136 = vunpack.c.l.s4 1966171168
        %v1137 = vunpack.c.0.s8 %v1136
        %v1138 = vlaneseq
        %v1139 = vshrl.u32 %v1138, 7
        %v1140 = vsub.s32 %v1137, %v1139
        %v1141 = vrot.slane %v276, %v1140
        %v1143 = vunpack.c.l.s4 1966171168
        %v1144 = vunpack.c.0.s8 %v1143
        %v1145 = vlaneseq
        %v1146 = vshrl.u32 %v1145, 7
        %v1147 = vsub.s32 %v1144, %v1146
        %v1148 = vrot.slane %v1141, %v1147
        %v1150 = vunpack.c.l.s4 1966171168
        %v1151 = vunpack.c.0.s8 %v1150
        %v1152 = vlaneseq
        %v1153 = vshrl.u32 %v1152, 7
        %v1154 = vsub.s32 %v1151, %v1153
        %v1155 = vrot.slane %v277, %v1154
        %v1157 = vunpack.c.l.s4 1966171168
        %v1158 = vunpack.c.0.s8 %v1157
        %v1159 = vlaneseq
        %v1160 = vshrl.u32 %v1159, 7
        %v1161 = vsub.s32 %v1158, %v1160
        %v1162 = vrot.slane %v1155, %v1161
        %v1164 = vunpack.c.l.s4 1966171168
        %v1165 = vunpack.c.0.s8 %v1164
        %v1166 = vlaneseq
        %v1167 = vshrl.u32 %v1166, 7
        %v1168 = vsub.s32 %v1165, %v1167
        %v1169 = vrot.slane %v278, %v1168
        %v1171 = vunpack.c.l.s4 1966171168
        %v1172 = vunpack.c.0.s8 %v1171
        %v1173 = vlaneseq
        %v1174 = vshrl.u32 %v1173, 7
        %v1175 = vsub.s32 %v1172, %v1174
        %v1176 = vrot.slane %v1169, %v1175
        %v1178 = vunpack.c.l.s4 1966171168
        %v1179 = vunpack.c.0.s8 %v1178
        %v1180 = vlaneseq
        %v1181 = vshrl.u32 %v1180, 7
        %v1182 = vsub.s32 %v1179, %v1181
        %v1183 = vrot.slane %v279, %v1182
        %v1185 = vunpack.c.l.s4 1966171168
        %v1186 = vunpack.c.0.s8 %v1185
        %v1187 = vlaneseq
        %v1188 = vshrl.u32 %v1187, 7
        %v1189 = vsub.s32 %v1186, %v1188
        %v1190 = vrot.slane %v1183, %v1189
        %v1192 = vunpack.c.l.s4 1966171168
        %v1193 = vunpack.c.0.s8 %v1192
        %v1194 = vlaneseq
        %v1195 = vshrl.u32 %v1194, 7
        %v1196 = vsub.s32 %v1193, %v1195
        %v1197 = vrot.slane %v280, %v1196
        %v1199 = vunpack.c.l.s4 1966171168
        %v1200 = vunpack.c.0.s8 %v1199
        %v1201 = vlaneseq
        %v1202 = vshrl.u32 %v1201, 7
        %v1203 = vsub.s32 %v1200, %v1202
        %v1204 = vrot.slane %v1197, %v1203
        %v1206 = vunpack.c.l.s4 1966171168
        %v1207 = vunpack.c.0.s8 %v1206
        %v1208 = vlaneseq
        %v1209 = vshrl.u32 %v1208, 7
        %v1210 = vsub.s32 %v1207, %v1209
        %v1211 = vrot.slane %v281, %v1210
        %v1213 = vunpack.c.l.s4 1966171168
        %v1214 = vunpack.c.0.s8 %v1213
        %v1215 = vlaneseq
        %v1216 = vshrl.u32 %v1215, 7
        %v1217 = vsub.s32 %v1214, %v1216
        %v1218 = vrot.slane %v1211, %v1217
        %v1220 = vunpack.c.l.s4 1966171168
        %v1221 = vunpack.c.0.s8 %v1220
        %v1222 = vlaneseq
        %v1223 = vshrl.u32 %v1222, 7
        %v1224 = vsub.s32 %v1221, %v1223
        %v1225 = vrot.slane %v282, %v1224
        %v1227 = vunpack.c.l.s4 1966171168
        %v1228 = vunpack.c.0.s8 %v1227
        %v1229 = vlaneseq
        %v1230 = vshrl.u32 %v1229, 7
        %v1231 = vsub.s32 %v1228, %v1230
        %v1232 = vrot.slane %v1225, %v1231
        %v1234 = vunpack.c.l.s4 1966171168
        %v1235 = vunpack.c.0.s8 %v1234
        %v1236 = vlaneseq
        %v1237 = vshrl.u32 %v1236, 7
        %v1238 = vsub.s32 %v1235, %v1237
        %v1239 = vrot.slane %v283, %v1238
        %v1241 = vunpack.c.l.s4 1966171168
        %v1242 = vunpack.c.0.s8 %v1241
        %v1243 = vlaneseq
        %v1244 = vshrl.u32 %v1243, 7
        %v1245 = vsub.s32 %v1242, %v1244
        %v1246 = vrot.slane %v1239, %v1245
        %v1247 = vunpack.c.l.b16 %v364
        %v1248 = vunpack.c.l.b16 %v378
        %v1249 = vunpack.c.l.b16 %v392
        %v1250 = vunpack.c.l.b16 %v406
        %v1251 = vunpack.c.l.b16 %v420
        %v1252 = vunpack.c.l.b16 %v434
        %v1253 = vunpack.c.l.b16 %v448
        %v1254 = vunpack.c.l.b16 %v462
        %v1255 = vunpack.c.l.b16 %v476
        %v1256 = vunpack.c.l.b16 %v490
        %v1257 = vunpack.c.l.b16 %v504
        %v1258 = vunpack.c.l.b16 %v518
        %v1259 = vunpack.c.l.b16 %v532
        %v1260 = vunpack.c.l.b16 %v546
        %v1261 = vunpack.c.l.b16 %v560
        %v1262 = vunpack.c.l.b16 %v574
        %v1263 = vunpack.c.l.b16 %v588
        %v1264 = vunpack.c.l.b16 %v602
        %v1265 = vunpack.c.l.b16 %v616
        %v1266 = vunpack.c.l.b16 %v630
        %v1267 = vunpack.c.l.b16 %v644
        %v1268 = vunpack.c.l.b16 %v658
        %v1269 = vunpack.c.l.b16 %v672
        %v1270 = vunpack.c.l.b16 %v686
        %v1271 = vunpack.c.l.b16 %v700
        %v1272 = vunpack.c.l.b16 %v714
        %v1273 = vunpack.c.l.b16 %v728
        %v1274 = vunpack.c.l.b16 %v742
        %v1275 = vunpack.c.l.b16 %v756
        %v1276 = vunpack.c.l.b16 %v770
        %v1277 = vunpack.c.l.b16 %v784
        %v1278 = vunpack.c.l.b16 %v798
        %v1279 = vunpack.c.l.b16 %v812
        %v1280 = vunpack.c.l.b16 %v826
        %v1281 = vunpack.c.l.b16 %v840
        %v1282 = vunpack.c.l.b16 %v854
        %v1283 = vunpack.c.l.b16 %v868
        %v1284 = vunpack.c.l.b16 %v882
        %v1285 = vunpack.c.l.b16 %v896
        %v1286 = vunpack.c.l.b16 %v910
        %v1287 = vunpack.c.l.b16 %v924
        %v1288 = vunpack.c.l.b16 %v938
        %v1289 = vunpack.c.l.b16 %v952
        %v1290 = vunpack.c.l.b16 %v966
        %v1291 = vunpack.c.l.b16 %v980
        %v1292 = vunpack.c.l.b16 %v994
        %v1293 = vunpack.c.l.b16 %v1008
        %v1294 = vunpack.c.l.b16 %v1022
        %v1295 = vunpack.c.l.b16 %v1036
        %v1296 = vunpack.c.l.b16 %v1050
        %v1297 = vunpack.c.l.b16 %v1064
        %v1298 = vunpack.c.l.b16 %v1078
        %v1299 = vunpack.c.l.b16 %v1092
        %v1300 = vunpack.c.l.b16 %v1106
        %v1301 = vunpack.c.l.b16 %v1120
        %v1302 = vunpack.c.l.b16 %v1134
        %v1303 = vunpack.c.l.b16 %v1148
        %v1304 = vunpack.c.l.b16 %v1162
        %v1305 = vunpack.c.l.b16 %v1176
        %v1306 = vunpack.c.l.b16 %v1190
        %v1307 = vunpack.c.l.b16 %v1204
        %v1308 = vunpack.c.l.b16 %v1218
        %v1309 = vunpack.c.l.b16 %v1232
        %v1310 = vunpack.c.l.b16 %v1246
        %v1311 = vrot.slane %v1247, 1
        %vm1312 = vcmask 1041409
        %v1313 = vsel %vm1312, %v1248, %v1311
        %v1314 = vrot.slane %v1249, 7
        %vm1315 = vcmask 1042434
        %v1316 = vsel %vm1315, %v1314, %v1313
        %v1317 = vrot.slane %v1250, 6
        %vm1318 = vcmask 1043459
        %v1319 = vsel %vm1318, %v1317, %v1316
        %v1320 = vrot.slane %v1251, 5
        %vm1321 = vcmask 1044484
        %v1322 = vsel %vm1321, %v1320, %v1319
        %v1323 = vrot.slane %v1252, 4
        %vm1324 = vcmask 1045509
        %v1325 = vsel %vm1324, %v1323, %v1322
        %v1326 = vrot.slane %v1253, 3
        %vm1327 = vcmask 1046534
        %v1328 = vsel %vm1327, %v1326, %v1325
        %v1329 = vrot.slane %v1254, 2
        %vm1330 = vcmask 1047559
        %v1331 = vsel %vm1330, %v1329, %v1328
        %v1332 = vrot.slane %v1255, 1
        %v1333 = vsel %vm1312, %v1256, %v1332
        %v1334 = vrot.slane %v1257, 7
        %v1335 = vsel %vm1315, %v1334, %v1333
        %v1336 = vrot.slane %v1258, 6
        %v1337 = vsel %vm1318, %v1336, %v1335
        %v1338 = vrot.slane %v1259, 5
        %v1339 = vsel %vm1321, %v1338, %v1337
        %v1340 = vrot.slane %v1260, 4
        %v1341 = vsel %vm1324, %v1340, %v1339
        %v1342 = vrot.slane %v1261, 3
        %v1343 = vsel %vm1327, %v1342, %v1341
        %v1344 = vrot.slane %v1262, 2
        %v1345 = vsel %vm1330, %v1344, %v1343
        %v1346 = vrot.slane %v1263, 1
        %v1347 = vsel %vm1312, %v1264, %v1346
        %v1348 = vrot.slane %v1265, 7
        %v1349 = vsel %vm1315, %v1348, %v1347
        %v1350 = vrot.slane %v1266, 6
        %v1351 = vsel %vm1318, %v1350, %v1349
        %v1352 = vrot.slane %v1267, 5
        %v1353 = vsel %vm1321, %v1352, %v1351
        %v1354 = vrot.slane %v1268, 4
        %v1355 = vsel %vm1324, %v1354, %v1353
        %v1356 = vrot.slane %v1269, 3
        %v1357 = vsel %vm1327, %v1356, %v1355
        %v1358 = vrot.slane %v1270, 2
        %v1359 = vsel %vm1330, %v1358, %v1357
        %v1360 = vrot.slane %v1271, 1
        %v1361 = vsel %vm1312, %v1272, %v1360
        %v1362 = vrot.slane %v1273, 7
        %v1363 = vsel %vm1315, %v1362, %v1361
        %v1364 = vrot.slane %v1274, 6
        %v1365 = vsel %vm1318, %v1364, %v1363
        %v1366 = vrot.slane %v1275, 5
        %v1367 = vsel %vm1321, %v1366, %v1365
        %v1368 = vrot.slane %v1276, 4
        %v1369 = vsel %vm1324, %v1368, %v1367
        %v1370 = vrot.slane %v1277, 3
        %v1371 = vsel %vm1327, %v1370, %v1369
        %v1372 = vrot.slane %v1278, 2
        %v1373 = vsel %vm1330, %v1372, %v1371
        %v1374 = vrot.slane %v1279, 1
        %v1375 = vsel %vm1312, %v1280, %v1374
        %v1376 = vrot.slane %v1281, 7
        %v1377 = vsel %vm1315, %v1376, %v1375
        %v1378 = vrot.slane %v1282, 6
        %v1379 = vsel %vm1318, %v1378, %v1377
        %v1380 = vrot.slane %v1283, 5
        %v1381 = vsel %vm1321, %v1380, %v1379
        %v1382 = vrot.slane %v1284, 4
        %v1383 = vsel %vm1324, %v1382, %v1381
        %v1384 = vrot.slane %v1285, 3
        %v1385 = vsel %vm1327, %v1384, %v1383
        %v1386 = vrot.slane %v1286, 2
        %v1387 = vsel %vm1330, %v1386, %v1385
        %v1388 = vrot.slane %v1287, 1
        %v1389 = vsel %vm1312, %v1288, %v1388
        %v1390 = vrot.slane %v1289, 7
        %v1391 = vsel %vm1315, %v1390, %v1389
        %v1392 = vrot.slane %v1290, 6
        %v1393 = vsel %vm1318, %v1392, %v1391
        %v1394 = vrot.slane %v1291, 5
        %v1395 = vsel %vm1321, %v1394, %v1393
        %v1396 = vrot.slane %v1292, 4
        %v1397 = vsel %vm1324, %v1396, %v1395
        %v1398 = vrot.slane %v1293, 3
        %v1399 = vsel %vm1327, %v1398, %v1397
        %v1400 = vrot.slane %v1294, 2
        %v1401 = vsel %vm1330, %v1400, %v1399
        %v1402 = vrot.slane %v1295, 1
        %v1403 = vsel %vm1312, %v1296, %v1402
        %v1404 = vrot.slane %v1297, 7
        %v1405 = vsel %vm1315, %v1404, %v1403
        %v1406 = vrot.slane %v1298, 6
        %v1407 = vsel %vm1318, %v1406, %v1405
        %v1408 = vrot.slane %v1299, 5
        %v1409 = vsel %vm1321, %v1408, %v1407
        %v1410 = vrot.slane %v1300, 4
        %v1411 = vsel %vm1324, %v1410, %v1409
        %v1412 = vrot.slane %v1301, 3
        %v1413 = vsel %vm1327, %v1412, %v1411
        %v1414 = vrot.slane %v1302, 2
        %v1415 = vsel %vm1330, %v1414, %v1413
        %v1416 = vrot.slane %v1303, 1
        %v1417 = vsel %vm1312, %v1304, %v1416
        %v1418 = vrot.slane %v1305, 7
        %v1419 = vsel %vm1315, %v1418, %v1417
        %v1420 = vrot.slane %v1306, 6
        %v1421 = vsel %vm1318, %v1420, %v1419
        %v1422 = vrot.slane %v1307, 5
        %v1423 = vsel %vm1321, %v1422, %v1421
        %v1424 = vrot.slane %v1308, 4
        %v1425 = vsel %vm1324, %v1424, %v1423
        %v1426 = vrot.slane %v1309, 3
        %v1427 = vsel %vm1327, %v1426, %v1425
        %v1428 = vrot.slane %v1310, 2
        %v1429 = vsel %vm1330, %v1428, %v1427
        %v1430 = vpack.c.b16 %v1345, %v1331
        %v1431 = vpack.c.b16 %v1373, %v1359
        %v1432 = vpack.c.b16 %v1401, %v1387
        %v1433 = vpack.c.b16 %v1429, %v1415
        %vm1434 = vcmask 31744
        %v1436 = vsel %vm1434, %v1430, 0
        %v1439 = vsel %vm1434, %v1431, 0
        %v1442 = vsel %vm1434, %v1432, 0
        %v1445 = vsel %vm1434, %v1433, 0
        %vm1447 = vcmask 1041408
        %v1449 = vsel %vm1447, %v286, 0
        %1451 = vmatprep.subr.bf16.mxu0 0
        %1452 = vmatpush1.bf16.msra.mxu0 0
        %1453 = vmatprep.subr.bf16.mxu0 0
        %1454 = vmatpush1.bf16.msra.mxu0 0
        %1455 = vmatprep.subr.bf16.mxu0 0
        %1456 = vmatpush1.bf16.msra.mxu0 0
        %1457 = vmatprep.subr.bf16.mxu0 0
        %1458 = vmatpush1.bf16.msra.mxu0 0
        %1459 = vmatprep.subr.bf16.mxu0 0
        %1460 = vmatpush1.bf16.msra.mxu0 0
        %1461 = vmatprep.subr.bf16.mxu0 0
        %1462 = vmatpush1.bf16.msra.mxu0 0
        %1463 = vmatprep.subr.bf16.mxu0 0
        %1464 = vmatpush1.bf16.msra.mxu0 0
        %1465 = vmatprep.subr.bf16.mxu0 0
        %1466 = vmatpush1.bf16.msra.mxu0 %v1449
        %1467 = vmatprep.subr.bf16.mxu0 0
        %1468 = vmatpush2.bf16.msra.mxu0 0
        %1469 = vmatprep.subr.bf16.mxu0 0
        %1470 = vmatpush2.bf16.msra.mxu0 0
        %1471 = vmatprep.subr.bf16.mxu0 0
        %1472 = vmatpush2.bf16.msra.mxu0 0
        %1473 = vmatprep.subr.bf16.mxu0 0
        %1474 = vmatpush2.bf16.msra.mxu0 0
        %1475 = vmatprep.subr.bf16.mxu0 0
        %1476 = vmatpush2.bf16.msra.mxu0 0
        %1477 = vmatprep.subr.bf16.mxu0 0
        %1478 = vmatpush2.bf16.msra.mxu0 0
        %1479 = vmatprep.subr.bf16.mxu0 0
        %1480 = vmatpush2.bf16.msra.mxu0 0
        %1481 = vmatprep.subr.bf16.mxu0 0
        %1482 = vmatpush2.bf16.msra.mxu0 0
        %1483 = vmatprep.mubr.bf16.mxu0 0
        %1484 = vmatmul.mubr.bf16.gmra.mxu0 %v1436
        %v1485 = vpop.f32.mrf.mxu0
        %v1486 = vadd.f32 0.0, %v1485
        %v1487 = vpop.f32.mrf.mxu0
        %v1488 = vpop.f32.mrf.mxu0
        %v1489 = vadd.f32 0.0, %v1488
        %v1490 = vpop.f32.mrf.mxu0
        %1491 = vmatprep.mubr.bf16.mxu0 0
        %1492 = vmatmul.mubr.bf16.gmra.mxu0 %v1439
        %v1493 = vpop.f32.mrf.mxu0
        %v1494 = vadd.f32 0.0, %v1493
        %v1495 = vpop.f32.mrf.mxu0
        %v1496 = vpop.f32.mrf.mxu0
        %v1497 = vadd.f32 0.0, %v1496
        %v1498 = vpop.f32.mrf.mxu0
        %1499 = vmatprep.mubr.bf16.mxu0 0
        %1500 = vmatmul.mubr.bf16.gmra.mxu0 %v1442
        %v1501 = vpop.f32.mrf.mxu0
        %v1502 = vadd.f32 0.0, %v1501
        %v1503 = vpop.f32.mrf.mxu0
        %v1504 = vpop.f32.mrf.mxu0
        %v1505 = vadd.f32 0.0, %v1504
        %v1506 = vpop.f32.mrf.mxu0
        %1507 = vmatprep.mubr.bf16.mxu0 0
        %1508 = vmatmul.mubr.bf16.gmra.mxu0 %v1445
        %v1509 = vpop.f32.mrf.mxu0
        %v1510 = vadd.f32 0.0, %v1509
        %v1511 = vpop.f32.mrf.mxu0
        %v1512 = vpop.f32.mrf.mxu0
        %v1513 = vadd.f32 0.0, %v1512
        %v1514 = vpop.f32.mrf.mxu0
        %1515 = vdwg.mxu0
        %v1516 = vrot.slane %v1248, 7
        %v1517 = vsel %vm1312, %v1516, %v1247
        %v1518 = vrot.slane %v1249, 6
        %v1519 = vsel %vm1315, %v1518, %v1517
        %v1520 = vrot.slane %v1250, 5
        %v1521 = vsel %vm1318, %v1520, %v1519
        %v1522 = vrot.slane %v1251, 4
        %v1523 = vsel %vm1321, %v1522, %v1521
        %v1524 = vrot.slane %v1252, 3
        %v1525 = vsel %vm1324, %v1524, %v1523
        %v1526 = vrot.slane %v1253, 2
        %v1527 = vsel %vm1327, %v1526, %v1525
        %v1528 = vrot.slane %v1254, 1
        %v1529 = vsel %vm1330, %v1528, %v1527
        %v1530 = vrot.slane %v1256, 7
        %v1531 = vsel %vm1312, %v1530, %v1255
        %v1532 = vrot.slane %v1257, 6
        %v1533 = vsel %vm1315, %v1532, %v1531
        %v1534 = vrot.slane %v1258, 5
        %v1535 = vsel %vm1318, %v1534, %v1533
        %v1536 = vrot.slane %v1259, 4
        %v1537 = vsel %vm1321, %v1536, %v1535
        %v1538 = vrot.slane %v1260, 3
        %v1539 = vsel %vm1324, %v1538, %v1537
        %v1540 = vrot.slane %v1261, 2
        %v1541 = vsel %vm1327, %v1540, %v1539
        %v1542 = vrot.slane %v1262, 1
        %v1543 = vsel %vm1330, %v1542, %v1541
        %v1544 = vrot.slane %v1264, 7
        %v1545 = vsel %vm1312, %v1544, %v1263
        %v1546 = vrot.slane %v1265, 6
        %v1547 = vsel %vm1315, %v1546, %v1545
        %v1548 = vrot.slane %v1266, 5
        %v1549 = vsel %vm1318, %v1548, %v1547
        %v1550 = vrot.slane %v1267, 4
        %v1551 = vsel %vm1321, %v1550, %v1549
        %v1552 = vrot.slane %v1268, 3
        %v1553 = vsel %vm1324, %v1552, %v1551
        %v1554 = vrot.slane %v1269, 2
        %v1555 = vsel %vm1327, %v1554, %v1553
        %v1556 = vrot.slane %v1270, 1
        %v1557 = vsel %vm1330, %v1556, %v1555
        %v1558 = vrot.slane %v1272, 7
        %v1559 = vsel %vm1312, %v1558, %v1271
        %v1560 = vrot.slane %v1273, 6
        %v1561 = vsel %vm1315, %v1560, %v1559
        %v1562 = vrot.slane %v1274, 5
        %v1563 = vsel %vm1318, %v1562, %v1561
        %v1564 = vrot.slane %v1275, 4
        %v1565 = vsel %vm1321, %v1564, %v1563
        %v1566 = vrot.slane %v1276, 3
        %v1567 = vsel %vm1324, %v1566, %v1565
        %v1568 = vrot.slane %v1277, 2
        %v1569 = vsel %vm1327, %v1568, %v1567
        %v1570 = vrot.slane %v1278, 1
        %v1571 = vsel %vm1330, %v1570, %v1569
        %v1572 = vrot.slane %v1280, 7
        %v1573 = vsel %vm1312, %v1572, %v1279
        %v1574 = vrot.slane %v1281, 6
        %v1575 = vsel %vm1315, %v1574, %v1573
        %v1576 = vrot.slane %v1282, 5
        %v1577 = vsel %vm1318, %v1576, %v1575
        %v1578 = vrot.slane %v1283, 4
        %v1579 = vsel %vm1321, %v1578, %v1577
        %v1580 = vrot.slane %v1284, 3
        %v1581 = vsel %vm1324, %v1580, %v1579
        %v1582 = vrot.slane %v1285, 2
        %v1583 = vsel %vm1327, %v1582, %v1581
        %v1584 = vrot.slane %v1286, 1
        %v1585 = vsel %vm1330, %v1584, %v1583
        %v1586 = vrot.slane %v1288, 7
        %v1587 = vsel %vm1312, %v1586, %v1287
        %v1588 = vrot.slane %v1289, 6
        %v1589 = vsel %vm1315, %v1588, %v1587
        %v1590 = vrot.slane %v1290, 5
        %v1591 = vsel %vm1318, %v1590, %v1589
        %v1592 = vrot.slane %v1291, 4
        %v1593 = vsel %vm1321, %v1592, %v1591
        %v1594 = vrot.slane %v1292, 3
        %v1595 = vsel %vm1324, %v1594, %v1593
        %v1596 = vrot.slane %v1293, 2
        %v1597 = vsel %vm1327, %v1596, %v1595
        %v1598 = vrot.slane %v1294, 1
        %v1599 = vsel %vm1330, %v1598, %v1597
        %v1600 = vrot.slane %v1296, 7
        %v1601 = vsel %vm1312, %v1600, %v1295
        %v1602 = vrot.slane %v1297, 6
        %v1603 = vsel %vm1315, %v1602, %v1601
        %v1604 = vrot.slane %v1298, 5
        %v1605 = vsel %vm1318, %v1604, %v1603
        %v1606 = vrot.slane %v1299, 4
        %v1607 = vsel %vm1321, %v1606, %v1605
        %v1608 = vrot.slane %v1300, 3
        %v1609 = vsel %vm1324, %v1608, %v1607
        %v1610 = vrot.slane %v1301, 2
        %v1611 = vsel %vm1327, %v1610, %v1609
        %v1612 = vrot.slane %v1302, 1
        %v1613 = vsel %vm1330, %v1612, %v1611
        %v1614 = vrot.slane %v1304, 7
        %v1615 = vsel %vm1312, %v1614, %v1303
        %v1616 = vrot.slane %v1305, 6
        %v1617 = vsel %vm1315, %v1616, %v1615
        %v1618 = vrot.slane %v1306, 5
        %v1619 = vsel %vm1318, %v1618, %v1617
        %v1620 = vrot.slane %v1307, 4
        %v1621 = vsel %vm1321, %v1620, %v1619
        %v1622 = vrot.slane %v1308, 3
        %v1623 = vsel %vm1324, %v1622, %v1621
        %v1624 = vrot.slane %v1309, 2
        %v1625 = vsel %vm1327, %v1624, %v1623
        %v1626 = vrot.slane %v1310, 1
        %v1627 = vsel %vm1330, %v1626, %v1625
        %v1628 = vpack.c.b16 %v1543, %v1529
        %v1629 = vpack.c.b16 %v1571, %v1557
        %v1630 = vpack.c.b16 %v1599, %v1585
        %v1631 = vpack.c.b16 %v1627, %v1613
        %v1633 = vsel %vm1434, %v1628, 0
        %v1636 = vsel %vm1434, %v1629, 0
        %v1639 = vsel %vm1434, %v1630, 0
        %v1642 = vsel %vm1434, %v1631, 0
        %v1645 = vsel %vm1447, %v284, 0
        %1647 = vmatprep.subr.bf16.mxu0 0
        %1648 = vmatpush1.bf16.msra.mxu0 0
        %1649 = vmatprep.subr.bf16.mxu0 0
        %1650 = vmatpush1.bf16.msra.mxu0 0
        %1651 = vmatprep.subr.bf16.mxu0 0
        %1652 = vmatpush1.bf16.msra.mxu0 0
        %1653 = vmatprep.subr.bf16.mxu0 0
        %1654 = vmatpush1.bf16.msra.mxu0 0
        %1655 = vmatprep.subr.bf16.mxu0 0
        %1656 = vmatpush1.bf16.msra.mxu0 0
        %1657 = vmatprep.subr.bf16.mxu0 0
        %1658 = vmatpush1.bf16.msra.mxu0 0
        %1659 = vmatprep.subr.bf16.mxu0 0
        %1660 = vmatpush1.bf16.msra.mxu0 0
        %1661 = vmatprep.subr.bf16.mxu0 0
        %1662 = vmatpush1.bf16.msra.mxu0 %v1645
        %1663 = vmatprep.subr.bf16.mxu0 0
        %1664 = vmatpush2.bf16.msra.mxu0 0
        %1665 = vmatprep.subr.bf16.mxu0 0
        %1666 = vmatpush2.bf16.msra.mxu0 0
        %1667 = vmatprep.subr.bf16.mxu0 0
        %1668 = vmatpush2.bf16.msra.mxu0 0
        %1669 = vmatprep.subr.bf16.mxu0 0
        %1670 = vmatpush2.bf16.msra.mxu0 0
        %1671 = vmatprep.subr.bf16.mxu0 0
        %1672 = vmatpush2.bf16.msra.mxu0 0
        %1673 = vmatprep.subr.bf16.mxu0 0
        %1674 = vmatpush2.bf16.msra.mxu0 0
        %1675 = vmatprep.subr.bf16.mxu0 0
        %1676 = vmatpush2.bf16.msra.mxu0 0
        %1677 = vmatprep.subr.bf16.mxu0 0
        %1678 = vmatpush2.bf16.msra.mxu0 0
        %1679 = vmatprep.mubr.bf16.mxu0 0
        %1680 = vmatmul.mubr.bf16.gmra.mxu0 %v1633
        %v1681 = vpop.f32.mrf.mxu0
        %v1682 = vadd.f32 %v1486, %v1681
        %v1683 = vpop.f32.mrf.mxu0
        %v1684 = vpop.f32.mrf.mxu0
        %v1685 = vadd.f32 %v1489, %v1684
        %v1686 = vpop.f32.mrf.mxu0
        %1687 = vmatprep.mubr.bf16.mxu0 0
        %1688 = vmatmul.mubr.bf16.gmra.mxu0 %v1636
        %v1689 = vpop.f32.mrf.mxu0
        %v1690 = vadd.f32 %v1494, %v1689
        %v1691 = vpop.f32.mrf.mxu0
        %v1692 = vpop.f32.mrf.mxu0
        %v1693 = vadd.f32 %v1497, %v1692
        %v1694 = vpop.f32.mrf.mxu0
        %1695 = vmatprep.mubr.bf16.mxu0 0
        %1696 = vmatmul.mubr.bf16.gmra.mxu0 %v1639
        %v1697 = vpop.f32.mrf.mxu0
        %v1698 = vadd.f32 %v1502, %v1697
        %v1699 = vpop.f32.mrf.mxu0
        %v1700 = vpop.f32.mrf.mxu0
        %v1701 = vadd.f32 %v1505, %v1700
        %v1702 = vpop.f32.mrf.mxu0
        %1703 = vmatprep.mubr.bf16.mxu0 0
        %1704 = vmatmul.mubr.bf16.gmra.mxu0 %v1642
        %v1705 = vpop.f32.mrf.mxu0
        %v1706 = vadd.f32 %v1510, %v1705
        %v1707 = vpop.f32.mrf.mxu0
        %v1708 = vpop.f32.mrf.mxu0
        %v1709 = vadd.f32 %v1513, %v1708
        %v1710 = vpop.f32.mrf.mxu0
        %1711 = vdwg.mxu0
        %s1712 = scalar_lea.vmem %s209, 1
        %v1713 = vld [vmem:[%s1712] sm:$0x1]
        %v1714 = vld [vmem:[%s1712 + $0x1] sm:$0x1]
        %v1715 = vld [vmem:[%s1712 + $0x2] sm:$0x1]
        %v1716 = vld [vmem:[%s1712 + $0x3] sm:$0x1]
        %v1717 = vld [vmem:[%s1712 + $0x4] sm:$0x1]
        %v1718 = vld [vmem:[%s1712 + $0x5] sm:$0x1]
        %v1719 = vld [vmem:[%s1712 + $0x6] sm:$0x1]
        %v1720 = vld [vmem:[%s1712 + $0x7] sm:$0x1]
        %v1721 = vld [vmem:[%s1712 + $0x12] sm:$0x1]
        %v1722 = vld [vmem:[%s1712 + $0x13] sm:$0x1]
        %v1723 = vld [vmem:[%s1712 + $0x14] sm:$0x1]
        %v1724 = vld [vmem:[%s1712 + $0x15] sm:$0x1]
        %v1725 = vld [vmem:[%s1712 + $0x16] sm:$0x1]
        %v1726 = vld [vmem:[%s1712 + $0x17] sm:$0x1]
        %v1727 = vld [vmem:[%s1712 + $0x18] sm:$0x1]
        %v1728 = vld [vmem:[%s1712 + $0x19] sm:$0x1]
        %v1729 = vld [vmem:[%s1712 + $0x24] sm:$0x1]
        %v1730 = vld [vmem:[%s1712 + $0x25] sm:$0x1]
        %v1731 = vld [vmem:[%s1712 + $0x26] sm:$0x1]
        %v1732 = vld [vmem:[%s1712 + $0x27] sm:$0x1]
        %v1733 = vld [vmem:[%s1712 + $0x28] sm:$0x1]
        %v1734 = vld [vmem:[%s1712 + $0x29] sm:$0x1]
        %v1735 = vld [vmem:[%s1712 + $0x2a] sm:$0x1]
        %v1736 = vld [vmem:[%s1712 + $0x2b] sm:$0x1]
        %v1737 = vld [vmem:[%s1712 + $0x36] sm:$0x1]
        %v1738 = vld [vmem:[%s1712 + $0x37] sm:$0x1]
        %v1739 = vld [vmem:[%s1712 + $0x38] sm:$0x1]
        %v1740 = vld [vmem:[%s1712 + $0x39] sm:$0x1]
        %v1741 = vld [vmem:[%s1712 + $0x3a] sm:$0x1]
        %v1742 = vld [vmem:[%s1712 + $0x3b] sm:$0x1]
        %v1743 = vld [vmem:[%s1712 + $0x3c] sm:$0x1]
        %v1744 = vld [vmem:[%s1712 + $0x3d] sm:$0x1]
        %v1745 = vld [vmem:[%s1712 + $0x48] sm:$0x1]
        %v1746 = vld [vmem:[%s1712 + $0x49] sm:$0x1]
        %v1747 = vld [vmem:[%s1712 + $0x4a] sm:$0x1]
        %v1748 = vld [vmem:[%s1712 + $0x4b] sm:$0x1]
        %v1749 = vld [vmem:[%s1712 + $0x4c] sm:$0x1]
        %v1750 = vld [vmem:[%s1712 + $0x4d] sm:$0x1]
        %v1751 = vld [vmem:[%s1712 + $0x4e] sm:$0x1]
        %v1752 = vld [vmem:[%s1712 + $0x4f] sm:$0x1]
        %v1753 = vld [vmem:[%s1712 + $0x5a] sm:$0x1]
        %v1754 = vld [vmem:[%s1712 + $0x5b] sm:$0x1]
        %v1755 = vld [vmem:[%s1712 + $0x5c] sm:$0x1]
        %v1756 = vld [vmem:[%s1712 + $0x5d] sm:$0x1]
        %v1757 = vld [vmem:[%s1712 + $0x5e] sm:$0x1]
        %v1758 = vld [vmem:[%s1712 + $0x5f] sm:$0x1]
        %v1759 = vld [vmem:[%s1712 + $0x60] sm:$0x1]
        %v1760 = vld [vmem:[%s1712 + $0x61] sm:$0x1]
        %v1761 = vld [vmem:[%s1712 + $0x6c] sm:$0x1]
        %v1762 = vld [vmem:[%s1712 + $0x6d] sm:$0x1]
        %v1763 = vld [vmem:[%s1712 + $0x6e] sm:$0x1]
        %v1764 = vld [vmem:[%s1712 + $0x6f] sm:$0x1]
        %v1765 = vld [vmem:[%s1712 + $0x70] sm:$0x1]
        %v1766 = vld [vmem:[%s1712 + $0x71] sm:$0x1]
        %v1767 = vld [vmem:[%s1712 + $0x72] sm:$0x1]
        %v1768 = vld [vmem:[%s1712 + $0x73] sm:$0x1]
        %v1769 = vld [vmem:[%s1712 + $0x7e] sm:$0x1]
        %v1770 = vld [vmem:[%s1712 + $0x7f] sm:$0x1]
        %v1771 = vld [vmem:[%s1712 + $0x80] sm:$0x1]
        %v1772 = vld [vmem:[%s1712 + $0x81] sm:$0x1]
        %v1773 = vld [vmem:[%s1712 + $0x82] sm:$0x1]
        %v1774 = vld [vmem:[%s1712 + $0x83] sm:$0x1]
        %v1775 = vld [vmem:[%s1712 + $0x84] sm:$0x1]
        %v1776 = vld [vmem:[%s1712 + $0x85] sm:$0x1]
        %s1777 = scalar_lea.vmem %s214, 4
        %v1778 = vld [vmem:[%s1777] sm:$0x3]
        %v1844 = vunpack.c.l.s4 1966171168
        %v1845 = vunpack.c.0.s8 %v1844
        %v1846 = vlaneseq
        %v1847 = vshrl.u32 %v1846, 7
        %v1848 = vsub.s32 %v1845, %v1847
        %v1849 = vrot.slane %v1713, %v1848
        %v1851 = vunpack.c.l.s4 1966171168
        %v1852 = vunpack.c.0.s8 %v1851
        %v1853 = vlaneseq
        %v1854 = vshrl.u32 %v1853, 7
        %v1855 = vsub.s32 %v1852, %v1854
        %v1856 = vrot.slane %v1849, %v1855
        %v1858 = vunpack.c.l.s4 1966171168
        %v1859 = vunpack.c.0.s8 %v1858
        %v1860 = vlaneseq
        %v1861 = vshrl.u32 %v1860, 7
        %v1862 = vsub.s32 %v1859, %v1861
        %v1863 = vrot.slane %v1714, %v1862
        %v1865 = vunpack.c.l.s4 1966171168
        %v1866 = vunpack.c.0.s8 %v1865
        %v1867 = vlaneseq
        %v1868 = vshrl.u32 %v1867, 7
        %v1869 = vsub.s32 %v1866, %v1868
        %v1870 = vrot.slane %v1863, %v1869
        %v1872 = vunpack.c.l.s4 1966171168
        %v1873 = vunpack.c.0.s8 %v1872
        %v1874 = vlaneseq
        %v1875 = vshrl.u32 %v1874, 7
        %v1876 = vsub.s32 %v1873, %v1875
        %v1877 = vrot.slane %v1715, %v1876
        %v1879 = vunpack.c.l.s4 1966171168
        %v1880 = vunpack.c.0.s8 %v1879
        %v1881 = vlaneseq
        %v1882 = vshrl.u32 %v1881, 7
        %v1883 = vsub.s32 %v1880, %v1882
        %v1884 = vrot.slane %v1877, %v1883
        %v1886 = vunpack.c.l.s4 1966171168
        %v1887 = vunpack.c.0.s8 %v1886
        %v1888 = vlaneseq
        %v1889 = vshrl.u32 %v1888, 7
        %v1890 = vsub.s32 %v1887, %v1889
        %v1891 = vrot.slane %v1716, %v1890
        %v1893 = vunpack.c.l.s4 1966171168
        %v1894 = vunpack.c.0.s8 %v1893
        %v1895 = vlaneseq
        %v1896 = vshrl.u32 %v1895, 7
        %v1897 = vsub.s32 %v1894, %v1896
        %v1898 = vrot.slane %v1891, %v1897
        %v1900 = vunpack.c.l.s4 1966171168
        %v1901 = vunpack.c.0.s8 %v1900
        %v1902 = vlaneseq
        %v1903 = vshrl.u32 %v1902, 7
        %v1904 = vsub.s32 %v1901, %v1903
        %v1905 = vrot.slane %v1717, %v1904
        %v1907 = vunpack.c.l.s4 1966171168
        %v1908 = vunpack.c.0.s8 %v1907
        %v1909 = vlaneseq
        %v1910 = vshrl.u32 %v1909, 7
        %v1911 = vsub.s32 %v1908, %v1910
        %v1912 = vrot.slane %v1905, %v1911
        %v1914 = vunpack.c.l.s4 1966171168
        %v1915 = vunpack.c.0.s8 %v1914
        %v1916 = vlaneseq
        %v1917 = vshrl.u32 %v1916, 7
        %v1918 = vsub.s32 %v1915, %v1917
        %v1919 = vrot.slane %v1718, %v1918
        %v1921 = vunpack.c.l.s4 1966171168
        %v1922 = vunpack.c.0.s8 %v1921
        %v1923 = vlaneseq
        %v1924 = vshrl.u32 %v1923, 7
        %v1925 = vsub.s32 %v1922, %v1924
        %v1926 = vrot.slane %v1919, %v1925
        %v1928 = vunpack.c.l.s4 1966171168
        %v1929 = vunpack.c.0.s8 %v1928
        %v1930 = vlaneseq
        %v1931 = vshrl.u32 %v1930, 7
        %v1932 = vsub.s32 %v1929, %v1931
        %v1933 = vrot.slane %v1719, %v1932
        %v1935 = vunpack.c.l.s4 1966171168
        %v1936 = vunpack.c.0.s8 %v1935
        %v1937 = vlaneseq
        %v1938 = vshrl.u32 %v1937, 7
        %v1939 = vsub.s32 %v1936, %v1938
        %v1940 = vrot.slane %v1933, %v1939
        %v1942 = vunpack.c.l.s4 1966171168
        %v1943 = vunpack.c.0.s8 %v1942
        %v1944 = vlaneseq
        %v1945 = vshrl.u32 %v1944, 7
        %v1946 = vsub.s32 %v1943, %v1945
        %v1947 = vrot.slane %v1720, %v1946
        %v1949 = vunpack.c.l.s4 1966171168
        %v1950 = vunpack.c.0.s8 %v1949
        %v1951 = vlaneseq
        %v1952 = vshrl.u32 %v1951, 7
        %v1953 = vsub.s32 %v1950, %v1952
        %v1954 = vrot.slane %v1947, %v1953
        %v1956 = vunpack.c.l.s4 1966171168
        %v1957 = vunpack.c.0.s8 %v1956
        %v1958 = vlaneseq
        %v1959 = vshrl.u32 %v1958, 7
        %v1960 = vsub.s32 %v1957, %v1959
        %v1961 = vrot.slane %v1721, %v1960
        %v1963 = vunpack.c.l.s4 1966171168
        %v1964 = vunpack.c.0.s8 %v1963
        %v1965 = vlaneseq
        %v1966 = vshrl.u32 %v1965, 7
        %v1967 = vsub.s32 %v1964, %v1966
        %v1968 = vrot.slane %v1961, %v1967
        %v1970 = vunpack.c.l.s4 1966171168
        %v1971 = vunpack.c.0.s8 %v1970
        %v1972 = vlaneseq
        %v1973 = vshrl.u32 %v1972, 7
        %v1974 = vsub.s32 %v1971, %v1973
        %v1975 = vrot.slane %v1722, %v1974
        %v1977 = vunpack.c.l.s4 1966171168
        %v1978 = vunpack.c.0.s8 %v1977
        %v1979 = vlaneseq
        %v1980 = vshrl.u32 %v1979, 7
        %v1981 = vsub.s32 %v1978, %v1980
        %v1982 = vrot.slane %v1975, %v1981
        %v1984 = vunpack.c.l.s4 1966171168
        %v1985 = vunpack.c.0.s8 %v1984
        %v1986 = vlaneseq
        %v1987 = vshrl.u32 %v1986, 7
        %v1988 = vsub.s32 %v1985, %v1987
        %v1989 = vrot.slane %v1723, %v1988
        %v1991 = vunpack.c.l.s4 1966171168
        %v1992 = vunpack.c.0.s8 %v1991
        %v1993 = vlaneseq
        %v1994 = vshrl.u32 %v1993, 7
        %v1995 = vsub.s32 %v1992, %v1994
        %v1996 = vrot.slane %v1989, %v1995
        %v1998 = vunpack.c.l.s4 1966171168
        %v1999 = vunpack.c.0.s8 %v1998
        %v2000 = vlaneseq
        %v2001 = vshrl.u32 %v2000, 7
        %v2002 = vsub.s32 %v1999, %v2001
        %v2003 = vrot.slane %v1724, %v2002
        %v2005 = vunpack.c.l.s4 1966171168
        %v2006 = vunpack.c.0.s8 %v2005
        %v2007 = vlaneseq
        %v2008 = vshrl.u32 %v2007, 7
        %v2009 = vsub.s32 %v2006, %v2008
        %v2010 = vrot.slane %v2003, %v2009
        %v2012 = vunpack.c.l.s4 1966171168
        %v2013 = vunpack.c.0.s8 %v2012
        %v2014 = vlaneseq
        %v2015 = vshrl.u32 %v2014, 7
        %v2016 = vsub.s32 %v2013, %v2015
        %v2017 = vrot.slane %v1725, %v2016
        %v2019 = vunpack.c.l.s4 1966171168
        %v2020 = vunpack.c.0.s8 %v2019
        %v2021 = vlaneseq
        %v2022 = vshrl.u32 %v2021, 7
        %v2023 = vsub.s32 %v2020, %v2022
        %v2024 = vrot.slane %v2017, %v2023
        %v2026 = vunpack.c.l.s4 1966171168
        %v2027 = vunpack.c.0.s8 %v2026
        %v2028 = vlaneseq
        %v2029 = vshrl.u32 %v2028, 7
        %v2030 = vsub.s32 %v2027, %v2029
        %v2031 = vrot.slane %v1726, %v2030
        %v2033 = vunpack.c.l.s4 1966171168
        %v2034 = vunpack.c.0.s8 %v2033
        %v2035 = vlaneseq
        %v2036 = vshrl.u32 %v2035, 7
        %v2037 = vsub.s32 %v2034, %v2036
        %v2038 = vrot.slane %v2031, %v2037
        %v2040 = vunpack.c.l.s4 1966171168
        %v2041 = vunpack.c.0.s8 %v2040
        %v2042 = vlaneseq
        %v2043 = vshrl.u32 %v2042, 7
        %v2044 = vsub.s32 %v2041, %v2043
        %v2045 = vrot.slane %v1727, %v2044
        %v2047 = vunpack.c.l.s4 1966171168
        %v2048 = vunpack.c.0.s8 %v2047
        %v2049 = vlaneseq
        %v2050 = vshrl.u32 %v2049, 7
        %v2051 = vsub.s32 %v2048, %v2050
        %v2052 = vrot.slane %v2045, %v2051
        %v2054 = vunpack.c.l.s4 1966171168
        %v2055 = vunpack.c.0.s8 %v2054
        %v2056 = vlaneseq
        %v2057 = vshrl.u32 %v2056, 7
        %v2058 = vsub.s32 %v2055, %v2057
        %v2059 = vrot.slane %v1728, %v2058
        %v2061 = vunpack.c.l.s4 1966171168
        %v2062 = vunpack.c.0.s8 %v2061
        %v2063 = vlaneseq
        %v2064 = vshrl.u32 %v2063, 7
        %v2065 = vsub.s32 %v2062, %v2064
        %v2066 = vrot.slane %v2059, %v2065
        %v2068 = vunpack.c.l.s4 1966171168
        %v2069 = vunpack.c.0.s8 %v2068
        %v2070 = vlaneseq
        %v2071 = vshrl.u32 %v2070, 7
        %v2072 = vsub.s32 %v2069, %v2071
        %v2073 = vrot.slane %v1729, %v2072
        %v2075 = vunpack.c.l.s4 1966171168
        %v2076 = vunpack.c.0.s8 %v2075
        %v2077 = vlaneseq
        %v2078 = vshrl.u32 %v2077, 7
        %v2079 = vsub.s32 %v2076, %v2078
        %v2080 = vrot.slane %v2073, %v2079
        %v2082 = vunpack.c.l.s4 1966171168
        %v2083 = vunpack.c.0.s8 %v2082
        %v2084 = vlaneseq
        %v2085 = vshrl.u32 %v2084, 7
        %v2086 = vsub.s32 %v2083, %v2085
        %v2087 = vrot.slane %v1730, %v2086
        %v2089 = vunpack.c.l.s4 1966171168
        %v2090 = vunpack.c.0.s8 %v2089
        %v2091 = vlaneseq
        %v2092 = vshrl.u32 %v2091, 7
        %v2093 = vsub.s32 %v2090, %v2092
        %v2094 = vrot.slane %v2087, %v2093
        %v2096 = vunpack.c.l.s4 1966171168
        %v2097 = vunpack.c.0.s8 %v2096
        %v2098 = vlaneseq
        %v2099 = vshrl.u32 %v2098, 7
        %v2100 = vsub.s32 %v2097, %v2099
        %v2101 = vrot.slane %v1731, %v2100
        %v2103 = vunpack.c.l.s4 1966171168
        %v2104 = vunpack.c.0.s8 %v2103
        %v2105 = vlaneseq
        %v2106 = vshrl.u32 %v2105, 7
        %v2107 = vsub.s32 %v2104, %v2106
        %v2108 = vrot.slane %v2101, %v2107
        %v2110 = vunpack.c.l.s4 1966171168
        %v2111 = vunpack.c.0.s8 %v2110
        %v2112 = vlaneseq
        %v2113 = vshrl.u32 %v2112, 7
        %v2114 = vsub.s32 %v2111, %v2113
        %v2115 = vrot.slane %v1732, %v2114
        %v2117 = vunpack.c.l.s4 1966171168
        %v2118 = vunpack.c.0.s8 %v2117
        %v2119 = vlaneseq
        %v2120 = vshrl.u32 %v2119, 7
        %v2121 = vsub.s32 %v2118, %v2120
        %v2122 = vrot.slane %v2115, %v2121
        %v2124 = vunpack.c.l.s4 1966171168
        %v2125 = vunpack.c.0.s8 %v2124
        %v2126 = vlaneseq
        %v2127 = vshrl.u32 %v2126, 7
        %v2128 = vsub.s32 %v2125, %v2127
        %v2129 = vrot.slane %v1733, %v2128
        %v2131 = vunpack.c.l.s4 1966171168
        %v2132 = vunpack.c.0.s8 %v2131
        %v2133 = vlaneseq
        %v2134 = vshrl.u32 %v2133, 7
        %v2135 = vsub.s32 %v2132, %v2134
        %v2136 = vrot.slane %v2129, %v2135
        %v2138 = vunpack.c.l.s4 1966171168
        %v2139 = vunpack.c.0.s8 %v2138
        %v2140 = vlaneseq
        %v2141 = vshrl.u32 %v2140, 7
        %v2142 = vsub.s32 %v2139, %v2141
        %v2143 = vrot.slane %v1734, %v2142
        %v2145 = vunpack.c.l.s4 1966171168
        %v2146 = vunpack.c.0.s8 %v2145
        %v2147 = vlaneseq
        %v2148 = vshrl.u32 %v2147, 7
        %v2149 = vsub.s32 %v2146, %v2148
        %v2150 = vrot.slane %v2143, %v2149
        %v2152 = vunpack.c.l.s4 1966171168
        %v2153 = vunpack.c.0.s8 %v2152
        %v2154 = vlaneseq
        %v2155 = vshrl.u32 %v2154, 7
        %v2156 = vsub.s32 %v2153, %v2155
        %v2157 = vrot.slane %v1735, %v2156
        %v2159 = vunpack.c.l.s4 1966171168
        %v2160 = vunpack.c.0.s8 %v2159
        %v2161 = vlaneseq
        %v2162 = vshrl.u32 %v2161, 7
        %v2163 = vsub.s32 %v2160, %v2162
        %v2164 = vrot.slane %v2157, %v2163
        %v2166 = vunpack.c.l.s4 1966171168
        %v2167 = vunpack.c.0.s8 %v2166
        %v2168 = vlaneseq
        %v2169 = vshrl.u32 %v2168, 7
        %v2170 = vsub.s32 %v2167, %v2169
        %v2171 = vrot.slane %v1736, %v2170
        %v2173 = vunpack.c.l.s4 1966171168
        %v2174 = vunpack.c.0.s8 %v2173
        %v2175 = vlaneseq
        %v2176 = vshrl.u32 %v2175, 7
        %v2177 = vsub.s32 %v2174, %v2176
        %v2178 = vrot.slane %v2171, %v2177
        %v2180 = vunpack.c.l.s4 1966171168
        %v2181 = vunpack.c.0.s8 %v2180
        %v2182 = vlaneseq
        %v2183 = vshrl.u32 %v2182, 7
        %v2184 = vsub.s32 %v2181, %v2183
        %v2185 = vrot.slane %v1737, %v2184
        %v2187 = vunpack.c.l.s4 1966171168
        %v2188 = vunpack.c.0.s8 %v2187
        %v2189 = vlaneseq
        %v2190 = vshrl.u32 %v2189, 7
        %v2191 = vsub.s32 %v2188, %v2190
        %v2192 = vrot.slane %v2185, %v2191
        %v2194 = vunpack.c.l.s4 1966171168
        %v2195 = vunpack.c.0.s8 %v2194
        %v2196 = vlaneseq
        %v2197 = vshrl.u32 %v2196, 7
        %v2198 = vsub.s32 %v2195, %v2197
        %v2199 = vrot.slane %v1738, %v2198
        %v2201 = vunpack.c.l.s4 1966171168
        %v2202 = vunpack.c.0.s8 %v2201
        %v2203 = vlaneseq
        %v2204 = vshrl.u32 %v2203, 7
        %v2205 = vsub.s32 %v2202, %v2204
        %v2206 = vrot.slane %v2199, %v2205
        %v2208 = vunpack.c.l.s4 1966171168
        %v2209 = vunpack.c.0.s8 %v2208
        %v2210 = vlaneseq
        %v2211 = vshrl.u32 %v2210, 7
        %v2212 = vsub.s32 %v2209, %v2211
        %v2213 = vrot.slane %v1739, %v2212
        %v2215 = vunpack.c.l.s4 1966171168
        %v2216 = vunpack.c.0.s8 %v2215
        %v2217 = vlaneseq
        %v2218 = vshrl.u32 %v2217, 7
        %v2219 = vsub.s32 %v2216, %v2218
        %v2220 = vrot.slane %v2213, %v2219
        %v2222 = vunpack.c.l.s4 1966171168
        %v2223 = vunpack.c.0.s8 %v2222
        %v2224 = vlaneseq
        %v2225 = vshrl.u32 %v2224, 7
        %v2226 = vsub.s32 %v2223, %v2225
        %v2227 = vrot.slane %v1740, %v2226
        %v2229 = vunpack.c.l.s4 1966171168
        %v2230 = vunpack.c.0.s8 %v2229
        %v2231 = vlaneseq
        %v2232 = vshrl.u32 %v2231, 7
        %v2233 = vsub.s32 %v2230, %v2232
        %v2234 = vrot.slane %v2227, %v2233
        %v2236 = vunpack.c.l.s4 1966171168
        %v2237 = vunpack.c.0.s8 %v2236
        %v2238 = vlaneseq
        %v2239 = vshrl.u32 %v2238, 7
        %v2240 = vsub.s32 %v2237, %v2239
        %v2241 = vrot.slane %v1741, %v2240
        %v2243 = vunpack.c.l.s4 1966171168
        %v2244 = vunpack.c.0.s8 %v2243
        %v2245 = vlaneseq
        %v2246 = vshrl.u32 %v2245, 7
        %v2247 = vsub.s32 %v2244, %v2246
        %v2248 = vrot.slane %v2241, %v2247
        %v2250 = vunpack.c.l.s4 1966171168
        %v2251 = vunpack.c.0.s8 %v2250
        %v2252 = vlaneseq
        %v2253 = vshrl.u32 %v2252, 7
        %v2254 = vsub.s32 %v2251, %v2253
        %v2255 = vrot.slane %v1742, %v2254
        %v2257 = vunpack.c.l.s4 1966171168
        %v2258 = vunpack.c.0.s8 %v2257
        %v2259 = vlaneseq
        %v2260 = vshrl.u32 %v2259, 7
        %v2261 = vsub.s32 %v2258, %v2260
        %v2262 = vrot.slane %v2255, %v2261
        %v2264 = vunpack.c.l.s4 1966171168
        %v2265 = vunpack.c.0.s8 %v2264
        %v2266 = vlaneseq
        %v2267 = vshrl.u32 %v2266, 7
        %v2268 = vsub.s32 %v2265, %v2267
        %v2269 = vrot.slane %v1743, %v2268
        %v2271 = vunpack.c.l.s4 1966171168
        %v2272 = vunpack.c.0.s8 %v2271
        %v2273 = vlaneseq
        %v2274 = vshrl.u32 %v2273, 7
        %v2275 = vsub.s32 %v2272, %v2274
        %v2276 = vrot.slane %v2269, %v2275
        %v2278 = vunpack.c.l.s4 1966171168
        %v2279 = vunpack.c.0.s8 %v2278
        %v2280 = vlaneseq
        %v2281 = vshrl.u32 %v2280, 7
        %v2282 = vsub.s32 %v2279, %v2281
        %v2283 = vrot.slane %v1744, %v2282
        %v2285 = vunpack.c.l.s4 1966171168
        %v2286 = vunpack.c.0.s8 %v2285
        %v2287 = vlaneseq
        %v2288 = vshrl.u32 %v2287, 7
        %v2289 = vsub.s32 %v2286, %v2288
        %v2290 = vrot.slane %v2283, %v2289
        %v2292 = vunpack.c.l.s4 1966171168
        %v2293 = vunpack.c.0.s8 %v2292
        %v2294 = vlaneseq
        %v2295 = vshrl.u32 %v2294, 7
        %v2296 = vsub.s32 %v2293, %v2295
        %v2297 = vrot.slane %v1745, %v2296
        %v2299 = vunpack.c.l.s4 1966171168
        %v2300 = vunpack.c.0.s8 %v2299
        %v2301 = vlaneseq
        %v2302 = vshrl.u32 %v2301, 7
        %v2303 = vsub.s32 %v2300, %v2302
        %v2304 = vrot.slane %v2297, %v2303
        %v2306 = vunpack.c.l.s4 1966171168
        %v2307 = vunpack.c.0.s8 %v2306
        %v2308 = vlaneseq
        %v2309 = vshrl.u32 %v2308, 7
        %v2310 = vsub.s32 %v2307, %v2309
        %v2311 = vrot.slane %v1746, %v2310
        %v2313 = vunpack.c.l.s4 1966171168
        %v2314 = vunpack.c.0.s8 %v2313
        %v2315 = vlaneseq
        %v2316 = vshrl.u32 %v2315, 7
        %v2317 = vsub.s32 %v2314, %v2316
        %v2318 = vrot.slane %v2311, %v2317
        %v2320 = vunpack.c.l.s4 1966171168
        %v2321 = vunpack.c.0.s8 %v2320
        %v2322 = vlaneseq
        %v2323 = vshrl.u32 %v2322, 7
        %v2324 = vsub.s32 %v2321, %v2323
        %v2325 = vrot.slane %v1747, %v2324
        %v2327 = vunpack.c.l.s4 1966171168
        %v2328 = vunpack.c.0.s8 %v2327
        %v2329 = vlaneseq
        %v2330 = vshrl.u32 %v2329, 7
        %v2331 = vsub.s32 %v2328, %v2330
        %v2332 = vrot.slane %v2325, %v2331
        %v2334 = vunpack.c.l.s4 1966171168
        %v2335 = vunpack.c.0.s8 %v2334
        %v2336 = vlaneseq
        %v2337 = vshrl.u32 %v2336, 7
        %v2338 = vsub.s32 %v2335, %v2337
        %v2339 = vrot.slane %v1748, %v2338
        %v2341 = vunpack.c.l.s4 1966171168
        %v2342 = vunpack.c.0.s8 %v2341
        %v2343 = vlaneseq
        %v2344 = vshrl.u32 %v2343, 7
        %v2345 = vsub.s32 %v2342, %v2344
        %v2346 = vrot.slane %v2339, %v2345
        %v2348 = vunpack.c.l.s4 1966171168
        %v2349 = vunpack.c.0.s8 %v2348
        %v2350 = vlaneseq
        %v2351 = vshrl.u32 %v2350, 7
        %v2352 = vsub.s32 %v2349, %v2351
        %v2353 = vrot.slane %v1749, %v2352
        %v2355 = vunpack.c.l.s4 1966171168
        %v2356 = vunpack.c.0.s8 %v2355
        %v2357 = vlaneseq
        %v2358 = vshrl.u32 %v2357, 7
        %v2359 = vsub.s32 %v2356, %v2358
        %v2360 = vrot.slane %v2353, %v2359
        %v2362 = vunpack.c.l.s4 1966171168
        %v2363 = vunpack.c.0.s8 %v2362
        %v2364 = vlaneseq
        %v2365 = vshrl.u32 %v2364, 7
        %v2366 = vsub.s32 %v2363, %v2365
        %v2367 = vrot.slane %v1750, %v2366
        %v2369 = vunpack.c.l.s4 1966171168
        %v2370 = vunpack.c.0.s8 %v2369
        %v2371 = vlaneseq
        %v2372 = vshrl.u32 %v2371, 7
        %v2373 = vsub.s32 %v2370, %v2372
        %v2374 = vrot.slane %v2367, %v2373
        %v2376 = vunpack.c.l.s4 1966171168
        %v2377 = vunpack.c.0.s8 %v2376
        %v2378 = vlaneseq
        %v2379 = vshrl.u32 %v2378, 7
        %v2380 = vsub.s32 %v2377, %v2379
        %v2381 = vrot.slane %v1751, %v2380
        %v2383 = vunpack.c.l.s4 1966171168
        %v2384 = vunpack.c.0.s8 %v2383
        %v2385 = vlaneseq
        %v2386 = vshrl.u32 %v2385, 7
        %v2387 = vsub.s32 %v2384, %v2386
        %v2388 = vrot.slane %v2381, %v2387
        %v2390 = vunpack.c.l.s4 1966171168
        %v2391 = vunpack.c.0.s8 %v2390
        %v2392 = vlaneseq
        %v2393 = vshrl.u32 %v2392, 7
        %v2394 = vsub.s32 %v2391, %v2393
        %v2395 = vrot.slane %v1752, %v2394
        %v2397 = vunpack.c.l.s4 1966171168
        %v2398 = vunpack.c.0.s8 %v2397
        %v2399 = vlaneseq
        %v2400 = vshrl.u32 %v2399, 7
        %v2401 = vsub.s32 %v2398, %v2400
        %v2402 = vrot.slane %v2395, %v2401
        %v2404 = vunpack.c.l.s4 1966171168
        %v2405 = vunpack.c.0.s8 %v2404
        %v2406 = vlaneseq
        %v2407 = vshrl.u32 %v2406, 7
        %v2408 = vsub.s32 %v2405, %v2407
        %v2409 = vrot.slane %v1753, %v2408
        %v2411 = vunpack.c.l.s4 1966171168
        %v2412 = vunpack.c.0.s8 %v2411
        %v2413 = vlaneseq
        %v2414 = vshrl.u32 %v2413, 7
        %v2415 = vsub.s32 %v2412, %v2414
        %v2416 = vrot.slane %v2409, %v2415
        %v2418 = vunpack.c.l.s4 1966171168
        %v2419 = vunpack.c.0.s8 %v2418
        %v2420 = vlaneseq
        %v2421 = vshrl.u32 %v2420, 7
        %v2422 = vsub.s32 %v2419, %v2421
        %v2423 = vrot.slane %v1754, %v2422
        %v2425 = vunpack.c.l.s4 1966171168
        %v2426 = vunpack.c.0.s8 %v2425
        %v2427 = vlaneseq
        %v2428 = vshrl.u32 %v2427, 7
        %v2429 = vsub.s32 %v2426, %v2428
        %v2430 = vrot.slane %v2423, %v2429
        %v2432 = vunpack.c.l.s4 1966171168
        %v2433 = vunpack.c.0.s8 %v2432
        %v2434 = vlaneseq
        %v2435 = vshrl.u32 %v2434, 7
        %v2436 = vsub.s32 %v2433, %v2435
        %v2437 = vrot.slane %v1755, %v2436
        %v2439 = vunpack.c.l.s4 1966171168
        %v2440 = vunpack.c.0.s8 %v2439
        %v2441 = vlaneseq
        %v2442 = vshrl.u32 %v2441, 7
        %v2443 = vsub.s32 %v2440, %v2442
        %v2444 = vrot.slane %v2437, %v2443
        %v2446 = vunpack.c.l.s4 1966171168
        %v2447 = vunpack.c.0.s8 %v2446
        %v2448 = vlaneseq
        %v2449 = vshrl.u32 %v2448, 7
        %v2450 = vsub.s32 %v2447, %v2449
        %v2451 = vrot.slane %v1756, %v2450
        %v2453 = vunpack.c.l.s4 1966171168
        %v2454 = vunpack.c.0.s8 %v2453
        %v2455 = vlaneseq
        %v2456 = vshrl.u32 %v2455, 7
        %v2457 = vsub.s32 %v2454, %v2456
        %v2458 = vrot.slane %v2451, %v2457
        %v2460 = vunpack.c.l.s4 1966171168
        %v2461 = vunpack.c.0.s8 %v2460
        %v2462 = vlaneseq
        %v2463 = vshrl.u32 %v2462, 7
        %v2464 = vsub.s32 %v2461, %v2463
        %v2465 = vrot.slane %v1757, %v2464
        %v2467 = vunpack.c.l.s4 1966171168
        %v2468 = vunpack.c.0.s8 %v2467
        %v2469 = vlaneseq
        %v2470 = vshrl.u32 %v2469, 7
        %v2471 = vsub.s32 %v2468, %v2470
        %v2472 = vrot.slane %v2465, %v2471
        %v2474 = vunpack.c.l.s4 1966171168
        %v2475 = vunpack.c.0.s8 %v2474
        %v2476 = vlaneseq
        %v2477 = vshrl.u32 %v2476, 7
        %v2478 = vsub.s32 %v2475, %v2477
        %v2479 = vrot.slane %v1758, %v2478
        %v2481 = vunpack.c.l.s4 1966171168
        %v2482 = vunpack.c.0.s8 %v2481
        %v2483 = vlaneseq
        %v2484 = vshrl.u32 %v2483, 7
        %v2485 = vsub.s32 %v2482, %v2484
        %v2486 = vrot.slane %v2479, %v2485
        %v2488 = vunpack.c.l.s4 1966171168
        %v2489 = vunpack.c.0.s8 %v2488
        %v2490 = vlaneseq
        %v2491 = vshrl.u32 %v2490, 7
        %v2492 = vsub.s32 %v2489, %v2491
        %v2493 = vrot.slane %v1759, %v2492
        %v2495 = vunpack.c.l.s4 1966171168
        %v2496 = vunpack.c.0.s8 %v2495
        %v2497 = vlaneseq
        %v2498 = vshrl.u32 %v2497, 7
        %v2499 = vsub.s32 %v2496, %v2498
        %v2500 = vrot.slane %v2493, %v2499
        %v2502 = vunpack.c.l.s4 1966171168
        %v2503 = vunpack.c.0.s8 %v2502
        %v2504 = vlaneseq
        %v2505 = vshrl.u32 %v2504, 7
        %v2506 = vsub.s32 %v2503, %v2505
        %v2507 = vrot.slane %v1760, %v2506
        %v2509 = vunpack.c.l.s4 1966171168
        %v2510 = vunpack.c.0.s8 %v2509
        %v2511 = vlaneseq
        %v2512 = vshrl.u32 %v2511, 7
        %v2513 = vsub.s32 %v2510, %v2512
        %v2514 = vrot.slane %v2507, %v2513
        %v2516 = vunpack.c.l.s4 1966171168
        %v2517 = vunpack.c.0.s8 %v2516
        %v2518 = vlaneseq
        %v2519 = vshrl.u32 %v2518, 7
        %v2520 = vsub.s32 %v2517, %v2519
        %v2521 = vrot.slane %v1761, %v2520
        %v2523 = vunpack.c.l.s4 1966171168
        %v2524 = vunpack.c.0.s8 %v2523
        %v2525 = vlaneseq
        %v2526 = vshrl.u32 %v2525, 7
        %v2527 = vsub.s32 %v2524, %v2526
        %v2528 = vrot.slane %v2521, %v2527
        %v2530 = vunpack.c.l.s4 1966171168
        %v2531 = vunpack.c.0.s8 %v2530
        %v2532 = vlaneseq
        %v2533 = vshrl.u32 %v2532, 7
        %v2534 = vsub.s32 %v2531, %v2533
        %v2535 = vrot.slane %v1762, %v2534
        %v2537 = vunpack.c.l.s4 1966171168
        %v2538 = vunpack.c.0.s8 %v2537
        %v2539 = vlaneseq
        %v2540 = vshrl.u32 %v2539, 7
        %v2541 = vsub.s32 %v2538, %v2540
        %v2542 = vrot.slane %v2535, %v2541
        %v2544 = vunpack.c.l.s4 1966171168
        %v2545 = vunpack.c.0.s8 %v2544
        %v2546 = vlaneseq
        %v2547 = vshrl.u32 %v2546, 7
        %v2548 = vsub.s32 %v2545, %v2547
        %v2549 = vrot.slane %v1763, %v2548
        %v2551 = vunpack.c.l.s4 1966171168
        %v2552 = vunpack.c.0.s8 %v2551
        %v2553 = vlaneseq
        %v2554 = vshrl.u32 %v2553, 7
        %v2555 = vsub.s32 %v2552, %v2554
        %v2556 = vrot.slane %v2549, %v2555
        %v2558 = vunpack.c.l.s4 1966171168
        %v2559 = vunpack.c.0.s8 %v2558
        %v2560 = vlaneseq
        %v2561 = vshrl.u32 %v2560, 7
        %v2562 = vsub.s32 %v2559, %v2561
        %v2563 = vrot.slane %v1764, %v2562
        %v2565 = vunpack.c.l.s4 1966171168
        %v2566 = vunpack.c.0.s8 %v2565
        %v2567 = vlaneseq
        %v2568 = vshrl.u32 %v2567, 7
        %v2569 = vsub.s32 %v2566, %v2568
        %v2570 = vrot.slane %v2563, %v2569
        %v2572 = vunpack.c.l.s4 1966171168
        %v2573 = vunpack.c.0.s8 %v2572
        %v2574 = vlaneseq
        %v2575 = vshrl.u32 %v2574, 7
        %v2576 = vsub.s32 %v2573, %v2575
        %v2577 = vrot.slane %v1765, %v2576
        %v2579 = vunpack.c.l.s4 1966171168
        %v2580 = vunpack.c.0.s8 %v2579
        %v2581 = vlaneseq
        %v2582 = vshrl.u32 %v2581, 7
        %v2583 = vsub.s32 %v2580, %v2582
        %v2584 = vrot.slane %v2577, %v2583
        %v2586 = vunpack.c.l.s4 1966171168
        %v2587 = vunpack.c.0.s8 %v2586
        %v2588 = vlaneseq
        %v2589 = vshrl.u32 %v2588, 7
        %v2590 = vsub.s32 %v2587, %v2589
        %v2591 = vrot.slane %v1766, %v2590
        %v2593 = vunpack.c.l.s4 1966171168
        %v2594 = vunpack.c.0.s8 %v2593
        %v2595 = vlaneseq
        %v2596 = vshrl.u32 %v2595, 7
        %v2597 = vsub.s32 %v2594, %v2596
        %v2598 = vrot.slane %v2591, %v2597
        %v2600 = vunpack.c.l.s4 1966171168
        %v2601 = vunpack.c.0.s8 %v2600
        %v2602 = vlaneseq
        %v2603 = vshrl.u32 %v2602, 7
        %v2604 = vsub.s32 %v2601, %v2603
        %v2605 = vrot.slane %v1767, %v2604
        %v2607 = vunpack.c.l.s4 1966171168
        %v2608 = vunpack.c.0.s8 %v2607
        %v2609 = vlaneseq
        %v2610 = vshrl.u32 %v2609, 7
        %v2611 = vsub.s32 %v2608, %v2610
        %v2612 = vrot.slane %v2605, %v2611
        %v2614 = vunpack.c.l.s4 1966171168
        %v2615 = vunpack.c.0.s8 %v2614
        %v2616 = vlaneseq
        %v2617 = vshrl.u32 %v2616, 7
        %v2618 = vsub.s32 %v2615, %v2617
        %v2619 = vrot.slane %v1768, %v2618
        %v2621 = vunpack.c.l.s4 1966171168
        %v2622 = vunpack.c.0.s8 %v2621
        %v2623 = vlaneseq
        %v2624 = vshrl.u32 %v2623, 7
        %v2625 = vsub.s32 %v2622, %v2624
        %v2626 = vrot.slane %v2619, %v2625
        %v2628 = vunpack.c.l.s4 1966171168
        %v2629 = vunpack.c.0.s8 %v2628
        %v2630 = vlaneseq
        %v2631 = vshrl.u32 %v2630, 7
        %v2632 = vsub.s32 %v2629, %v2631
        %v2633 = vrot.slane %v1769, %v2632
        %v2635 = vunpack.c.l.s4 1966171168
        %v2636 = vunpack.c.0.s8 %v2635
        %v2637 = vlaneseq
        %v2638 = vshrl.u32 %v2637, 7
        %v2639 = vsub.s32 %v2636, %v2638
        %v2640 = vrot.slane %v2633, %v2639
        %v2642 = vunpack.c.l.s4 1966171168
        %v2643 = vunpack.c.0.s8 %v2642
        %v2644 = vlaneseq
        %v2645 = vshrl.u32 %v2644, 7
        %v2646 = vsub.s32 %v2643, %v2645
        %v2647 = vrot.slane %v1770, %v2646
        %v2649 = vunpack.c.l.s4 1966171168
        %v2650 = vunpack.c.0.s8 %v2649
        %v2651 = vlaneseq
        %v2652 = vshrl.u32 %v2651, 7
        %v2653 = vsub.s32 %v2650, %v2652
        %v2654 = vrot.slane %v2647, %v2653
        %v2656 = vunpack.c.l.s4 1966171168
        %v2657 = vunpack.c.0.s8 %v2656
        %v2658 = vlaneseq
        %v2659 = vshrl.u32 %v2658, 7
        %v2660 = vsub.s32 %v2657, %v2659
        %v2661 = vrot.slane %v1771, %v2660
        %v2663 = vunpack.c.l.s4 1966171168
        %v2664 = vunpack.c.0.s8 %v2663
        %v2665 = vlaneseq
        %v2666 = vshrl.u32 %v2665, 7
        %v2667 = vsub.s32 %v2664, %v2666
        %v2668 = vrot.slane %v2661, %v2667
        %v2670 = vunpack.c.l.s4 1966171168
        %v2671 = vunpack.c.0.s8 %v2670
        %v2672 = vlaneseq
        %v2673 = vshrl.u32 %v2672, 7
        %v2674 = vsub.s32 %v2671, %v2673
        %v2675 = vrot.slane %v1772, %v2674
        %v2677 = vunpack.c.l.s4 1966171168
        %v2678 = vunpack.c.0.s8 %v2677
        %v2679 = vlaneseq
        %v2680 = vshrl.u32 %v2679, 7
        %v2681 = vsub.s32 %v2678, %v2680
        %v2682 = vrot.slane %v2675, %v2681
        %v2684 = vunpack.c.l.s4 1966171168
        %v2685 = vunpack.c.0.s8 %v2684
        %v2686 = vlaneseq
        %v2687 = vshrl.u32 %v2686, 7
        %v2688 = vsub.s32 %v2685, %v2687
        %v2689 = vrot.slane %v1773, %v2688
        %v2691 = vunpack.c.l.s4 1966171168
        %v2692 = vunpack.c.0.s8 %v2691
        %v2693 = vlaneseq
        %v2694 = vshrl.u32 %v2693, 7
        %v2695 = vsub.s32 %v2692, %v2694
        %v2696 = vrot.slane %v2689, %v2695
        %v2698 = vunpack.c.l.s4 1966171168
        %v2699 = vunpack.c.0.s8 %v2698
        %v2700 = vlaneseq
        %v2701 = vshrl.u32 %v2700, 7
        %v2702 = vsub.s32 %v2699, %v2701
        %v2703 = vrot.slane %v1774, %v2702
        %v2705 = vunpack.c.l.s4 1966171168
        %v2706 = vunpack.c.0.s8 %v2705
        %v2707 = vlaneseq
        %v2708 = vshrl.u32 %v2707, 7
        %v2709 = vsub.s32 %v2706, %v2708
        %v2710 = vrot.slane %v2703, %v2709
        %v2712 = vunpack.c.l.s4 1966171168
        %v2713 = vunpack.c.0.s8 %v2712
        %v2714 = vlaneseq
        %v2715 = vshrl.u32 %v2714, 7
        %v2716 = vsub.s32 %v2713, %v2715
        %v2717 = vrot.slane %v1775, %v2716
        %v2719 = vunpack.c.l.s4 1966171168
        %v2720 = vunpack.c.0.s8 %v2719
        %v2721 = vlaneseq
        %v2722 = vshrl.u32 %v2721, 7
        %v2723 = vsub.s32 %v2720, %v2722
        %v2724 = vrot.slane %v2717, %v2723
        %v2726 = vunpack.c.l.s4 1966171168
        %v2727 = vunpack.c.0.s8 %v2726
        %v2728 = vlaneseq
        %v2729 = vshrl.u32 %v2728, 7
        %v2730 = vsub.s32 %v2727, %v2729
        %v2731 = vrot.slane %v1776, %v2730
        %v2733 = vunpack.c.l.s4 1966171168
        %v2734 = vunpack.c.0.s8 %v2733
        %v2735 = vlaneseq
        %v2736 = vshrl.u32 %v2735, 7
        %v2737 = vsub.s32 %v2734, %v2736
        %v2738 = vrot.slane %v2731, %v2737
        %v2739 = vunpack.c.l.b16 %v1856
        %v2740 = vunpack.c.l.b16 %v1870
        %v2741 = vunpack.c.l.b16 %v1884
        %v2742 = vunpack.c.l.b16 %v1898
        %v2743 = vunpack.c.l.b16 %v1912
        %v2744 = vunpack.c.l.b16 %v1926
        %v2745 = vunpack.c.l.b16 %v1940
        %v2746 = vunpack.c.l.b16 %v1954
        %v2747 = vunpack.c.l.b16 %v1968
        %v2748 = vunpack.c.l.b16 %v1982
        %v2749 = vunpack.c.l.b16 %v1996
        %v2750 = vunpack.c.l.b16 %v2010
        %v2751 = vunpack.c.l.b16 %v2024
        %v2752 = vunpack.c.l.b16 %v2038
        %v2753 = vunpack.c.l.b16 %v2052
        %v2754 = vunpack.c.l.b16 %v2066
        %v2755 = vunpack.c.l.b16 %v2080
        %v2756 = vunpack.c.l.b16 %v2094
        %v2757 = vunpack.c.l.b16 %v2108
        %v2758 = vunpack.c.l.b16 %v2122
        %v2759 = vunpack.c.l.b16 %v2136
        %v2760 = vunpack.c.l.b16 %v2150
        %v2761 = vunpack.c.l.b16 %v2164
        %v2762 = vunpack.c.l.b16 %v2178
        %v2763 = vunpack.c.l.b16 %v2192
        %v2764 = vunpack.c.l.b16 %v2206
        %v2765 = vunpack.c.l.b16 %v2220
        %v2766 = vunpack.c.l.b16 %v2234
        %v2767 = vunpack.c.l.b16 %v2248
        %v2768 = vunpack.c.l.b16 %v2262
        %v2769 = vunpack.c.l.b16 %v2276
        %v2770 = vunpack.c.l.b16 %v2290
        %v2771 = vunpack.c.l.b16 %v2304
        %v2772 = vunpack.c.l.b16 %v2318
        %v2773 = vunpack.c.l.b16 %v2332
        %v2774 = vunpack.c.l.b16 %v2346
        %v2775 = vunpack.c.l.b16 %v2360
        %v2776 = vunpack.c.l.b16 %v2374
        %v2777 = vunpack.c.l.b16 %v2388
        %v2778 = vunpack.c.l.b16 %v2402
        %v2779 = vunpack.c.l.b16 %v2416
        %v2780 = vunpack.c.l.b16 %v2430
        %v2781 = vunpack.c.l.b16 %v2444
        %v2782 = vunpack.c.l.b16 %v2458
        %v2783 = vunpack.c.l.b16 %v2472
        %v2784 = vunpack.c.l.b16 %v2486
        %v2785 = vunpack.c.l.b16 %v2500
        %v2786 = vunpack.c.l.b16 %v2514
        %v2787 = vunpack.c.l.b16 %v2528
        %v2788 = vunpack.c.l.b16 %v2542
        %v2789 = vunpack.c.l.b16 %v2556
        %v2790 = vunpack.c.l.b16 %v2570
        %v2791 = vunpack.c.l.b16 %v2584
        %v2792 = vunpack.c.l.b16 %v2598
        %v2793 = vunpack.c.l.b16 %v2612
        %v2794 = vunpack.c.l.b16 %v2626
        %v2795 = vunpack.c.l.b16 %v2640
        %v2796 = vunpack.c.l.b16 %v2654
        %v2797 = vunpack.c.l.b16 %v2668
        %v2798 = vunpack.c.l.b16 %v2682
        %v2799 = vunpack.c.l.b16 %v2696
        %v2800 = vunpack.c.l.b16 %v2710
        %v2801 = vunpack.c.l.b16 %v2724
        %v2802 = vunpack.c.l.b16 %v2738
        %v2803 = vrot.slane %v2740, 7
        %v2804 = vsel %vm1312, %v2803, %v2739
        %v2805 = vrot.slane %v2741, 6
        %v2806 = vsel %vm1315, %v2805, %v2804
        %v2807 = vrot.slane %v2742, 5
        %v2808 = vsel %vm1318, %v2807, %v2806
        %v2809 = vrot.slane %v2743, 4
        %v2810 = vsel %vm1321, %v2809, %v2808
        %v2811 = vrot.slane %v2744, 3
        %v2812 = vsel %vm1324, %v2811, %v2810
        %v2813 = vrot.slane %v2745, 2
        %v2814 = vsel %vm1327, %v2813, %v2812
        %v2815 = vrot.slane %v2746, 1
        %v2816 = vsel %vm1330, %v2815, %v2814
        %v2817 = vrot.slane %v2748, 7
        %v2818 = vsel %vm1312, %v2817, %v2747
        %v2819 = vrot.slane %v2749, 6
        %v2820 = vsel %vm1315, %v2819, %v2818
        %v2821 = vrot.slane %v2750, 5
        %v2822 = vsel %vm1318, %v2821, %v2820
        %v2823 = vrot.slane %v2751, 4
        %v2824 = vsel %vm1321, %v2823, %v2822
        %v2825 = vrot.slane %v2752, 3
        %v2826 = vsel %vm1324, %v2825, %v2824
        %v2827 = vrot.slane %v2753, 2
        %v2828 = vsel %vm1327, %v2827, %v2826
        %v2829 = vrot.slane %v2754, 1
        %v2830 = vsel %vm1330, %v2829, %v2828
        %v2831 = vrot.slane %v2756, 7
        %v2832 = vsel %vm1312, %v2831, %v2755
        %v2833 = vrot.slane %v2757, 6
        %v2834 = vsel %vm1315, %v2833, %v2832
        %v2835 = vrot.slane %v2758, 5
        %v2836 = vsel %vm1318, %v2835, %v2834
        %v2837 = vrot.slane %v2759, 4
        %v2838 = vsel %vm1321, %v2837, %v2836
        %v2839 = vrot.slane %v2760, 3
        %v2840 = vsel %vm1324, %v2839, %v2838
        %v2841 = vrot.slane %v2761, 2
        %v2842 = vsel %vm1327, %v2841, %v2840
        %v2843 = vrot.slane %v2762, 1
        %v2844 = vsel %vm1330, %v2843, %v2842
        %v2845 = vrot.slane %v2764, 7
        %v2846 = vsel %vm1312, %v2845, %v2763
        %v2847 = vrot.slane %v2765, 6
        %v2848 = vsel %vm1315, %v2847, %v2846
        %v2849 = vrot.slane %v2766, 5
        %v2850 = vsel %vm1318, %v2849, %v2848
        %v2851 = vrot.slane %v2767, 4
        %v2852 = vsel %vm1321, %v2851, %v2850
        %v2853 = vrot.slane %v2768, 3
        %v2854 = vsel %vm1324, %v2853, %v2852
        %v2855 = vrot.slane %v2769, 2
        %v2856 = vsel %vm1327, %v2855, %v2854
        %v2857 = vrot.slane %v2770, 1
        %v2858 = vsel %vm1330, %v2857, %v2856
        %v2859 = vrot.slane %v2772, 7
        %v2860 = vsel %vm1312, %v2859, %v2771
        %v2861 = vrot.slane %v2773, 6
        %v2862 = vsel %vm1315, %v2861, %v2860
        %v2863 = vrot.slane %v2774, 5
        %v2864 = vsel %vm1318, %v2863, %v2862
        %v2865 = vrot.slane %v2775, 4
        %v2866 = vsel %vm1321, %v2865, %v2864
        %v2867 = vrot.slane %v2776, 3
        %v2868 = vsel %vm1324, %v2867, %v2866
        %v2869 = vrot.slane %v2777, 2
        %v2870 = vsel %vm1327, %v2869, %v2868
        %v2871 = vrot.slane %v2778, 1
        %v2872 = vsel %vm1330, %v2871, %v2870
        %v2873 = vrot.slane %v2780, 7
        %v2874 = vsel %vm1312, %v2873, %v2779
        %v2875 = vrot.slane %v2781, 6
        %v2876 = vsel %vm1315, %v2875, %v2874
        %v2877 = vrot.slane %v2782, 5
        %v2878 = vsel %vm1318, %v2877, %v2876
        %v2879 = vrot.slane %v2783, 4
        %v2880 = vsel %vm1321, %v2879, %v2878
        %v2881 = vrot.slane %v2784, 3
        %v2882 = vsel %vm1324, %v2881, %v2880
        %v2883 = vrot.slane %v2785, 2
        %v2884 = vsel %vm1327, %v2883, %v2882
        %v2885 = vrot.slane %v2786, 1
        %v2886 = vsel %vm1330, %v2885, %v2884
        %v2887 = vrot.slane %v2788, 7
        %v2888 = vsel %vm1312, %v2887, %v2787
        %v2889 = vrot.slane %v2789, 6
        %v2890 = vsel %vm1315, %v2889, %v2888
        %v2891 = vrot.slane %v2790, 5
        %v2892 = vsel %vm1318, %v2891, %v2890
        %v2893 = vrot.slane %v2791, 4
        %v2894 = vsel %vm1321, %v2893, %v2892
        %v2895 = vrot.slane %v2792, 3
        %v2896 = vsel %vm1324, %v2895, %v2894
        %v2897 = vrot.slane %v2793, 2
        %v2898 = vsel %vm1327, %v2897, %v2896
        %v2899 = vrot.slane %v2794, 1
        %v2900 = vsel %vm1330, %v2899, %v2898
        %v2901 = vrot.slane %v2796, 7
        %v2902 = vsel %vm1312, %v2901, %v2795
        %v2903 = vrot.slane %v2797, 6
        %v2904 = vsel %vm1315, %v2903, %v2902
        %v2905 = vrot.slane %v2798, 5
        %v2906 = vsel %vm1318, %v2905, %v2904
        %v2907 = vrot.slane %v2799, 4
        %v2908 = vsel %vm1321, %v2907, %v2906
        %v2909 = vrot.slane %v2800, 3
        %v2910 = vsel %vm1324, %v2909, %v2908
        %v2911 = vrot.slane %v2801, 2
        %v2912 = vsel %vm1327, %v2911, %v2910
        %v2913 = vrot.slane %v2802, 1
        %v2914 = vsel %vm1330, %v2913, %v2912
        %v2915 = vpack.c.b16 %v2830, %v2816
        %v2916 = vpack.c.b16 %v2858, %v2844
        %v2917 = vpack.c.b16 %v2886, %v2872
        %v2918 = vpack.c.b16 %v2914, %v2900
        %v2920 = vsel %vm1434, %v2915, 0
        %v2923 = vsel %vm1434, %v2916, 0
        %v2926 = vsel %vm1434, %v2917, 0
        %v2929 = vsel %vm1434, %v2918, 0
        %v2932 = vsel %vm1447, %v1778, 0
        %2934 = vmatprep.subr.bf16.mxu0 0
        %2935 = vmatpush1.bf16.msra.mxu0 0
        %2936 = vmatprep.subr.bf16.mxu0 0
        %2937 = vmatpush1.bf16.msra.mxu0 0
        %2938 = vmatprep.subr.bf16.mxu0 0
        %2939 = vmatpush1.bf16.msra.mxu0 0
        %2940 = vmatprep.subr.bf16.mxu0 0
        %2941 = vmatpush1.bf16.msra.mxu0 0
        %2942 = vmatprep.subr.bf16.mxu0 0
        %2943 = vmatpush1.bf16.msra.mxu0 0
        %2944 = vmatprep.subr.bf16.mxu0 0
        %2945 = vmatpush1.bf16.msra.mxu0 0
        %2946 = vmatprep.subr.bf16.mxu0 0
        %2947 = vmatpush1.bf16.msra.mxu0 0
        %2948 = vmatprep.subr.bf16.mxu0 0
        %2949 = vmatpush1.bf16.msra.mxu0 %v2932
        %2950 = vmatprep.subr.bf16.mxu0 0
        %2951 = vmatpush2.bf16.msra.mxu0 0
        %2952 = vmatprep.subr.bf16.mxu0 0
        %2953 = vmatpush2.bf16.msra.mxu0 0
        %2954 = vmatprep.subr.bf16.mxu0 0
        %2955 = vmatpush2.bf16.msra.mxu0 0
        %2956 = vmatprep.subr.bf16.mxu0 0
        %2957 = vmatpush2.bf16.msra.mxu0 0
        %2958 = vmatprep.subr.bf16.mxu0 0
        %2959 = vmatpush2.bf16.msra.mxu0 0
        %2960 = vmatprep.subr.bf16.mxu0 0
        %2961 = vmatpush2.bf16.msra.mxu0 0
        %2962 = vmatprep.subr.bf16.mxu0 0
        %2963 = vmatpush2.bf16.msra.mxu0 0
        %2964 = vmatprep.subr.bf16.mxu0 0
        %2965 = vmatpush2.bf16.msra.mxu0 0
        %2966 = vmatprep.mubr.bf16.mxu0 0
        %2967 = vmatmul.mubr.bf16.gmra.mxu0 %v2920
        %v2968 = vpop.f32.mrf.mxu0
        %v2969 = vadd.f32 0.0, %v2968
        %v2970 = vpop.f32.mrf.mxu0
        %v2971 = vpop.f32.mrf.mxu0
        %v2972 = vadd.f32 0.0, %v2971
        %v2973 = vpop.f32.mrf.mxu0
        %2974 = vmatprep.mubr.bf16.mxu0 0
        %2975 = vmatmul.mubr.bf16.gmra.mxu0 %v2923
        %v2976 = vpop.f32.mrf.mxu0
        %v2977 = vadd.f32 0.0, %v2976
        %v2978 = vpop.f32.mrf.mxu0
        %v2979 = vpop.f32.mrf.mxu0
        %v2980 = vadd.f32 0.0, %v2979
        %v2981 = vpop.f32.mrf.mxu0
        %2982 = vmatprep.mubr.bf16.mxu0 0
        %2983 = vmatmul.mubr.bf16.gmra.mxu0 %v2926
        %v2984 = vpop.f32.mrf.mxu0
        %v2985 = vadd.f32 0.0, %v2984
        %v2986 = vpop.f32.mrf.mxu0
        %v2987 = vpop.f32.mrf.mxu0
        %v2988 = vadd.f32 0.0, %v2987
        %v2989 = vpop.f32.mrf.mxu0
        %2990 = vmatprep.mubr.bf16.mxu0 0
        %2991 = vmatmul.mubr.bf16.gmra.mxu0 %v2929
        %v2992 = vpop.f32.mrf.mxu0
        %v2993 = vadd.f32 0.0, %v2992
        %v2994 = vpop.f32.mrf.mxu0
        %v2995 = vpop.f32.mrf.mxu0
        %v2996 = vadd.f32 0.0, %v2995
        %v2997 = vpop.f32.mrf.mxu0
        %2998 = vdwg.mxu0
        %v2999 = vadd.f32 %v1682, %v2969
        %v3000 = vadd.f32 %v1685, %v2972
        %v3001 = vadd.f32 %v1690, %v2977
        %v3002 = vadd.f32 %v1693, %v2980
        %v3003 = vadd.f32 %v1698, %v2985
        %v3004 = vadd.f32 %v1701, %v2988
        %v3005 = vadd.f32 %v1706, %v2993
        %v3006 = vadd.f32 %v1709, %v2996
        %s3007 = scalar_lea.vmem %s209, 9
        %v3008 = vld [vmem:[%s3007] sm:$0x1]
        %v3009 = vld [vmem:[%s3007 + $0x1] sm:$0x1]
        %v3010 = vld [vmem:[%s3007 + $0x2] sm:$0x1]
        %v3011 = vld [vmem:[%s3007 + $0x3] sm:$0x1]
        %v3012 = vld [vmem:[%s3007 + $0x4] sm:$0x1]
        %v3013 = vld [vmem:[%s3007 + $0x5] sm:$0x1]
        %v3014 = vld [vmem:[%s3007 + $0x6] sm:$0x1]
        %v3015 = vld [vmem:[%s3007 + $0x7] sm:$0x1]
        %v3016 = vld [vmem:[%s3007 + $0x12] sm:$0x1]
        %v3017 = vld [vmem:[%s3007 + $0x13] sm:$0x1]
        %v3018 = vld [vmem:[%s3007 + $0x14] sm:$0x1]
        %v3019 = vld [vmem:[%s3007 + $0x15] sm:$0x1]
        %v3020 = vld [vmem:[%s3007 + $0x16] sm:$0x1]
        %v3021 = vld [vmem:[%s3007 + $0x17] sm:$0x1]
        %v3022 = vld [vmem:[%s3007 + $0x18] sm:$0x1]
        %v3023 = vld [vmem:[%s3007 + $0x19] sm:$0x1]
        %v3024 = vld [vmem:[%s3007 + $0x24] sm:$0x1]
        %v3025 = vld [vmem:[%s3007 + $0x25] sm:$0x1]
        %v3026 = vld [vmem:[%s3007 + $0x26] sm:$0x1]
        %v3027 = vld [vmem:[%s3007 + $0x27] sm:$0x1]
        %v3028 = vld [vmem:[%s3007 + $0x28] sm:$0x1]
        %v3029 = vld [vmem:[%s3007 + $0x29] sm:$0x1]
        %v3030 = vld [vmem:[%s3007 + $0x2a] sm:$0x1]
        %v3031 = vld [vmem:[%s3007 + $0x2b] sm:$0x1]
        %v3032 = vld [vmem:[%s3007 + $0x36] sm:$0x1]
        %v3033 = vld [vmem:[%s3007 + $0x37] sm:$0x1]
        %v3034 = vld [vmem:[%s3007 + $0x38] sm:$0x1]
        %v3035 = vld [vmem:[%s3007 + $0x39] sm:$0x1]
        %v3036 = vld [vmem:[%s3007 + $0x3a] sm:$0x1]
        %v3037 = vld [vmem:[%s3007 + $0x3b] sm:$0x1]
        %v3038 = vld [vmem:[%s3007 + $0x3c] sm:$0x1]
        %v3039 = vld [vmem:[%s3007 + $0x3d] sm:$0x1]
        %v3040 = vld [vmem:[%s3007 + $0x48] sm:$0x1]
        %v3041 = vld [vmem:[%s3007 + $0x49] sm:$0x1]
        %v3042 = vld [vmem:[%s3007 + $0x4a] sm:$0x1]
        %v3043 = vld [vmem:[%s3007 + $0x4b] sm:$0x1]
        %v3044 = vld [vmem:[%s3007 + $0x4c] sm:$0x1]
        %v3045 = vld [vmem:[%s3007 + $0x4d] sm:$0x1]
        %v3046 = vld [vmem:[%s3007 + $0x4e] sm:$0x1]
        %v3047 = vld [vmem:[%s3007 + $0x4f] sm:$0x1]
        %v3048 = vld [vmem:[%s3007 + $0x5a] sm:$0x1]
        %v3049 = vld [vmem:[%s3007 + $0x5b] sm:$0x1]
        %v3050 = vld [vmem:[%s3007 + $0x5c] sm:$0x1]
        %v3051 = vld [vmem:[%s3007 + $0x5d] sm:$0x1]
        %v3052 = vld [vmem:[%s3007 + $0x5e] sm:$0x1]
        %v3053 = vld [vmem:[%s3007 + $0x5f] sm:$0x1]
        %v3054 = vld [vmem:[%s3007 + $0x60] sm:$0x1]
        %v3055 = vld [vmem:[%s3007 + $0x61] sm:$0x1]
        %v3056 = vld [vmem:[%s3007 + $0x6c] sm:$0x1]
        %v3057 = vld [vmem:[%s3007 + $0x6d] sm:$0x1]
        %v3058 = vld [vmem:[%s3007 + $0x6e] sm:$0x1]
        %v3059 = vld [vmem:[%s3007 + $0x6f] sm:$0x1]
        %v3060 = vld [vmem:[%s3007 + $0x70] sm:$0x1]
        %v3061 = vld [vmem:[%s3007 + $0x71] sm:$0x1]
        %v3062 = vld [vmem:[%s3007 + $0x72] sm:$0x1]
        %v3063 = vld [vmem:[%s3007 + $0x73] sm:$0x1]
        %v3064 = vld [vmem:[%s3007 + $0x7e] sm:$0x1]
        %v3065 = vld [vmem:[%s3007 + $0x7f] sm:$0x1]
        %v3066 = vld [vmem:[%s3007 + $0x80] sm:$0x1]
        %v3067 = vld [vmem:[%s3007 + $0x81] sm:$0x1]
        %v3068 = vld [vmem:[%s3007 + $0x82] sm:$0x1]
        %v3069 = vld [vmem:[%s3007 + $0x83] sm:$0x1]
        %v3070 = vld [vmem:[%s3007 + $0x84] sm:$0x1]
        %v3071 = vld [vmem:[%s3007 + $0x85] sm:$0x1]
        %s3072 = scalar_lea.vmem %s214, 6
        %v3073 = vld [vmem:[%s3072] sm:$0x3]
        %v3139 = vunpack.c.l.s4 1966171168
        %v3140 = vunpack.c.0.s8 %v3139
        %v3141 = vlaneseq
        %v3142 = vshrl.u32 %v3141, 7
        %v3143 = vsub.s32 %v3140, %v3142
        %v3144 = vrot.slane %v3008, %v3143
        %v3146 = vunpack.c.l.s4 1966171168
        %v3147 = vunpack.c.0.s8 %v3146
        %v3148 = vlaneseq
        %v3149 = vshrl.u32 %v3148, 7
        %v3150 = vsub.s32 %v3147, %v3149
        %v3151 = vrot.slane %v3144, %v3150
        %v3153 = vunpack.c.l.s4 1966171168
        %v3154 = vunpack.c.0.s8 %v3153
        %v3155 = vlaneseq
        %v3156 = vshrl.u32 %v3155, 7
        %v3157 = vsub.s32 %v3154, %v3156
        %v3158 = vrot.slane %v3009, %v3157
        %v3160 = vunpack.c.l.s4 1966171168
        %v3161 = vunpack.c.0.s8 %v3160
        %v3162 = vlaneseq
        %v3163 = vshrl.u32 %v3162, 7
        %v3164 = vsub.s32 %v3161, %v3163
        %v3165 = vrot.slane %v3158, %v3164
        %v3167 = vunpack.c.l.s4 1966171168
        %v3168 = vunpack.c.0.s8 %v3167
        %v3169 = vlaneseq
        %v3170 = vshrl.u32 %v3169, 7
        %v3171 = vsub.s32 %v3168, %v3170
        %v3172 = vrot.slane %v3010, %v3171
        %v3174 = vunpack.c.l.s4 1966171168
        %v3175 = vunpack.c.0.s8 %v3174
        %v3176 = vlaneseq
        %v3177 = vshrl.u32 %v3176, 7
        %v3178 = vsub.s32 %v3175, %v3177
        %v3179 = vrot.slane %v3172, %v3178
        %v3181 = vunpack.c.l.s4 1966171168
        %v3182 = vunpack.c.0.s8 %v3181
        %v3183 = vlaneseq
        %v3184 = vshrl.u32 %v3183, 7
        %v3185 = vsub.s32 %v3182, %v3184
        %v3186 = vrot.slane %v3011, %v3185
        %v3188 = vunpack.c.l.s4 1966171168
        %v3189 = vunpack.c.0.s8 %v3188
        %v3190 = vlaneseq
        %v3191 = vshrl.u32 %v3190, 7
        %v3192 = vsub.s32 %v3189, %v3191
        %v3193 = vrot.slane %v3186, %v3192
        %v3195 = vunpack.c.l.s4 1966171168
        %v3196 = vunpack.c.0.s8 %v3195
        %v3197 = vlaneseq
        %v3198 = vshrl.u32 %v3197, 7
        %v3199 = vsub.s32 %v3196, %v3198
        %v3200 = vrot.slane %v3012, %v3199
        %v3202 = vunpack.c.l.s4 1966171168
        %v3203 = vunpack.c.0.s8 %v3202
        %v3204 = vlaneseq
        %v3205 = vshrl.u32 %v3204, 7
        %v3206 = vsub.s32 %v3203, %v3205
        %v3207 = vrot.slane %v3200, %v3206
        %v3209 = vunpack.c.l.s4 1966171168
        %v3210 = vunpack.c.0.s8 %v3209
        %v3211 = vlaneseq
        %v3212 = vshrl.u32 %v3211, 7
        %v3213 = vsub.s32 %v3210, %v3212
        %v3214 = vrot.slane %v3013, %v3213
        %v3216 = vunpack.c.l.s4 1966171168
        %v3217 = vunpack.c.0.s8 %v3216
        %v3218 = vlaneseq
        %v3219 = vshrl.u32 %v3218, 7
        %v3220 = vsub.s32 %v3217, %v3219
        %v3221 = vrot.slane %v3214, %v3220
        %v3223 = vunpack.c.l.s4 1966171168
        %v3224 = vunpack.c.0.s8 %v3223
        %v3225 = vlaneseq
        %v3226 = vshrl.u32 %v3225, 7
        %v3227 = vsub.s32 %v3224, %v3226
        %v3228 = vrot.slane %v3014, %v3227
        %v3230 = vunpack.c.l.s4 1966171168
        %v3231 = vunpack.c.0.s8 %v3230
        %v3232 = vlaneseq
        %v3233 = vshrl.u32 %v3232, 7
        %v3234 = vsub.s32 %v3231, %v3233
        %v3235 = vrot.slane %v3228, %v3234
        %v3237 = vunpack.c.l.s4 1966171168
        %v3238 = vunpack.c.0.s8 %v3237
        %v3239 = vlaneseq
        %v3240 = vshrl.u32 %v3239, 7
        %v3241 = vsub.s32 %v3238, %v3240
        %v3242 = vrot.slane %v3015, %v3241
        %v3244 = vunpack.c.l.s4 1966171168
        %v3245 = vunpack.c.0.s8 %v3244
        %v3246 = vlaneseq
        %v3247 = vshrl.u32 %v3246, 7
        %v3248 = vsub.s32 %v3245, %v3247
        %v3249 = vrot.slane %v3242, %v3248
        %v3251 = vunpack.c.l.s4 1966171168
        %v3252 = vunpack.c.0.s8 %v3251
        %v3253 = vlaneseq
        %v3254 = vshrl.u32 %v3253, 7
        %v3255 = vsub.s32 %v3252, %v3254
        %v3256 = vrot.slane %v3016, %v3255
        %v3258 = vunpack.c.l.s4 1966171168
        %v3259 = vunpack.c.0.s8 %v3258
        %v3260 = vlaneseq
        %v3261 = vshrl.u32 %v3260, 7
        %v3262 = vsub.s32 %v3259, %v3261
        %v3263 = vrot.slane %v3256, %v3262
        %v3265 = vunpack.c.l.s4 1966171168
        %v3266 = vunpack.c.0.s8 %v3265
        %v3267 = vlaneseq
        %v3268 = vshrl.u32 %v3267, 7
        %v3269 = vsub.s32 %v3266, %v3268
        %v3270 = vrot.slane %v3017, %v3269
        %v3272 = vunpack.c.l.s4 1966171168
        %v3273 = vunpack.c.0.s8 %v3272
        %v3274 = vlaneseq
        %v3275 = vshrl.u32 %v3274, 7
        %v3276 = vsub.s32 %v3273, %v3275
        %v3277 = vrot.slane %v3270, %v3276
        %v3279 = vunpack.c.l.s4 1966171168
        %v3280 = vunpack.c.0.s8 %v3279
        %v3281 = vlaneseq
        %v3282 = vshrl.u32 %v3281, 7
        %v3283 = vsub.s32 %v3280, %v3282
        %v3284 = vrot.slane %v3018, %v3283
        %v3286 = vunpack.c.l.s4 1966171168
        %v3287 = vunpack.c.0.s8 %v3286
        %v3288 = vlaneseq
        %v3289 = vshrl.u32 %v3288, 7
        %v3290 = vsub.s32 %v3287, %v3289
        %v3291 = vrot.slane %v3284, %v3290
        %v3293 = vunpack.c.l.s4 1966171168
        %v3294 = vunpack.c.0.s8 %v3293
        %v3295 = vlaneseq
        %v3296 = vshrl.u32 %v3295, 7
        %v3297 = vsub.s32 %v3294, %v3296
        %v3298 = vrot.slane %v3019, %v3297
        %v3300 = vunpack.c.l.s4 1966171168
        %v3301 = vunpack.c.0.s8 %v3300
        %v3302 = vlaneseq
        %v3303 = vshrl.u32 %v3302, 7
        %v3304 = vsub.s32 %v3301, %v3303
        %v3305 = vrot.slane %v3298, %v3304
        %v3307 = vunpack.c.l.s4 1966171168
        %v3308 = vunpack.c.0.s8 %v3307
        %v3309 = vlaneseq
        %v3310 = vshrl.u32 %v3309, 7
        %v3311 = vsub.s32 %v3308, %v3310
        %v3312 = vrot.slane %v3020, %v3311
        %v3314 = vunpack.c.l.s4 1966171168
        %v3315 = vunpack.c.0.s8 %v3314
        %v3316 = vlaneseq
        %v3317 = vshrl.u32 %v3316, 7
        %v3318 = vsub.s32 %v3315, %v3317
        %v3319 = vrot.slane %v3312, %v3318
        %v3321 = vunpack.c.l.s4 1966171168
        %v3322 = vunpack.c.0.s8 %v3321
        %v3323 = vlaneseq
        %v3324 = vshrl.u32 %v3323, 7
        %v3325 = vsub.s32 %v3322, %v3324
        %v3326 = vrot.slane %v3021, %v3325
        %v3328 = vunpack.c.l.s4 1966171168
        %v3329 = vunpack.c.0.s8 %v3328
        %v3330 = vlaneseq
        %v3331 = vshrl.u32 %v3330, 7
        %v3332 = vsub.s32 %v3329, %v3331
        %v3333 = vrot.slane %v3326, %v3332
        %v3335 = vunpack.c.l.s4 1966171168
        %v3336 = vunpack.c.0.s8 %v3335
        %v3337 = vlaneseq
        %v3338 = vshrl.u32 %v3337, 7
        %v3339 = vsub.s32 %v3336, %v3338
        %v3340 = vrot.slane %v3022, %v3339
        %v3342 = vunpack.c.l.s4 1966171168
        %v3343 = vunpack.c.0.s8 %v3342
        %v3344 = vlaneseq
        %v3345 = vshrl.u32 %v3344, 7
        %v3346 = vsub.s32 %v3343, %v3345
        %v3347 = vrot.slane %v3340, %v3346
        %v3349 = vunpack.c.l.s4 1966171168
        %v3350 = vunpack.c.0.s8 %v3349
        %v3351 = vlaneseq
        %v3352 = vshrl.u32 %v3351, 7
        %v3353 = vsub.s32 %v3350, %v3352
        %v3354 = vrot.slane %v3023, %v3353
        %v3356 = vunpack.c.l.s4 1966171168
        %v3357 = vunpack.c.0.s8 %v3356
        %v3358 = vlaneseq
        %v3359 = vshrl.u32 %v3358, 7
        %v3360 = vsub.s32 %v3357, %v3359
        %v3361 = vrot.slane %v3354, %v3360
        %v3363 = vunpack.c.l.s4 1966171168
        %v3364 = vunpack.c.0.s8 %v3363
        %v3365 = vlaneseq
        %v3366 = vshrl.u32 %v3365, 7
        %v3367 = vsub.s32 %v3364, %v3366
        %v3368 = vrot.slane %v3024, %v3367
        %v3370 = vunpack.c.l.s4 1966171168
        %v3371 = vunpack.c.0.s8 %v3370
        %v3372 = vlaneseq
        %v3373 = vshrl.u32 %v3372, 7
        %v3374 = vsub.s32 %v3371, %v3373
        %v3375 = vrot.slane %v3368, %v3374
        %v3377 = vunpack.c.l.s4 1966171168
        %v3378 = vunpack.c.0.s8 %v3377
        %v3379 = vlaneseq
        %v3380 = vshrl.u32 %v3379, 7
        %v3381 = vsub.s32 %v3378, %v3380
        %v3382 = vrot.slane %v3025, %v3381
        %v3384 = vunpack.c.l.s4 1966171168
        %v3385 = vunpack.c.0.s8 %v3384
        %v3386 = vlaneseq
        %v3387 = vshrl.u32 %v3386, 7
        %v3388 = vsub.s32 %v3385, %v3387
        %v3389 = vrot.slane %v3382, %v3388
        %v3391 = vunpack.c.l.s4 1966171168
        %v3392 = vunpack.c.0.s8 %v3391
        %v3393 = vlaneseq
        %v3394 = vshrl.u32 %v3393, 7
        %v3395 = vsub.s32 %v3392, %v3394
        %v3396 = vrot.slane %v3026, %v3395
        %v3398 = vunpack.c.l.s4 1966171168
        %v3399 = vunpack.c.0.s8 %v3398
        %v3400 = vlaneseq
        %v3401 = vshrl.u32 %v3400, 7
        %v3402 = vsub.s32 %v3399, %v3401
        %v3403 = vrot.slane %v3396, %v3402
        %v3405 = vunpack.c.l.s4 1966171168
        %v3406 = vunpack.c.0.s8 %v3405
        %v3407 = vlaneseq
        %v3408 = vshrl.u32 %v3407, 7
        %v3409 = vsub.s32 %v3406, %v3408
        %v3410 = vrot.slane %v3027, %v3409
        %v3412 = vunpack.c.l.s4 1966171168
        %v3413 = vunpack.c.0.s8 %v3412
        %v3414 = vlaneseq
        %v3415 = vshrl.u32 %v3414, 7
        %v3416 = vsub.s32 %v3413, %v3415
        %v3417 = vrot.slane %v3410, %v3416
        %v3419 = vunpack.c.l.s4 1966171168
        %v3420 = vunpack.c.0.s8 %v3419
        %v3421 = vlaneseq
        %v3422 = vshrl.u32 %v3421, 7
        %v3423 = vsub.s32 %v3420, %v3422
        %v3424 = vrot.slane %v3028, %v3423
        %v3426 = vunpack.c.l.s4 1966171168
        %v3427 = vunpack.c.0.s8 %v3426
        %v3428 = vlaneseq
        %v3429 = vshrl.u32 %v3428, 7
        %v3430 = vsub.s32 %v3427, %v3429
        %v3431 = vrot.slane %v3424, %v3430
        %v3433 = vunpack.c.l.s4 1966171168
        %v3434 = vunpack.c.0.s8 %v3433
        %v3435 = vlaneseq
        %v3436 = vshrl.u32 %v3435, 7
        %v3437 = vsub.s32 %v3434, %v3436
        %v3438 = vrot.slane %v3029, %v3437
        %v3440 = vunpack.c.l.s4 1966171168
        %v3441 = vunpack.c.0.s8 %v3440
        %v3442 = vlaneseq
        %v3443 = vshrl.u32 %v3442, 7
        %v3444 = vsub.s32 %v3441, %v3443
        %v3445 = vrot.slane %v3438, %v3444
        %v3447 = vunpack.c.l.s4 1966171168
        %v3448 = vunpack.c.0.s8 %v3447
        %v3449 = vlaneseq
        %v3450 = vshrl.u32 %v3449, 7
        %v3451 = vsub.s32 %v3448, %v3450
        %v3452 = vrot.slane %v3030, %v3451
        %v3454 = vunpack.c.l.s4 1966171168
        %v3455 = vunpack.c.0.s8 %v3454
        %v3456 = vlaneseq
        %v3457 = vshrl.u32 %v3456, 7
        %v3458 = vsub.s32 %v3455, %v3457
        %v3459 = vrot.slane %v3452, %v3458
        %v3461 = vunpack.c.l.s4 1966171168
        %v3462 = vunpack.c.0.s8 %v3461
        %v3463 = vlaneseq
        %v3464 = vshrl.u32 %v3463, 7
        %v3465 = vsub.s32 %v3462, %v3464
        %v3466 = vrot.slane %v3031, %v3465
        %v3468 = vunpack.c.l.s4 1966171168
        %v3469 = vunpack.c.0.s8 %v3468
        %v3470 = vlaneseq
        %v3471 = vshrl.u32 %v3470, 7
        %v3472 = vsub.s32 %v3469, %v3471
        %v3473 = vrot.slane %v3466, %v3472
        %v3475 = vunpack.c.l.s4 1966171168
        %v3476 = vunpack.c.0.s8 %v3475
        %v3477 = vlaneseq
        %v3478 = vshrl.u32 %v3477, 7
        %v3479 = vsub.s32 %v3476, %v3478
        %v3480 = vrot.slane %v3032, %v3479
        %v3482 = vunpack.c.l.s4 1966171168
        %v3483 = vunpack.c.0.s8 %v3482
        %v3484 = vlaneseq
        %v3485 = vshrl.u32 %v3484, 7
        %v3486 = vsub.s32 %v3483, %v3485
        %v3487 = vrot.slane %v3480, %v3486
        %v3489 = vunpack.c.l.s4 1966171168
        %v3490 = vunpack.c.0.s8 %v3489
        %v3491 = vlaneseq
        %v3492 = vshrl.u32 %v3491, 7
        %v3493 = vsub.s32 %v3490, %v3492
        %v3494 = vrot.slane %v3033, %v3493
        %v3496 = vunpack.c.l.s4 1966171168
        %v3497 = vunpack.c.0.s8 %v3496
        %v3498 = vlaneseq
        %v3499 = vshrl.u32 %v3498, 7
        %v3500 = vsub.s32 %v3497, %v3499
        %v3501 = vrot.slane %v3494, %v3500
        %v3503 = vunpack.c.l.s4 1966171168
        %v3504 = vunpack.c.0.s8 %v3503
        %v3505 = vlaneseq
        %v3506 = vshrl.u32 %v3505, 7
        %v3507 = vsub.s32 %v3504, %v3506
        %v3508 = vrot.slane %v3034, %v3507
        %v3510 = vunpack.c.l.s4 1966171168
        %v3511 = vunpack.c.0.s8 %v3510
        %v3512 = vlaneseq
        %v3513 = vshrl.u32 %v3512, 7
        %v3514 = vsub.s32 %v3511, %v3513
        %v3515 = vrot.slane %v3508, %v3514
        %v3517 = vunpack.c.l.s4 1966171168
        %v3518 = vunpack.c.0.s8 %v3517
        %v3519 = vlaneseq
        %v3520 = vshrl.u32 %v3519, 7
        %v3521 = vsub.s32 %v3518, %v3520
        %v3522 = vrot.slane %v3035, %v3521
        %v3524 = vunpack.c.l.s4 1966171168
        %v3525 = vunpack.c.0.s8 %v3524
        %v3526 = vlaneseq
        %v3527 = vshrl.u32 %v3526, 7
        %v3528 = vsub.s32 %v3525, %v3527
        %v3529 = vrot.slane %v3522, %v3528
        %v3531 = vunpack.c.l.s4 1966171168
        %v3532 = vunpack.c.0.s8 %v3531
        %v3533 = vlaneseq
        %v3534 = vshrl.u32 %v3533, 7
        %v3535 = vsub.s32 %v3532, %v3534
        %v3536 = vrot.slane %v3036, %v3535
        %v3538 = vunpack.c.l.s4 1966171168
        %v3539 = vunpack.c.0.s8 %v3538
        %v3540 = vlaneseq
        %v3541 = vshrl.u32 %v3540, 7
        %v3542 = vsub.s32 %v3539, %v3541
        %v3543 = vrot.slane %v3536, %v3542
        %v3545 = vunpack.c.l.s4 1966171168
        %v3546 = vunpack.c.0.s8 %v3545
        %v3547 = vlaneseq
        %v3548 = vshrl.u32 %v3547, 7
        %v3549 = vsub.s32 %v3546, %v3548
        %v3550 = vrot.slane %v3037, %v3549
        %v3552 = vunpack.c.l.s4 1966171168
        %v3553 = vunpack.c.0.s8 %v3552
        %v3554 = vlaneseq
        %v3555 = vshrl.u32 %v3554, 7
        %v3556 = vsub.s32 %v3553, %v3555
        %v3557 = vrot.slane %v3550, %v3556
        %v3559 = vunpack.c.l.s4 1966171168
        %v3560 = vunpack.c.0.s8 %v3559
        %v3561 = vlaneseq
        %v3562 = vshrl.u32 %v3561, 7
        %v3563 = vsub.s32 %v3560, %v3562
        %v3564 = vrot.slane %v3038, %v3563
        %v3566 = vunpack.c.l.s4 1966171168
        %v3567 = vunpack.c.0.s8 %v3566
        %v3568 = vlaneseq
        %v3569 = vshrl.u32 %v3568, 7
        %v3570 = vsub.s32 %v3567, %v3569
        %v3571 = vrot.slane %v3564, %v3570
        %v3573 = vunpack.c.l.s4 1966171168
        %v3574 = vunpack.c.0.s8 %v3573
        %v3575 = vlaneseq
        %v3576 = vshrl.u32 %v3575, 7
        %v3577 = vsub.s32 %v3574, %v3576
        %v3578 = vrot.slane %v3039, %v3577
        %v3580 = vunpack.c.l.s4 1966171168
        %v3581 = vunpack.c.0.s8 %v3580
        %v3582 = vlaneseq
        %v3583 = vshrl.u32 %v3582, 7
        %v3584 = vsub.s32 %v3581, %v3583
        %v3585 = vrot.slane %v3578, %v3584
        %v3587 = vunpack.c.l.s4 1966171168
        %v3588 = vunpack.c.0.s8 %v3587
        %v3589 = vlaneseq
        %v3590 = vshrl.u32 %v3589, 7
        %v3591 = vsub.s32 %v3588, %v3590
        %v3592 = vrot.slane %v3040, %v3591
        %v3594 = vunpack.c.l.s4 1966171168
        %v3595 = vunpack.c.0.s8 %v3594
        %v3596 = vlaneseq
        %v3597 = vshrl.u32 %v3596, 7
        %v3598 = vsub.s32 %v3595, %v3597
        %v3599 = vrot.slane %v3592, %v3598
        %v3601 = vunpack.c.l.s4 1966171168
        %v3602 = vunpack.c.0.s8 %v3601
        %v3603 = vlaneseq
        %v3604 = vshrl.u32 %v3603, 7
        %v3605 = vsub.s32 %v3602, %v3604
        %v3606 = vrot.slane %v3041, %v3605
        %v3608 = vunpack.c.l.s4 1966171168
        %v3609 = vunpack.c.0.s8 %v3608
        %v3610 = vlaneseq
        %v3611 = vshrl.u32 %v3610, 7
        %v3612 = vsub.s32 %v3609, %v3611
        %v3613 = vrot.slane %v3606, %v3612
        %v3615 = vunpack.c.l.s4 1966171168
        %v3616 = vunpack.c.0.s8 %v3615
        %v3617 = vlaneseq
        %v3618 = vshrl.u32 %v3617, 7
        %v3619 = vsub.s32 %v3616, %v3618
        %v3620 = vrot.slane %v3042, %v3619
        %v3622 = vunpack.c.l.s4 1966171168
        %v3623 = vunpack.c.0.s8 %v3622
        %v3624 = vlaneseq
        %v3625 = vshrl.u32 %v3624, 7
        %v3626 = vsub.s32 %v3623, %v3625
        %v3627 = vrot.slane %v3620, %v3626
        %v3629 = vunpack.c.l.s4 1966171168
        %v3630 = vunpack.c.0.s8 %v3629
        %v3631 = vlaneseq
        %v3632 = vshrl.u32 %v3631, 7
        %v3633 = vsub.s32 %v3630, %v3632
        %v3634 = vrot.slane %v3043, %v3633
        %v3636 = vunpack.c.l.s4 1966171168
        %v3637 = vunpack.c.0.s8 %v3636
        %v3638 = vlaneseq
        %v3639 = vshrl.u32 %v3638, 7
        %v3640 = vsub.s32 %v3637, %v3639
        %v3641 = vrot.slane %v3634, %v3640
        %v3643 = vunpack.c.l.s4 1966171168
        %v3644 = vunpack.c.0.s8 %v3643
        %v3645 = vlaneseq
        %v3646 = vshrl.u32 %v3645, 7
        %v3647 = vsub.s32 %v3644, %v3646
        %v3648 = vrot.slane %v3044, %v3647
        %v3650 = vunpack.c.l.s4 1966171168
        %v3651 = vunpack.c.0.s8 %v3650
        %v3652 = vlaneseq
        %v3653 = vshrl.u32 %v3652, 7
        %v3654 = vsub.s32 %v3651, %v3653
        %v3655 = vrot.slane %v3648, %v3654
        %v3657 = vunpack.c.l.s4 1966171168
        %v3658 = vunpack.c.0.s8 %v3657
        %v3659 = vlaneseq
        %v3660 = vshrl.u32 %v3659, 7
        %v3661 = vsub.s32 %v3658, %v3660
        %v3662 = vrot.slane %v3045, %v3661
        %v3664 = vunpack.c.l.s4 1966171168
        %v3665 = vunpack.c.0.s8 %v3664
        %v3666 = vlaneseq
        %v3667 = vshrl.u32 %v3666, 7
        %v3668 = vsub.s32 %v3665, %v3667
        %v3669 = vrot.slane %v3662, %v3668
        %v3671 = vunpack.c.l.s4 1966171168
        %v3672 = vunpack.c.0.s8 %v3671
        %v3673 = vlaneseq
        %v3674 = vshrl.u32 %v3673, 7
        %v3675 = vsub.s32 %v3672, %v3674
        %v3676 = vrot.slane %v3046, %v3675
        %v3678 = vunpack.c.l.s4 1966171168
        %v3679 = vunpack.c.0.s8 %v3678
        %v3680 = vlaneseq
        %v3681 = vshrl.u32 %v3680, 7
        %v3682 = vsub.s32 %v3679, %v3681
        %v3683 = vrot.slane %v3676, %v3682
        %v3685 = vunpack.c.l.s4 1966171168
        %v3686 = vunpack.c.0.s8 %v3685
        %v3687 = vlaneseq
        %v3688 = vshrl.u32 %v3687, 7
        %v3689 = vsub.s32 %v3686, %v3688
        %v3690 = vrot.slane %v3047, %v3689
        %v3692 = vunpack.c.l.s4 1966171168
        %v3693 = vunpack.c.0.s8 %v3692
        %v3694 = vlaneseq
        %v3695 = vshrl.u32 %v3694, 7
        %v3696 = vsub.s32 %v3693, %v3695
        %v3697 = vrot.slane %v3690, %v3696
        %v3699 = vunpack.c.l.s4 1966171168
        %v3700 = vunpack.c.0.s8 %v3699
        %v3701 = vlaneseq
        %v3702 = vshrl.u32 %v3701, 7
        %v3703 = vsub.s32 %v3700, %v3702
        %v3704 = vrot.slane %v3048, %v3703
        %v3706 = vunpack.c.l.s4 1966171168
        %v3707 = vunpack.c.0.s8 %v3706
        %v3708 = vlaneseq
        %v3709 = vshrl.u32 %v3708, 7
        %v3710 = vsub.s32 %v3707, %v3709
        %v3711 = vrot.slane %v3704, %v3710
        %v3713 = vunpack.c.l.s4 1966171168
        %v3714 = vunpack.c.0.s8 %v3713
        %v3715 = vlaneseq
        %v3716 = vshrl.u32 %v3715, 7
        %v3717 = vsub.s32 %v3714, %v3716
        %v3718 = vrot.slane %v3049, %v3717
        %v3720 = vunpack.c.l.s4 1966171168
        %v3721 = vunpack.c.0.s8 %v3720
        %v3722 = vlaneseq
        %v3723 = vshrl.u32 %v3722, 7
        %v3724 = vsub.s32 %v3721, %v3723
        %v3725 = vrot.slane %v3718, %v3724
        %v3727 = vunpack.c.l.s4 1966171168
        %v3728 = vunpack.c.0.s8 %v3727
        %v3729 = vlaneseq
        %v3730 = vshrl.u32 %v3729, 7
        %v3731 = vsub.s32 %v3728, %v3730
        %v3732 = vrot.slane %v3050, %v3731
        %v3734 = vunpack.c.l.s4 1966171168
        %v3735 = vunpack.c.0.s8 %v3734
        %v3736 = vlaneseq
        %v3737 = vshrl.u32 %v3736, 7
        %v3738 = vsub.s32 %v3735, %v3737
        %v3739 = vrot.slane %v3732, %v3738
        %v3741 = vunpack.c.l.s4 1966171168
        %v3742 = vunpack.c.0.s8 %v3741
        %v3743 = vlaneseq
        %v3744 = vshrl.u32 %v3743, 7
        %v3745 = vsub.s32 %v3742, %v3744
        %v3746 = vrot.slane %v3051, %v3745
        %v3748 = vunpack.c.l.s4 1966171168
        %v3749 = vunpack.c.0.s8 %v3748
        %v3750 = vlaneseq
        %v3751 = vshrl.u32 %v3750, 7
        %v3752 = vsub.s32 %v3749, %v3751
        %v3753 = vrot.slane %v3746, %v3752
        %v3755 = vunpack.c.l.s4 1966171168
        %v3756 = vunpack.c.0.s8 %v3755
        %v3757 = vlaneseq
        %v3758 = vshrl.u32 %v3757, 7
        %v3759 = vsub.s32 %v3756, %v3758
        %v3760 = vrot.slane %v3052, %v3759
        %v3762 = vunpack.c.l.s4 1966171168
        %v3763 = vunpack.c.0.s8 %v3762
        %v3764 = vlaneseq
        %v3765 = vshrl.u32 %v3764, 7
        %v3766 = vsub.s32 %v3763, %v3765
        %v3767 = vrot.slane %v3760, %v3766
        %v3769 = vunpack.c.l.s4 1966171168
        %v3770 = vunpack.c.0.s8 %v3769
        %v3771 = vlaneseq
        %v3772 = vshrl.u32 %v3771, 7
        %v3773 = vsub.s32 %v3770, %v3772
        %v3774 = vrot.slane %v3053, %v3773
        %v3776 = vunpack.c.l.s4 1966171168
        %v3777 = vunpack.c.0.s8 %v3776
        %v3778 = vlaneseq
        %v3779 = vshrl.u32 %v3778, 7
        %v3780 = vsub.s32 %v3777, %v3779
        %v3781 = vrot.slane %v3774, %v3780
        %v3783 = vunpack.c.l.s4 1966171168
        %v3784 = vunpack.c.0.s8 %v3783
        %v3785 = vlaneseq
        %v3786 = vshrl.u32 %v3785, 7
        %v3787 = vsub.s32 %v3784, %v3786
        %v3788 = vrot.slane %v3054, %v3787
        %v3790 = vunpack.c.l.s4 1966171168
        %v3791 = vunpack.c.0.s8 %v3790
        %v3792 = vlaneseq
        %v3793 = vshrl.u32 %v3792, 7
        %v3794 = vsub.s32 %v3791, %v3793
        %v3795 = vrot.slane %v3788, %v3794
        %v3797 = vunpack.c.l.s4 1966171168
        %v3798 = vunpack.c.0.s8 %v3797
        %v3799 = vlaneseq
        %v3800 = vshrl.u32 %v3799, 7
        %v3801 = vsub.s32 %v3798, %v3800
        %v3802 = vrot.slane %v3055, %v3801
        %v3804 = vunpack.c.l.s4 1966171168
        %v3805 = vunpack.c.0.s8 %v3804
        %v3806 = vlaneseq
        %v3807 = vshrl.u32 %v3806, 7
        %v3808 = vsub.s32 %v3805, %v3807
        %v3809 = vrot.slane %v3802, %v3808
        %v3811 = vunpack.c.l.s4 1966171168
        %v3812 = vunpack.c.0.s8 %v3811
        %v3813 = vlaneseq
        %v3814 = vshrl.u32 %v3813, 7
        %v3815 = vsub.s32 %v3812, %v3814
        %v3816 = vrot.slane %v3056, %v3815
        %v3818 = vunpack.c.l.s4 1966171168
        %v3819 = vunpack.c.0.s8 %v3818
        %v3820 = vlaneseq
        %v3821 = vshrl.u32 %v3820, 7
        %v3822 = vsub.s32 %v3819, %v3821
        %v3823 = vrot.slane %v3816, %v3822
        %v3825 = vunpack.c.l.s4 1966171168
        %v3826 = vunpack.c.0.s8 %v3825
        %v3827 = vlaneseq
        %v3828 = vshrl.u32 %v3827, 7
        %v3829 = vsub.s32 %v3826, %v3828
        %v3830 = vrot.slane %v3057, %v3829
        %v3832 = vunpack.c.l.s4 1966171168
        %v3833 = vunpack.c.0.s8 %v3832
        %v3834 = vlaneseq
        %v3835 = vshrl.u32 %v3834, 7
        %v3836 = vsub.s32 %v3833, %v3835
        %v3837 = vrot.slane %v3830, %v3836
        %v3839 = vunpack.c.l.s4 1966171168
        %v3840 = vunpack.c.0.s8 %v3839
        %v3841 = vlaneseq
        %v3842 = vshrl.u32 %v3841, 7
        %v3843 = vsub.s32 %v3840, %v3842
        %v3844 = vrot.slane %v3058, %v3843
        %v3846 = vunpack.c.l.s4 1966171168
        %v3847 = vunpack.c.0.s8 %v3846
        %v3848 = vlaneseq
        %v3849 = vshrl.u32 %v3848, 7
        %v3850 = vsub.s32 %v3847, %v3849
        %v3851 = vrot.slane %v3844, %v3850
        %v3853 = vunpack.c.l.s4 1966171168
        %v3854 = vunpack.c.0.s8 %v3853
        %v3855 = vlaneseq
        %v3856 = vshrl.u32 %v3855, 7
        %v3857 = vsub.s32 %v3854, %v3856
        %v3858 = vrot.slane %v3059, %v3857
        %v3860 = vunpack.c.l.s4 1966171168
        %v3861 = vunpack.c.0.s8 %v3860
        %v3862 = vlaneseq
        %v3863 = vshrl.u32 %v3862, 7
        %v3864 = vsub.s32 %v3861, %v3863
        %v3865 = vrot.slane %v3858, %v3864
        %v3867 = vunpack.c.l.s4 1966171168
        %v3868 = vunpack.c.0.s8 %v3867
        %v3869 = vlaneseq
        %v3870 = vshrl.u32 %v3869, 7
        %v3871 = vsub.s32 %v3868, %v3870
        %v3872 = vrot.slane %v3060, %v3871
        %v3874 = vunpack.c.l.s4 1966171168
        %v3875 = vunpack.c.0.s8 %v3874
        %v3876 = vlaneseq
        %v3877 = vshrl.u32 %v3876, 7
        %v3878 = vsub.s32 %v3875, %v3877
        %v3879 = vrot.slane %v3872, %v3878
        %v3881 = vunpack.c.l.s4 1966171168
        %v3882 = vunpack.c.0.s8 %v3881
        %v3883 = vlaneseq
        %v3884 = vshrl.u32 %v3883, 7
        %v3885 = vsub.s32 %v3882, %v3884
        %v3886 = vrot.slane %v3061, %v3885
        %v3888 = vunpack.c.l.s4 1966171168
        %v3889 = vunpack.c.0.s8 %v3888
        %v3890 = vlaneseq
        %v3891 = vshrl.u32 %v3890, 7
        %v3892 = vsub.s32 %v3889, %v3891
        %v3893 = vrot.slane %v3886, %v3892
        %v3895 = vunpack.c.l.s4 1966171168
        %v3896 = vunpack.c.0.s8 %v3895
        %v3897 = vlaneseq
        %v3898 = vshrl.u32 %v3897, 7
        %v3899 = vsub.s32 %v3896, %v3898
        %v3900 = vrot.slane %v3062, %v3899
        %v3902 = vunpack.c.l.s4 1966171168
        %v3903 = vunpack.c.0.s8 %v3902
        %v3904 = vlaneseq
        %v3905 = vshrl.u32 %v3904, 7
        %v3906 = vsub.s32 %v3903, %v3905
        %v3907 = vrot.slane %v3900, %v3906
        %v3909 = vunpack.c.l.s4 1966171168
        %v3910 = vunpack.c.0.s8 %v3909
        %v3911 = vlaneseq
        %v3912 = vshrl.u32 %v3911, 7
        %v3913 = vsub.s32 %v3910, %v3912
        %v3914 = vrot.slane %v3063, %v3913
        %v3916 = vunpack.c.l.s4 1966171168
        %v3917 = vunpack.c.0.s8 %v3916
        %v3918 = vlaneseq
        %v3919 = vshrl.u32 %v3918, 7
        %v3920 = vsub.s32 %v3917, %v3919
        %v3921 = vrot.slane %v3914, %v3920
        %v3923 = vunpack.c.l.s4 1966171168
        %v3924 = vunpack.c.0.s8 %v3923
        %v3925 = vlaneseq
        %v3926 = vshrl.u32 %v3925, 7
        %v3927 = vsub.s32 %v3924, %v3926
        %v3928 = vrot.slane %v3064, %v3927
        %v3930 = vunpack.c.l.s4 1966171168
        %v3931 = vunpack.c.0.s8 %v3930
        %v3932 = vlaneseq
        %v3933 = vshrl.u32 %v3932, 7
        %v3934 = vsub.s32 %v3931, %v3933
        %v3935 = vrot.slane %v3928, %v3934
        %v3937 = vunpack.c.l.s4 1966171168
        %v3938 = vunpack.c.0.s8 %v3937
        %v3939 = vlaneseq
        %v3940 = vshrl.u32 %v3939, 7
        %v3941 = vsub.s32 %v3938, %v3940
        %v3942 = vrot.slane %v3065, %v3941
        %v3944 = vunpack.c.l.s4 1966171168
        %v3945 = vunpack.c.0.s8 %v3944
        %v3946 = vlaneseq
        %v3947 = vshrl.u32 %v3946, 7
        %v3948 = vsub.s32 %v3945, %v3947
        %v3949 = vrot.slane %v3942, %v3948
        %v3951 = vunpack.c.l.s4 1966171168
        %v3952 = vunpack.c.0.s8 %v3951
        %v3953 = vlaneseq
        %v3954 = vshrl.u32 %v3953, 7
        %v3955 = vsub.s32 %v3952, %v3954
        %v3956 = vrot.slane %v3066, %v3955
        %v3958 = vunpack.c.l.s4 1966171168
        %v3959 = vunpack.c.0.s8 %v3958
        %v3960 = vlaneseq
        %v3961 = vshrl.u32 %v3960, 7
        %v3962 = vsub.s32 %v3959, %v3961
        %v3963 = vrot.slane %v3956, %v3962
        %v3965 = vunpack.c.l.s4 1966171168
        %v3966 = vunpack.c.0.s8 %v3965
        %v3967 = vlaneseq
        %v3968 = vshrl.u32 %v3967, 7
        %v3969 = vsub.s32 %v3966, %v3968
        %v3970 = vrot.slane %v3067, %v3969
        %v3972 = vunpack.c.l.s4 1966171168
        %v3973 = vunpack.c.0.s8 %v3972
        %v3974 = vlaneseq
        %v3975 = vshrl.u32 %v3974, 7
        %v3976 = vsub.s32 %v3973, %v3975
        %v3977 = vrot.slane %v3970, %v3976
        %v3979 = vunpack.c.l.s4 1966171168
        %v3980 = vunpack.c.0.s8 %v3979
        %v3981 = vlaneseq
        %v3982 = vshrl.u32 %v3981, 7
        %v3983 = vsub.s32 %v3980, %v3982
        %v3984 = vrot.slane %v3068, %v3983
        %v3986 = vunpack.c.l.s4 1966171168
        %v3987 = vunpack.c.0.s8 %v3986
        %v3988 = vlaneseq
        %v3989 = vshrl.u32 %v3988, 7
        %v3990 = vsub.s32 %v3987, %v3989
        %v3991 = vrot.slane %v3984, %v3990
        %v3993 = vunpack.c.l.s4 1966171168
        %v3994 = vunpack.c.0.s8 %v3993
        %v3995 = vlaneseq
        %v3996 = vshrl.u32 %v3995, 7
        %v3997 = vsub.s32 %v3994, %v3996
        %v3998 = vrot.slane %v3069, %v3997
        %v4000 = vunpack.c.l.s4 1966171168
        %v4001 = vunpack.c.0.s8 %v4000
        %v4002 = vlaneseq
        %v4003 = vshrl.u32 %v4002, 7
        %v4004 = vsub.s32 %v4001, %v4003
        %v4005 = vrot.slane %v3998, %v4004
        %v4007 = vunpack.c.l.s4 1966171168
        %v4008 = vunpack.c.0.s8 %v4007
        %v4009 = vlaneseq
        %v4010 = vshrl.u32 %v4009, 7
        %v4011 = vsub.s32 %v4008, %v4010
        %v4012 = vrot.slane %v3070, %v4011
        %v4014 = vunpack.c.l.s4 1966171168
        %v4015 = vunpack.c.0.s8 %v4014
        %v4016 = vlaneseq
        %v4017 = vshrl.u32 %v4016, 7
        %v4018 = vsub.s32 %v4015, %v4017
        %v4019 = vrot.slane %v4012, %v4018
        %v4021 = vunpack.c.l.s4 1966171168
        %v4022 = vunpack.c.0.s8 %v4021
        %v4023 = vlaneseq
        %v4024 = vshrl.u32 %v4023, 7
        %v4025 = vsub.s32 %v4022, %v4024
        %v4026 = vrot.slane %v3071, %v4025
        %v4028 = vunpack.c.l.s4 1966171168
        %v4029 = vunpack.c.0.s8 %v4028
        %v4030 = vlaneseq
        %v4031 = vshrl.u32 %v4030, 7
        %v4032 = vsub.s32 %v4029, %v4031
        %v4033 = vrot.slane %v4026, %v4032
        %v4034 = vunpack.c.l.b16 %v3151
        %v4035 = vunpack.c.l.b16 %v3165
        %v4036 = vunpack.c.l.b16 %v3179
        %v4037 = vunpack.c.l.b16 %v3193
        %v4038 = vunpack.c.l.b16 %v3207
        %v4039 = vunpack.c.l.b16 %v3221
        %v4040 = vunpack.c.l.b16 %v3235
        %v4041 = vunpack.c.l.b16 %v3249
        %v4042 = vunpack.c.l.b16 %v3263
        %v4043 = vunpack.c.l.b16 %v3277
        %v4044 = vunpack.c.l.b16 %v3291
        %v4045 = vunpack.c.l.b16 %v3305
        %v4046 = vunpack.c.l.b16 %v3319
        %v4047 = vunpack.c.l.b16 %v3333
        %v4048 = vunpack.c.l.b16 %v3347
        %v4049 = vunpack.c.l.b16 %v3361
        %v4050 = vunpack.c.l.b16 %v3375
        %v4051 = vunpack.c.l.b16 %v3389
        %v4052 = vunpack.c.l.b16 %v3403
        %v4053 = vunpack.c.l.b16 %v3417
        %v4054 = vunpack.c.l.b16 %v3431
        %v4055 = vunpack.c.l.b16 %v3445
        %v4056 = vunpack.c.l.b16 %v3459
        %v4057 = vunpack.c.l.b16 %v3473
        %v4058 = vunpack.c.l.b16 %v3487
        %v4059 = vunpack.c.l.b16 %v3501
        %v4060 = vunpack.c.l.b16 %v3515
        %v4061 = vunpack.c.l.b16 %v3529
        %v4062 = vunpack.c.l.b16 %v3543
        %v4063 = vunpack.c.l.b16 %v3557
        %v4064 = vunpack.c.l.b16 %v3571
        %v4065 = vunpack.c.l.b16 %v3585
        %v4066 = vunpack.c.l.b16 %v3599
        %v4067 = vunpack.c.l.b16 %v3613
        %v4068 = vunpack.c.l.b16 %v3627
        %v4069 = vunpack.c.l.b16 %v3641
        %v4070 = vunpack.c.l.b16 %v3655
        %v4071 = vunpack.c.l.b16 %v3669
        %v4072 = vunpack.c.l.b16 %v3683
        %v4073 = vunpack.c.l.b16 %v3697
        %v4074 = vunpack.c.l.b16 %v3711
        %v4075 = vunpack.c.l.b16 %v3725
        %v4076 = vunpack.c.l.b16 %v3739
        %v4077 = vunpack.c.l.b16 %v3753
        %v4078 = vunpack.c.l.b16 %v3767
        %v4079 = vunpack.c.l.b16 %v3781
        %v4080 = vunpack.c.l.b16 %v3795
        %v4081 = vunpack.c.l.b16 %v3809
        %v4082 = vunpack.c.l.b16 %v3823
        %v4083 = vunpack.c.l.b16 %v3837
        %v4084 = vunpack.c.l.b16 %v3851
        %v4085 = vunpack.c.l.b16 %v3865
        %v4086 = vunpack.c.l.b16 %v3879
        %v4087 = vunpack.c.l.b16 %v3893
        %v4088 = vunpack.c.l.b16 %v3907
        %v4089 = vunpack.c.l.b16 %v3921
        %v4090 = vunpack.c.l.b16 %v3935
        %v4091 = vunpack.c.l.b16 %v3949
        %v4092 = vunpack.c.l.b16 %v3963
        %v4093 = vunpack.c.l.b16 %v3977
        %v4094 = vunpack.c.l.b16 %v3991
        %v4095 = vunpack.c.l.b16 %v4005
        %v4096 = vunpack.c.l.b16 %v4019
        %v4097 = vunpack.c.l.b16 %v4033
        %v4098 = vrot.slane %v4035, 7
        %v4099 = vsel %vm1312, %v4098, %v4034
        %v4100 = vrot.slane %v4036, 6
        %v4101 = vsel %vm1315, %v4100, %v4099
        %v4102 = vrot.slane %v4037, 5
        %v4103 = vsel %vm1318, %v4102, %v4101
        %v4104 = vrot.slane %v4038, 4
        %v4105 = vsel %vm1321, %v4104, %v4103
        %v4106 = vrot.slane %v4039, 3
        %v4107 = vsel %vm1324, %v4106, %v4105
        %v4108 = vrot.slane %v4040, 2
        %v4109 = vsel %vm1327, %v4108, %v4107
        %v4110 = vrot.slane %v4041, 1
        %v4111 = vsel %vm1330, %v4110, %v4109
        %v4112 = vrot.slane %v4043, 7
        %v4113 = vsel %vm1312, %v4112, %v4042
        %v4114 = vrot.slane %v4044, 6
        %v4115 = vsel %vm1315, %v4114, %v4113
        %v4116 = vrot.slane %v4045, 5
        %v4117 = vsel %vm1318, %v4116, %v4115
        %v4118 = vrot.slane %v4046, 4
        %v4119 = vsel %vm1321, %v4118, %v4117
        %v4120 = vrot.slane %v4047, 3
        %v4121 = vsel %vm1324, %v4120, %v4119
        %v4122 = vrot.slane %v4048, 2
        %v4123 = vsel %vm1327, %v4122, %v4121
        %v4124 = vrot.slane %v4049, 1
        %v4125 = vsel %vm1330, %v4124, %v4123
        %v4126 = vrot.slane %v4051, 7
        %v4127 = vsel %vm1312, %v4126, %v4050
        %v4128 = vrot.slane %v4052, 6
        %v4129 = vsel %vm1315, %v4128, %v4127
        %v4130 = vrot.slane %v4053, 5
        %v4131 = vsel %vm1318, %v4130, %v4129
        %v4132 = vrot.slane %v4054, 4
        %v4133 = vsel %vm1321, %v4132, %v4131
        %v4134 = vrot.slane %v4055, 3
        %v4135 = vsel %vm1324, %v4134, %v4133
        %v4136 = vrot.slane %v4056, 2
        %v4137 = vsel %vm1327, %v4136, %v4135
        %v4138 = vrot.slane %v4057, 1
        %v4139 = vsel %vm1330, %v4138, %v4137
        %v4140 = vrot.slane %v4059, 7
        %v4141 = vsel %vm1312, %v4140, %v4058
        %v4142 = vrot.slane %v4060, 6
        %v4143 = vsel %vm1315, %v4142, %v4141
        %v4144 = vrot.slane %v4061, 5
        %v4145 = vsel %vm1318, %v4144, %v4143
        %v4146 = vrot.slane %v4062, 4
        %v4147 = vsel %vm1321, %v4146, %v4145
        %v4148 = vrot.slane %v4063, 3
        %v4149 = vsel %vm1324, %v4148, %v4147
        %v4150 = vrot.slane %v4064, 2
        %v4151 = vsel %vm1327, %v4150, %v4149
        %v4152 = vrot.slane %v4065, 1
        %v4153 = vsel %vm1330, %v4152, %v4151
        %v4154 = vrot.slane %v4067, 7
        %v4155 = vsel %vm1312, %v4154, %v4066
        %v4156 = vrot.slane %v4068, 6
        %v4157 = vsel %vm1315, %v4156, %v4155
        %v4158 = vrot.slane %v4069, 5
        %v4159 = vsel %vm1318, %v4158, %v4157
        %v4160 = vrot.slane %v4070, 4
        %v4161 = vsel %vm1321, %v4160, %v4159
        %v4162 = vrot.slane %v4071, 3
        %v4163 = vsel %vm1324, %v4162, %v4161
        %v4164 = vrot.slane %v4072, 2
        %v4165 = vsel %vm1327, %v4164, %v4163
        %v4166 = vrot.slane %v4073, 1
        %v4167 = vsel %vm1330, %v4166, %v4165
        %v4168 = vrot.slane %v4075, 7
        %v4169 = vsel %vm1312, %v4168, %v4074
        %v4170 = vrot.slane %v4076, 6
        %v4171 = vsel %vm1315, %v4170, %v4169
        %v4172 = vrot.slane %v4077, 5
        %v4173 = vsel %vm1318, %v4172, %v4171
        %v4174 = vrot.slane %v4078, 4
        %v4175 = vsel %vm1321, %v4174, %v4173
        %v4176 = vrot.slane %v4079, 3
        %v4177 = vsel %vm1324, %v4176, %v4175
        %v4178 = vrot.slane %v4080, 2
        %v4179 = vsel %vm1327, %v4178, %v4177
        %v4180 = vrot.slane %v4081, 1
        %v4181 = vsel %vm1330, %v4180, %v4179
        %v4182 = vrot.slane %v4083, 7
        %v4183 = vsel %vm1312, %v4182, %v4082
        %v4184 = vrot.slane %v4084, 6
        %v4185 = vsel %vm1315, %v4184, %v4183
        %v4186 = vrot.slane %v4085, 5
        %v4187 = vsel %vm1318, %v4186, %v4185
        %v4188 = vrot.slane %v4086, 4
        %v4189 = vsel %vm1321, %v4188, %v4187
        %v4190 = vrot.slane %v4087, 3
        %v4191 = vsel %vm1324, %v4190, %v4189
        %v4192 = vrot.slane %v4088, 2
        %v4193 = vsel %vm1327, %v4192, %v4191
        %v4194 = vrot.slane %v4089, 1
        %v4195 = vsel %vm1330, %v4194, %v4193
        %v4196 = vrot.slane %v4091, 7
        %v4197 = vsel %vm1312, %v4196, %v4090
        %v4198 = vrot.slane %v4092, 6
        %v4199 = vsel %vm1315, %v4198, %v4197
        %v4200 = vrot.slane %v4093, 5
        %v4201 = vsel %vm1318, %v4200, %v4199
        %v4202 = vrot.slane %v4094, 4
        %v4203 = vsel %vm1321, %v4202, %v4201
        %v4204 = vrot.slane %v4095, 3
        %v4205 = vsel %vm1324, %v4204, %v4203
        %v4206 = vrot.slane %v4096, 2
        %v4207 = vsel %vm1327, %v4206, %v4205
        %v4208 = vrot.slane %v4097, 1
        %v4209 = vsel %vm1330, %v4208, %v4207
        %v4210 = vpack.c.b16 %v4125, %v4111
        %v4211 = vpack.c.b16 %v4153, %v4139
        %v4212 = vpack.c.b16 %v4181, %v4167
        %v4213 = vpack.c.b16 %v4209, %v4195
        %v4215 = vsel %vm1434, %v4210, 0
        %v4218 = vsel %vm1434, %v4211, 0
        %v4221 = vsel %vm1434, %v4212, 0
        %v4224 = vsel %vm1434, %v4213, 0
        %v4227 = vsel %vm1447, %v3073, 0
        %4229 = vmatprep.subr.bf16.mxu0 0
        %4230 = vmatpush1.bf16.msra.mxu0 0
        %4231 = vmatprep.subr.bf16.mxu0 0
        %4232 = vmatpush1.bf16.msra.mxu0 0
        %4233 = vmatprep.subr.bf16.mxu0 0
        %4234 = vmatpush1.bf16.msra.mxu0 0
        %4235 = vmatprep.subr.bf16.mxu0 0
        %4236 = vmatpush1.bf16.msra.mxu0 0
        %4237 = vmatprep.subr.bf16.mxu0 0
        %4238 = vmatpush1.bf16.msra.mxu0 0
        %4239 = vmatprep.subr.bf16.mxu0 0
        %4240 = vmatpush1.bf16.msra.mxu0 0
        %4241 = vmatprep.subr.bf16.mxu0 0
        %4242 = vmatpush1.bf16.msra.mxu0 0
        %4243 = vmatprep.subr.bf16.mxu0 0
        %4244 = vmatpush1.bf16.msra.mxu0 %v4227
        %4245 = vmatprep.subr.bf16.mxu0 0
        %4246 = vmatpush2.bf16.msra.mxu0 0
        %4247 = vmatprep.subr.bf16.mxu0 0
        %4248 = vmatpush2.bf16.msra.mxu0 0
        %4249 = vmatprep.subr.bf16.mxu0 0
        %4250 = vmatpush2.bf16.msra.mxu0 0
        %4251 = vmatprep.subr.bf16.mxu0 0
        %4252 = vmatpush2.bf16.msra.mxu0 0
        %4253 = vmatprep.subr.bf16.mxu0 0
        %4254 = vmatpush2.bf16.msra.mxu0 0
        %4255 = vmatprep.subr.bf16.mxu0 0
        %4256 = vmatpush2.bf16.msra.mxu0 0
        %4257 = vmatprep.subr.bf16.mxu0 0
        %4258 = vmatpush2.bf16.msra.mxu0 0
        %4259 = vmatprep.subr.bf16.mxu0 0
        %4260 = vmatpush2.bf16.msra.mxu0 0
        %4261 = vmatprep.mubr.bf16.mxu0 0
        %4262 = vmatmul.mubr.bf16.gmra.mxu0 %v4215
        %v4263 = vpop.f32.mrf.mxu0
        %v4264 = vadd.f32 0.0, %v4263
        %v4265 = vpop.f32.mrf.mxu0
        %v4266 = vpop.f32.mrf.mxu0
        %v4267 = vadd.f32 0.0, %v4266
        %v4268 = vpop.f32.mrf.mxu0
        %4269 = vmatprep.mubr.bf16.mxu0 0
        %4270 = vmatmul.mubr.bf16.gmra.mxu0 %v4218
        %v4271 = vpop.f32.mrf.mxu0
        %v4272 = vadd.f32 0.0, %v4271
        %v4273 = vpop.f32.mrf.mxu0
        %v4274 = vpop.f32.mrf.mxu0
        %v4275 = vadd.f32 0.0, %v4274
        %v4276 = vpop.f32.mrf.mxu0
        %4277 = vmatprep.mubr.bf16.mxu0 0
        %4278 = vmatmul.mubr.bf16.gmra.mxu0 %v4221
        %v4279 = vpop.f32.mrf.mxu0
        %v4280 = vadd.f32 0.0, %v4279
        %v4281 = vpop.f32.mrf.mxu0
        %v4282 = vpop.f32.mrf.mxu0
        %v4283 = vadd.f32 0.0, %v4282
        %v4284 = vpop.f32.mrf.mxu0
        %4285 = vmatprep.mubr.bf16.mxu0 0
        %4286 = vmatmul.mubr.bf16.gmra.mxu0 %v4224
        %v4287 = vpop.f32.mrf.mxu0
        %v4288 = vadd.f32 0.0, %v4287
        %v4289 = vpop.f32.mrf.mxu0
        %v4290 = vpop.f32.mrf.mxu0
        %v4291 = vadd.f32 0.0, %v4290
        %v4292 = vpop.f32.mrf.mxu0
        %4293 = vdwg.mxu0
        %v4294 = vadd.f32 %v2999, %v4264
        %v4295 = vadd.f32 %v3000, %v4267
        %v4296 = vadd.f32 %v3001, %v4272
        %v4297 = vadd.f32 %v3002, %v4275
        %v4298 = vadd.f32 %v3003, %v4280
        %v4299 = vadd.f32 %v3004, %v4283
        %v4300 = vadd.f32 %v3005, %v4288
        %v4301 = vadd.f32 %v3006, %v4291
        %v4302 = vld [vmem:[%s3007] sm:$0x1]
        %v4303 = vld [vmem:[%s3007 + $0x1] sm:$0x1]
        %v4304 = vld [vmem:[%s3007 + $0x2] sm:$0x1]
        %v4305 = vld [vmem:[%s3007 + $0x3] sm:$0x1]
        %v4306 = vld [vmem:[%s3007 + $0x4] sm:$0x1]
        %v4307 = vld [vmem:[%s3007 + $0x5] sm:$0x1]
        %v4308 = vld [vmem:[%s3007 + $0x6] sm:$0x1]
        %v4309 = vld [vmem:[%s3007 + $0x7] sm:$0x1]
        %v4310 = vld [vmem:[%s3007 + $0x12] sm:$0x1]
        %v4311 = vld [vmem:[%s3007 + $0x13] sm:$0x1]
        %v4312 = vld [vmem:[%s3007 + $0x14] sm:$0x1]
        %v4313 = vld [vmem:[%s3007 + $0x15] sm:$0x1]
        %v4314 = vld [vmem:[%s3007 + $0x16] sm:$0x1]
        %v4315 = vld [vmem:[%s3007 + $0x17] sm:$0x1]
        %v4316 = vld [vmem:[%s3007 + $0x18] sm:$0x1]
        %v4317 = vld [vmem:[%s3007 + $0x19] sm:$0x1]
        %v4318 = vld [vmem:[%s3007 + $0x24] sm:$0x1]
        %v4319 = vld [vmem:[%s3007 + $0x25] sm:$0x1]
        %v4320 = vld [vmem:[%s3007 + $0x26] sm:$0x1]
        %v4321 = vld [vmem:[%s3007 + $0x27] sm:$0x1]
        %v4322 = vld [vmem:[%s3007 + $0x28] sm:$0x1]
        %v4323 = vld [vmem:[%s3007 + $0x29] sm:$0x1]
        %v4324 = vld [vmem:[%s3007 + $0x2a] sm:$0x1]
        %v4325 = vld [vmem:[%s3007 + $0x2b] sm:$0x1]
        %v4326 = vld [vmem:[%s3007 + $0x36] sm:$0x1]
        %v4327 = vld [vmem:[%s3007 + $0x37] sm:$0x1]
        %v4328 = vld [vmem:[%s3007 + $0x38] sm:$0x1]
        %v4329 = vld [vmem:[%s3007 + $0x39] sm:$0x1]
        %v4330 = vld [vmem:[%s3007 + $0x3a] sm:$0x1]
        %v4331 = vld [vmem:[%s3007 + $0x3b] sm:$0x1]
        %v4332 = vld [vmem:[%s3007 + $0x3c] sm:$0x1]
        %v4333 = vld [vmem:[%s3007 + $0x3d] sm:$0x1]
        %v4334 = vld [vmem:[%s3007 + $0x48] sm:$0x1]
        %v4335 = vld [vmem:[%s3007 + $0x49] sm:$0x1]
        %v4336 = vld [vmem:[%s3007 + $0x4a] sm:$0x1]
        %v4337 = vld [vmem:[%s3007 + $0x4b] sm:$0x1]
        %v4338 = vld [vmem:[%s3007 + $0x4c] sm:$0x1]
        %v4339 = vld [vmem:[%s3007 + $0x4d] sm:$0x1]
        %v4340 = vld [vmem:[%s3007 + $0x4e] sm:$0x1]
        %v4341 = vld [vmem:[%s3007 + $0x4f] sm:$0x1]
        %v4342 = vld [vmem:[%s3007 + $0x5a] sm:$0x1]
        %v4343 = vld [vmem:[%s3007 + $0x5b] sm:$0x1]
        %v4344 = vld [vmem:[%s3007 + $0x5c] sm:$0x1]
        %v4345 = vld [vmem:[%s3007 + $0x5d] sm:$0x1]
        %v4346 = vld [vmem:[%s3007 + $0x5e] sm:$0x1]
        %v4347 = vld [vmem:[%s3007 + $0x5f] sm:$0x1]
        %v4348 = vld [vmem:[%s3007 + $0x60] sm:$0x1]
        %v4349 = vld [vmem:[%s3007 + $0x61] sm:$0x1]
        %v4350 = vld [vmem:[%s3007 + $0x6c] sm:$0x1]
        %v4351 = vld [vmem:[%s3007 + $0x6d] sm:$0x1]
        %v4352 = vld [vmem:[%s3007 + $0x6e] sm:$0x1]
        %v4353 = vld [vmem:[%s3007 + $0x6f] sm:$0x1]
        %v4354 = vld [vmem:[%s3007 + $0x70] sm:$0x1]
        %v4355 = vld [vmem:[%s3007 + $0x71] sm:$0x1]
        %v4356 = vld [vmem:[%s3007 + $0x72] sm:$0x1]
        %v4357 = vld [vmem:[%s3007 + $0x73] sm:$0x1]
        %v4358 = vld [vmem:[%s3007 + $0x7e] sm:$0x1]
        %v4359 = vld [vmem:[%s3007 + $0x7f] sm:$0x1]
        %v4360 = vld [vmem:[%s3007 + $0x80] sm:$0x1]
        %v4361 = vld [vmem:[%s3007 + $0x81] sm:$0x1]
        %v4362 = vld [vmem:[%s3007 + $0x82] sm:$0x1]
        %v4363 = vld [vmem:[%s3007 + $0x83] sm:$0x1]
        %v4364 = vld [vmem:[%s3007 + $0x84] sm:$0x1]
        %v4365 = vld [vmem:[%s3007 + $0x85] sm:$0x1]
        %s4366 = scalar_lea.vmem %s214, 8
        %v4367 = vld [vmem:[%s4366] sm:$0x3]
        %v4433 = vunpack.c.l.s4 1966171168
        %v4434 = vunpack.c.0.s8 %v4433
        %v4435 = vlaneseq
        %v4436 = vshrl.u32 %v4435, 7
        %v4437 = vsub.s32 %v4434, %v4436
        %v4438 = vrot.slane %v4302, %v4437
        %v4440 = vunpack.c.l.s4 1966171168
        %v4441 = vunpack.c.0.s8 %v4440
        %v4442 = vlaneseq
        %v4443 = vshrl.u32 %v4442, 7
        %v4444 = vsub.s32 %v4441, %v4443
        %v4445 = vrot.slane %v4438, %v4444
        %v4447 = vunpack.c.l.s4 1966171168
        %v4448 = vunpack.c.0.s8 %v4447
        %v4449 = vlaneseq
        %v4450 = vshrl.u32 %v4449, 7
        %v4451 = vsub.s32 %v4448, %v4450
        %v4452 = vrot.slane %v4303, %v4451
        %v4454 = vunpack.c.l.s4 1966171168
        %v4455 = vunpack.c.0.s8 %v4454
        %v4456 = vlaneseq
        %v4457 = vshrl.u32 %v4456, 7
        %v4458 = vsub.s32 %v4455, %v4457
        %v4459 = vrot.slane %v4452, %v4458
        %v4461 = vunpack.c.l.s4 1966171168
        %v4462 = vunpack.c.0.s8 %v4461
        %v4463 = vlaneseq
        %v4464 = vshrl.u32 %v4463, 7
        %v4465 = vsub.s32 %v4462, %v4464
        %v4466 = vrot.slane %v4304, %v4465
        %v4468 = vunpack.c.l.s4 1966171168
        %v4469 = vunpack.c.0.s8 %v4468
        %v4470 = vlaneseq
        %v4471 = vshrl.u32 %v4470, 7
        %v4472 = vsub.s32 %v4469, %v4471
        %v4473 = vrot.slane %v4466, %v4472
        %v4475 = vunpack.c.l.s4 1966171168
        %v4476 = vunpack.c.0.s8 %v4475
        %v4477 = vlaneseq
        %v4478 = vshrl.u32 %v4477, 7
        %v4479 = vsub.s32 %v4476, %v4478
        %v4480 = vrot.slane %v4305, %v4479
        %v4482 = vunpack.c.l.s4 1966171168
        %v4483 = vunpack.c.0.s8 %v4482
        %v4484 = vlaneseq
        %v4485 = vshrl.u32 %v4484, 7
        %v4486 = vsub.s32 %v4483, %v4485
        %v4487 = vrot.slane %v4480, %v4486
        %v4489 = vunpack.c.l.s4 1966171168
        %v4490 = vunpack.c.0.s8 %v4489
        %v4491 = vlaneseq
        %v4492 = vshrl.u32 %v4491, 7
        %v4493 = vsub.s32 %v4490, %v4492
        %v4494 = vrot.slane %v4306, %v4493
        %v4496 = vunpack.c.l.s4 1966171168
        %v4497 = vunpack.c.0.s8 %v4496
        %v4498 = vlaneseq
        %v4499 = vshrl.u32 %v4498, 7
        %v4500 = vsub.s32 %v4497, %v4499
        %v4501 = vrot.slane %v4494, %v4500
        %v4503 = vunpack.c.l.s4 1966171168
        %v4504 = vunpack.c.0.s8 %v4503
        %v4505 = vlaneseq
        %v4506 = vshrl.u32 %v4505, 7
        %v4507 = vsub.s32 %v4504, %v4506
        %v4508 = vrot.slane %v4307, %v4507
        %v4510 = vunpack.c.l.s4 1966171168
        %v4511 = vunpack.c.0.s8 %v4510
        %v4512 = vlaneseq
        %v4513 = vshrl.u32 %v4512, 7
        %v4514 = vsub.s32 %v4511, %v4513
        %v4515 = vrot.slane %v4508, %v4514
        %v4517 = vunpack.c.l.s4 1966171168
        %v4518 = vunpack.c.0.s8 %v4517
        %v4519 = vlaneseq
        %v4520 = vshrl.u32 %v4519, 7
        %v4521 = vsub.s32 %v4518, %v4520
        %v4522 = vrot.slane %v4308, %v4521
        %v4524 = vunpack.c.l.s4 1966171168
        %v4525 = vunpack.c.0.s8 %v4524
        %v4526 = vlaneseq
        %v4527 = vshrl.u32 %v4526, 7
        %v4528 = vsub.s32 %v4525, %v4527
        %v4529 = vrot.slane %v4522, %v4528
        %v4531 = vunpack.c.l.s4 1966171168
        %v4532 = vunpack.c.0.s8 %v4531
        %v4533 = vlaneseq
        %v4534 = vshrl.u32 %v4533, 7
        %v4535 = vsub.s32 %v4532, %v4534
        %v4536 = vrot.slane %v4309, %v4535
        %v4538 = vunpack.c.l.s4 1966171168
        %v4539 = vunpack.c.0.s8 %v4538
        %v4540 = vlaneseq
        %v4541 = vshrl.u32 %v4540, 7
        %v4542 = vsub.s32 %v4539, %v4541
        %v4543 = vrot.slane %v4536, %v4542
        %v4545 = vunpack.c.l.s4 1966171168
        %v4546 = vunpack.c.0.s8 %v4545
        %v4547 = vlaneseq
        %v4548 = vshrl.u32 %v4547, 7
        %v4549 = vsub.s32 %v4546, %v4548
        %v4550 = vrot.slane %v4310, %v4549
        %v4552 = vunpack.c.l.s4 1966171168
        %v4553 = vunpack.c.0.s8 %v4552
        %v4554 = vlaneseq
        %v4555 = vshrl.u32 %v4554, 7
        %v4556 = vsub.s32 %v4553, %v4555
        %v4557 = vrot.slane %v4550, %v4556
        %v4559 = vunpack.c.l.s4 1966171168
        %v4560 = vunpack.c.0.s8 %v4559
        %v4561 = vlaneseq
        %v4562 = vshrl.u32 %v4561, 7
        %v4563 = vsub.s32 %v4560, %v4562
        %v4564 = vrot.slane %v4311, %v4563
        %v4566 = vunpack.c.l.s4 1966171168
        %v4567 = vunpack.c.0.s8 %v4566
        %v4568 = vlaneseq
        %v4569 = vshrl.u32 %v4568, 7
        %v4570 = vsub.s32 %v4567, %v4569
        %v4571 = vrot.slane %v4564, %v4570
        %v4573 = vunpack.c.l.s4 1966171168
        %v4574 = vunpack.c.0.s8 %v4573
        %v4575 = vlaneseq
        %v4576 = vshrl.u32 %v4575, 7
        %v4577 = vsub.s32 %v4574, %v4576
        %v4578 = vrot.slane %v4312, %v4577
        %v4580 = vunpack.c.l.s4 1966171168
        %v4581 = vunpack.c.0.s8 %v4580
        %v4582 = vlaneseq
        %v4583 = vshrl.u32 %v4582, 7
        %v4584 = vsub.s32 %v4581, %v4583
        %v4585 = vrot.slane %v4578, %v4584
        %v4587 = vunpack.c.l.s4 1966171168
        %v4588 = vunpack.c.0.s8 %v4587
        %v4589 = vlaneseq
        %v4590 = vshrl.u32 %v4589, 7
        %v4591 = vsub.s32 %v4588, %v4590
        %v4592 = vrot.slane %v4313, %v4591
        %v4594 = vunpack.c.l.s4 1966171168
        %v4595 = vunpack.c.0.s8 %v4594
        %v4596 = vlaneseq
        %v4597 = vshrl.u32 %v4596, 7
        %v4598 = vsub.s32 %v4595, %v4597
        %v4599 = vrot.slane %v4592, %v4598
        %v4601 = vunpack.c.l.s4 1966171168
        %v4602 = vunpack.c.0.s8 %v4601
        %v4603 = vlaneseq
        %v4604 = vshrl.u32 %v4603, 7
        %v4605 = vsub.s32 %v4602, %v4604
        %v4606 = vrot.slane %v4314, %v4605
        %v4608 = vunpack.c.l.s4 1966171168
        %v4609 = vunpack.c.0.s8 %v4608
        %v4610 = vlaneseq
        %v4611 = vshrl.u32 %v4610, 7
        %v4612 = vsub.s32 %v4609, %v4611
        %v4613 = vrot.slane %v4606, %v4612
        %v4615 = vunpack.c.l.s4 1966171168
        %v4616 = vunpack.c.0.s8 %v4615
        %v4617 = vlaneseq
        %v4618 = vshrl.u32 %v4617, 7
        %v4619 = vsub.s32 %v4616, %v4618
        %v4620 = vrot.slane %v4315, %v4619
        %v4622 = vunpack.c.l.s4 1966171168
        %v4623 = vunpack.c.0.s8 %v4622
        %v4624 = vlaneseq
        %v4625 = vshrl.u32 %v4624, 7
        %v4626 = vsub.s32 %v4623, %v4625
        %v4627 = vrot.slane %v4620, %v4626
        %v4629 = vunpack.c.l.s4 1966171168
        %v4630 = vunpack.c.0.s8 %v4629
        %v4631 = vlaneseq
        %v4632 = vshrl.u32 %v4631, 7
        %v4633 = vsub.s32 %v4630, %v4632
        %v4634 = vrot.slane %v4316, %v4633
        %v4636 = vunpack.c.l.s4 1966171168
        %v4637 = vunpack.c.0.s8 %v4636
        %v4638 = vlaneseq
        %v4639 = vshrl.u32 %v4638, 7
        %v4640 = vsub.s32 %v4637, %v4639
        %v4641 = vrot.slane %v4634, %v4640
        %v4643 = vunpack.c.l.s4 1966171168
        %v4644 = vunpack.c.0.s8 %v4643
        %v4645 = vlaneseq
        %v4646 = vshrl.u32 %v4645, 7
        %v4647 = vsub.s32 %v4644, %v4646
        %v4648 = vrot.slane %v4317, %v4647
        %v4650 = vunpack.c.l.s4 1966171168
        %v4651 = vunpack.c.0.s8 %v4650
        %v4652 = vlaneseq
        %v4653 = vshrl.u32 %v4652, 7
        %v4654 = vsub.s32 %v4651, %v4653
        %v4655 = vrot.slane %v4648, %v4654
        %v4657 = vunpack.c.l.s4 1966171168
        %v4658 = vunpack.c.0.s8 %v4657
        %v4659 = vlaneseq
        %v4660 = vshrl.u32 %v4659, 7
        %v4661 = vsub.s32 %v4658, %v4660
        %v4662 = vrot.slane %v4318, %v4661
        %v4664 = vunpack.c.l.s4 1966171168
        %v4665 = vunpack.c.0.s8 %v4664
        %v4666 = vlaneseq
        %v4667 = vshrl.u32 %v4666, 7
        %v4668 = vsub.s32 %v4665, %v4667
        %v4669 = vrot.slane %v4662, %v4668
        %v4671 = vunpack.c.l.s4 1966171168
        %v4672 = vunpack.c.0.s8 %v4671
        %v4673 = vlaneseq
        %v4674 = vshrl.u32 %v4673, 7
        %v4675 = vsub.s32 %v4672, %v4674
        %v4676 = vrot.slane %v4319, %v4675
        %v4678 = vunpack.c.l.s4 1966171168
        %v4679 = vunpack.c.0.s8 %v4678
        %v4680 = vlaneseq
        %v4681 = vshrl.u32 %v4680, 7
        %v4682 = vsub.s32 %v4679, %v4681
        %v4683 = vrot.slane %v4676, %v4682
        %v4685 = vunpack.c.l.s4 1966171168
        %v4686 = vunpack.c.0.s8 %v4685
        %v4687 = vlaneseq
        %v4688 = vshrl.u32 %v4687, 7
        %v4689 = vsub.s32 %v4686, %v4688
        %v4690 = vrot.slane %v4320, %v4689
        %v4692 = vunpack.c.l.s4 1966171168
        %v4693 = vunpack.c.0.s8 %v4692
        %v4694 = vlaneseq
        %v4695 = vshrl.u32 %v4694, 7
        %v4696 = vsub.s32 %v4693, %v4695
        %v4697 = vrot.slane %v4690, %v4696
        %v4699 = vunpack.c.l.s4 1966171168
        %v4700 = vunpack.c.0.s8 %v4699
        %v4701 = vlaneseq
        %v4702 = vshrl.u32 %v4701, 7
        %v4703 = vsub.s32 %v4700, %v4702
        %v4704 = vrot.slane %v4321, %v4703
        %v4706 = vunpack.c.l.s4 1966171168
        %v4707 = vunpack.c.0.s8 %v4706
        %v4708 = vlaneseq
        %v4709 = vshrl.u32 %v4708, 7
        %v4710 = vsub.s32 %v4707, %v4709
        %v4711 = vrot.slane %v4704, %v4710
        %v4713 = vunpack.c.l.s4 1966171168
        %v4714 = vunpack.c.0.s8 %v4713
        %v4715 = vlaneseq
        %v4716 = vshrl.u32 %v4715, 7
        %v4717 = vsub.s32 %v4714, %v4716
        %v4718 = vrot.slane %v4322, %v4717
        %v4720 = vunpack.c.l.s4 1966171168
        %v4721 = vunpack.c.0.s8 %v4720
        %v4722 = vlaneseq
        %v4723 = vshrl.u32 %v4722, 7
        %v4724 = vsub.s32 %v4721, %v4723
        %v4725 = vrot.slane %v4718, %v4724
        %v4727 = vunpack.c.l.s4 1966171168
        %v4728 = vunpack.c.0.s8 %v4727
        %v4729 = vlaneseq
        %v4730 = vshrl.u32 %v4729, 7
        %v4731 = vsub.s32 %v4728, %v4730
        %v4732 = vrot.slane %v4323, %v4731
        %v4734 = vunpack.c.l.s4 1966171168
        %v4735 = vunpack.c.0.s8 %v4734
        %v4736 = vlaneseq
        %v4737 = vshrl.u32 %v4736, 7
        %v4738 = vsub.s32 %v4735, %v4737
        %v4739 = vrot.slane %v4732, %v4738
        %v4741 = vunpack.c.l.s4 1966171168
        %v4742 = vunpack.c.0.s8 %v4741
        %v4743 = vlaneseq
        %v4744 = vshrl.u32 %v4743, 7
        %v4745 = vsub.s32 %v4742, %v4744
        %v4746 = vrot.slane %v4324, %v4745
        %v4748 = vunpack.c.l.s4 1966171168
        %v4749 = vunpack.c.0.s8 %v4748
        %v4750 = vlaneseq
        %v4751 = vshrl.u32 %v4750, 7
        %v4752 = vsub.s32 %v4749, %v4751
        %v4753 = vrot.slane %v4746, %v4752
        %v4755 = vunpack.c.l.s4 1966171168
        %v4756 = vunpack.c.0.s8 %v4755
        %v4757 = vlaneseq
        %v4758 = vshrl.u32 %v4757, 7
        %v4759 = vsub.s32 %v4756, %v4758
        %v4760 = vrot.slane %v4325, %v4759
        %v4762 = vunpack.c.l.s4 1966171168
        %v4763 = vunpack.c.0.s8 %v4762
        %v4764 = vlaneseq
        %v4765 = vshrl.u32 %v4764, 7
        %v4766 = vsub.s32 %v4763, %v4765
        %v4767 = vrot.slane %v4760, %v4766
        %v4769 = vunpack.c.l.s4 1966171168
        %v4770 = vunpack.c.0.s8 %v4769
        %v4771 = vlaneseq
        %v4772 = vshrl.u32 %v4771, 7
        %v4773 = vsub.s32 %v4770, %v4772
        %v4774 = vrot.slane %v4326, %v4773
        %v4776 = vunpack.c.l.s4 1966171168
        %v4777 = vunpack.c.0.s8 %v4776
        %v4778 = vlaneseq
        %v4779 = vshrl.u32 %v4778, 7
        %v4780 = vsub.s32 %v4777, %v4779
        %v4781 = vrot.slane %v4774, %v4780
        %v4783 = vunpack.c.l.s4 1966171168
        %v4784 = vunpack.c.0.s8 %v4783
        %v4785 = vlaneseq
        %v4786 = vshrl.u32 %v4785, 7
        %v4787 = vsub.s32 %v4784, %v4786
        %v4788 = vrot.slane %v4327, %v4787
        %v4790 = vunpack.c.l.s4 1966171168
        %v4791 = vunpack.c.0.s8 %v4790
        %v4792 = vlaneseq
        %v4793 = vshrl.u32 %v4792, 7
        %v4794 = vsub.s32 %v4791, %v4793
        %v4795 = vrot.slane %v4788, %v4794
        %v4797 = vunpack.c.l.s4 1966171168
        %v4798 = vunpack.c.0.s8 %v4797
        %v4799 = vlaneseq
        %v4800 = vshrl.u32 %v4799, 7
        %v4801 = vsub.s32 %v4798, %v4800
        %v4802 = vrot.slane %v4328, %v4801
        %v4804 = vunpack.c.l.s4 1966171168
        %v4805 = vunpack.c.0.s8 %v4804
        %v4806 = vlaneseq
        %v4807 = vshrl.u32 %v4806, 7
        %v4808 = vsub.s32 %v4805, %v4807
        %v4809 = vrot.slane %v4802, %v4808
        %v4811 = vunpack.c.l.s4 1966171168
        %v4812 = vunpack.c.0.s8 %v4811
        %v4813 = vlaneseq
        %v4814 = vshrl.u32 %v4813, 7
        %v4815 = vsub.s32 %v4812, %v4814
        %v4816 = vrot.slane %v4329, %v4815
        %v4818 = vunpack.c.l.s4 1966171168
        %v4819 = vunpack.c.0.s8 %v4818
        %v4820 = vlaneseq
        %v4821 = vshrl.u32 %v4820, 7
        %v4822 = vsub.s32 %v4819, %v4821
        %v4823 = vrot.slane %v4816, %v4822
        %v4825 = vunpack.c.l.s4 1966171168
        %v4826 = vunpack.c.0.s8 %v4825
        %v4827 = vlaneseq
        %v4828 = vshrl.u32 %v4827, 7
        %v4829 = vsub.s32 %v4826, %v4828
        %v4830 = vrot.slane %v4330, %v4829
        %v4832 = vunpack.c.l.s4 1966171168
        %v4833 = vunpack.c.0.s8 %v4832
        %v4834 = vlaneseq
        %v4835 = vshrl.u32 %v4834, 7
        %v4836 = vsub.s32 %v4833, %v4835
        %v4837 = vrot.slane %v4830, %v4836
        %v4839 = vunpack.c.l.s4 1966171168
        %v4840 = vunpack.c.0.s8 %v4839
        %v4841 = vlaneseq
        %v4842 = vshrl.u32 %v4841, 7
        %v4843 = vsub.s32 %v4840, %v4842
        %v4844 = vrot.slane %v4331, %v4843
        %v4846 = vunpack.c.l.s4 1966171168
        %v4847 = vunpack.c.0.s8 %v4846
        %v4848 = vlaneseq
        %v4849 = vshrl.u32 %v4848, 7
        %v4850 = vsub.s32 %v4847, %v4849
        %v4851 = vrot.slane %v4844, %v4850
        %v4853 = vunpack.c.l.s4 1966171168
        %v4854 = vunpack.c.0.s8 %v4853
        %v4855 = vlaneseq
        %v4856 = vshrl.u32 %v4855, 7
        %v4857 = vsub.s32 %v4854, %v4856
        %v4858 = vrot.slane %v4332, %v4857
        %v4860 = vunpack.c.l.s4 1966171168
        %v4861 = vunpack.c.0.s8 %v4860
        %v4862 = vlaneseq
        %v4863 = vshrl.u32 %v4862, 7
        %v4864 = vsub.s32 %v4861, %v4863
        %v4865 = vrot.slane %v4858, %v4864
        %v4867 = vunpack.c.l.s4 1966171168
        %v4868 = vunpack.c.0.s8 %v4867
        %v4869 = vlaneseq
        %v4870 = vshrl.u32 %v4869, 7
        %v4871 = vsub.s32 %v4868, %v4870
        %v4872 = vrot.slane %v4333, %v4871
        %v4874 = vunpack.c.l.s4 1966171168
        %v4875 = vunpack.c.0.s8 %v4874
        %v4876 = vlaneseq
        %v4877 = vshrl.u32 %v4876, 7
        %v4878 = vsub.s32 %v4875, %v4877
        %v4879 = vrot.slane %v4872, %v4878
        %v4881 = vunpack.c.l.s4 1966171168
        %v4882 = vunpack.c.0.s8 %v4881
        %v4883 = vlaneseq
        %v4884 = vshrl.u32 %v4883, 7
        %v4885 = vsub.s32 %v4882, %v4884
        %v4886 = vrot.slane %v4334, %v4885
        %v4888 = vunpack.c.l.s4 1966171168
        %v4889 = vunpack.c.0.s8 %v4888
        %v4890 = vlaneseq
        %v4891 = vshrl.u32 %v4890, 7
        %v4892 = vsub.s32 %v4889, %v4891
        %v4893 = vrot.slane %v4886, %v4892
        %v4895 = vunpack.c.l.s4 1966171168
        %v4896 = vunpack.c.0.s8 %v4895
        %v4897 = vlaneseq
        %v4898 = vshrl.u32 %v4897, 7
        %v4899 = vsub.s32 %v4896, %v4898
        %v4900 = vrot.slane %v4335, %v4899
        %v4902 = vunpack.c.l.s4 1966171168
        %v4903 = vunpack.c.0.s8 %v4902
        %v4904 = vlaneseq
        %v4905 = vshrl.u32 %v4904, 7
        %v4906 = vsub.s32 %v4903, %v4905
        %v4907 = vrot.slane %v4900, %v4906
        %v4909 = vunpack.c.l.s4 1966171168
        %v4910 = vunpack.c.0.s8 %v4909
        %v4911 = vlaneseq
        %v4912 = vshrl.u32 %v4911, 7
        %v4913 = vsub.s32 %v4910, %v4912
        %v4914 = vrot.slane %v4336, %v4913
        %v4916 = vunpack.c.l.s4 1966171168
        %v4917 = vunpack.c.0.s8 %v4916
        %v4918 = vlaneseq
        %v4919 = vshrl.u32 %v4918, 7
        %v4920 = vsub.s32 %v4917, %v4919
        %v4921 = vrot.slane %v4914, %v4920
        %v4923 = vunpack.c.l.s4 1966171168
        %v4924 = vunpack.c.0.s8 %v4923
        %v4925 = vlaneseq
        %v4926 = vshrl.u32 %v4925, 7
        %v4927 = vsub.s32 %v4924, %v4926
        %v4928 = vrot.slane %v4337, %v4927
        %v4930 = vunpack.c.l.s4 1966171168
        %v4931 = vunpack.c.0.s8 %v4930
        %v4932 = vlaneseq
        %v4933 = vshrl.u32 %v4932, 7
        %v4934 = vsub.s32 %v4931, %v4933
        %v4935 = vrot.slane %v4928, %v4934
        %v4937 = vunpack.c.l.s4 1966171168
        %v4938 = vunpack.c.0.s8 %v4937
        %v4939 = vlaneseq
        %v4940 = vshrl.u32 %v4939, 7
        %v4941 = vsub.s32 %v4938, %v4940
        %v4942 = vrot.slane %v4338, %v4941
        %v4944 = vunpack.c.l.s4 1966171168
        %v4945 = vunpack.c.0.s8 %v4944
        %v4946 = vlaneseq
        %v4947 = vshrl.u32 %v4946, 7
        %v4948 = vsub.s32 %v4945, %v4947
        %v4949 = vrot.slane %v4942, %v4948
        %v4951 = vunpack.c.l.s4 1966171168
        %v4952 = vunpack.c.0.s8 %v4951
        %v4953 = vlaneseq
        %v4954 = vshrl.u32 %v4953, 7
        %v4955 = vsub.s32 %v4952, %v4954
        %v4956 = vrot.slane %v4339, %v4955
        %v4958 = vunpack.c.l.s4 1966171168
        %v4959 = vunpack.c.0.s8 %v4958
        %v4960 = vlaneseq
        %v4961 = vshrl.u32 %v4960, 7
        %v4962 = vsub.s32 %v4959, %v4961
        %v4963 = vrot.slane %v4956, %v4962
        %v4965 = vunpack.c.l.s4 1966171168
        %v4966 = vunpack.c.0.s8 %v4965
        %v4967 = vlaneseq
        %v4968 = vshrl.u32 %v4967, 7
        %v4969 = vsub.s32 %v4966, %v4968
        %v4970 = vrot.slane %v4340, %v4969
        %v4972 = vunpack.c.l.s4 1966171168
        %v4973 = vunpack.c.0.s8 %v4972
        %v4974 = vlaneseq
        %v4975 = vshrl.u32 %v4974, 7
        %v4976 = vsub.s32 %v4973, %v4975
        %v4977 = vrot.slane %v4970, %v4976
        %v4979 = vunpack.c.l.s4 1966171168
        %v4980 = vunpack.c.0.s8 %v4979
        %v4981 = vlaneseq
        %v4982 = vshrl.u32 %v4981, 7
        %v4983 = vsub.s32 %v4980, %v4982
        %v4984 = vrot.slane %v4341, %v4983
        %v4986 = vunpack.c.l.s4 1966171168
        %v4987 = vunpack.c.0.s8 %v4986
        %v4988 = vlaneseq
        %v4989 = vshrl.u32 %v4988, 7
        %v4990 = vsub.s32 %v4987, %v4989
        %v4991 = vrot.slane %v4984, %v4990
        %v4993 = vunpack.c.l.s4 1966171168
        %v4994 = vunpack.c.0.s8 %v4993
        %v4995 = vlaneseq
        %v4996 = vshrl.u32 %v4995, 7
        %v4997 = vsub.s32 %v4994, %v4996
        %v4998 = vrot.slane %v4342, %v4997
        %v5000 = vunpack.c.l.s4 1966171168
        %v5001 = vunpack.c.0.s8 %v5000
        %v5002 = vlaneseq
        %v5003 = vshrl.u32 %v5002, 7
        %v5004 = vsub.s32 %v5001, %v5003
        %v5005 = vrot.slane %v4998, %v5004
        %v5007 = vunpack.c.l.s4 1966171168
        %v5008 = vunpack.c.0.s8 %v5007
        %v5009 = vlaneseq
        %v5010 = vshrl.u32 %v5009, 7
        %v5011 = vsub.s32 %v5008, %v5010
        %v5012 = vrot.slane %v4343, %v5011
        %v5014 = vunpack.c.l.s4 1966171168
        %v5015 = vunpack.c.0.s8 %v5014
        %v5016 = vlaneseq
        %v5017 = vshrl.u32 %v5016, 7
        %v5018 = vsub.s32 %v5015, %v5017
        %v5019 = vrot.slane %v5012, %v5018
        %v5021 = vunpack.c.l.s4 1966171168
        %v5022 = vunpack.c.0.s8 %v5021
        %v5023 = vlaneseq
        %v5024 = vshrl.u32 %v5023, 7
        %v5025 = vsub.s32 %v5022, %v5024
        %v5026 = vrot.slane %v4344, %v5025
        %v5028 = vunpack.c.l.s4 1966171168
        %v5029 = vunpack.c.0.s8 %v5028
        %v5030 = vlaneseq
        %v5031 = vshrl.u32 %v5030, 7
        %v5032 = vsub.s32 %v5029, %v5031
        %v5033 = vrot.slane %v5026, %v5032
        %v5035 = vunpack.c.l.s4 1966171168
        %v5036 = vunpack.c.0.s8 %v5035
        %v5037 = vlaneseq
        %v5038 = vshrl.u32 %v5037, 7
        %v5039 = vsub.s32 %v5036, %v5038
        %v5040 = vrot.slane %v4345, %v5039
        %v5042 = vunpack.c.l.s4 1966171168
        %v5043 = vunpack.c.0.s8 %v5042
        %v5044 = vlaneseq
        %v5045 = vshrl.u32 %v5044, 7
        %v5046 = vsub.s32 %v5043, %v5045
        %v5047 = vrot.slane %v5040, %v5046
        %v5049 = vunpack.c.l.s4 1966171168
        %v5050 = vunpack.c.0.s8 %v5049
        %v5051 = vlaneseq
        %v5052 = vshrl.u32 %v5051, 7
        %v5053 = vsub.s32 %v5050, %v5052
        %v5054 = vrot.slane %v4346, %v5053
        %v5056 = vunpack.c.l.s4 1966171168
        %v5057 = vunpack.c.0.s8 %v5056
        %v5058 = vlaneseq
        %v5059 = vshrl.u32 %v5058, 7
        %v5060 = vsub.s32 %v5057, %v5059
        %v5061 = vrot.slane %v5054, %v5060
        %v5063 = vunpack.c.l.s4 1966171168
        %v5064 = vunpack.c.0.s8 %v5063
        %v5065 = vlaneseq
        %v5066 = vshrl.u32 %v5065, 7
        %v5067 = vsub.s32 %v5064, %v5066
        %v5068 = vrot.slane %v4347, %v5067
        %v5070 = vunpack.c.l.s4 1966171168
        %v5071 = vunpack.c.0.s8 %v5070
        %v5072 = vlaneseq
        %v5073 = vshrl.u32 %v5072, 7
        %v5074 = vsub.s32 %v5071, %v5073
        %v5075 = vrot.slane %v5068, %v5074
        %v5077 = vunpack.c.l.s4 1966171168
        %v5078 = vunpack.c.0.s8 %v5077
        %v5079 = vlaneseq
        %v5080 = vshrl.u32 %v5079, 7
        %v5081 = vsub.s32 %v5078, %v5080
        %v5082 = vrot.slane %v4348, %v5081
        %v5084 = vunpack.c.l.s4 1966171168
        %v5085 = vunpack.c.0.s8 %v5084
        %v5086 = vlaneseq
        %v5087 = vshrl.u32 %v5086, 7
        %v5088 = vsub.s32 %v5085, %v5087
        %v5089 = vrot.slane %v5082, %v5088
        %v5091 = vunpack.c.l.s4 1966171168
        %v5092 = vunpack.c.0.s8 %v5091
        %v5093 = vlaneseq
        %v5094 = vshrl.u32 %v5093, 7
        %v5095 = vsub.s32 %v5092, %v5094
        %v5096 = vrot.slane %v4349, %v5095
        %v5098 = vunpack.c.l.s4 1966171168
        %v5099 = vunpack.c.0.s8 %v5098
        %v5100 = vlaneseq
        %v5101 = vshrl.u32 %v5100, 7
        %v5102 = vsub.s32 %v5099, %v5101
        %v5103 = vrot.slane %v5096, %v5102
        %v5105 = vunpack.c.l.s4 1966171168
        %v5106 = vunpack.c.0.s8 %v5105
        %v5107 = vlaneseq
        %v5108 = vshrl.u32 %v5107, 7
        %v5109 = vsub.s32 %v5106, %v5108
        %v5110 = vrot.slane %v4350, %v5109
        %v5112 = vunpack.c.l.s4 1966171168
        %v5113 = vunpack.c.0.s8 %v5112
        %v5114 = vlaneseq
        %v5115 = vshrl.u32 %v5114, 7
        %v5116 = vsub.s32 %v5113, %v5115
        %v5117 = vrot.slane %v5110, %v5116
        %v5119 = vunpack.c.l.s4 1966171168
        %v5120 = vunpack.c.0.s8 %v5119
        %v5121 = vlaneseq
        %v5122 = vshrl.u32 %v5121, 7
        %v5123 = vsub.s32 %v5120, %v5122
        %v5124 = vrot.slane %v4351, %v5123
        %v5126 = vunpack.c.l.s4 1966171168
        %v5127 = vunpack.c.0.s8 %v5126
        %v5128 = vlaneseq
        %v5129 = vshrl.u32 %v5128, 7
        %v5130 = vsub.s32 %v5127, %v5129
        %v5131 = vrot.slane %v5124, %v5130
        %v5133 = vunpack.c.l.s4 1966171168
        %v5134 = vunpack.c.0.s8 %v5133
        %v5135 = vlaneseq
        %v5136 = vshrl.u32 %v5135, 7
        %v5137 = vsub.s32 %v5134, %v5136
        %v5138 = vrot.slane %v4352, %v5137
        %v5140 = vunpack.c.l.s4 1966171168
        %v5141 = vunpack.c.0.s8 %v5140
        %v5142 = vlaneseq
        %v5143 = vshrl.u32 %v5142, 7
        %v5144 = vsub.s32 %v5141, %v5143
        %v5145 = vrot.slane %v5138, %v5144
        %v5147 = vunpack.c.l.s4 1966171168
        %v5148 = vunpack.c.0.s8 %v5147
        %v5149 = vlaneseq
        %v5150 = vshrl.u32 %v5149, 7
        %v5151 = vsub.s32 %v5148, %v5150
        %v5152 = vrot.slane %v4353, %v5151
        %v5154 = vunpack.c.l.s4 1966171168
        %v5155 = vunpack.c.0.s8 %v5154
        %v5156 = vlaneseq
        %v5157 = vshrl.u32 %v5156, 7
        %v5158 = vsub.s32 %v5155, %v5157
        %v5159 = vrot.slane %v5152, %v5158
        %v5161 = vunpack.c.l.s4 1966171168
        %v5162 = vunpack.c.0.s8 %v5161
        %v5163 = vlaneseq
        %v5164 = vshrl.u32 %v5163, 7
        %v5165 = vsub.s32 %v5162, %v5164
        %v5166 = vrot.slane %v4354, %v5165
        %v5168 = vunpack.c.l.s4 1966171168
        %v5169 = vunpack.c.0.s8 %v5168
        %v5170 = vlaneseq
        %v5171 = vshrl.u32 %v5170, 7
        %v5172 = vsub.s32 %v5169, %v5171
        %v5173 = vrot.slane %v5166, %v5172
        %v5175 = vunpack.c.l.s4 1966171168
        %v5176 = vunpack.c.0.s8 %v5175
        %v5177 = vlaneseq
        %v5178 = vshrl.u32 %v5177, 7
        %v5179 = vsub.s32 %v5176, %v5178
        %v5180 = vrot.slane %v4355, %v5179
        %v5182 = vunpack.c.l.s4 1966171168
        %v5183 = vunpack.c.0.s8 %v5182
        %v5184 = vlaneseq
        %v5185 = vshrl.u32 %v5184, 7
        %v5186 = vsub.s32 %v5183, %v5185
        %v5187 = vrot.slane %v5180, %v5186
        %v5189 = vunpack.c.l.s4 1966171168
        %v5190 = vunpack.c.0.s8 %v5189
        %v5191 = vlaneseq
        %v5192 = vshrl.u32 %v5191, 7
        %v5193 = vsub.s32 %v5190, %v5192
        %v5194 = vrot.slane %v4356, %v5193
        %v5196 = vunpack.c.l.s4 1966171168
        %v5197 = vunpack.c.0.s8 %v5196
        %v5198 = vlaneseq
        %v5199 = vshrl.u32 %v5198, 7
        %v5200 = vsub.s32 %v5197, %v5199
        %v5201 = vrot.slane %v5194, %v5200
        %v5203 = vunpack.c.l.s4 1966171168
        %v5204 = vunpack.c.0.s8 %v5203
        %v5205 = vlaneseq
        %v5206 = vshrl.u32 %v5205, 7
        %v5207 = vsub.s32 %v5204, %v5206
        %v5208 = vrot.slane %v4357, %v5207
        %v5210 = vunpack.c.l.s4 1966171168
        %v5211 = vunpack.c.0.s8 %v5210
        %v5212 = vlaneseq
        %v5213 = vshrl.u32 %v5212, 7
        %v5214 = vsub.s32 %v5211, %v5213
        %v5215 = vrot.slane %v5208, %v5214
        %v5217 = vunpack.c.l.s4 1966171168
        %v5218 = vunpack.c.0.s8 %v5217
        %v5219 = vlaneseq
        %v5220 = vshrl.u32 %v5219, 7
        %v5221 = vsub.s32 %v5218, %v5220
        %v5222 = vrot.slane %v4358, %v5221
        %v5224 = vunpack.c.l.s4 1966171168
        %v5225 = vunpack.c.0.s8 %v5224
        %v5226 = vlaneseq
        %v5227 = vshrl.u32 %v5226, 7
        %v5228 = vsub.s32 %v5225, %v5227
        %v5229 = vrot.slane %v5222, %v5228
        %v5231 = vunpack.c.l.s4 1966171168
        %v5232 = vunpack.c.0.s8 %v5231
        %v5233 = vlaneseq
        %v5234 = vshrl.u32 %v5233, 7
        %v5235 = vsub.s32 %v5232, %v5234
        %v5236 = vrot.slane %v4359, %v5235
        %v5238 = vunpack.c.l.s4 1966171168
        %v5239 = vunpack.c.0.s8 %v5238
        %v5240 = vlaneseq
        %v5241 = vshrl.u32 %v5240, 7
        %v5242 = vsub.s32 %v5239, %v5241
        %v5243 = vrot.slane %v5236, %v5242
        %v5245 = vunpack.c.l.s4 1966171168
        %v5246 = vunpack.c.0.s8 %v5245
        %v5247 = vlaneseq
        %v5248 = vshrl.u32 %v5247, 7
        %v5249 = vsub.s32 %v5246, %v5248
        %v5250 = vrot.slane %v4360, %v5249
        %v5252 = vunpack.c.l.s4 1966171168
        %v5253 = vunpack.c.0.s8 %v5252
        %v5254 = vlaneseq
        %v5255 = vshrl.u32 %v5254, 7
        %v5256 = vsub.s32 %v5253, %v5255
        %v5257 = vrot.slane %v5250, %v5256
        %v5259 = vunpack.c.l.s4 1966171168
        %v5260 = vunpack.c.0.s8 %v5259
        %v5261 = vlaneseq
        %v5262 = vshrl.u32 %v5261, 7
        %v5263 = vsub.s32 %v5260, %v5262
        %v5264 = vrot.slane %v4361, %v5263
        %v5266 = vunpack.c.l.s4 1966171168
        %v5267 = vunpack.c.0.s8 %v5266
        %v5268 = vlaneseq
        %v5269 = vshrl.u32 %v5268, 7
        %v5270 = vsub.s32 %v5267, %v5269
        %v5271 = vrot.slane %v5264, %v5270
        %v5273 = vunpack.c.l.s4 1966171168
        %v5274 = vunpack.c.0.s8 %v5273
        %v5275 = vlaneseq
        %v5276 = vshrl.u32 %v5275, 7
        %v5277 = vsub.s32 %v5274, %v5276
        %v5278 = vrot.slane %v4362, %v5277
        %v5280 = vunpack.c.l.s4 1966171168
        %v5281 = vunpack.c.0.s8 %v5280
        %v5282 = vlaneseq
        %v5283 = vshrl.u32 %v5282, 7
        %v5284 = vsub.s32 %v5281, %v5283
        %v5285 = vrot.slane %v5278, %v5284
        %v5287 = vunpack.c.l.s4 1966171168
        %v5288 = vunpack.c.0.s8 %v5287
        %v5289 = vlaneseq
        %v5290 = vshrl.u32 %v5289, 7
        %v5291 = vsub.s32 %v5288, %v5290
        %v5292 = vrot.slane %v4363, %v5291
        %v5294 = vunpack.c.l.s4 1966171168
        %v5295 = vunpack.c.0.s8 %v5294
        %v5296 = vlaneseq
        %v5297 = vshrl.u32 %v5296, 7
        %v5298 = vsub.s32 %v5295, %v5297
        %v5299 = vrot.slane %v5292, %v5298
        %v5301 = vunpack.c.l.s4 1966171168
        %v5302 = vunpack.c.0.s8 %v5301
        %v5303 = vlaneseq
        %v5304 = vshrl.u32 %v5303, 7
        %v5305 = vsub.s32 %v5302, %v5304
        %v5306 = vrot.slane %v4364, %v5305
        %v5308 = vunpack.c.l.s4 1966171168
        %v5309 = vunpack.c.0.s8 %v5308
        %v5310 = vlaneseq
        %v5311 = vshrl.u32 %v5310, 7
        %v5312 = vsub.s32 %v5309, %v5311
        %v5313 = vrot.slane %v5306, %v5312
        %v5315 = vunpack.c.l.s4 1966171168
        %v5316 = vunpack.c.0.s8 %v5315
        %v5317 = vlaneseq
        %v5318 = vshrl.u32 %v5317, 7
        %v5319 = vsub.s32 %v5316, %v5318
        %v5320 = vrot.slane %v4365, %v5319
        %v5322 = vunpack.c.l.s4 1966171168
        %v5323 = vunpack.c.0.s8 %v5322
        %v5324 = vlaneseq
        %v5325 = vshrl.u32 %v5324, 7
        %v5326 = vsub.s32 %v5323, %v5325
        %v5327 = vrot.slane %v5320, %v5326
        %v5328 = vunpack.c.l.b16 %v4445
        %v5329 = vunpack.c.l.b16 %v4459
        %v5330 = vunpack.c.l.b16 %v4473
        %v5331 = vunpack.c.l.b16 %v4487
        %v5332 = vunpack.c.l.b16 %v4501
        %v5333 = vunpack.c.l.b16 %v4515
        %v5334 = vunpack.c.l.b16 %v4529
        %v5335 = vunpack.c.l.b16 %v4543
        %v5336 = vunpack.c.l.b16 %v4557
        %v5337 = vunpack.c.l.b16 %v4571
        %v5338 = vunpack.c.l.b16 %v4585
        %v5339 = vunpack.c.l.b16 %v4599
        %v5340 = vunpack.c.l.b16 %v4613
        %v5341 = vunpack.c.l.b16 %v4627
        %v5342 = vunpack.c.l.b16 %v4641
        %v5343 = vunpack.c.l.b16 %v4655
        %v5344 = vunpack.c.l.b16 %v4669
        %v5345 = vunpack.c.l.b16 %v4683
        %v5346 = vunpack.c.l.b16 %v4697
        %v5347 = vunpack.c.l.b16 %v4711
        %v5348 = vunpack.c.l.b16 %v4725
        %v5349 = vunpack.c.l.b16 %v4739
        %v5350 = vunpack.c.l.b16 %v4753
        %v5351 = vunpack.c.l.b16 %v4767
        %v5352 = vunpack.c.l.b16 %v4781
        %v5353 = vunpack.c.l.b16 %v4795
        %v5354 = vunpack.c.l.b16 %v4809
        %v5355 = vunpack.c.l.b16 %v4823
        %v5356 = vunpack.c.l.b16 %v4837
        %v5357 = vunpack.c.l.b16 %v4851
        %v5358 = vunpack.c.l.b16 %v4865
        %v5359 = vunpack.c.l.b16 %v4879
        %v5360 = vunpack.c.l.b16 %v4893
        %v5361 = vunpack.c.l.b16 %v4907
        %v5362 = vunpack.c.l.b16 %v4921
        %v5363 = vunpack.c.l.b16 %v4935
        %v5364 = vunpack.c.l.b16 %v4949
        %v5365 = vunpack.c.l.b16 %v4963
        %v5366 = vunpack.c.l.b16 %v4977
        %v5367 = vunpack.c.l.b16 %v4991
        %v5368 = vunpack.c.l.b16 %v5005
        %v5369 = vunpack.c.l.b16 %v5019
        %v5370 = vunpack.c.l.b16 %v5033
        %v5371 = vunpack.c.l.b16 %v5047
        %v5372 = vunpack.c.l.b16 %v5061
        %v5373 = vunpack.c.l.b16 %v5075
        %v5374 = vunpack.c.l.b16 %v5089
        %v5375 = vunpack.c.l.b16 %v5103
        %v5376 = vunpack.c.l.b16 %v5117
        %v5377 = vunpack.c.l.b16 %v5131
        %v5378 = vunpack.c.l.b16 %v5145
        %v5379 = vunpack.c.l.b16 %v5159
        %v5380 = vunpack.c.l.b16 %v5173
        %v5381 = vunpack.c.l.b16 %v5187
        %v5382 = vunpack.c.l.b16 %v5201
        %v5383 = vunpack.c.l.b16 %v5215
        %v5384 = vunpack.c.l.b16 %v5229
        %v5385 = vunpack.c.l.b16 %v5243
        %v5386 = vunpack.c.l.b16 %v5257
        %v5387 = vunpack.c.l.b16 %v5271
        %v5388 = vunpack.c.l.b16 %v5285
        %v5389 = vunpack.c.l.b16 %v5299
        %v5390 = vunpack.c.l.b16 %v5313
        %v5391 = vunpack.c.l.b16 %v5327
        %v5392 = vrot.slane %v5328, 1
        %v5393 = vsel %vm1312, %v5329, %v5392
        %v5394 = vrot.slane %v5330, 7
        %v5395 = vsel %vm1315, %v5394, %v5393
        %v5396 = vrot.slane %v5331, 6
        %v5397 = vsel %vm1318, %v5396, %v5395
        %v5398 = vrot.slane %v5332, 5
        %v5399 = vsel %vm1321, %v5398, %v5397
        %v5400 = vrot.slane %v5333, 4
        %v5401 = vsel %vm1324, %v5400, %v5399
        %v5402 = vrot.slane %v5334, 3
        %v5403 = vsel %vm1327, %v5402, %v5401
        %v5404 = vrot.slane %v5335, 2
        %v5405 = vsel %vm1330, %v5404, %v5403
        %v5406 = vrot.slane %v5336, 1
        %v5407 = vsel %vm1312, %v5337, %v5406
        %v5408 = vrot.slane %v5338, 7
        %v5409 = vsel %vm1315, %v5408, %v5407
        %v5410 = vrot.slane %v5339, 6
        %v5411 = vsel %vm1318, %v5410, %v5409
        %v5412 = vrot.slane %v5340, 5
        %v5413 = vsel %vm1321, %v5412, %v5411
        %v5414 = vrot.slane %v5341, 4
        %v5415 = vsel %vm1324, %v5414, %v5413
        %v5416 = vrot.slane %v5342, 3
        %v5417 = vsel %vm1327, %v5416, %v5415
        %v5418 = vrot.slane %v5343, 2
        %v5419 = vsel %vm1330, %v5418, %v5417
        %v5420 = vrot.slane %v5344, 1
        %v5421 = vsel %vm1312, %v5345, %v5420
        %v5422 = vrot.slane %v5346, 7
        %v5423 = vsel %vm1315, %v5422, %v5421
        %v5424 = vrot.slane %v5347, 6
        %v5425 = vsel %vm1318, %v5424, %v5423
        %v5426 = vrot.slane %v5348, 5
        %v5427 = vsel %vm1321, %v5426, %v5425
        %v5428 = vrot.slane %v5349, 4
        %v5429 = vsel %vm1324, %v5428, %v5427
        %v5430 = vrot.slane %v5350, 3
        %v5431 = vsel %vm1327, %v5430, %v5429
        %v5432 = vrot.slane %v5351, 2
        %v5433 = vsel %vm1330, %v5432, %v5431
        %v5434 = vrot.slane %v5352, 1
        %v5435 = vsel %vm1312, %v5353, %v5434
        %v5436 = vrot.slane %v5354, 7
        %v5437 = vsel %vm1315, %v5436, %v5435
        %v5438 = vrot.slane %v5355, 6
        %v5439 = vsel %vm1318, %v5438, %v5437
        %v5440 = vrot.slane %v5356, 5
        %v5441 = vsel %vm1321, %v5440, %v5439
        %v5442 = vrot.slane %v5357, 4
        %v5443 = vsel %vm1324, %v5442, %v5441
        %v5444 = vrot.slane %v5358, 3
        %v5445 = vsel %vm1327, %v5444, %v5443
        %v5446 = vrot.slane %v5359, 2
        %v5447 = vsel %vm1330, %v5446, %v5445
        %v5448 = vrot.slane %v5360, 1
        %v5449 = vsel %vm1312, %v5361, %v5448
        %v5450 = vrot.slane %v5362, 7
        %v5451 = vsel %vm1315, %v5450, %v5449
        %v5452 = vrot.slane %v5363, 6
        %v5453 = vsel %vm1318, %v5452, %v5451
        %v5454 = vrot.slane %v5364, 5
        %v5455 = vsel %vm1321, %v5454, %v5453
        %v5456 = vrot.slane %v5365, 4
        %v5457 = vsel %vm1324, %v5456, %v5455
        %v5458 = vrot.slane %v5366, 3
        %v5459 = vsel %vm1327, %v5458, %v5457
        %v5460 = vrot.slane %v5367, 2
        %v5461 = vsel %vm1330, %v5460, %v5459
        %v5462 = vrot.slane %v5368, 1
        %v5463 = vsel %vm1312, %v5369, %v5462
        %v5464 = vrot.slane %v5370, 7
        %v5465 = vsel %vm1315, %v5464, %v5463
        %v5466 = vrot.slane %v5371, 6
        %v5467 = vsel %vm1318, %v5466, %v5465
        %v5468 = vrot.slane %v5372, 5
        %v5469 = vsel %vm1321, %v5468, %v5467
        %v5470 = vrot.slane %v5373, 4
        %v5471 = vsel %vm1324, %v5470, %v5469
        %v5472 = vrot.slane %v5374, 3
        %v5473 = vsel %vm1327, %v5472, %v5471
        %v5474 = vrot.slane %v5375, 2
        %v5475 = vsel %vm1330, %v5474, %v5473
        %v5476 = vrot.slane %v5376, 1
        %v5477 = vsel %vm1312, %v5377, %v5476
        %v5478 = vrot.slane %v5378, 7
        %v5479 = vsel %vm1315, %v5478, %v5477
        %v5480 = vrot.slane %v5379, 6
        %v5481 = vsel %vm1318, %v5480, %v5479
        %v5482 = vrot.slane %v5380, 5
        %v5483 = vsel %vm1321, %v5482, %v5481
        %v5484 = vrot.slane %v5381, 4
        %v5485 = vsel %vm1324, %v5484, %v5483
        %v5486 = vrot.slane %v5382, 3
        %v5487 = vsel %vm1327, %v5486, %v5485
        %v5488 = vrot.slane %v5383, 2
        %v5489 = vsel %vm1330, %v5488, %v5487
        %v5490 = vrot.slane %v5384, 1
        %v5491 = vsel %vm1312, %v5385, %v5490
        %v5492 = vrot.slane %v5386, 7
        %v5493 = vsel %vm1315, %v5492, %v5491
        %v5494 = vrot.slane %v5387, 6
        %v5495 = vsel %vm1318, %v5494, %v5493
        %v5496 = vrot.slane %v5388, 5
        %v5497 = vsel %vm1321, %v5496, %v5495
        %v5498 = vrot.slane %v5389, 4
        %v5499 = vsel %vm1324, %v5498, %v5497
        %v5500 = vrot.slane %v5390, 3
        %v5501 = vsel %vm1327, %v5500, %v5499
        %v5502 = vrot.slane %v5391, 2
        %v5503 = vsel %vm1330, %v5502, %v5501
        %v5504 = vpack.c.b16 %v5419, %v5405
        %v5505 = vpack.c.b16 %v5447, %v5433
        %v5506 = vpack.c.b16 %v5475, %v5461
        %v5507 = vpack.c.b16 %v5503, %v5489
        %v5509 = vsel %vm1434, %v5504, 0
        %v5512 = vsel %vm1434, %v5505, 0
        %v5515 = vsel %vm1434, %v5506, 0
        %v5518 = vsel %vm1434, %v5507, 0
        %v5521 = vsel %vm1447, %v4367, 0
        %5523 = vmatprep.subr.bf16.mxu0 0
        %5524 = vmatpush1.bf16.msra.mxu0 0
        %5525 = vmatprep.subr.bf16.mxu0 0
        %5526 = vmatpush1.bf16.msra.mxu0 0
        %5527 = vmatprep.subr.bf16.mxu0 0
        %5528 = vmatpush1.bf16.msra.mxu0 0
        %5529 = vmatprep.subr.bf16.mxu0 0
        %5530 = vmatpush1.bf16.msra.mxu0 0
        %5531 = vmatprep.subr.bf16.mxu0 0
        %5532 = vmatpush1.bf16.msra.mxu0 0
        %5533 = vmatprep.subr.bf16.mxu0 0
        %5534 = vmatpush1.bf16.msra.mxu0 0
        %5535 = vmatprep.subr.bf16.mxu0 0
        %5536 = vmatpush1.bf16.msra.mxu0 0
        %5537 = vmatprep.subr.bf16.mxu0 0
        %5538 = vmatpush1.bf16.msra.mxu0 %v5521
        %5539 = vmatprep.subr.bf16.mxu0 0
        %5540 = vmatpush2.bf16.msra.mxu0 0
        %5541 = vmatprep.subr.bf16.mxu0 0
        %5542 = vmatpush2.bf16.msra.mxu0 0
        %5543 = vmatprep.subr.bf16.mxu0 0
        %5544 = vmatpush2.bf16.msra.mxu0 0
        %5545 = vmatprep.subr.bf16.mxu0 0
        %5546 = vmatpush2.bf16.msra.mxu0 0
        %5547 = vmatprep.subr.bf16.mxu0 0
        %5548 = vmatpush2.bf16.msra.mxu0 0
        %5549 = vmatprep.subr.bf16.mxu0 0
        %5550 = vmatpush2.bf16.msra.mxu0 0
        %5551 = vmatprep.subr.bf16.mxu0 0
        %5552 = vmatpush2.bf16.msra.mxu0 0
        %5553 = vmatprep.subr.bf16.mxu0 0
        %5554 = vmatpush2.bf16.msra.mxu0 0
        %5555 = vmatprep.mubr.bf16.mxu0 0
        %5556 = vmatmul.mubr.bf16.gmra.mxu0 %v5509
        %v5557 = vpop.f32.mrf.mxu0
        %v5558 = vadd.f32 0.0, %v5557
        %v5559 = vpop.f32.mrf.mxu0
        %v5560 = vpop.f32.mrf.mxu0
        %v5561 = vadd.f32 0.0, %v5560
        %v5562 = vpop.f32.mrf.mxu0
        %5563 = vmatprep.mubr.bf16.mxu0 0
        %5564 = vmatmul.mubr.bf16.gmra.mxu0 %v5512
        %v5565 = vpop.f32.mrf.mxu0
        %v5566 = vadd.f32 0.0, %v5565
        %v5567 = vpop.f32.mrf.mxu0
        %v5568 = vpop.f32.mrf.mxu0
        %v5569 = vadd.f32 0.0, %v5568
        %v5570 = vpop.f32.mrf.mxu0
        %5571 = vmatprep.mubr.bf16.mxu0 0
        %5572 = vmatmul.mubr.bf16.gmra.mxu0 %v5515
        %v5573 = vpop.f32.mrf.mxu0
        %v5574 = vadd.f32 0.0, %v5573
        %v5575 = vpop.f32.mrf.mxu0
        %v5576 = vpop.f32.mrf.mxu0
        %v5577 = vadd.f32 0.0, %v5576
        %v5578 = vpop.f32.mrf.mxu0
        %5579 = vmatprep.mubr.bf16.mxu0 0
        %5580 = vmatmul.mubr.bf16.gmra.mxu0 %v5518
        %v5581 = vpop.f32.mrf.mxu0
        %v5582 = vadd.f32 0.0, %v5581
        %v5583 = vpop.f32.mrf.mxu0
        %v5584 = vpop.f32.mrf.mxu0
        %v5585 = vadd.f32 0.0, %v5584
        %v5586 = vpop.f32.mrf.mxu0
        %5587 = vdwg.mxu0
        %v5588 = vadd.f32 %v4294, %v5558
        %v5589 = vadd.f32 %v4295, %v5561
        %v5590 = vadd.f32 %v4296, %v5566
        %v5591 = vadd.f32 %v4297, %v5569
        %v5592 = vadd.f32 %v4298, %v5574
        %v5593 = vadd.f32 %v4299, %v5577
        %v5594 = vadd.f32 %v4300, %v5582
        %v5595 = vadd.f32 %v4301, %v5585
        %s5596 = scalar_lea.vmem %s209, 10
        %v5597 = vld [vmem:[%s5596] sm:$0x1]
        %v5598 = vld [vmem:[%s5596 + $0x1] sm:$0x1]
        %v5599 = vld [vmem:[%s5596 + $0x2] sm:$0x1]
        %v5600 = vld [vmem:[%s5596 + $0x3] sm:$0x1]
        %v5601 = vld [vmem:[%s5596 + $0x4] sm:$0x1]
        %v5602 = vld [vmem:[%s5596 + $0x5] sm:$0x1]
        %v5603 = vld [vmem:[%s5596 + $0x6] sm:$0x1]
        %v5604 = vld [vmem:[%s5596 + $0x7] sm:$0x1]
        %v5605 = vld [vmem:[%s5596 + $0x12] sm:$0x1]
        %v5606 = vld [vmem:[%s5596 + $0x13] sm:$0x1]
        %v5607 = vld [vmem:[%s5596 + $0x14] sm:$0x1]
        %v5608 = vld [vmem:[%s5596 + $0x15] sm:$0x1]
        %v5609 = vld [vmem:[%s5596 + $0x16] sm:$0x1]
        %v5610 = vld [vmem:[%s5596 + $0x17] sm:$0x1]
        %v5611 = vld [vmem:[%s5596 + $0x18] sm:$0x1]
        %v5612 = vld [vmem:[%s5596 + $0x19] sm:$0x1]
        %v5613 = vld [vmem:[%s5596 + $0x24] sm:$0x1]
        %v5614 = vld [vmem:[%s5596 + $0x25] sm:$0x1]
        %v5615 = vld [vmem:[%s5596 + $0x26] sm:$0x1]
        %v5616 = vld [vmem:[%s5596 + $0x27] sm:$0x1]
        %v5617 = vld [vmem:[%s5596 + $0x28] sm:$0x1]
        %v5618 = vld [vmem:[%s5596 + $0x29] sm:$0x1]
        %v5619 = vld [vmem:[%s5596 + $0x2a] sm:$0x1]
        %v5620 = vld [vmem:[%s5596 + $0x2b] sm:$0x1]
        %v5621 = vld [vmem:[%s5596 + $0x36] sm:$0x1]
        %v5622 = vld [vmem:[%s5596 + $0x37] sm:$0x1]
        %v5623 = vld [vmem:[%s5596 + $0x38] sm:$0x1]
        %v5624 = vld [vmem:[%s5596 + $0x39] sm:$0x1]
        %v5625 = vld [vmem:[%s5596 + $0x3a] sm:$0x1]
        %v5626 = vld [vmem:[%s5596 + $0x3b] sm:$0x1]
        %v5627 = vld [vmem:[%s5596 + $0x3c] sm:$0x1]
        %v5628 = vld [vmem:[%s5596 + $0x3d] sm:$0x1]
        %v5629 = vld [vmem:[%s5596 + $0x48] sm:$0x1]
        %v5630 = vld [vmem:[%s5596 + $0x49] sm:$0x1]
        %v5631 = vld [vmem:[%s5596 + $0x4a] sm:$0x1]
        %v5632 = vld [vmem:[%s5596 + $0x4b] sm:$0x1]
        %v5633 = vld [vmem:[%s5596 + $0x4c] sm:$0x1]
        %v5634 = vld [vmem:[%s5596 + $0x4d] sm:$0x1]
        %v5635 = vld [vmem:[%s5596 + $0x4e] sm:$0x1]
        %v5636 = vld [vmem:[%s5596 + $0x4f] sm:$0x1]
        %v5637 = vld [vmem:[%s5596 + $0x5a] sm:$0x1]
        %v5638 = vld [vmem:[%s5596 + $0x5b] sm:$0x1]
        %v5639 = vld [vmem:[%s5596 + $0x5c] sm:$0x1]
        %v5640 = vld [vmem:[%s5596 + $0x5d] sm:$0x1]
        %v5641 = vld [vmem:[%s5596 + $0x5e] sm:$0x1]
        %v5642 = vld [vmem:[%s5596 + $0x5f] sm:$0x1]
        %v5643 = vld [vmem:[%s5596 + $0x60] sm:$0x1]
        %v5644 = vld [vmem:[%s5596 + $0x61] sm:$0x1]
        %v5645 = vld [vmem:[%s5596 + $0x6c] sm:$0x1]
        %v5646 = vld [vmem:[%s5596 + $0x6d] sm:$0x1]
        %v5647 = vld [vmem:[%s5596 + $0x6e] sm:$0x1]
        %v5648 = vld [vmem:[%s5596 + $0x6f] sm:$0x1]
        %v5649 = vld [vmem:[%s5596 + $0x70] sm:$0x1]
        %v5650 = vld [vmem:[%s5596 + $0x71] sm:$0x1]
        %v5651 = vld [vmem:[%s5596 + $0x72] sm:$0x1]
        %v5652 = vld [vmem:[%s5596 + $0x73] sm:$0x1]
        %v5653 = vld [vmem:[%s5596 + $0x7e] sm:$0x1]
        %v5654 = vld [vmem:[%s5596 + $0x7f] sm:$0x1]
        %v5655 = vld [vmem:[%s5596 + $0x80] sm:$0x1]
        %v5656 = vld [vmem:[%s5596 + $0x81] sm:$0x1]
        %v5657 = vld [vmem:[%s5596 + $0x82] sm:$0x1]
        %v5658 = vld [vmem:[%s5596 + $0x83] sm:$0x1]
        %v5659 = vld [vmem:[%s5596 + $0x84] sm:$0x1]
        %v5660 = vld [vmem:[%s5596 + $0x85] sm:$0x1]
        %s5661 = scalar_lea.vmem %s214, 10
        %v5662 = vld [vmem:[%s5661] sm:$0x3]
        %v5728 = vunpack.c.l.s4 1966171168
        %v5729 = vunpack.c.0.s8 %v5728
        %v5730 = vlaneseq
        %v5731 = vshrl.u32 %v5730, 7
        %v5732 = vsub.s32 %v5729, %v5731
        %v5733 = vrot.slane %v5597, %v5732
        %v5735 = vunpack.c.l.s4 1966171168
        %v5736 = vunpack.c.0.s8 %v5735
        %v5737 = vlaneseq
        %v5738 = vshrl.u32 %v5737, 7
        %v5739 = vsub.s32 %v5736, %v5738
        %v5740 = vrot.slane %v5733, %v5739
        %v5742 = vunpack.c.l.s4 1966171168
        %v5743 = vunpack.c.0.s8 %v5742
        %v5744 = vlaneseq
        %v5745 = vshrl.u32 %v5744, 7
        %v5746 = vsub.s32 %v5743, %v5745
        %v5747 = vrot.slane %v5598, %v5746
        %v5749 = vunpack.c.l.s4 1966171168
        %v5750 = vunpack.c.0.s8 %v5749
        %v5751 = vlaneseq
        %v5752 = vshrl.u32 %v5751, 7
        %v5753 = vsub.s32 %v5750, %v5752
        %v5754 = vrot.slane %v5747, %v5753
        %v5756 = vunpack.c.l.s4 1966171168
        %v5757 = vunpack.c.0.s8 %v5756
        %v5758 = vlaneseq
        %v5759 = vshrl.u32 %v5758, 7
        %v5760 = vsub.s32 %v5757, %v5759
        %v5761 = vrot.slane %v5599, %v5760
        %v5763 = vunpack.c.l.s4 1966171168
        %v5764 = vunpack.c.0.s8 %v5763
        %v5765 = vlaneseq
        %v5766 = vshrl.u32 %v5765, 7
        %v5767 = vsub.s32 %v5764, %v5766
        %v5768 = vrot.slane %v5761, %v5767
        %v5770 = vunpack.c.l.s4 1966171168
        %v5771 = vunpack.c.0.s8 %v5770
        %v5772 = vlaneseq
        %v5773 = vshrl.u32 %v5772, 7
        %v5774 = vsub.s32 %v5771, %v5773
        %v5775 = vrot.slane %v5600, %v5774
        %v5777 = vunpack.c.l.s4 1966171168
        %v5778 = vunpack.c.0.s8 %v5777
        %v5779 = vlaneseq
        %v5780 = vshrl.u32 %v5779, 7
        %v5781 = vsub.s32 %v5778, %v5780
        %v5782 = vrot.slane %v5775, %v5781
        %v5784 = vunpack.c.l.s4 1966171168
        %v5785 = vunpack.c.0.s8 %v5784
        %v5786 = vlaneseq
        %v5787 = vshrl.u32 %v5786, 7
        %v5788 = vsub.s32 %v5785, %v5787
        %v5789 = vrot.slane %v5601, %v5788
        %v5791 = vunpack.c.l.s4 1966171168
        %v5792 = vunpack.c.0.s8 %v5791
        %v5793 = vlaneseq
        %v5794 = vshrl.u32 %v5793, 7
        %v5795 = vsub.s32 %v5792, %v5794
        %v5796 = vrot.slane %v5789, %v5795
        %v5798 = vunpack.c.l.s4 1966171168
        %v5799 = vunpack.c.0.s8 %v5798
        %v5800 = vlaneseq
        %v5801 = vshrl.u32 %v5800, 7
        %v5802 = vsub.s32 %v5799, %v5801
        %v5803 = vrot.slane %v5602, %v5802
        %v5805 = vunpack.c.l.s4 1966171168
        %v5806 = vunpack.c.0.s8 %v5805
        %v5807 = vlaneseq
        %v5808 = vshrl.u32 %v5807, 7
        %v5809 = vsub.s32 %v5806, %v5808
        %v5810 = vrot.slane %v5803, %v5809
        %v5812 = vunpack.c.l.s4 1966171168
        %v5813 = vunpack.c.0.s8 %v5812
        %v5814 = vlaneseq
        %v5815 = vshrl.u32 %v5814, 7
        %v5816 = vsub.s32 %v5813, %v5815
        %v5817 = vrot.slane %v5603, %v5816
        %v5819 = vunpack.c.l.s4 1966171168
        %v5820 = vunpack.c.0.s8 %v5819
        %v5821 = vlaneseq
        %v5822 = vshrl.u32 %v5821, 7
        %v5823 = vsub.s32 %v5820, %v5822
        %v5824 = vrot.slane %v5817, %v5823
        %v5826 = vunpack.c.l.s4 1966171168
        %v5827 = vunpack.c.0.s8 %v5826
        %v5828 = vlaneseq
        %v5829 = vshrl.u32 %v5828, 7
        %v5830 = vsub.s32 %v5827, %v5829
        %v5831 = vrot.slane %v5604, %v5830
        %v5833 = vunpack.c.l.s4 1966171168
        %v5834 = vunpack.c.0.s8 %v5833
        %v5835 = vlaneseq
        %v5836 = vshrl.u32 %v5835, 7
        %v5837 = vsub.s32 %v5834, %v5836
        %v5838 = vrot.slane %v5831, %v5837
        %v5840 = vunpack.c.l.s4 1966171168
        %v5841 = vunpack.c.0.s8 %v5840
        %v5842 = vlaneseq
        %v5843 = vshrl.u32 %v5842, 7
        %v5844 = vsub.s32 %v5841, %v5843
        %v5845 = vrot.slane %v5605, %v5844
        %v5847 = vunpack.c.l.s4 1966171168
        %v5848 = vunpack.c.0.s8 %v5847
        %v5849 = vlaneseq
        %v5850 = vshrl.u32 %v5849, 7
        %v5851 = vsub.s32 %v5848, %v5850
        %v5852 = vrot.slane %v5845, %v5851
        %v5854 = vunpack.c.l.s4 1966171168
        %v5855 = vunpack.c.0.s8 %v5854
        %v5856 = vlaneseq
        %v5857 = vshrl.u32 %v5856, 7
        %v5858 = vsub.s32 %v5855, %v5857
        %v5859 = vrot.slane %v5606, %v5858
        %v5861 = vunpack.c.l.s4 1966171168
        %v5862 = vunpack.c.0.s8 %v5861
        %v5863 = vlaneseq
        %v5864 = vshrl.u32 %v5863, 7
        %v5865 = vsub.s32 %v5862, %v5864
        %v5866 = vrot.slane %v5859, %v5865
        %v5868 = vunpack.c.l.s4 1966171168
        %v5869 = vunpack.c.0.s8 %v5868
        %v5870 = vlaneseq
        %v5871 = vshrl.u32 %v5870, 7
        %v5872 = vsub.s32 %v5869, %v5871
        %v5873 = vrot.slane %v5607, %v5872
        %v5875 = vunpack.c.l.s4 1966171168
        %v5876 = vunpack.c.0.s8 %v5875
        %v5877 = vlaneseq
        %v5878 = vshrl.u32 %v5877, 7
        %v5879 = vsub.s32 %v5876, %v5878
        %v5880 = vrot.slane %v5873, %v5879
        %v5882 = vunpack.c.l.s4 1966171168
        %v5883 = vunpack.c.0.s8 %v5882
        %v5884 = vlaneseq
        %v5885 = vshrl.u32 %v5884, 7
        %v5886 = vsub.s32 %v5883, %v5885
        %v5887 = vrot.slane %v5608, %v5886
        %v5889 = vunpack.c.l.s4 1966171168
        %v5890 = vunpack.c.0.s8 %v5889
        %v5891 = vlaneseq
        %v5892 = vshrl.u32 %v5891, 7
        %v5893 = vsub.s32 %v5890, %v5892
        %v5894 = vrot.slane %v5887, %v5893
        %v5896 = vunpack.c.l.s4 1966171168
        %v5897 = vunpack.c.0.s8 %v5896
        %v5898 = vlaneseq
        %v5899 = vshrl.u32 %v5898, 7
        %v5900 = vsub.s32 %v5897, %v5899
        %v5901 = vrot.slane %v5609, %v5900
        %v5903 = vunpack.c.l.s4 1966171168
        %v5904 = vunpack.c.0.s8 %v5903
        %v5905 = vlaneseq
        %v5906 = vshrl.u32 %v5905, 7
        %v5907 = vsub.s32 %v5904, %v5906
        %v5908 = vrot.slane %v5901, %v5907
        %v5910 = vunpack.c.l.s4 1966171168
        %v5911 = vunpack.c.0.s8 %v5910
        %v5912 = vlaneseq
        %v5913 = vshrl.u32 %v5912, 7
        %v5914 = vsub.s32 %v5911, %v5913
        %v5915 = vrot.slane %v5610, %v5914
        %v5917 = vunpack.c.l.s4 1966171168
        %v5918 = vunpack.c.0.s8 %v5917
        %v5919 = vlaneseq
        %v5920 = vshrl.u32 %v5919, 7
        %v5921 = vsub.s32 %v5918, %v5920
        %v5922 = vrot.slane %v5915, %v5921
        %v5924 = vunpack.c.l.s4 1966171168
        %v5925 = vunpack.c.0.s8 %v5924
        %v5926 = vlaneseq
        %v5927 = vshrl.u32 %v5926, 7
        %v5928 = vsub.s32 %v5925, %v5927
        %v5929 = vrot.slane %v5611, %v5928
        %v5931 = vunpack.c.l.s4 1966171168
        %v5932 = vunpack.c.0.s8 %v5931
        %v5933 = vlaneseq
        %v5934 = vshrl.u32 %v5933, 7
        %v5935 = vsub.s32 %v5932, %v5934
        %v5936 = vrot.slane %v5929, %v5935
        %v5938 = vunpack.c.l.s4 1966171168
        %v5939 = vunpack.c.0.s8 %v5938
        %v5940 = vlaneseq
        %v5941 = vshrl.u32 %v5940, 7
        %v5942 = vsub.s32 %v5939, %v5941
        %v5943 = vrot.slane %v5612, %v5942
        %v5945 = vunpack.c.l.s4 1966171168
        %v5946 = vunpack.c.0.s8 %v5945
        %v5947 = vlaneseq
        %v5948 = vshrl.u32 %v5947, 7
        %v5949 = vsub.s32 %v5946, %v5948
        %v5950 = vrot.slane %v5943, %v5949
        %v5952 = vunpack.c.l.s4 1966171168
        %v5953 = vunpack.c.0.s8 %v5952
        %v5954 = vlaneseq
        %v5955 = vshrl.u32 %v5954, 7
        %v5956 = vsub.s32 %v5953, %v5955
        %v5957 = vrot.slane %v5613, %v5956
        %v5959 = vunpack.c.l.s4 1966171168
        %v5960 = vunpack.c.0.s8 %v5959
        %v5961 = vlaneseq
        %v5962 = vshrl.u32 %v5961, 7
        %v5963 = vsub.s32 %v5960, %v5962
        %v5964 = vrot.slane %v5957, %v5963
        %v5966 = vunpack.c.l.s4 1966171168
        %v5967 = vunpack.c.0.s8 %v5966
        %v5968 = vlaneseq
        %v5969 = vshrl.u32 %v5968, 7
        %v5970 = vsub.s32 %v5967, %v5969
        %v5971 = vrot.slane %v5614, %v5970
        %v5973 = vunpack.c.l.s4 1966171168
        %v5974 = vunpack.c.0.s8 %v5973
        %v5975 = vlaneseq
        %v5976 = vshrl.u32 %v5975, 7
        %v5977 = vsub.s32 %v5974, %v5976
        %v5978 = vrot.slane %v5971, %v5977
        %v5980 = vunpack.c.l.s4 1966171168
        %v5981 = vunpack.c.0.s8 %v5980
        %v5982 = vlaneseq
        %v5983 = vshrl.u32 %v5982, 7
        %v5984 = vsub.s32 %v5981, %v5983
        %v5985 = vrot.slane %v5615, %v5984
        %v5987 = vunpack.c.l.s4 1966171168
        %v5988 = vunpack.c.0.s8 %v5987
        %v5989 = vlaneseq
        %v5990 = vshrl.u32 %v5989, 7
        %v5991 = vsub.s32 %v5988, %v5990
        %v5992 = vrot.slane %v5985, %v5991
        %v5994 = vunpack.c.l.s4 1966171168
        %v5995 = vunpack.c.0.s8 %v5994
        %v5996 = vlaneseq
        %v5997 = vshrl.u32 %v5996, 7
        %v5998 = vsub.s32 %v5995, %v5997
        %v5999 = vrot.slane %v5616, %v5998
        %v6001 = vunpack.c.l.s4 1966171168
        %v6002 = vunpack.c.0.s8 %v6001
        %v6003 = vlaneseq
        %v6004 = vshrl.u32 %v6003, 7
        %v6005 = vsub.s32 %v6002, %v6004
        %v6006 = vrot.slane %v5999, %v6005
        %v6008 = vunpack.c.l.s4 1966171168
        %v6009 = vunpack.c.0.s8 %v6008
        %v6010 = vlaneseq
        %v6011 = vshrl.u32 %v6010, 7
        %v6012 = vsub.s32 %v6009, %v6011
        %v6013 = vrot.slane %v5617, %v6012
        %v6015 = vunpack.c.l.s4 1966171168
        %v6016 = vunpack.c.0.s8 %v6015
        %v6017 = vlaneseq
        %v6018 = vshrl.u32 %v6017, 7
        %v6019 = vsub.s32 %v6016, %v6018
        %v6020 = vrot.slane %v6013, %v6019
        %v6022 = vunpack.c.l.s4 1966171168
        %v6023 = vunpack.c.0.s8 %v6022
        %v6024 = vlaneseq
        %v6025 = vshrl.u32 %v6024, 7
        %v6026 = vsub.s32 %v6023, %v6025
        %v6027 = vrot.slane %v5618, %v6026
        %v6029 = vunpack.c.l.s4 1966171168
        %v6030 = vunpack.c.0.s8 %v6029
        %v6031 = vlaneseq
        %v6032 = vshrl.u32 %v6031, 7
        %v6033 = vsub.s32 %v6030, %v6032
        %v6034 = vrot.slane %v6027, %v6033
        %v6036 = vunpack.c.l.s4 1966171168
        %v6037 = vunpack.c.0.s8 %v6036
        %v6038 = vlaneseq
        %v6039 = vshrl.u32 %v6038, 7
        %v6040 = vsub.s32 %v6037, %v6039
        %v6041 = vrot.slane %v5619, %v6040
        %v6043 = vunpack.c.l.s4 1966171168
        %v6044 = vunpack.c.0.s8 %v6043
        %v6045 = vlaneseq
        %v6046 = vshrl.u32 %v6045, 7
        %v6047 = vsub.s32 %v6044, %v6046
        %v6048 = vrot.slane %v6041, %v6047
        %v6050 = vunpack.c.l.s4 1966171168
        %v6051 = vunpack.c.0.s8 %v6050
        %v6052 = vlaneseq
        %v6053 = vshrl.u32 %v6052, 7
        %v6054 = vsub.s32 %v6051, %v6053
        %v6055 = vrot.slane %v5620, %v6054
        %v6057 = vunpack.c.l.s4 1966171168
        %v6058 = vunpack.c.0.s8 %v6057
        %v6059 = vlaneseq
        %v6060 = vshrl.u32 %v6059, 7
        %v6061 = vsub.s32 %v6058, %v6060
        %v6062 = vrot.slane %v6055, %v6061
        %v6064 = vunpack.c.l.s4 1966171168
        %v6065 = vunpack.c.0.s8 %v6064
        %v6066 = vlaneseq
        %v6067 = vshrl.u32 %v6066, 7
        %v6068 = vsub.s32 %v6065, %v6067
        %v6069 = vrot.slane %v5621, %v6068
        %v6071 = vunpack.c.l.s4 1966171168
        %v6072 = vunpack.c.0.s8 %v6071
        %v6073 = vlaneseq
        %v6074 = vshrl.u32 %v6073, 7
        %v6075 = vsub.s32 %v6072, %v6074
        %v6076 = vrot.slane %v6069, %v6075
        %v6078 = vunpack.c.l.s4 1966171168
        %v6079 = vunpack.c.0.s8 %v6078
        %v6080 = vlaneseq
        %v6081 = vshrl.u32 %v6080, 7
        %v6082 = vsub.s32 %v6079, %v6081
        %v6083 = vrot.slane %v5622, %v6082
        %v6085 = vunpack.c.l.s4 1966171168
        %v6086 = vunpack.c.0.s8 %v6085
        %v6087 = vlaneseq
        %v6088 = vshrl.u32 %v6087, 7
        %v6089 = vsub.s32 %v6086, %v6088
        %v6090 = vrot.slane %v6083, %v6089
        %v6092 = vunpack.c.l.s4 1966171168
        %v6093 = vunpack.c.0.s8 %v6092
        %v6094 = vlaneseq
        %v6095 = vshrl.u32 %v6094, 7
        %v6096 = vsub.s32 %v6093, %v6095
        %v6097 = vrot.slane %v5623, %v6096
        %v6099 = vunpack.c.l.s4 1966171168
        %v6100 = vunpack.c.0.s8 %v6099
        %v6101 = vlaneseq
        %v6102 = vshrl.u32 %v6101, 7
        %v6103 = vsub.s32 %v6100, %v6102
        %v6104 = vrot.slane %v6097, %v6103
        %v6106 = vunpack.c.l.s4 1966171168
        %v6107 = vunpack.c.0.s8 %v6106
        %v6108 = vlaneseq
        %v6109 = vshrl.u32 %v6108, 7
        %v6110 = vsub.s32 %v6107, %v6109
        %v6111 = vrot.slane %v5624, %v6110
        %v6113 = vunpack.c.l.s4 1966171168
        %v6114 = vunpack.c.0.s8 %v6113
        %v6115 = vlaneseq
        %v6116 = vshrl.u32 %v6115, 7
        %v6117 = vsub.s32 %v6114, %v6116
        %v6118 = vrot.slane %v6111, %v6117
        %v6120 = vunpack.c.l.s4 1966171168
        %v6121 = vunpack.c.0.s8 %v6120
        %v6122 = vlaneseq
        %v6123 = vshrl.u32 %v6122, 7
        %v6124 = vsub.s32 %v6121, %v6123
        %v6125 = vrot.slane %v5625, %v6124
        %v6127 = vunpack.c.l.s4 1966171168
        %v6128 = vunpack.c.0.s8 %v6127
        %v6129 = vlaneseq
        %v6130 = vshrl.u32 %v6129, 7
        %v6131 = vsub.s32 %v6128, %v6130
        %v6132 = vrot.slane %v6125, %v6131
        %v6134 = vunpack.c.l.s4 1966171168
        %v6135 = vunpack.c.0.s8 %v6134
        %v6136 = vlaneseq
        %v6137 = vshrl.u32 %v6136, 7
        %v6138 = vsub.s32 %v6135, %v6137
        %v6139 = vrot.slane %v5626, %v6138
        %v6141 = vunpack.c.l.s4 1966171168
        %v6142 = vunpack.c.0.s8 %v6141
        %v6143 = vlaneseq
        %v6144 = vshrl.u32 %v6143, 7
        %v6145 = vsub.s32 %v6142, %v6144
        %v6146 = vrot.slane %v6139, %v6145
        %v6148 = vunpack.c.l.s4 1966171168
        %v6149 = vunpack.c.0.s8 %v6148
        %v6150 = vlaneseq
        %v6151 = vshrl.u32 %v6150, 7
        %v6152 = vsub.s32 %v6149, %v6151
        %v6153 = vrot.slane %v5627, %v6152
        %v6155 = vunpack.c.l.s4 1966171168
        %v6156 = vunpack.c.0.s8 %v6155
        %v6157 = vlaneseq
        %v6158 = vshrl.u32 %v6157, 7
        %v6159 = vsub.s32 %v6156, %v6158
        %v6160 = vrot.slane %v6153, %v6159
        %v6162 = vunpack.c.l.s4 1966171168
        %v6163 = vunpack.c.0.s8 %v6162
        %v6164 = vlaneseq
        %v6165 = vshrl.u32 %v6164, 7
        %v6166 = vsub.s32 %v6163, %v6165
        %v6167 = vrot.slane %v5628, %v6166
        %v6169 = vunpack.c.l.s4 1966171168
        %v6170 = vunpack.c.0.s8 %v6169
        %v6171 = vlaneseq
        %v6172 = vshrl.u32 %v6171, 7
        %v6173 = vsub.s32 %v6170, %v6172
        %v6174 = vrot.slane %v6167, %v6173
        %v6176 = vunpack.c.l.s4 1966171168
        %v6177 = vunpack.c.0.s8 %v6176
        %v6178 = vlaneseq
        %v6179 = vshrl.u32 %v6178, 7
        %v6180 = vsub.s32 %v6177, %v6179
        %v6181 = vrot.slane %v5629, %v6180
        %v6183 = vunpack.c.l.s4 1966171168
        %v6184 = vunpack.c.0.s8 %v6183
        %v6185 = vlaneseq
        %v6186 = vshrl.u32 %v6185, 7
        %v6187 = vsub.s32 %v6184, %v6186
        %v6188 = vrot.slane %v6181, %v6187
        %v6190 = vunpack.c.l.s4 1966171168
        %v6191 = vunpack.c.0.s8 %v6190
        %v6192 = vlaneseq
        %v6193 = vshrl.u32 %v6192, 7
        %v6194 = vsub.s32 %v6191, %v6193
        %v6195 = vrot.slane %v5630, %v6194
        %v6197 = vunpack.c.l.s4 1966171168
        %v6198 = vunpack.c.0.s8 %v6197
        %v6199 = vlaneseq
        %v6200 = vshrl.u32 %v6199, 7
        %v6201 = vsub.s32 %v6198, %v6200
        %v6202 = vrot.slane %v6195, %v6201
        %v6204 = vunpack.c.l.s4 1966171168
        %v6205 = vunpack.c.0.s8 %v6204
        %v6206 = vlaneseq
        %v6207 = vshrl.u32 %v6206, 7
        %v6208 = vsub.s32 %v6205, %v6207
        %v6209 = vrot.slane %v5631, %v6208
        %v6211 = vunpack.c.l.s4 1966171168
        %v6212 = vunpack.c.0.s8 %v6211
        %v6213 = vlaneseq
        %v6214 = vshrl.u32 %v6213, 7
        %v6215 = vsub.s32 %v6212, %v6214
        %v6216 = vrot.slane %v6209, %v6215
        %v6218 = vunpack.c.l.s4 1966171168
        %v6219 = vunpack.c.0.s8 %v6218
        %v6220 = vlaneseq
        %v6221 = vshrl.u32 %v6220, 7
        %v6222 = vsub.s32 %v6219, %v6221
        %v6223 = vrot.slane %v5632, %v6222
        %v6225 = vunpack.c.l.s4 1966171168
        %v6226 = vunpack.c.0.s8 %v6225
        %v6227 = vlaneseq
        %v6228 = vshrl.u32 %v6227, 7
        %v6229 = vsub.s32 %v6226, %v6228
        %v6230 = vrot.slane %v6223, %v6229
        %v6232 = vunpack.c.l.s4 1966171168
        %v6233 = vunpack.c.0.s8 %v6232
        %v6234 = vlaneseq
        %v6235 = vshrl.u32 %v6234, 7
        %v6236 = vsub.s32 %v6233, %v6235
        %v6237 = vrot.slane %v5633, %v6236
        %v6239 = vunpack.c.l.s4 1966171168
        %v6240 = vunpack.c.0.s8 %v6239
        %v6241 = vlaneseq
        %v6242 = vshrl.u32 %v6241, 7
        %v6243 = vsub.s32 %v6240, %v6242
        %v6244 = vrot.slane %v6237, %v6243
        %v6246 = vunpack.c.l.s4 1966171168
        %v6247 = vunpack.c.0.s8 %v6246
        %v6248 = vlaneseq
        %v6249 = vshrl.u32 %v6248, 7
        %v6250 = vsub.s32 %v6247, %v6249
        %v6251 = vrot.slane %v5634, %v6250
        %v6253 = vunpack.c.l.s4 1966171168
        %v6254 = vunpack.c.0.s8 %v6253
        %v6255 = vlaneseq
        %v6256 = vshrl.u32 %v6255, 7
        %v6257 = vsub.s32 %v6254, %v6256
        %v6258 = vrot.slane %v6251, %v6257
        %v6260 = vunpack.c.l.s4 1966171168
        %v6261 = vunpack.c.0.s8 %v6260
        %v6262 = vlaneseq
        %v6263 = vshrl.u32 %v6262, 7
        %v6264 = vsub.s32 %v6261, %v6263
        %v6265 = vrot.slane %v5635, %v6264
        %v6267 = vunpack.c.l.s4 1966171168
        %v6268 = vunpack.c.0.s8 %v6267
        %v6269 = vlaneseq
        %v6270 = vshrl.u32 %v6269, 7
        %v6271 = vsub.s32 %v6268, %v6270
        %v6272 = vrot.slane %v6265, %v6271
        %v6274 = vunpack.c.l.s4 1966171168
        %v6275 = vunpack.c.0.s8 %v6274
        %v6276 = vlaneseq
        %v6277 = vshrl.u32 %v6276, 7
        %v6278 = vsub.s32 %v6275, %v6277
        %v6279 = vrot.slane %v5636, %v6278
        %v6281 = vunpack.c.l.s4 1966171168
        %v6282 = vunpack.c.0.s8 %v6281
        %v6283 = vlaneseq
        %v6284 = vshrl.u32 %v6283, 7
        %v6285 = vsub.s32 %v6282, %v6284
        %v6286 = vrot.slane %v6279, %v6285
        %v6288 = vunpack.c.l.s4 1966171168
        %v6289 = vunpack.c.0.s8 %v6288
        %v6290 = vlaneseq
        %v6291 = vshrl.u32 %v6290, 7
        %v6292 = vsub.s32 %v6289, %v6291
        %v6293 = vrot.slane %v5637, %v6292
        %v6295 = vunpack.c.l.s4 1966171168
        %v6296 = vunpack.c.0.s8 %v6295
        %v6297 = vlaneseq
        %v6298 = vshrl.u32 %v6297, 7
        %v6299 = vsub.s32 %v6296, %v6298
        %v6300 = vrot.slane %v6293, %v6299
        %v6302 = vunpack.c.l.s4 1966171168
        %v6303 = vunpack.c.0.s8 %v6302
        %v6304 = vlaneseq
        %v6305 = vshrl.u32 %v6304, 7
        %v6306 = vsub.s32 %v6303, %v6305
        %v6307 = vrot.slane %v5638, %v6306
        %v6309 = vunpack.c.l.s4 1966171168
        %v6310 = vunpack.c.0.s8 %v6309
        %v6311 = vlaneseq
        %v6312 = vshrl.u32 %v6311, 7
        %v6313 = vsub.s32 %v6310, %v6312
        %v6314 = vrot.slane %v6307, %v6313
        %v6316 = vunpack.c.l.s4 1966171168
        %v6317 = vunpack.c.0.s8 %v6316
        %v6318 = vlaneseq
        %v6319 = vshrl.u32 %v6318, 7
        %v6320 = vsub.s32 %v6317, %v6319
        %v6321 = vrot.slane %v5639, %v6320
        %v6323 = vunpack.c.l.s4 1966171168
        %v6324 = vunpack.c.0.s8 %v6323
        %v6325 = vlaneseq
        %v6326 = vshrl.u32 %v6325, 7
        %v6327 = vsub.s32 %v6324, %v6326
        %v6328 = vrot.slane %v6321, %v6327
        %v6330 = vunpack.c.l.s4 1966171168
        %v6331 = vunpack.c.0.s8 %v6330
        %v6332 = vlaneseq
        %v6333 = vshrl.u32 %v6332, 7
        %v6334 = vsub.s32 %v6331, %v6333
        %v6335 = vrot.slane %v5640, %v6334
        %v6337 = vunpack.c.l.s4 1966171168
        %v6338 = vunpack.c.0.s8 %v6337
        %v6339 = vlaneseq
        %v6340 = vshrl.u32 %v6339, 7
        %v6341 = vsub.s32 %v6338, %v6340
        %v6342 = vrot.slane %v6335, %v6341
        %v6344 = vunpack.c.l.s4 1966171168
        %v6345 = vunpack.c.0.s8 %v6344
        %v6346 = vlaneseq
        %v6347 = vshrl.u32 %v6346, 7
        %v6348 = vsub.s32 %v6345, %v6347
        %v6349 = vrot.slane %v5641, %v6348
        %v6351 = vunpack.c.l.s4 1966171168
        %v6352 = vunpack.c.0.s8 %v6351
        %v6353 = vlaneseq
        %v6354 = vshrl.u32 %v6353, 7
        %v6355 = vsub.s32 %v6352, %v6354
        %v6356 = vrot.slane %v6349, %v6355
        %v6358 = vunpack.c.l.s4 1966171168
        %v6359 = vunpack.c.0.s8 %v6358
        %v6360 = vlaneseq
        %v6361 = vshrl.u32 %v6360, 7
        %v6362 = vsub.s32 %v6359, %v6361
        %v6363 = vrot.slane %v5642, %v6362
        %v6365 = vunpack.c.l.s4 1966171168
        %v6366 = vunpack.c.0.s8 %v6365
        %v6367 = vlaneseq
        %v6368 = vshrl.u32 %v6367, 7
        %v6369 = vsub.s32 %v6366, %v6368
        %v6370 = vrot.slane %v6363, %v6369
        %v6372 = vunpack.c.l.s4 1966171168
        %v6373 = vunpack.c.0.s8 %v6372
        %v6374 = vlaneseq
        %v6375 = vshrl.u32 %v6374, 7
        %v6376 = vsub.s32 %v6373, %v6375
        %v6377 = vrot.slane %v5643, %v6376
        %v6379 = vunpack.c.l.s4 1966171168
        %v6380 = vunpack.c.0.s8 %v6379
        %v6381 = vlaneseq
        %v6382 = vshrl.u32 %v6381, 7
        %v6383 = vsub.s32 %v6380, %v6382
        %v6384 = vrot.slane %v6377, %v6383
        %v6386 = vunpack.c.l.s4 1966171168
        %v6387 = vunpack.c.0.s8 %v6386
        %v6388 = vlaneseq
        %v6389 = vshrl.u32 %v6388, 7
        %v6390 = vsub.s32 %v6387, %v6389
        %v6391 = vrot.slane %v5644, %v6390
        %v6393 = vunpack.c.l.s4 1966171168
        %v6394 = vunpack.c.0.s8 %v6393
        %v6395 = vlaneseq
        %v6396 = vshrl.u32 %v6395, 7
        %v6397 = vsub.s32 %v6394, %v6396
        %v6398 = vrot.slane %v6391, %v6397
        %v6400 = vunpack.c.l.s4 1966171168
        %v6401 = vunpack.c.0.s8 %v6400
        %v6402 = vlaneseq
        %v6403 = vshrl.u32 %v6402, 7
        %v6404 = vsub.s32 %v6401, %v6403
        %v6405 = vrot.slane %v5645, %v6404
        %v6407 = vunpack.c.l.s4 1966171168
        %v6408 = vunpack.c.0.s8 %v6407
        %v6409 = vlaneseq
        %v6410 = vshrl.u32 %v6409, 7
        %v6411 = vsub.s32 %v6408, %v6410
        %v6412 = vrot.slane %v6405, %v6411
        %v6414 = vunpack.c.l.s4 1966171168
        %v6415 = vunpack.c.0.s8 %v6414
        %v6416 = vlaneseq
        %v6417 = vshrl.u32 %v6416, 7
        %v6418 = vsub.s32 %v6415, %v6417
        %v6419 = vrot.slane %v5646, %v6418
        %v6421 = vunpack.c.l.s4 1966171168
        %v6422 = vunpack.c.0.s8 %v6421
        %v6423 = vlaneseq
        %v6424 = vshrl.u32 %v6423, 7
        %v6425 = vsub.s32 %v6422, %v6424
        %v6426 = vrot.slane %v6419, %v6425
        %v6428 = vunpack.c.l.s4 1966171168
        %v6429 = vunpack.c.0.s8 %v6428
        %v6430 = vlaneseq
        %v6431 = vshrl.u32 %v6430, 7
        %v6432 = vsub.s32 %v6429, %v6431
        %v6433 = vrot.slane %v5647, %v6432
        %v6435 = vunpack.c.l.s4 1966171168
        %v6436 = vunpack.c.0.s8 %v6435
        %v6437 = vlaneseq
        %v6438 = vshrl.u32 %v6437, 7
        %v6439 = vsub.s32 %v6436, %v6438
        %v6440 = vrot.slane %v6433, %v6439
        %v6442 = vunpack.c.l.s4 1966171168
        %v6443 = vunpack.c.0.s8 %v6442
        %v6444 = vlaneseq
        %v6445 = vshrl.u32 %v6444, 7
        %v6446 = vsub.s32 %v6443, %v6445
        %v6447 = vrot.slane %v5648, %v6446
        %v6449 = vunpack.c.l.s4 1966171168
        %v6450 = vunpack.c.0.s8 %v6449
        %v6451 = vlaneseq
        %v6452 = vshrl.u32 %v6451, 7
        %v6453 = vsub.s32 %v6450, %v6452
        %v6454 = vrot.slane %v6447, %v6453
        %v6456 = vunpack.c.l.s4 1966171168
        %v6457 = vunpack.c.0.s8 %v6456
        %v6458 = vlaneseq
        %v6459 = vshrl.u32 %v6458, 7
        %v6460 = vsub.s32 %v6457, %v6459
        %v6461 = vrot.slane %v5649, %v6460
        %v6463 = vunpack.c.l.s4 1966171168
        %v6464 = vunpack.c.0.s8 %v6463
        %v6465 = vlaneseq
        %v6466 = vshrl.u32 %v6465, 7
        %v6467 = vsub.s32 %v6464, %v6466
        %v6468 = vrot.slane %v6461, %v6467
        %v6470 = vunpack.c.l.s4 1966171168
        %v6471 = vunpack.c.0.s8 %v6470
        %v6472 = vlaneseq
        %v6473 = vshrl.u32 %v6472, 7
        %v6474 = vsub.s32 %v6471, %v6473
        %v6475 = vrot.slane %v5650, %v6474
        %v6477 = vunpack.c.l.s4 1966171168
        %v6478 = vunpack.c.0.s8 %v6477
        %v6479 = vlaneseq
        %v6480 = vshrl.u32 %v6479, 7
        %v6481 = vsub.s32 %v6478, %v6480
        %v6482 = vrot.slane %v6475, %v6481
        %v6484 = vunpack.c.l.s4 1966171168
        %v6485 = vunpack.c.0.s8 %v6484
        %v6486 = vlaneseq
        %v6487 = vshrl.u32 %v6486, 7
        %v6488 = vsub.s32 %v6485, %v6487
        %v6489 = vrot.slane %v5651, %v6488
        %v6491 = vunpack.c.l.s4 1966171168
        %v6492 = vunpack.c.0.s8 %v6491
        %v6493 = vlaneseq
        %v6494 = vshrl.u32 %v6493, 7
        %v6495 = vsub.s32 %v6492, %v6494
        %v6496 = vrot.slane %v6489, %v6495
        %v6498 = vunpack.c.l.s4 1966171168
        %v6499 = vunpack.c.0.s8 %v6498
        %v6500 = vlaneseq
        %v6501 = vshrl.u32 %v6500, 7
        %v6502 = vsub.s32 %v6499, %v6501
        %v6503 = vrot.slane %v5652, %v6502
        %v6505 = vunpack.c.l.s4 1966171168
        %v6506 = vunpack.c.0.s8 %v6505
        %v6507 = vlaneseq
        %v6508 = vshrl.u32 %v6507, 7
        %v6509 = vsub.s32 %v6506, %v6508
        %v6510 = vrot.slane %v6503, %v6509
        %v6512 = vunpack.c.l.s4 1966171168
        %v6513 = vunpack.c.0.s8 %v6512
        %v6514 = vlaneseq
        %v6515 = vshrl.u32 %v6514, 7
        %v6516 = vsub.s32 %v6513, %v6515
        %v6517 = vrot.slane %v5653, %v6516
        %v6519 = vunpack.c.l.s4 1966171168
        %v6520 = vunpack.c.0.s8 %v6519
        %v6521 = vlaneseq
        %v6522 = vshrl.u32 %v6521, 7
        %v6523 = vsub.s32 %v6520, %v6522
        %v6524 = vrot.slane %v6517, %v6523
        %v6526 = vunpack.c.l.s4 1966171168
        %v6527 = vunpack.c.0.s8 %v6526
        %v6528 = vlaneseq
        %v6529 = vshrl.u32 %v6528, 7
        %v6530 = vsub.s32 %v6527, %v6529
        %v6531 = vrot.slane %v5654, %v6530
        %v6533 = vunpack.c.l.s4 1966171168
        %v6534 = vunpack.c.0.s8 %v6533
        %v6535 = vlaneseq
        %v6536 = vshrl.u32 %v6535, 7
        %v6537 = vsub.s32 %v6534, %v6536
        %v6538 = vrot.slane %v6531, %v6537
        %v6540 = vunpack.c.l.s4 1966171168
        %v6541 = vunpack.c.0.s8 %v6540
        %v6542 = vlaneseq
        %v6543 = vshrl.u32 %v6542, 7
        %v6544 = vsub.s32 %v6541, %v6543
        %v6545 = vrot.slane %v5655, %v6544
        %v6547 = vunpack.c.l.s4 1966171168
        %v6548 = vunpack.c.0.s8 %v6547
        %v6549 = vlaneseq
        %v6550 = vshrl.u32 %v6549, 7
        %v6551 = vsub.s32 %v6548, %v6550
        %v6552 = vrot.slane %v6545, %v6551
        %v6554 = vunpack.c.l.s4 1966171168
        %v6555 = vunpack.c.0.s8 %v6554
        %v6556 = vlaneseq
        %v6557 = vshrl.u32 %v6556, 7
        %v6558 = vsub.s32 %v6555, %v6557
        %v6559 = vrot.slane %v5656, %v6558
        %v6561 = vunpack.c.l.s4 1966171168
        %v6562 = vunpack.c.0.s8 %v6561
        %v6563 = vlaneseq
        %v6564 = vshrl.u32 %v6563, 7
        %v6565 = vsub.s32 %v6562, %v6564
        %v6566 = vrot.slane %v6559, %v6565
        %v6568 = vunpack.c.l.s4 1966171168
        %v6569 = vunpack.c.0.s8 %v6568
        %v6570 = vlaneseq
        %v6571 = vshrl.u32 %v6570, 7
        %v6572 = vsub.s32 %v6569, %v6571
        %v6573 = vrot.slane %v5657, %v6572
        %v6575 = vunpack.c.l.s4 1966171168
        %v6576 = vunpack.c.0.s8 %v6575
        %v6577 = vlaneseq
        %v6578 = vshrl.u32 %v6577, 7
        %v6579 = vsub.s32 %v6576, %v6578
        %v6580 = vrot.slane %v6573, %v6579
        %v6582 = vunpack.c.l.s4 1966171168
        %v6583 = vunpack.c.0.s8 %v6582
        %v6584 = vlaneseq
        %v6585 = vshrl.u32 %v6584, 7
        %v6586 = vsub.s32 %v6583, %v6585
        %v6587 = vrot.slane %v5658, %v6586
        %v6589 = vunpack.c.l.s4 1966171168
        %v6590 = vunpack.c.0.s8 %v6589
        %v6591 = vlaneseq
        %v6592 = vshrl.u32 %v6591, 7
        %v6593 = vsub.s32 %v6590, %v6592
        %v6594 = vrot.slane %v6587, %v6593
        %v6596 = vunpack.c.l.s4 1966171168
        %v6597 = vunpack.c.0.s8 %v6596
        %v6598 = vlaneseq
        %v6599 = vshrl.u32 %v6598, 7
        %v6600 = vsub.s32 %v6597, %v6599
        %v6601 = vrot.slane %v5659, %v6600
        %v6603 = vunpack.c.l.s4 1966171168
        %v6604 = vunpack.c.0.s8 %v6603
        %v6605 = vlaneseq
        %v6606 = vshrl.u32 %v6605, 7
        %v6607 = vsub.s32 %v6604, %v6606
        %v6608 = vrot.slane %v6601, %v6607
        %v6610 = vunpack.c.l.s4 1966171168
        %v6611 = vunpack.c.0.s8 %v6610
        %v6612 = vlaneseq
        %v6613 = vshrl.u32 %v6612, 7
        %v6614 = vsub.s32 %v6611, %v6613
        %v6615 = vrot.slane %v5660, %v6614
        %v6617 = vunpack.c.l.s4 1966171168
        %v6618 = vunpack.c.0.s8 %v6617
        %v6619 = vlaneseq
        %v6620 = vshrl.u32 %v6619, 7
        %v6621 = vsub.s32 %v6618, %v6620
        %v6622 = vrot.slane %v6615, %v6621
        %v6623 = vunpack.c.l.b16 %v5740
        %v6624 = vunpack.c.l.b16 %v5754
        %v6625 = vunpack.c.l.b16 %v5768
        %v6626 = vunpack.c.l.b16 %v5782
        %v6627 = vunpack.c.l.b16 %v5796
        %v6628 = vunpack.c.l.b16 %v5810
        %v6629 = vunpack.c.l.b16 %v5824
        %v6630 = vunpack.c.l.b16 %v5838
        %v6631 = vunpack.c.l.b16 %v5852
        %v6632 = vunpack.c.l.b16 %v5866
        %v6633 = vunpack.c.l.b16 %v5880
        %v6634 = vunpack.c.l.b16 %v5894
        %v6635 = vunpack.c.l.b16 %v5908
        %v6636 = vunpack.c.l.b16 %v5922
        %v6637 = vunpack.c.l.b16 %v5936
        %v6638 = vunpack.c.l.b16 %v5950
        %v6639 = vunpack.c.l.b16 %v5964
        %v6640 = vunpack.c.l.b16 %v5978
        %v6641 = vunpack.c.l.b16 %v5992
        %v6642 = vunpack.c.l.b16 %v6006
        %v6643 = vunpack.c.l.b16 %v6020
        %v6644 = vunpack.c.l.b16 %v6034
        %v6645 = vunpack.c.l.b16 %v6048
        %v6646 = vunpack.c.l.b16 %v6062
        %v6647 = vunpack.c.l.b16 %v6076
        %v6648 = vunpack.c.l.b16 %v6090
        %v6649 = vunpack.c.l.b16 %v6104
        %v6650 = vunpack.c.l.b16 %v6118
        %v6651 = vunpack.c.l.b16 %v6132
        %v6652 = vunpack.c.l.b16 %v6146
        %v6653 = vunpack.c.l.b16 %v6160
        %v6654 = vunpack.c.l.b16 %v6174
        %v6655 = vunpack.c.l.b16 %v6188
        %v6656 = vunpack.c.l.b16 %v6202
        %v6657 = vunpack.c.l.b16 %v6216
        %v6658 = vunpack.c.l.b16 %v6230
        %v6659 = vunpack.c.l.b16 %v6244
        %v6660 = vunpack.c.l.b16 %v6258
        %v6661 = vunpack.c.l.b16 %v6272
        %v6662 = vunpack.c.l.b16 %v6286
        %v6663 = vunpack.c.l.b16 %v6300
        %v6664 = vunpack.c.l.b16 %v6314
        %v6665 = vunpack.c.l.b16 %v6328
        %v6666 = vunpack.c.l.b16 %v6342
        %v6667 = vunpack.c.l.b16 %v6356
        %v6668 = vunpack.c.l.b16 %v6370
        %v6669 = vunpack.c.l.b16 %v6384
        %v6670 = vunpack.c.l.b16 %v6398
        %v6671 = vunpack.c.l.b16 %v6412
        %v6672 = vunpack.c.l.b16 %v6426
        %v6673 = vunpack.c.l.b16 %v6440
        %v6674 = vunpack.c.l.b16 %v6454
        %v6675 = vunpack.c.l.b16 %v6468
        %v6676 = vunpack.c.l.b16 %v6482
        %v6677 = vunpack.c.l.b16 %v6496
        %v6678 = vunpack.c.l.b16 %v6510
        %v6679 = vunpack.c.l.b16 %v6524
        %v6680 = vunpack.c.l.b16 %v6538
        %v6681 = vunpack.c.l.b16 %v6552
        %v6682 = vunpack.c.l.b16 %v6566
        %v6683 = vunpack.c.l.b16 %v6580
        %v6684 = vunpack.c.l.b16 %v6594
        %v6685 = vunpack.c.l.b16 %v6608
        %v6686 = vunpack.c.l.b16 %v6622
        %v6687 = vrot.slane %v6624, 7
        %v6688 = vsel %vm1312, %v6687, %v6623
        %v6689 = vrot.slane %v6625, 6
        %v6690 = vsel %vm1315, %v6689, %v6688
        %v6691 = vrot.slane %v6626, 5
        %v6692 = vsel %vm1318, %v6691, %v6690
        %v6693 = vrot.slane %v6627, 4
        %v6694 = vsel %vm1321, %v6693, %v6692
        %v6695 = vrot.slane %v6628, 3
        %v6696 = vsel %vm1324, %v6695, %v6694
        %v6697 = vrot.slane %v6629, 2
        %v6698 = vsel %vm1327, %v6697, %v6696
        %v6699 = vrot.slane %v6630, 1
        %v6700 = vsel %vm1330, %v6699, %v6698
        %v6701 = vrot.slane %v6632, 7
        %v6702 = vsel %vm1312, %v6701, %v6631
        %v6703 = vrot.slane %v6633, 6
        %v6704 = vsel %vm1315, %v6703, %v6702
        %v6705 = vrot.slane %v6634, 5
        %v6706 = vsel %vm1318, %v6705, %v6704
        %v6707 = vrot.slane %v6635, 4
        %v6708 = vsel %vm1321, %v6707, %v6706
        %v6709 = vrot.slane %v6636, 3
        %v6710 = vsel %vm1324, %v6709, %v6708
        %v6711 = vrot.slane %v6637, 2
        %v6712 = vsel %vm1327, %v6711, %v6710
        %v6713 = vrot.slane %v6638, 1
        %v6714 = vsel %vm1330, %v6713, %v6712
        %v6715 = vrot.slane %v6640, 7
        %v6716 = vsel %vm1312, %v6715, %v6639
        %v6717 = vrot.slane %v6641, 6
        %v6718 = vsel %vm1315, %v6717, %v6716
        %v6719 = vrot.slane %v6642, 5
        %v6720 = vsel %vm1318, %v6719, %v6718
        %v6721 = vrot.slane %v6643, 4
        %v6722 = vsel %vm1321, %v6721, %v6720
        %v6723 = vrot.slane %v6644, 3
        %v6724 = vsel %vm1324, %v6723, %v6722
        %v6725 = vrot.slane %v6645, 2
        %v6726 = vsel %vm1327, %v6725, %v6724
        %v6727 = vrot.slane %v6646, 1
        %v6728 = vsel %vm1330, %v6727, %v6726
        %v6729 = vrot.slane %v6648, 7
        %v6730 = vsel %vm1312, %v6729, %v6647
        %v6731 = vrot.slane %v6649, 6
        %v6732 = vsel %vm1315, %v6731, %v6730
        %v6733 = vrot.slane %v6650, 5
        %v6734 = vsel %vm1318, %v6733, %v6732
        %v6735 = vrot.slane %v6651, 4
        %v6736 = vsel %vm1321, %v6735, %v6734
        %v6737 = vrot.slane %v6652, 3
        %v6738 = vsel %vm1324, %v6737, %v6736
        %v6739 = vrot.slane %v6653, 2
        %v6740 = vsel %vm1327, %v6739, %v6738
        %v6741 = vrot.slane %v6654, 1
        %v6742 = vsel %vm1330, %v6741, %v6740
        %v6743 = vrot.slane %v6656, 7
        %v6744 = vsel %vm1312, %v6743, %v6655
        %v6745 = vrot.slane %v6657, 6
        %v6746 = vsel %vm1315, %v6745, %v6744
        %v6747 = vrot.slane %v6658, 5
        %v6748 = vsel %vm1318, %v6747, %v6746
        %v6749 = vrot.slane %v6659, 4
        %v6750 = vsel %vm1321, %v6749, %v6748
        %v6751 = vrot.slane %v6660, 3
        %v6752 = vsel %vm1324, %v6751, %v6750
        %v6753 = vrot.slane %v6661, 2
        %v6754 = vsel %vm1327, %v6753, %v6752
        %v6755 = vrot.slane %v6662, 1
        %v6756 = vsel %vm1330, %v6755, %v6754
        %v6757 = vrot.slane %v6664, 7
        %v6758 = vsel %vm1312, %v6757, %v6663
        %v6759 = vrot.slane %v6665, 6
        %v6760 = vsel %vm1315, %v6759, %v6758
        %v6761 = vrot.slane %v6666, 5
        %v6762 = vsel %vm1318, %v6761, %v6760
        %v6763 = vrot.slane %v6667, 4
        %v6764 = vsel %vm1321, %v6763, %v6762
        %v6765 = vrot.slane %v6668, 3
        %v6766 = vsel %vm1324, %v6765, %v6764
        %v6767 = vrot.slane %v6669, 2
        %v6768 = vsel %vm1327, %v6767, %v6766
        %v6769 = vrot.slane %v6670, 1
        %v6770 = vsel %vm1330, %v6769, %v6768
        %v6771 = vrot.slane %v6672, 7
        %v6772 = vsel %vm1312, %v6771, %v6671
        %v6773 = vrot.slane %v6673, 6
        %v6774 = vsel %vm1315, %v6773, %v6772
        %v6775 = vrot.slane %v6674, 5
        %v6776 = vsel %vm1318, %v6775, %v6774
        %v6777 = vrot.slane %v6675, 4
        %v6778 = vsel %vm1321, %v6777, %v6776
        %v6779 = vrot.slane %v6676, 3
        %v6780 = vsel %vm1324, %v6779, %v6778
        %v6781 = vrot.slane %v6677, 2
        %v6782 = vsel %vm1327, %v6781, %v6780
        %v6783 = vrot.slane %v6678, 1
        %v6784 = vsel %vm1330, %v6783, %v6782
        %v6785 = vrot.slane %v6680, 7
        %v6786 = vsel %vm1312, %v6785, %v6679
        %v6787 = vrot.slane %v6681, 6
        %v6788 = vsel %vm1315, %v6787, %v6786
        %v6789 = vrot.slane %v6682, 5
        %v6790 = vsel %vm1318, %v6789, %v6788
        %v6791 = vrot.slane %v6683, 4
        %v6792 = vsel %vm1321, %v6791, %v6790
        %v6793 = vrot.slane %v6684, 3
        %v6794 = vsel %vm1324, %v6793, %v6792
        %v6795 = vrot.slane %v6685, 2
        %v6796 = vsel %vm1327, %v6795, %v6794
        %v6797 = vrot.slane %v6686, 1
        %v6798 = vsel %vm1330, %v6797, %v6796
        %v6799 = vpack.c.b16 %v6714, %v6700
        %v6800 = vpack.c.b16 %v6742, %v6728
        %v6801 = vpack.c.b16 %v6770, %v6756
        %v6802 = vpack.c.b16 %v6798, %v6784
        %v6804 = vsel %vm1434, %v6799, 0
        %v6807 = vsel %vm1434, %v6800, 0
        %v6810 = vsel %vm1434, %v6801, 0
        %v6813 = vsel %vm1434, %v6802, 0
        %v6816 = vsel %vm1447, %v5662, 0
        %6818 = vmatprep.subr.bf16.mxu0 0
        %6819 = vmatpush1.bf16.msra.mxu0 0
        %6820 = vmatprep.subr.bf16.mxu0 0
        %6821 = vmatpush1.bf16.msra.mxu0 0
        %6822 = vmatprep.subr.bf16.mxu0 0
        %6823 = vmatpush1.bf16.msra.mxu0 0
        %6824 = vmatprep.subr.bf16.mxu0 0
        %6825 = vmatpush1.bf16.msra.mxu0 0
        %6826 = vmatprep.subr.bf16.mxu0 0
        %6827 = vmatpush1.bf16.msra.mxu0 0
        %6828 = vmatprep.subr.bf16.mxu0 0
        %6829 = vmatpush1.bf16.msra.mxu0 0
        %6830 = vmatprep.subr.bf16.mxu0 0
        %6831 = vmatpush1.bf16.msra.mxu0 0
        %6832 = vmatprep.subr.bf16.mxu0 0
        %6833 = vmatpush1.bf16.msra.mxu0 %v6816
        %6834 = vmatprep.subr.bf16.mxu0 0
        %6835 = vmatpush2.bf16.msra.mxu0 0
        %6836 = vmatprep.subr.bf16.mxu0 0
        %6837 = vmatpush2.bf16.msra.mxu0 0
        %6838 = vmatprep.subr.bf16.mxu0 0
        %6839 = vmatpush2.bf16.msra.mxu0 0
        %6840 = vmatprep.subr.bf16.mxu0 0
        %6841 = vmatpush2.bf16.msra.mxu0 0
        %6842 = vmatprep.subr.bf16.mxu0 0
        %6843 = vmatpush2.bf16.msra.mxu0 0
        %6844 = vmatprep.subr.bf16.mxu0 0
        %6845 = vmatpush2.bf16.msra.mxu0 0
        %6846 = vmatprep.subr.bf16.mxu0 0
        %6847 = vmatpush2.bf16.msra.mxu0 0
        %6848 = vmatprep.subr.bf16.mxu0 0
        %6849 = vmatpush2.bf16.msra.mxu0 0
        %6850 = vmatprep.mubr.bf16.mxu0 0
        %6851 = vmatmul.mubr.bf16.gmra.mxu0 %v6804
        %v6852 = vpop.f32.mrf.mxu0
        %v6853 = vadd.f32 0.0, %v6852
        %v6854 = vpop.f32.mrf.mxu0
        %v6855 = vpop.f32.mrf.mxu0
        %v6856 = vadd.f32 0.0, %v6855
        %v6857 = vpop.f32.mrf.mxu0
        %6858 = vmatprep.mubr.bf16.mxu0 0
        %6859 = vmatmul.mubr.bf16.gmra.mxu0 %v6807
        %v6860 = vpop.f32.mrf.mxu0
        %v6861 = vadd.f32 0.0, %v6860
        %v6862 = vpop.f32.mrf.mxu0
        %v6863 = vpop.f32.mrf.mxu0
        %v6864 = vadd.f32 0.0, %v6863
        %v6865 = vpop.f32.mrf.mxu0
        %6866 = vmatprep.mubr.bf16.mxu0 0
        %6867 = vmatmul.mubr.bf16.gmra.mxu0 %v6810
        %v6868 = vpop.f32.mrf.mxu0
        %v6869 = vadd.f32 0.0, %v6868
        %v6870 = vpop.f32.mrf.mxu0
        %v6871 = vpop.f32.mrf.mxu0
        %v6872 = vadd.f32 0.0, %v6871
        %v6873 = vpop.f32.mrf.mxu0
        %6874 = vmatprep.mubr.bf16.mxu0 0
        %6875 = vmatmul.mubr.bf16.gmra.mxu0 %v6813
        %v6876 = vpop.f32.mrf.mxu0
        %v6877 = vadd.f32 0.0, %v6876
        %v6878 = vpop.f32.mrf.mxu0
        %v6879 = vpop.f32.mrf.mxu0
        %v6880 = vadd.f32 0.0, %v6879
        %v6881 = vpop.f32.mrf.mxu0
        %6882 = vdwg.mxu0
        %v6883 = vadd.f32 %v5588, %v6853
        %v6884 = vadd.f32 %v5589, %v6856
        %v6885 = vadd.f32 %v5590, %v6861
        %v6886 = vadd.f32 %v5591, %v6864
        %v6887 = vadd.f32 %v5592, %v6869
        %v6888 = vadd.f32 %v5593, %v6872
        %v6889 = vadd.f32 %v5594, %v6877
        %v6890 = vadd.f32 %v5595, %v6880
        %s6891 = scalar_lea.vmem %s209, 18
        %v6892 = vld [vmem:[%s6891] sm:$0x1]
        %v6893 = vld [vmem:[%s6891 + $0x1] sm:$0x1]
        %v6894 = vld [vmem:[%s6891 + $0x2] sm:$0x1]
        %v6895 = vld [vmem:[%s6891 + $0x3] sm:$0x1]
        %v6896 = vld [vmem:[%s6891 + $0x4] sm:$0x1]
        %v6897 = vld [vmem:[%s6891 + $0x5] sm:$0x1]
        %v6898 = vld [vmem:[%s6891 + $0x6] sm:$0x1]
        %v6899 = vld [vmem:[%s6891 + $0x7] sm:$0x1]
        %v6900 = vld [vmem:[%s6891 + $0x12] sm:$0x1]
        %v6901 = vld [vmem:[%s6891 + $0x13] sm:$0x1]
        %v6902 = vld [vmem:[%s6891 + $0x14] sm:$0x1]
        %v6903 = vld [vmem:[%s6891 + $0x15] sm:$0x1]
        %v6904 = vld [vmem:[%s6891 + $0x16] sm:$0x1]
        %v6905 = vld [vmem:[%s6891 + $0x17] sm:$0x1]
        %v6906 = vld [vmem:[%s6891 + $0x18] sm:$0x1]
        %v6907 = vld [vmem:[%s6891 + $0x19] sm:$0x1]
        %v6908 = vld [vmem:[%s6891 + $0x24] sm:$0x1]
        %v6909 = vld [vmem:[%s6891 + $0x25] sm:$0x1]
        %v6910 = vld [vmem:[%s6891 + $0x26] sm:$0x1]
        %v6911 = vld [vmem:[%s6891 + $0x27] sm:$0x1]
        %v6912 = vld [vmem:[%s6891 + $0x28] sm:$0x1]
        %v6913 = vld [vmem:[%s6891 + $0x29] sm:$0x1]
        %v6914 = vld [vmem:[%s6891 + $0x2a] sm:$0x1]
        %v6915 = vld [vmem:[%s6891 + $0x2b] sm:$0x1]
        %v6916 = vld [vmem:[%s6891 + $0x36] sm:$0x1]
        %v6917 = vld [vmem:[%s6891 + $0x37] sm:$0x1]
        %v6918 = vld [vmem:[%s6891 + $0x38] sm:$0x1]
        %v6919 = vld [vmem:[%s6891 + $0x39] sm:$0x1]
        %v6920 = vld [vmem:[%s6891 + $0x3a] sm:$0x1]
        %v6921 = vld [vmem:[%s6891 + $0x3b] sm:$0x1]
        %v6922 = vld [vmem:[%s6891 + $0x3c] sm:$0x1]
        %v6923 = vld [vmem:[%s6891 + $0x3d] sm:$0x1]
        %v6924 = vld [vmem:[%s6891 + $0x48] sm:$0x1]
        %v6925 = vld [vmem:[%s6891 + $0x49] sm:$0x1]
        %v6926 = vld [vmem:[%s6891 + $0x4a] sm:$0x1]
        %v6927 = vld [vmem:[%s6891 + $0x4b] sm:$0x1]
        %v6928 = vld [vmem:[%s6891 + $0x4c] sm:$0x1]
        %v6929 = vld [vmem:[%s6891 + $0x4d] sm:$0x1]
        %v6930 = vld [vmem:[%s6891 + $0x4e] sm:$0x1]
        %v6931 = vld [vmem:[%s6891 + $0x4f] sm:$0x1]
        %v6932 = vld [vmem:[%s6891 + $0x5a] sm:$0x1]
        %v6933 = vld [vmem:[%s6891 + $0x5b] sm:$0x1]
        %v6934 = vld [vmem:[%s6891 + $0x5c] sm:$0x1]
        %v6935 = vld [vmem:[%s6891 + $0x5d] sm:$0x1]
        %v6936 = vld [vmem:[%s6891 + $0x5e] sm:$0x1]
        %v6937 = vld [vmem:[%s6891 + $0x5f] sm:$0x1]
        %v6938 = vld [vmem:[%s6891 + $0x60] sm:$0x1]
        %v6939 = vld [vmem:[%s6891 + $0x61] sm:$0x1]
        %v6940 = vld [vmem:[%s6891 + $0x6c] sm:$0x1]
        %v6941 = vld [vmem:[%s6891 + $0x6d] sm:$0x1]
        %v6942 = vld [vmem:[%s6891 + $0x6e] sm:$0x1]
        %v6943 = vld [vmem:[%s6891 + $0x6f] sm:$0x1]
        %v6944 = vld [vmem:[%s6891 + $0x70] sm:$0x1]
        %v6945 = vld [vmem:[%s6891 + $0x71] sm:$0x1]
        %v6946 = vld [vmem:[%s6891 + $0x72] sm:$0x1]
        %v6947 = vld [vmem:[%s6891 + $0x73] sm:$0x1]
        %v6948 = vld [vmem:[%s6891 + $0x7e] sm:$0x1]
        %v6949 = vld [vmem:[%s6891 + $0x7f] sm:$0x1]
        %v6950 = vld [vmem:[%s6891 + $0x80] sm:$0x1]
        %v6951 = vld [vmem:[%s6891 + $0x81] sm:$0x1]
        %v6952 = vld [vmem:[%s6891 + $0x82] sm:$0x1]
        %v6953 = vld [vmem:[%s6891 + $0x83] sm:$0x1]
        %v6954 = vld [vmem:[%s6891 + $0x84] sm:$0x1]
        %v6955 = vld [vmem:[%s6891 + $0x85] sm:$0x1]
        %s6956 = scalar_lea.vmem %s214, 12
        %v6957 = vld [vmem:[%s6956] sm:$0x3]
        %v7023 = vunpack.c.l.s4 1966171168
        %v7024 = vunpack.c.0.s8 %v7023
        %v7025 = vlaneseq
        %v7026 = vshrl.u32 %v7025, 7
        %v7027 = vsub.s32 %v7024, %v7026
        %v7028 = vrot.slane %v6892, %v7027
        %v7030 = vunpack.c.l.s4 1966171168
        %v7031 = vunpack.c.0.s8 %v7030
        %v7032 = vlaneseq
        %v7033 = vshrl.u32 %v7032, 7
        %v7034 = vsub.s32 %v7031, %v7033
        %v7035 = vrot.slane %v7028, %v7034
        %v7037 = vunpack.c.l.s4 1966171168
        %v7038 = vunpack.c.0.s8 %v7037
        %v7039 = vlaneseq
        %v7040 = vshrl.u32 %v7039, 7
        %v7041 = vsub.s32 %v7038, %v7040
        %v7042 = vrot.slane %v6893, %v7041
        %v7044 = vunpack.c.l.s4 1966171168
        %v7045 = vunpack.c.0.s8 %v7044
        %v7046 = vlaneseq
        %v7047 = vshrl.u32 %v7046, 7
        %v7048 = vsub.s32 %v7045, %v7047
        %v7049 = vrot.slane %v7042, %v7048
        %v7051 = vunpack.c.l.s4 1966171168
        %v7052 = vunpack.c.0.s8 %v7051
        %v7053 = vlaneseq
        %v7054 = vshrl.u32 %v7053, 7
        %v7055 = vsub.s32 %v7052, %v7054
        %v7056 = vrot.slane %v6894, %v7055
        %v7058 = vunpack.c.l.s4 1966171168
        %v7059 = vunpack.c.0.s8 %v7058
        %v7060 = vlaneseq
        %v7061 = vshrl.u32 %v7060, 7
        %v7062 = vsub.s32 %v7059, %v7061
        %v7063 = vrot.slane %v7056, %v7062
        %v7065 = vunpack.c.l.s4 1966171168
        %v7066 = vunpack.c.0.s8 %v7065
        %v7067 = vlaneseq
        %v7068 = vshrl.u32 %v7067, 7
        %v7069 = vsub.s32 %v7066, %v7068
        %v7070 = vrot.slane %v6895, %v7069
        %v7072 = vunpack.c.l.s4 1966171168
        %v7073 = vunpack.c.0.s8 %v7072
        %v7074 = vlaneseq
        %v7075 = vshrl.u32 %v7074, 7
        %v7076 = vsub.s32 %v7073, %v7075
        %v7077 = vrot.slane %v7070, %v7076
        %v7079 = vunpack.c.l.s4 1966171168
        %v7080 = vunpack.c.0.s8 %v7079
        %v7081 = vlaneseq
        %v7082 = vshrl.u32 %v7081, 7
        %v7083 = vsub.s32 %v7080, %v7082
        %v7084 = vrot.slane %v6896, %v7083
        %v7086 = vunpack.c.l.s4 1966171168
        %v7087 = vunpack.c.0.s8 %v7086
        %v7088 = vlaneseq
        %v7089 = vshrl.u32 %v7088, 7
        %v7090 = vsub.s32 %v7087, %v7089
        %v7091 = vrot.slane %v7084, %v7090
        %v7093 = vunpack.c.l.s4 1966171168
        %v7094 = vunpack.c.0.s8 %v7093
        %v7095 = vlaneseq
        %v7096 = vshrl.u32 %v7095, 7
        %v7097 = vsub.s32 %v7094, %v7096
        %v7098 = vrot.slane %v6897, %v7097
        %v7100 = vunpack.c.l.s4 1966171168
        %v7101 = vunpack.c.0.s8 %v7100
        %v7102 = vlaneseq
        %v7103 = vshrl.u32 %v7102, 7
        %v7104 = vsub.s32 %v7101, %v7103
        %v7105 = vrot.slane %v7098, %v7104
        %v7107 = vunpack.c.l.s4 1966171168
        %v7108 = vunpack.c.0.s8 %v7107
        %v7109 = vlaneseq
        %v7110 = vshrl.u32 %v7109, 7
        %v7111 = vsub.s32 %v7108, %v7110
        %v7112 = vrot.slane %v6898, %v7111
        %v7114 = vunpack.c.l.s4 1966171168
        %v7115 = vunpack.c.0.s8 %v7114
        %v7116 = vlaneseq
        %v7117 = vshrl.u32 %v7116, 7
        %v7118 = vsub.s32 %v7115, %v7117
        %v7119 = vrot.slane %v7112, %v7118
        %v7121 = vunpack.c.l.s4 1966171168
        %v7122 = vunpack.c.0.s8 %v7121
        %v7123 = vlaneseq
        %v7124 = vshrl.u32 %v7123, 7
        %v7125 = vsub.s32 %v7122, %v7124
        %v7126 = vrot.slane %v6899, %v7125
        %v7128 = vunpack.c.l.s4 1966171168
        %v7129 = vunpack.c.0.s8 %v7128
        %v7130 = vlaneseq
        %v7131 = vshrl.u32 %v7130, 7
        %v7132 = vsub.s32 %v7129, %v7131
        %v7133 = vrot.slane %v7126, %v7132
        %v7135 = vunpack.c.l.s4 1966171168
        %v7136 = vunpack.c.0.s8 %v7135
        %v7137 = vlaneseq
        %v7138 = vshrl.u32 %v7137, 7
        %v7139 = vsub.s32 %v7136, %v7138
        %v7140 = vrot.slane %v6900, %v7139
        %v7142 = vunpack.c.l.s4 1966171168
        %v7143 = vunpack.c.0.s8 %v7142
        %v7144 = vlaneseq
        %v7145 = vshrl.u32 %v7144, 7
        %v7146 = vsub.s32 %v7143, %v7145
        %v7147 = vrot.slane %v7140, %v7146
        %v7149 = vunpack.c.l.s4 1966171168
        %v7150 = vunpack.c.0.s8 %v7149
        %v7151 = vlaneseq
        %v7152 = vshrl.u32 %v7151, 7
        %v7153 = vsub.s32 %v7150, %v7152
        %v7154 = vrot.slane %v6901, %v7153
        %v7156 = vunpack.c.l.s4 1966171168
        %v7157 = vunpack.c.0.s8 %v7156
        %v7158 = vlaneseq
        %v7159 = vshrl.u32 %v7158, 7
        %v7160 = vsub.s32 %v7157, %v7159
        %v7161 = vrot.slane %v7154, %v7160
        %v7163 = vunpack.c.l.s4 1966171168
        %v7164 = vunpack.c.0.s8 %v7163
        %v7165 = vlaneseq
        %v7166 = vshrl.u32 %v7165, 7
        %v7167 = vsub.s32 %v7164, %v7166
        %v7168 = vrot.slane %v6902, %v7167
        %v7170 = vunpack.c.l.s4 1966171168
        %v7171 = vunpack.c.0.s8 %v7170
        %v7172 = vlaneseq
        %v7173 = vshrl.u32 %v7172, 7
        %v7174 = vsub.s32 %v7171, %v7173
        %v7175 = vrot.slane %v7168, %v7174
        %v7177 = vunpack.c.l.s4 1966171168
        %v7178 = vunpack.c.0.s8 %v7177
        %v7179 = vlaneseq
        %v7180 = vshrl.u32 %v7179, 7
        %v7181 = vsub.s32 %v7178, %v7180
        %v7182 = vrot.slane %v6903, %v7181
        %v7184 = vunpack.c.l.s4 1966171168
        %v7185 = vunpack.c.0.s8 %v7184
        %v7186 = vlaneseq
        %v7187 = vshrl.u32 %v7186, 7
        %v7188 = vsub.s32 %v7185, %v7187
        %v7189 = vrot.slane %v7182, %v7188
        %v7191 = vunpack.c.l.s4 1966171168
        %v7192 = vunpack.c.0.s8 %v7191
        %v7193 = vlaneseq
        %v7194 = vshrl.u32 %v7193, 7
        %v7195 = vsub.s32 %v7192, %v7194
        %v7196 = vrot.slane %v6904, %v7195
        %v7198 = vunpack.c.l.s4 1966171168
        %v7199 = vunpack.c.0.s8 %v7198
        %v7200 = vlaneseq
        %v7201 = vshrl.u32 %v7200, 7
        %v7202 = vsub.s32 %v7199, %v7201
        %v7203 = vrot.slane %v7196, %v7202
        %v7205 = vunpack.c.l.s4 1966171168
        %v7206 = vunpack.c.0.s8 %v7205
        %v7207 = vlaneseq
        %v7208 = vshrl.u32 %v7207, 7
        %v7209 = vsub.s32 %v7206, %v7208
        %v7210 = vrot.slane %v6905, %v7209
        %v7212 = vunpack.c.l.s4 1966171168
        %v7213 = vunpack.c.0.s8 %v7212
        %v7214 = vlaneseq
        %v7215 = vshrl.u32 %v7214, 7
        %v7216 = vsub.s32 %v7213, %v7215
        %v7217 = vrot.slane %v7210, %v7216
        %v7219 = vunpack.c.l.s4 1966171168
        %v7220 = vunpack.c.0.s8 %v7219
        %v7221 = vlaneseq
        %v7222 = vshrl.u32 %v7221, 7
        %v7223 = vsub.s32 %v7220, %v7222
        %v7224 = vrot.slane %v6906, %v7223
        %v7226 = vunpack.c.l.s4 1966171168
        %v7227 = vunpack.c.0.s8 %v7226
        %v7228 = vlaneseq
        %v7229 = vshrl.u32 %v7228, 7
        %v7230 = vsub.s32 %v7227, %v7229
        %v7231 = vrot.slane %v7224, %v7230
        %v7233 = vunpack.c.l.s4 1966171168
        %v7234 = vunpack.c.0.s8 %v7233
        %v7235 = vlaneseq
        %v7236 = vshrl.u32 %v7235, 7
        %v7237 = vsub.s32 %v7234, %v7236
        %v7238 = vrot.slane %v6907, %v7237
        %v7240 = vunpack.c.l.s4 1966171168
        %v7241 = vunpack.c.0.s8 %v7240
        %v7242 = vlaneseq
        %v7243 = vshrl.u32 %v7242, 7
        %v7244 = vsub.s32 %v7241, %v7243
        %v7245 = vrot.slane %v7238, %v7244
        %v7247 = vunpack.c.l.s4 1966171168
        %v7248 = vunpack.c.0.s8 %v7247
        %v7249 = vlaneseq
        %v7250 = vshrl.u32 %v7249, 7
        %v7251 = vsub.s32 %v7248, %v7250
        %v7252 = vrot.slane %v6908, %v7251
        %v7254 = vunpack.c.l.s4 1966171168
        %v7255 = vunpack.c.0.s8 %v7254
        %v7256 = vlaneseq
        %v7257 = vshrl.u32 %v7256, 7
        %v7258 = vsub.s32 %v7255, %v7257
        %v7259 = vrot.slane %v7252, %v7258
        %v7261 = vunpack.c.l.s4 1966171168
        %v7262 = vunpack.c.0.s8 %v7261
        %v7263 = vlaneseq
        %v7264 = vshrl.u32 %v7263, 7
        %v7265 = vsub.s32 %v7262, %v7264
        %v7266 = vrot.slane %v6909, %v7265
        %v7268 = vunpack.c.l.s4 1966171168
        %v7269 = vunpack.c.0.s8 %v7268
        %v7270 = vlaneseq
        %v7271 = vshrl.u32 %v7270, 7
        %v7272 = vsub.s32 %v7269, %v7271
        %v7273 = vrot.slane %v7266, %v7272
        %v7275 = vunpack.c.l.s4 1966171168
        %v7276 = vunpack.c.0.s8 %v7275
        %v7277 = vlaneseq
        %v7278 = vshrl.u32 %v7277, 7
        %v7279 = vsub.s32 %v7276, %v7278
        %v7280 = vrot.slane %v6910, %v7279
        %v7282 = vunpack.c.l.s4 1966171168
        %v7283 = vunpack.c.0.s8 %v7282
        %v7284 = vlaneseq
        %v7285 = vshrl.u32 %v7284, 7
        %v7286 = vsub.s32 %v7283, %v7285
        %v7287 = vrot.slane %v7280, %v7286
        %v7289 = vunpack.c.l.s4 1966171168
        %v7290 = vunpack.c.0.s8 %v7289
        %v7291 = vlaneseq
        %v7292 = vshrl.u32 %v7291, 7
        %v7293 = vsub.s32 %v7290, %v7292
        %v7294 = vrot.slane %v6911, %v7293
        %v7296 = vunpack.c.l.s4 1966171168
        %v7297 = vunpack.c.0.s8 %v7296
        %v7298 = vlaneseq
        %v7299 = vshrl.u32 %v7298, 7
        %v7300 = vsub.s32 %v7297, %v7299
        %v7301 = vrot.slane %v7294, %v7300
        %v7303 = vunpack.c.l.s4 1966171168
        %v7304 = vunpack.c.0.s8 %v7303
        %v7305 = vlaneseq
        %v7306 = vshrl.u32 %v7305, 7
        %v7307 = vsub.s32 %v7304, %v7306
        %v7308 = vrot.slane %v6912, %v7307
        %v7310 = vunpack.c.l.s4 1966171168
        %v7311 = vunpack.c.0.s8 %v7310
        %v7312 = vlaneseq
        %v7313 = vshrl.u32 %v7312, 7
        %v7314 = vsub.s32 %v7311, %v7313
        %v7315 = vrot.slane %v7308, %v7314
        %v7317 = vunpack.c.l.s4 1966171168
        %v7318 = vunpack.c.0.s8 %v7317
        %v7319 = vlaneseq
        %v7320 = vshrl.u32 %v7319, 7
        %v7321 = vsub.s32 %v7318, %v7320
        %v7322 = vrot.slane %v6913, %v7321
        %v7324 = vunpack.c.l.s4 1966171168
        %v7325 = vunpack.c.0.s8 %v7324
        %v7326 = vlaneseq
        %v7327 = vshrl.u32 %v7326, 7
        %v7328 = vsub.s32 %v7325, %v7327
        %v7329 = vrot.slane %v7322, %v7328
        %v7331 = vunpack.c.l.s4 1966171168
        %v7332 = vunpack.c.0.s8 %v7331
        %v7333 = vlaneseq
        %v7334 = vshrl.u32 %v7333, 7
        %v7335 = vsub.s32 %v7332, %v7334
        %v7336 = vrot.slane %v6914, %v7335
        %v7338 = vunpack.c.l.s4 1966171168
        %v7339 = vunpack.c.0.s8 %v7338
        %v7340 = vlaneseq
        %v7341 = vshrl.u32 %v7340, 7
        %v7342 = vsub.s32 %v7339, %v7341
        %v7343 = vrot.slane %v7336, %v7342
        %v7345 = vunpack.c.l.s4 1966171168
        %v7346 = vunpack.c.0.s8 %v7345
        %v7347 = vlaneseq
        %v7348 = vshrl.u32 %v7347, 7
        %v7349 = vsub.s32 %v7346, %v7348
        %v7350 = vrot.slane %v6915, %v7349
        %v7352 = vunpack.c.l.s4 1966171168
        %v7353 = vunpack.c.0.s8 %v7352
        %v7354 = vlaneseq
        %v7355 = vshrl.u32 %v7354, 7
        %v7356 = vsub.s32 %v7353, %v7355
        %v7357 = vrot.slane %v7350, %v7356
        %v7359 = vunpack.c.l.s4 1966171168
        %v7360 = vunpack.c.0.s8 %v7359
        %v7361 = vlaneseq
        %v7362 = vshrl.u32 %v7361, 7
        %v7363 = vsub.s32 %v7360, %v7362
        %v7364 = vrot.slane %v6916, %v7363
        %v7366 = vunpack.c.l.s4 1966171168
        %v7367 = vunpack.c.0.s8 %v7366
        %v7368 = vlaneseq
        %v7369 = vshrl.u32 %v7368, 7
        %v7370 = vsub.s32 %v7367, %v7369
        %v7371 = vrot.slane %v7364, %v7370
        %v7373 = vunpack.c.l.s4 1966171168
        %v7374 = vunpack.c.0.s8 %v7373
        %v7375 = vlaneseq
        %v7376 = vshrl.u32 %v7375, 7
        %v7377 = vsub.s32 %v7374, %v7376
        %v7378 = vrot.slane %v6917, %v7377
        %v7380 = vunpack.c.l.s4 1966171168
        %v7381 = vunpack.c.0.s8 %v7380
        %v7382 = vlaneseq
        %v7383 = vshrl.u32 %v7382, 7
        %v7384 = vsub.s32 %v7381, %v7383
        %v7385 = vrot.slane %v7378, %v7384
        %v7387 = vunpack.c.l.s4 1966171168
        %v7388 = vunpack.c.0.s8 %v7387
        %v7389 = vlaneseq
        %v7390 = vshrl.u32 %v7389, 7
        %v7391 = vsub.s32 %v7388, %v7390
        %v7392 = vrot.slane %v6918, %v7391
        %v7394 = vunpack.c.l.s4 1966171168
        %v7395 = vunpack.c.0.s8 %v7394
        %v7396 = vlaneseq
        %v7397 = vshrl.u32 %v7396, 7
        %v7398 = vsub.s32 %v7395, %v7397
        %v7399 = vrot.slane %v7392, %v7398
        %v7401 = vunpack.c.l.s4 1966171168
        %v7402 = vunpack.c.0.s8 %v7401
        %v7403 = vlaneseq
        %v7404 = vshrl.u32 %v7403, 7
        %v7405 = vsub.s32 %v7402, %v7404
        %v7406 = vrot.slane %v6919, %v7405
        %v7408 = vunpack.c.l.s4 1966171168
        %v7409 = vunpack.c.0.s8 %v7408
        %v7410 = vlaneseq
        %v7411 = vshrl.u32 %v7410, 7
        %v7412 = vsub.s32 %v7409, %v7411
        %v7413 = vrot.slane %v7406, %v7412
        %v7415 = vunpack.c.l.s4 1966171168
        %v7416 = vunpack.c.0.s8 %v7415
        %v7417 = vlaneseq
        %v7418 = vshrl.u32 %v7417, 7
        %v7419 = vsub.s32 %v7416, %v7418
        %v7420 = vrot.slane %v6920, %v7419
        %v7422 = vunpack.c.l.s4 1966171168
        %v7423 = vunpack.c.0.s8 %v7422
        %v7424 = vlaneseq
        %v7425 = vshrl.u32 %v7424, 7
        %v7426 = vsub.s32 %v7423, %v7425
        %v7427 = vrot.slane %v7420, %v7426
        %v7429 = vunpack.c.l.s4 1966171168
        %v7430 = vunpack.c.0.s8 %v7429
        %v7431 = vlaneseq
        %v7432 = vshrl.u32 %v7431, 7
        %v7433 = vsub.s32 %v7430, %v7432
        %v7434 = vrot.slane %v6921, %v7433
        %v7436 = vunpack.c.l.s4 1966171168
        %v7437 = vunpack.c.0.s8 %v7436
        %v7438 = vlaneseq
        %v7439 = vshrl.u32 %v7438, 7
        %v7440 = vsub.s32 %v7437, %v7439
        %v7441 = vrot.slane %v7434, %v7440
        %v7443 = vunpack.c.l.s4 1966171168
        %v7444 = vunpack.c.0.s8 %v7443
        %v7445 = vlaneseq
        %v7446 = vshrl.u32 %v7445, 7
        %v7447 = vsub.s32 %v7444, %v7446
        %v7448 = vrot.slane %v6922, %v7447
        %v7450 = vunpack.c.l.s4 1966171168
        %v7451 = vunpack.c.0.s8 %v7450
        %v7452 = vlaneseq
        %v7453 = vshrl.u32 %v7452, 7
        %v7454 = vsub.s32 %v7451, %v7453
        %v7455 = vrot.slane %v7448, %v7454
        %v7457 = vunpack.c.l.s4 1966171168
        %v7458 = vunpack.c.0.s8 %v7457
        %v7459 = vlaneseq
        %v7460 = vshrl.u32 %v7459, 7
        %v7461 = vsub.s32 %v7458, %v7460
        %v7462 = vrot.slane %v6923, %v7461
        %v7464 = vunpack.c.l.s4 1966171168
        %v7465 = vunpack.c.0.s8 %v7464
        %v7466 = vlaneseq
        %v7467 = vshrl.u32 %v7466, 7
        %v7468 = vsub.s32 %v7465, %v7467
        %v7469 = vrot.slane %v7462, %v7468
        %v7471 = vunpack.c.l.s4 1966171168
        %v7472 = vunpack.c.0.s8 %v7471
        %v7473 = vlaneseq
        %v7474 = vshrl.u32 %v7473, 7
        %v7475 = vsub.s32 %v7472, %v7474
        %v7476 = vrot.slane %v6924, %v7475
        %v7478 = vunpack.c.l.s4 1966171168
        %v7479 = vunpack.c.0.s8 %v7478
        %v7480 = vlaneseq
        %v7481 = vshrl.u32 %v7480, 7
        %v7482 = vsub.s32 %v7479, %v7481
        %v7483 = vrot.slane %v7476, %v7482
        %v7485 = vunpack.c.l.s4 1966171168
        %v7486 = vunpack.c.0.s8 %v7485
        %v7487 = vlaneseq
        %v7488 = vshrl.u32 %v7487, 7
        %v7489 = vsub.s32 %v7486, %v7488
        %v7490 = vrot.slane %v6925, %v7489
        %v7492 = vunpack.c.l.s4 1966171168
        %v7493 = vunpack.c.0.s8 %v7492
        %v7494 = vlaneseq
        %v7495 = vshrl.u32 %v7494, 7
        %v7496 = vsub.s32 %v7493, %v7495
        %v7497 = vrot.slane %v7490, %v7496
        %v7499 = vunpack.c.l.s4 1966171168
        %v7500 = vunpack.c.0.s8 %v7499
        %v7501 = vlaneseq
        %v7502 = vshrl.u32 %v7501, 7
        %v7503 = vsub.s32 %v7500, %v7502
        %v7504 = vrot.slane %v6926, %v7503
        %v7506 = vunpack.c.l.s4 1966171168
        %v7507 = vunpack.c.0.s8 %v7506
        %v7508 = vlaneseq
        %v7509 = vshrl.u32 %v7508, 7
        %v7510 = vsub.s32 %v7507, %v7509
        %v7511 = vrot.slane %v7504, %v7510
        %v7513 = vunpack.c.l.s4 1966171168
        %v7514 = vunpack.c.0.s8 %v7513
        %v7515 = vlaneseq
        %v7516 = vshrl.u32 %v7515, 7
        %v7517 = vsub.s32 %v7514, %v7516
        %v7518 = vrot.slane %v6927, %v7517
        %v7520 = vunpack.c.l.s4 1966171168
        %v7521 = vunpack.c.0.s8 %v7520
        %v7522 = vlaneseq
        %v7523 = vshrl.u32 %v7522, 7
        %v7524 = vsub.s32 %v7521, %v7523
        %v7525 = vrot.slane %v7518, %v7524
        %v7527 = vunpack.c.l.s4 1966171168
        %v7528 = vunpack.c.0.s8 %v7527
        %v7529 = vlaneseq
        %v7530 = vshrl.u32 %v7529, 7
        %v7531 = vsub.s32 %v7528, %v7530
        %v7532 = vrot.slane %v6928, %v7531
        %v7534 = vunpack.c.l.s4 1966171168
        %v7535 = vunpack.c.0.s8 %v7534
        %v7536 = vlaneseq
        %v7537 = vshrl.u32 %v7536, 7
        %v7538 = vsub.s32 %v7535, %v7537
        %v7539 = vrot.slane %v7532, %v7538
        %v7541 = vunpack.c.l.s4 1966171168
        %v7542 = vunpack.c.0.s8 %v7541
        %v7543 = vlaneseq
        %v7544 = vshrl.u32 %v7543, 7
        %v7545 = vsub.s32 %v7542, %v7544
        %v7546 = vrot.slane %v6929, %v7545
        %v7548 = vunpack.c.l.s4 1966171168
        %v7549 = vunpack.c.0.s8 %v7548
        %v7550 = vlaneseq
        %v7551 = vshrl.u32 %v7550, 7
        %v7552 = vsub.s32 %v7549, %v7551
        %v7553 = vrot.slane %v7546, %v7552
        %v7555 = vunpack.c.l.s4 1966171168
        %v7556 = vunpack.c.0.s8 %v7555
        %v7557 = vlaneseq
        %v7558 = vshrl.u32 %v7557, 7
        %v7559 = vsub.s32 %v7556, %v7558
        %v7560 = vrot.slane %v6930, %v7559
        %v7562 = vunpack.c.l.s4 1966171168
        %v7563 = vunpack.c.0.s8 %v7562
        %v7564 = vlaneseq
        %v7565 = vshrl.u32 %v7564, 7
        %v7566 = vsub.s32 %v7563, %v7565
        %v7567 = vrot.slane %v7560, %v7566
        %v7569 = vunpack.c.l.s4 1966171168
        %v7570 = vunpack.c.0.s8 %v7569
        %v7571 = vlaneseq
        %v7572 = vshrl.u32 %v7571, 7
        %v7573 = vsub.s32 %v7570, %v7572
        %v7574 = vrot.slane %v6931, %v7573
        %v7576 = vunpack.c.l.s4 1966171168
        %v7577 = vunpack.c.0.s8 %v7576
        %v7578 = vlaneseq
        %v7579 = vshrl.u32 %v7578, 7
        %v7580 = vsub.s32 %v7577, %v7579
        %v7581 = vrot.slane %v7574, %v7580
        %v7583 = vunpack.c.l.s4 1966171168
        %v7584 = vunpack.c.0.s8 %v7583
        %v7585 = vlaneseq
        %v7586 = vshrl.u32 %v7585, 7
        %v7587 = vsub.s32 %v7584, %v7586
        %v7588 = vrot.slane %v6932, %v7587
        %v7590 = vunpack.c.l.s4 1966171168
        %v7591 = vunpack.c.0.s8 %v7590
        %v7592 = vlaneseq
        %v7593 = vshrl.u32 %v7592, 7
        %v7594 = vsub.s32 %v7591, %v7593
        %v7595 = vrot.slane %v7588, %v7594
        %v7597 = vunpack.c.l.s4 1966171168
        %v7598 = vunpack.c.0.s8 %v7597
        %v7599 = vlaneseq
        %v7600 = vshrl.u32 %v7599, 7
        %v7601 = vsub.s32 %v7598, %v7600
        %v7602 = vrot.slane %v6933, %v7601
        %v7604 = vunpack.c.l.s4 1966171168
        %v7605 = vunpack.c.0.s8 %v7604
        %v7606 = vlaneseq
        %v7607 = vshrl.u32 %v7606, 7
        %v7608 = vsub.s32 %v7605, %v7607
        %v7609 = vrot.slane %v7602, %v7608
        %v7611 = vunpack.c.l.s4 1966171168
        %v7612 = vunpack.c.0.s8 %v7611
        %v7613 = vlaneseq
        %v7614 = vshrl.u32 %v7613, 7
        %v7615 = vsub.s32 %v7612, %v7614
        %v7616 = vrot.slane %v6934, %v7615
        %v7618 = vunpack.c.l.s4 1966171168
        %v7619 = vunpack.c.0.s8 %v7618
        %v7620 = vlaneseq
        %v7621 = vshrl.u32 %v7620, 7
        %v7622 = vsub.s32 %v7619, %v7621
        %v7623 = vrot.slane %v7616, %v7622
        %v7625 = vunpack.c.l.s4 1966171168
        %v7626 = vunpack.c.0.s8 %v7625
        %v7627 = vlaneseq
        %v7628 = vshrl.u32 %v7627, 7
        %v7629 = vsub.s32 %v7626, %v7628
        %v7630 = vrot.slane %v6935, %v7629
        %v7632 = vunpack.c.l.s4 1966171168
        %v7633 = vunpack.c.0.s8 %v7632
        %v7634 = vlaneseq
        %v7635 = vshrl.u32 %v7634, 7
        %v7636 = vsub.s32 %v7633, %v7635
        %v7637 = vrot.slane %v7630, %v7636
        %v7639 = vunpack.c.l.s4 1966171168
        %v7640 = vunpack.c.0.s8 %v7639
        %v7641 = vlaneseq
        %v7642 = vshrl.u32 %v7641, 7
        %v7643 = vsub.s32 %v7640, %v7642
        %v7644 = vrot.slane %v6936, %v7643
        %v7646 = vunpack.c.l.s4 1966171168
        %v7647 = vunpack.c.0.s8 %v7646
        %v7648 = vlaneseq
        %v7649 = vshrl.u32 %v7648, 7
        %v7650 = vsub.s32 %v7647, %v7649
        %v7651 = vrot.slane %v7644, %v7650
        %v7653 = vunpack.c.l.s4 1966171168
        %v7654 = vunpack.c.0.s8 %v7653
        %v7655 = vlaneseq
        %v7656 = vshrl.u32 %v7655, 7
        %v7657 = vsub.s32 %v7654, %v7656
        %v7658 = vrot.slane %v6937, %v7657
        %v7660 = vunpack.c.l.s4 1966171168
        %v7661 = vunpack.c.0.s8 %v7660
        %v7662 = vlaneseq
        %v7663 = vshrl.u32 %v7662, 7
        %v7664 = vsub.s32 %v7661, %v7663
        %v7665 = vrot.slane %v7658, %v7664
        %v7667 = vunpack.c.l.s4 1966171168
        %v7668 = vunpack.c.0.s8 %v7667
        %v7669 = vlaneseq
        %v7670 = vshrl.u32 %v7669, 7
        %v7671 = vsub.s32 %v7668, %v7670
        %v7672 = vrot.slane %v6938, %v7671
        %v7674 = vunpack.c.l.s4 1966171168
        %v7675 = vunpack.c.0.s8 %v7674
        %v7676 = vlaneseq
        %v7677 = vshrl.u32 %v7676, 7
        %v7678 = vsub.s32 %v7675, %v7677
        %v7679 = vrot.slane %v7672, %v7678
        %v7681 = vunpack.c.l.s4 1966171168
        %v7682 = vunpack.c.0.s8 %v7681
        %v7683 = vlaneseq
        %v7684 = vshrl.u32 %v7683, 7
        %v7685 = vsub.s32 %v7682, %v7684
        %v7686 = vrot.slane %v6939, %v7685
        %v7688 = vunpack.c.l.s4 1966171168
        %v7689 = vunpack.c.0.s8 %v7688
        %v7690 = vlaneseq
        %v7691 = vshrl.u32 %v7690, 7
        %v7692 = vsub.s32 %v7689, %v7691
        %v7693 = vrot.slane %v7686, %v7692
        %v7695 = vunpack.c.l.s4 1966171168
        %v7696 = vunpack.c.0.s8 %v7695
        %v7697 = vlaneseq
        %v7698 = vshrl.u32 %v7697, 7
        %v7699 = vsub.s32 %v7696, %v7698
        %v7700 = vrot.slane %v6940, %v7699
        %v7702 = vunpack.c.l.s4 1966171168
        %v7703 = vunpack.c.0.s8 %v7702
        %v7704 = vlaneseq
        %v7705 = vshrl.u32 %v7704, 7
        %v7706 = vsub.s32 %v7703, %v7705
        %v7707 = vrot.slane %v7700, %v7706
        %v7709 = vunpack.c.l.s4 1966171168
        %v7710 = vunpack.c.0.s8 %v7709
        %v7711 = vlaneseq
        %v7712 = vshrl.u32 %v7711, 7
        %v7713 = vsub.s32 %v7710, %v7712
        %v7714 = vrot.slane %v6941, %v7713
        %v7716 = vunpack.c.l.s4 1966171168
        %v7717 = vunpack.c.0.s8 %v7716
        %v7718 = vlaneseq
        %v7719 = vshrl.u32 %v7718, 7
        %v7720 = vsub.s32 %v7717, %v7719
        %v7721 = vrot.slane %v7714, %v7720
        %v7723 = vunpack.c.l.s4 1966171168
        %v7724 = vunpack.c.0.s8 %v7723
        %v7725 = vlaneseq
        %v7726 = vshrl.u32 %v7725, 7
        %v7727 = vsub.s32 %v7724, %v7726
        %v7728 = vrot.slane %v6942, %v7727
        %v7730 = vunpack.c.l.s4 1966171168
        %v7731 = vunpack.c.0.s8 %v7730
        %v7732 = vlaneseq
        %v7733 = vshrl.u32 %v7732, 7
        %v7734 = vsub.s32 %v7731, %v7733
        %v7735 = vrot.slane %v7728, %v7734
        %v7737 = vunpack.c.l.s4 1966171168
        %v7738 = vunpack.c.0.s8 %v7737
        %v7739 = vlaneseq
        %v7740 = vshrl.u32 %v7739, 7
        %v7741 = vsub.s32 %v7738, %v7740
        %v7742 = vrot.slane %v6943, %v7741
        %v7744 = vunpack.c.l.s4 1966171168
        %v7745 = vunpack.c.0.s8 %v7744
        %v7746 = vlaneseq
        %v7747 = vshrl.u32 %v7746, 7
        %v7748 = vsub.s32 %v7745, %v7747
        %v7749 = vrot.slane %v7742, %v7748
        %v7751 = vunpack.c.l.s4 1966171168
        %v7752 = vunpack.c.0.s8 %v7751
        %v7753 = vlaneseq
        %v7754 = vshrl.u32 %v7753, 7
        %v7755 = vsub.s32 %v7752, %v7754
        %v7756 = vrot.slane %v6944, %v7755
        %v7758 = vunpack.c.l.s4 1966171168
        %v7759 = vunpack.c.0.s8 %v7758
        %v7760 = vlaneseq
        %v7761 = vshrl.u32 %v7760, 7
        %v7762 = vsub.s32 %v7759, %v7761
        %v7763 = vrot.slane %v7756, %v7762
        %v7765 = vunpack.c.l.s4 1966171168
        %v7766 = vunpack.c.0.s8 %v7765
        %v7767 = vlaneseq
        %v7768 = vshrl.u32 %v7767, 7
        %v7769 = vsub.s32 %v7766, %v7768
        %v7770 = vrot.slane %v6945, %v7769
        %v7772 = vunpack.c.l.s4 1966171168
        %v7773 = vunpack.c.0.s8 %v7772
        %v7774 = vlaneseq
        %v7775 = vshrl.u32 %v7774, 7
        %v7776 = vsub.s32 %v7773, %v7775
        %v7777 = vrot.slane %v7770, %v7776
        %v7779 = vunpack.c.l.s4 1966171168
        %v7780 = vunpack.c.0.s8 %v7779
        %v7781 = vlaneseq
        %v7782 = vshrl.u32 %v7781, 7
        %v7783 = vsub.s32 %v7780, %v7782
        %v7784 = vrot.slane %v6946, %v7783
        %v7786 = vunpack.c.l.s4 1966171168
        %v7787 = vunpack.c.0.s8 %v7786
        %v7788 = vlaneseq
        %v7789 = vshrl.u32 %v7788, 7
        %v7790 = vsub.s32 %v7787, %v7789
        %v7791 = vrot.slane %v7784, %v7790
        %v7793 = vunpack.c.l.s4 1966171168
        %v7794 = vunpack.c.0.s8 %v7793
        %v7795 = vlaneseq
        %v7796 = vshrl.u32 %v7795, 7
        %v7797 = vsub.s32 %v7794, %v7796
        %v7798 = vrot.slane %v6947, %v7797
        %v7800 = vunpack.c.l.s4 1966171168
        %v7801 = vunpack.c.0.s8 %v7800
        %v7802 = vlaneseq
        %v7803 = vshrl.u32 %v7802, 7
        %v7804 = vsub.s32 %v7801, %v7803
        %v7805 = vrot.slane %v7798, %v7804
        %v7807 = vunpack.c.l.s4 1966171168
        %v7808 = vunpack.c.0.s8 %v7807
        %v7809 = vlaneseq
        %v7810 = vshrl.u32 %v7809, 7
        %v7811 = vsub.s32 %v7808, %v7810
        %v7812 = vrot.slane %v6948, %v7811
        %v7814 = vunpack.c.l.s4 1966171168
        %v7815 = vunpack.c.0.s8 %v7814
        %v7816 = vlaneseq
        %v7817 = vshrl.u32 %v7816, 7
        %v7818 = vsub.s32 %v7815, %v7817
        %v7819 = vrot.slane %v7812, %v7818
        %v7821 = vunpack.c.l.s4 1966171168
        %v7822 = vunpack.c.0.s8 %v7821
        %v7823 = vlaneseq
        %v7824 = vshrl.u32 %v7823, 7
        %v7825 = vsub.s32 %v7822, %v7824
        %v7826 = vrot.slane %v6949, %v7825
        %v7828 = vunpack.c.l.s4 1966171168
        %v7829 = vunpack.c.0.s8 %v7828
        %v7830 = vlaneseq
        %v7831 = vshrl.u32 %v7830, 7
        %v7832 = vsub.s32 %v7829, %v7831
        %v7833 = vrot.slane %v7826, %v7832
        %v7835 = vunpack.c.l.s4 1966171168
        %v7836 = vunpack.c.0.s8 %v7835
        %v7837 = vlaneseq
        %v7838 = vshrl.u32 %v7837, 7
        %v7839 = vsub.s32 %v7836, %v7838
        %v7840 = vrot.slane %v6950, %v7839
        %v7842 = vunpack.c.l.s4 1966171168
        %v7843 = vunpack.c.0.s8 %v7842
        %v7844 = vlaneseq
        %v7845 = vshrl.u32 %v7844, 7
        %v7846 = vsub.s32 %v7843, %v7845
        %v7847 = vrot.slane %v7840, %v7846
        %v7849 = vunpack.c.l.s4 1966171168
        %v7850 = vunpack.c.0.s8 %v7849
        %v7851 = vlaneseq
        %v7852 = vshrl.u32 %v7851, 7
        %v7853 = vsub.s32 %v7850, %v7852
        %v7854 = vrot.slane %v6951, %v7853
        %v7856 = vunpack.c.l.s4 1966171168
        %v7857 = vunpack.c.0.s8 %v7856
        %v7858 = vlaneseq
        %v7859 = vshrl.u32 %v7858, 7
        %v7860 = vsub.s32 %v7857, %v7859
        %v7861 = vrot.slane %v7854, %v7860
        %v7863 = vunpack.c.l.s4 1966171168
        %v7864 = vunpack.c.0.s8 %v7863
        %v7865 = vlaneseq
        %v7866 = vshrl.u32 %v7865, 7
        %v7867 = vsub.s32 %v7864, %v7866
        %v7868 = vrot.slane %v6952, %v7867
        %v7870 = vunpack.c.l.s4 1966171168
        %v7871 = vunpack.c.0.s8 %v7870
        %v7872 = vlaneseq
        %v7873 = vshrl.u32 %v7872, 7
        %v7874 = vsub.s32 %v7871, %v7873
        %v7875 = vrot.slane %v7868, %v7874
        %v7877 = vunpack.c.l.s4 1966171168
        %v7878 = vunpack.c.0.s8 %v7877
        %v7879 = vlaneseq
        %v7880 = vshrl.u32 %v7879, 7
        %v7881 = vsub.s32 %v7878, %v7880
        %v7882 = vrot.slane %v6953, %v7881
        %v7884 = vunpack.c.l.s4 1966171168
        %v7885 = vunpack.c.0.s8 %v7884
        %v7886 = vlaneseq
        %v7887 = vshrl.u32 %v7886, 7
        %v7888 = vsub.s32 %v7885, %v7887
        %v7889 = vrot.slane %v7882, %v7888
        %v7891 = vunpack.c.l.s4 1966171168
        %v7892 = vunpack.c.0.s8 %v7891
        %v7893 = vlaneseq
        %v7894 = vshrl.u32 %v7893, 7
        %v7895 = vsub.s32 %v7892, %v7894
        %v7896 = vrot.slane %v6954, %v7895
        %v7898 = vunpack.c.l.s4 1966171168
        %v7899 = vunpack.c.0.s8 %v7898
        %v7900 = vlaneseq
        %v7901 = vshrl.u32 %v7900, 7
        %v7902 = vsub.s32 %v7899, %v7901
        %v7903 = vrot.slane %v7896, %v7902
        %v7905 = vunpack.c.l.s4 1966171168
        %v7906 = vunpack.c.0.s8 %v7905
        %v7907 = vlaneseq
        %v7908 = vshrl.u32 %v7907, 7
        %v7909 = vsub.s32 %v7906, %v7908
        %v7910 = vrot.slane %v6955, %v7909
        %v7912 = vunpack.c.l.s4 1966171168
        %v7913 = vunpack.c.0.s8 %v7912
        %v7914 = vlaneseq
        %v7915 = vshrl.u32 %v7914, 7
        %v7916 = vsub.s32 %v7913, %v7915
        %v7917 = vrot.slane %v7910, %v7916
        %v7918 = vunpack.c.l.b16 %v7035
        %v7919 = vunpack.c.l.b16 %v7049
        %v7920 = vunpack.c.l.b16 %v7063
        %v7921 = vunpack.c.l.b16 %v7077
        %v7922 = vunpack.c.l.b16 %v7091
        %v7923 = vunpack.c.l.b16 %v7105
        %v7924 = vunpack.c.l.b16 %v7119
        %v7925 = vunpack.c.l.b16 %v7133
        %v7926 = vunpack.c.l.b16 %v7147
        %v7927 = vunpack.c.l.b16 %v7161
        %v7928 = vunpack.c.l.b16 %v7175
        %v7929 = vunpack.c.l.b16 %v7189
        %v7930 = vunpack.c.l.b16 %v7203
        %v7931 = vunpack.c.l.b16 %v7217
        %v7932 = vunpack.c.l.b16 %v7231
        %v7933 = vunpack.c.l.b16 %v7245
        %v7934 = vunpack.c.l.b16 %v7259
        %v7935 = vunpack.c.l.b16 %v7273
        %v7936 = vunpack.c.l.b16 %v7287
        %v7937 = vunpack.c.l.b16 %v7301
        %v7938 = vunpack.c.l.b16 %v7315
        %v7939 = vunpack.c.l.b16 %v7329
        %v7940 = vunpack.c.l.b16 %v7343
        %v7941 = vunpack.c.l.b16 %v7357
        %v7942 = vunpack.c.l.b16 %v7371
        %v7943 = vunpack.c.l.b16 %v7385
        %v7944 = vunpack.c.l.b16 %v7399
        %v7945 = vunpack.c.l.b16 %v7413
        %v7946 = vunpack.c.l.b16 %v7427
        %v7947 = vunpack.c.l.b16 %v7441
        %v7948 = vunpack.c.l.b16 %v7455
        %v7949 = vunpack.c.l.b16 %v7469
        %v7950 = vunpack.c.l.b16 %v7483
        %v7951 = vunpack.c.l.b16 %v7497
        %v7952 = vunpack.c.l.b16 %v7511
        %v7953 = vunpack.c.l.b16 %v7525
        %v7954 = vunpack.c.l.b16 %v7539
        %v7955 = vunpack.c.l.b16 %v7553
        %v7956 = vunpack.c.l.b16 %v7567
        %v7957 = vunpack.c.l.b16 %v7581
        %v7958 = vunpack.c.l.b16 %v7595
        %v7959 = vunpack.c.l.b16 %v7609
        %v7960 = vunpack.c.l.b16 %v7623
        %v7961 = vunpack.c.l.b16 %v7637
        %v7962 = vunpack.c.l.b16 %v7651
        %v7963 = vunpack.c.l.b16 %v7665
        %v7964 = vunpack.c.l.b16 %v7679
        %v7965 = vunpack.c.l.b16 %v7693
        %v7966 = vunpack.c.l.b16 %v7707
        %v7967 = vunpack.c.l.b16 %v7721
        %v7968 = vunpack.c.l.b16 %v7735
        %v7969 = vunpack.c.l.b16 %v7749
        %v7970 = vunpack.c.l.b16 %v7763
        %v7971 = vunpack.c.l.b16 %v7777
        %v7972 = vunpack.c.l.b16 %v7791
        %v7973 = vunpack.c.l.b16 %v7805
        %v7974 = vunpack.c.l.b16 %v7819
        %v7975 = vunpack.c.l.b16 %v7833
        %v7976 = vunpack.c.l.b16 %v7847
        %v7977 = vunpack.c.l.b16 %v7861
        %v7978 = vunpack.c.l.b16 %v7875
        %v7979 = vunpack.c.l.b16 %v7889
        %v7980 = vunpack.c.l.b16 %v7903
        %v7981 = vunpack.c.l.b16 %v7917
        %v7982 = vrot.slane %v7919, 7
        %v7983 = vsel %vm1312, %v7982, %v7918
        %v7984 = vrot.slane %v7920, 6
        %v7985 = vsel %vm1315, %v7984, %v7983
        %v7986 = vrot.slane %v7921, 5
        %v7987 = vsel %vm1318, %v7986, %v7985
        %v7988 = vrot.slane %v7922, 4
        %v7989 = vsel %vm1321, %v7988, %v7987
        %v7990 = vrot.slane %v7923, 3
        %v7991 = vsel %vm1324, %v7990, %v7989
        %v7992 = vrot.slane %v7924, 2
        %v7993 = vsel %vm1327, %v7992, %v7991
        %v7994 = vrot.slane %v7925, 1
        %v7995 = vsel %vm1330, %v7994, %v7993
        %v7996 = vrot.slane %v7927, 7
        %v7997 = vsel %vm1312, %v7996, %v7926
        %v7998 = vrot.slane %v7928, 6
        %v7999 = vsel %vm1315, %v7998, %v7997
        %v8000 = vrot.slane %v7929, 5
        %v8001 = vsel %vm1318, %v8000, %v7999
        %v8002 = vrot.slane %v7930, 4
        %v8003 = vsel %vm1321, %v8002, %v8001
        %v8004 = vrot.slane %v7931, 3
        %v8005 = vsel %vm1324, %v8004, %v8003
        %v8006 = vrot.slane %v7932, 2
        %v8007 = vsel %vm1327, %v8006, %v8005
        %v8008 = vrot.slane %v7933, 1
        %v8009 = vsel %vm1330, %v8008, %v8007
        %v8010 = vrot.slane %v7935, 7
        %v8011 = vsel %vm1312, %v8010, %v7934
        %v8012 = vrot.slane %v7936, 6
        %v8013 = vsel %vm1315, %v8012, %v8011
        %v8014 = vrot.slane %v7937, 5
        %v8015 = vsel %vm1318, %v8014, %v8013
        %v8016 = vrot.slane %v7938, 4
        %v8017 = vsel %vm1321, %v8016, %v8015
        %v8018 = vrot.slane %v7939, 3
        %v8019 = vsel %vm1324, %v8018, %v8017
        %v8020 = vrot.slane %v7940, 2
        %v8021 = vsel %vm1327, %v8020, %v8019
        %v8022 = vrot.slane %v7941, 1
        %v8023 = vsel %vm1330, %v8022, %v8021
        %v8024 = vrot.slane %v7943, 7
        %v8025 = vsel %vm1312, %v8024, %v7942
        %v8026 = vrot.slane %v7944, 6
        %v8027 = vsel %vm1315, %v8026, %v8025
        %v8028 = vrot.slane %v7945, 5
        %v8029 = vsel %vm1318, %v8028, %v8027
        %v8030 = vrot.slane %v7946, 4
        %v8031 = vsel %vm1321, %v8030, %v8029
        %v8032 = vrot.slane %v7947, 3
        %v8033 = vsel %vm1324, %v8032, %v8031
        %v8034 = vrot.slane %v7948, 2
        %v8035 = vsel %vm1327, %v8034, %v8033
        %v8036 = vrot.slane %v7949, 1
        %v8037 = vsel %vm1330, %v8036, %v8035
        %v8038 = vrot.slane %v7951, 7
        %v8039 = vsel %vm1312, %v8038, %v7950
        %v8040 = vrot.slane %v7952, 6
        %v8041 = vsel %vm1315, %v8040, %v8039
        %v8042 = vrot.slane %v7953, 5
        %v8043 = vsel %vm1318, %v8042, %v8041
        %v8044 = vrot.slane %v7954, 4
        %v8045 = vsel %vm1321, %v8044, %v8043
        %v8046 = vrot.slane %v7955, 3
        %v8047 = vsel %vm1324, %v8046, %v8045
        %v8048 = vrot.slane %v7956, 2
        %v8049 = vsel %vm1327, %v8048, %v8047
        %v8050 = vrot.slane %v7957, 1
        %v8051 = vsel %vm1330, %v8050, %v8049
        %v8052 = vrot.slane %v7959, 7
        %v8053 = vsel %vm1312, %v8052, %v7958
        %v8054 = vrot.slane %v7960, 6
        %v8055 = vsel %vm1315, %v8054, %v8053
        %v8056 = vrot.slane %v7961, 5
        %v8057 = vsel %vm1318, %v8056, %v8055
        %v8058 = vrot.slane %v7962, 4
        %v8059 = vsel %vm1321, %v8058, %v8057
        %v8060 = vrot.slane %v7963, 3
        %v8061 = vsel %vm1324, %v8060, %v8059
        %v8062 = vrot.slane %v7964, 2
        %v8063 = vsel %vm1327, %v8062, %v8061
        %v8064 = vrot.slane %v7965, 1
        %v8065 = vsel %vm1330, %v8064, %v8063
        %v8066 = vrot.slane %v7967, 7
        %v8067 = vsel %vm1312, %v8066, %v7966
        %v8068 = vrot.slane %v7968, 6
        %v8069 = vsel %vm1315, %v8068, %v8067
        %v8070 = vrot.slane %v7969, 5
        %v8071 = vsel %vm1318, %v8070, %v8069
        %v8072 = vrot.slane %v7970, 4
        %v8073 = vsel %vm1321, %v8072, %v8071
        %v8074 = vrot.slane %v7971, 3
        %v8075 = vsel %vm1324, %v8074, %v8073
        %v8076 = vrot.slane %v7972, 2
        %v8077 = vsel %vm1327, %v8076, %v8075
        %v8078 = vrot.slane %v7973, 1
        %v8079 = vsel %vm1330, %v8078, %v8077
        %v8080 = vrot.slane %v7975, 7
        %v8081 = vsel %vm1312, %v8080, %v7974
        %v8082 = vrot.slane %v7976, 6
        %v8083 = vsel %vm1315, %v8082, %v8081
        %v8084 = vrot.slane %v7977, 5
        %v8085 = vsel %vm1318, %v8084, %v8083
        %v8086 = vrot.slane %v7978, 4
        %v8087 = vsel %vm1321, %v8086, %v8085
        %v8088 = vrot.slane %v7979, 3
        %v8089 = vsel %vm1324, %v8088, %v8087
        %v8090 = vrot.slane %v7980, 2
        %v8091 = vsel %vm1327, %v8090, %v8089
        %v8092 = vrot.slane %v7981, 1
        %v8093 = vsel %vm1330, %v8092, %v8091
        %v8094 = vpack.c.b16 %v8009, %v7995
        %v8095 = vpack.c.b16 %v8037, %v8023
        %v8096 = vpack.c.b16 %v8065, %v8051
        %v8097 = vpack.c.b16 %v8093, %v8079
        %v8099 = vsel %vm1434, %v8094, 0
        %v8102 = vsel %vm1434, %v8095, 0
        %v8105 = vsel %vm1434, %v8096, 0
        %v8108 = vsel %vm1434, %v8097, 0
        %v8111 = vsel %vm1447, %v6957, 0
        %8113 = vmatprep.subr.bf16.mxu0 0
        %8114 = vmatpush1.bf16.msra.mxu0 0
        %8115 = vmatprep.subr.bf16.mxu0 0
        %8116 = vmatpush1.bf16.msra.mxu0 0
        %8117 = vmatprep.subr.bf16.mxu0 0
        %8118 = vmatpush1.bf16.msra.mxu0 0
        %8119 = vmatprep.subr.bf16.mxu0 0
        %8120 = vmatpush1.bf16.msra.mxu0 0
        %8121 = vmatprep.subr.bf16.mxu0 0
        %8122 = vmatpush1.bf16.msra.mxu0 0
        %8123 = vmatprep.subr.bf16.mxu0 0
        %8124 = vmatpush1.bf16.msra.mxu0 0
        %8125 = vmatprep.subr.bf16.mxu0 0
        %8126 = vmatpush1.bf16.msra.mxu0 0
        %8127 = vmatprep.subr.bf16.mxu0 0
        %8128 = vmatpush1.bf16.msra.mxu0 %v8111
        %8129 = vmatprep.subr.bf16.mxu0 0
        %8130 = vmatpush2.bf16.msra.mxu0 0
        %8131 = vmatprep.subr.bf16.mxu0 0
        %8132 = vmatpush2.bf16.msra.mxu0 0
        %8133 = vmatprep.subr.bf16.mxu0 0
        %8134 = vmatpush2.bf16.msra.mxu0 0
        %8135 = vmatprep.subr.bf16.mxu0 0
        %8136 = vmatpush2.bf16.msra.mxu0 0
        %8137 = vmatprep.subr.bf16.mxu0 0
        %8138 = vmatpush2.bf16.msra.mxu0 0
        %8139 = vmatprep.subr.bf16.mxu0 0
        %8140 = vmatpush2.bf16.msra.mxu0 0
        %8141 = vmatprep.subr.bf16.mxu0 0
        %8142 = vmatpush2.bf16.msra.mxu0 0
        %8143 = vmatprep.subr.bf16.mxu0 0
        %8144 = vmatpush2.bf16.msra.mxu0 0
        %8145 = vmatprep.mubr.bf16.mxu0 0
        %8146 = vmatmul.mubr.bf16.gmra.mxu0 %v8099
        %v8147 = vpop.f32.mrf.mxu0
        %v8148 = vadd.f32 0.0, %v8147
        %v8149 = vpop.f32.mrf.mxu0
        %v8150 = vpop.f32.mrf.mxu0
        %v8151 = vadd.f32 0.0, %v8150
        %v8152 = vpop.f32.mrf.mxu0
        %8153 = vmatprep.mubr.bf16.mxu0 0
        %8154 = vmatmul.mubr.bf16.gmra.mxu0 %v8102
        %v8155 = vpop.f32.mrf.mxu0
        %v8156 = vadd.f32 0.0, %v8155
        %v8157 = vpop.f32.mrf.mxu0
        %v8158 = vpop.f32.mrf.mxu0
        %v8159 = vadd.f32 0.0, %v8158
        %v8160 = vpop.f32.mrf.mxu0
        %8161 = vmatprep.mubr.bf16.mxu0 0
        %8162 = vmatmul.mubr.bf16.gmra.mxu0 %v8105
        %v8163 = vpop.f32.mrf.mxu0
        %v8164 = vadd.f32 0.0, %v8163
        %v8165 = vpop.f32.mrf.mxu0
        %v8166 = vpop.f32.mrf.mxu0
        %v8167 = vadd.f32 0.0, %v8166
        %v8168 = vpop.f32.mrf.mxu0
        %8169 = vmatprep.mubr.bf16.mxu0 0
        %8170 = vmatmul.mubr.bf16.gmra.mxu0 %v8108
        %v8171 = vpop.f32.mrf.mxu0
        %v8172 = vadd.f32 0.0, %v8171
        %v8173 = vpop.f32.mrf.mxu0
        %v8174 = vpop.f32.mrf.mxu0
        %v8175 = vadd.f32 0.0, %v8174
        %v8176 = vpop.f32.mrf.mxu0
        %8177 = vdwg.mxu0
        %v8178 = vadd.f32 %v6883, %v8148
        %v8179 = vadd.f32 %v6884, %v8151
        %v8180 = vadd.f32 %v6885, %v8156
        %v8181 = vadd.f32 %v6886, %v8159
        %v8182 = vadd.f32 %v6887, %v8164
        %v8183 = vadd.f32 %v6888, %v8167
        %v8184 = vadd.f32 %v6889, %v8172
        %v8185 = vadd.f32 %v6890, %v8175
        %v8186 = vld [vmem:[%s6891] sm:$0x1]
        %v8187 = vld [vmem:[%s6891 + $0x1] sm:$0x1]
        %v8188 = vld [vmem:[%s6891 + $0x2] sm:$0x1]
        %v8189 = vld [vmem:[%s6891 + $0x3] sm:$0x1]
        %v8190 = vld [vmem:[%s6891 + $0x4] sm:$0x1]
        %v8191 = vld [vmem:[%s6891 + $0x5] sm:$0x1]
        %v8192 = vld [vmem:[%s6891 + $0x6] sm:$0x1]
        %v8193 = vld [vmem:[%s6891 + $0x7] sm:$0x1]
        %v8194 = vld [vmem:[%s6891 + $0x12] sm:$0x1]
        %v8195 = vld [vmem:[%s6891 + $0x13] sm:$0x1]
        %v8196 = vld [vmem:[%s6891 + $0x14] sm:$0x1]
        %v8197 = vld [vmem:[%s6891 + $0x15] sm:$0x1]
        %v8198 = vld [vmem:[%s6891 + $0x16] sm:$0x1]
        %v8199 = vld [vmem:[%s6891 + $0x17] sm:$0x1]
        %v8200 = vld [vmem:[%s6891 + $0x18] sm:$0x1]
        %v8201 = vld [vmem:[%s6891 + $0x19] sm:$0x1]
        %v8202 = vld [vmem:[%s6891 + $0x24] sm:$0x1]
        %v8203 = vld [vmem:[%s6891 + $0x25] sm:$0x1]
        %v8204 = vld [vmem:[%s6891 + $0x26] sm:$0x1]
        %v8205 = vld [vmem:[%s6891 + $0x27] sm:$0x1]
        %v8206 = vld [vmem:[%s6891 + $0x28] sm:$0x1]
        %v8207 = vld [vmem:[%s6891 + $0x29] sm:$0x1]
        %v8208 = vld [vmem:[%s6891 + $0x2a] sm:$0x1]
        %v8209 = vld [vmem:[%s6891 + $0x2b] sm:$0x1]
        %v8210 = vld [vmem:[%s6891 + $0x36] sm:$0x1]
        %v8211 = vld [vmem:[%s6891 + $0x37] sm:$0x1]
        %v8212 = vld [vmem:[%s6891 + $0x38] sm:$0x1]
        %v8213 = vld [vmem:[%s6891 + $0x39] sm:$0x1]
        %v8214 = vld [vmem:[%s6891 + $0x3a] sm:$0x1]
        %v8215 = vld [vmem:[%s6891 + $0x3b] sm:$0x1]
        %v8216 = vld [vmem:[%s6891 + $0x3c] sm:$0x1]
        %v8217 = vld [vmem:[%s6891 + $0x3d] sm:$0x1]
        %v8218 = vld [vmem:[%s6891 + $0x48] sm:$0x1]
        %v8219 = vld [vmem:[%s6891 + $0x49] sm:$0x1]
        %v8220 = vld [vmem:[%s6891 + $0x4a] sm:$0x1]
        %v8221 = vld [vmem:[%s6891 + $0x4b] sm:$0x1]
        %v8222 = vld [vmem:[%s6891 + $0x4c] sm:$0x1]
        %v8223 = vld [vmem:[%s6891 + $0x4d] sm:$0x1]
        %v8224 = vld [vmem:[%s6891 + $0x4e] sm:$0x1]
        %v8225 = vld [vmem:[%s6891 + $0x4f] sm:$0x1]
        %v8226 = vld [vmem:[%s6891 + $0x5a] sm:$0x1]
        %v8227 = vld [vmem:[%s6891 + $0x5b] sm:$0x1]
        %v8228 = vld [vmem:[%s6891 + $0x5c] sm:$0x1]
        %v8229 = vld [vmem:[%s6891 + $0x5d] sm:$0x1]
        %v8230 = vld [vmem:[%s6891 + $0x5e] sm:$0x1]
        %v8231 = vld [vmem:[%s6891 + $0x5f] sm:$0x1]
        %v8232 = vld [vmem:[%s6891 + $0x60] sm:$0x1]
        %v8233 = vld [vmem:[%s6891 + $0x61] sm:$0x1]
        %v8234 = vld [vmem:[%s6891 + $0x6c] sm:$0x1]
        %v8235 = vld [vmem:[%s6891 + $0x6d] sm:$0x1]
        %v8236 = vld [vmem:[%s6891 + $0x6e] sm:$0x1]
        %v8237 = vld [vmem:[%s6891 + $0x6f] sm:$0x1]
        %v8238 = vld [vmem:[%s6891 + $0x70] sm:$0x1]
        %v8239 = vld [vmem:[%s6891 + $0x71] sm:$0x1]
        %v8240 = vld [vmem:[%s6891 + $0x72] sm:$0x1]
        %v8241 = vld [vmem:[%s6891 + $0x73] sm:$0x1]
        %v8242 = vld [vmem:[%s6891 + $0x7e] sm:$0x1]
        %v8243 = vld [vmem:[%s6891 + $0x7f] sm:$0x1]
        %v8244 = vld [vmem:[%s6891 + $0x80] sm:$0x1]
        %v8245 = vld [vmem:[%s6891 + $0x81] sm:$0x1]
        %v8246 = vld [vmem:[%s6891 + $0x82] sm:$0x1]
        %v8247 = vld [vmem:[%s6891 + $0x83] sm:$0x1]
        %v8248 = vld [vmem:[%s6891 + $0x84] sm:$0x1]
        %v8249 = vld [vmem:[%s6891 + $0x85] sm:$0x1]
        %s8250 = scalar_lea.vmem %s214, 14
        %v8251 = vld [vmem:[%s8250] sm:$0x3]
        %v8317 = vunpack.c.l.s4 1966171168
        %v8318 = vunpack.c.0.s8 %v8317
        %v8319 = vlaneseq
        %v8320 = vshrl.u32 %v8319, 7
        %v8321 = vsub.s32 %v8318, %v8320
        %v8322 = vrot.slane %v8186, %v8321
        %v8324 = vunpack.c.l.s4 1966171168
        %v8325 = vunpack.c.0.s8 %v8324
        %v8326 = vlaneseq
        %v8327 = vshrl.u32 %v8326, 7
        %v8328 = vsub.s32 %v8325, %v8327
        %v8329 = vrot.slane %v8322, %v8328
        %v8331 = vunpack.c.l.s4 1966171168
        %v8332 = vunpack.c.0.s8 %v8331
        %v8333 = vlaneseq
        %v8334 = vshrl.u32 %v8333, 7
        %v8335 = vsub.s32 %v8332, %v8334
        %v8336 = vrot.slane %v8187, %v8335
        %v8338 = vunpack.c.l.s4 1966171168
        %v8339 = vunpack.c.0.s8 %v8338
        %v8340 = vlaneseq
        %v8341 = vshrl.u32 %v8340, 7
        %v8342 = vsub.s32 %v8339, %v8341
        %v8343 = vrot.slane %v8336, %v8342
        %v8345 = vunpack.c.l.s4 1966171168
        %v8346 = vunpack.c.0.s8 %v8345
        %v8347 = vlaneseq
        %v8348 = vshrl.u32 %v8347, 7
        %v8349 = vsub.s32 %v8346, %v8348
        %v8350 = vrot.slane %v8188, %v8349
        %v8352 = vunpack.c.l.s4 1966171168
        %v8353 = vunpack.c.0.s8 %v8352
        %v8354 = vlaneseq
        %v8355 = vshrl.u32 %v8354, 7
        %v8356 = vsub.s32 %v8353, %v8355
        %v8357 = vrot.slane %v8350, %v8356
        %v8359 = vunpack.c.l.s4 1966171168
        %v8360 = vunpack.c.0.s8 %v8359
        %v8361 = vlaneseq
        %v8362 = vshrl.u32 %v8361, 7
        %v8363 = vsub.s32 %v8360, %v8362
        %v8364 = vrot.slane %v8189, %v8363
        %v8366 = vunpack.c.l.s4 1966171168
        %v8367 = vunpack.c.0.s8 %v8366
        %v8368 = vlaneseq
        %v8369 = vshrl.u32 %v8368, 7
        %v8370 = vsub.s32 %v8367, %v8369
        %v8371 = vrot.slane %v8364, %v8370
        %v8373 = vunpack.c.l.s4 1966171168
        %v8374 = vunpack.c.0.s8 %v8373
        %v8375 = vlaneseq
        %v8376 = vshrl.u32 %v8375, 7
        %v8377 = vsub.s32 %v8374, %v8376
        %v8378 = vrot.slane %v8190, %v8377
        %v8380 = vunpack.c.l.s4 1966171168
        %v8381 = vunpack.c.0.s8 %v8380
        %v8382 = vlaneseq
        %v8383 = vshrl.u32 %v8382, 7
        %v8384 = vsub.s32 %v8381, %v8383
        %v8385 = vrot.slane %v8378, %v8384
        %v8387 = vunpack.c.l.s4 1966171168
        %v8388 = vunpack.c.0.s8 %v8387
        %v8389 = vlaneseq
        %v8390 = vshrl.u32 %v8389, 7
        %v8391 = vsub.s32 %v8388, %v8390
        %v8392 = vrot.slane %v8191, %v8391
        %v8394 = vunpack.c.l.s4 1966171168
        %v8395 = vunpack.c.0.s8 %v8394
        %v8396 = vlaneseq
        %v8397 = vshrl.u32 %v8396, 7
        %v8398 = vsub.s32 %v8395, %v8397
        %v8399 = vrot.slane %v8392, %v8398
        %v8401 = vunpack.c.l.s4 1966171168
        %v8402 = vunpack.c.0.s8 %v8401
        %v8403 = vlaneseq
        %v8404 = vshrl.u32 %v8403, 7
        %v8405 = vsub.s32 %v8402, %v8404
        %v8406 = vrot.slane %v8192, %v8405
        %v8408 = vunpack.c.l.s4 1966171168
        %v8409 = vunpack.c.0.s8 %v8408
        %v8410 = vlaneseq
        %v8411 = vshrl.u32 %v8410, 7
        %v8412 = vsub.s32 %v8409, %v8411
        %v8413 = vrot.slane %v8406, %v8412
        %v8415 = vunpack.c.l.s4 1966171168
        %v8416 = vunpack.c.0.s8 %v8415
        %v8417 = vlaneseq
        %v8418 = vshrl.u32 %v8417, 7
        %v8419 = vsub.s32 %v8416, %v8418
        %v8420 = vrot.slane %v8193, %v8419
        %v8422 = vunpack.c.l.s4 1966171168
        %v8423 = vunpack.c.0.s8 %v8422
        %v8424 = vlaneseq
        %v8425 = vshrl.u32 %v8424, 7
        %v8426 = vsub.s32 %v8423, %v8425
        %v8427 = vrot.slane %v8420, %v8426
        %v8429 = vunpack.c.l.s4 1966171168
        %v8430 = vunpack.c.0.s8 %v8429
        %v8431 = vlaneseq
        %v8432 = vshrl.u32 %v8431, 7
        %v8433 = vsub.s32 %v8430, %v8432
        %v8434 = vrot.slane %v8194, %v8433
        %v8436 = vunpack.c.l.s4 1966171168
        %v8437 = vunpack.c.0.s8 %v8436
        %v8438 = vlaneseq
        %v8439 = vshrl.u32 %v8438, 7
        %v8440 = vsub.s32 %v8437, %v8439
        %v8441 = vrot.slane %v8434, %v8440
        %v8443 = vunpack.c.l.s4 1966171168
        %v8444 = vunpack.c.0.s8 %v8443
        %v8445 = vlaneseq
        %v8446 = vshrl.u32 %v8445, 7
        %v8447 = vsub.s32 %v8444, %v8446
        %v8448 = vrot.slane %v8195, %v8447
        %v8450 = vunpack.c.l.s4 1966171168
        %v8451 = vunpack.c.0.s8 %v8450
        %v8452 = vlaneseq
        %v8453 = vshrl.u32 %v8452, 7
        %v8454 = vsub.s32 %v8451, %v8453
        %v8455 = vrot.slane %v8448, %v8454
        %v8457 = vunpack.c.l.s4 1966171168
        %v8458 = vunpack.c.0.s8 %v8457
        %v8459 = vlaneseq
        %v8460 = vshrl.u32 %v8459, 7
        %v8461 = vsub.s32 %v8458, %v8460
        %v8462 = vrot.slane %v8196, %v8461
        %v8464 = vunpack.c.l.s4 1966171168
        %v8465 = vunpack.c.0.s8 %v8464
        %v8466 = vlaneseq
        %v8467 = vshrl.u32 %v8466, 7
        %v8468 = vsub.s32 %v8465, %v8467
        %v8469 = vrot.slane %v8462, %v8468
        %v8471 = vunpack.c.l.s4 1966171168
        %v8472 = vunpack.c.0.s8 %v8471
        %v8473 = vlaneseq
        %v8474 = vshrl.u32 %v8473, 7
        %v8475 = vsub.s32 %v8472, %v8474
        %v8476 = vrot.slane %v8197, %v8475
        %v8478 = vunpack.c.l.s4 1966171168
        %v8479 = vunpack.c.0.s8 %v8478
        %v8480 = vlaneseq
        %v8481 = vshrl.u32 %v8480, 7
        %v8482 = vsub.s32 %v8479, %v8481
        %v8483 = vrot.slane %v8476, %v8482
        %v8485 = vunpack.c.l.s4 1966171168
        %v8486 = vunpack.c.0.s8 %v8485
        %v8487 = vlaneseq
        %v8488 = vshrl.u32 %v8487, 7
        %v8489 = vsub.s32 %v8486, %v8488
        %v8490 = vrot.slane %v8198, %v8489
        %v8492 = vunpack.c.l.s4 1966171168
        %v8493 = vunpack.c.0.s8 %v8492
        %v8494 = vlaneseq
        %v8495 = vshrl.u32 %v8494, 7
        %v8496 = vsub.s32 %v8493, %v8495
        %v8497 = vrot.slane %v8490, %v8496
        %v8499 = vunpack.c.l.s4 1966171168
        %v8500 = vunpack.c.0.s8 %v8499
        %v8501 = vlaneseq
        %v8502 = vshrl.u32 %v8501, 7
        %v8503 = vsub.s32 %v8500, %v8502
        %v8504 = vrot.slane %v8199, %v8503
        %v8506 = vunpack.c.l.s4 1966171168
        %v8507 = vunpack.c.0.s8 %v8506
        %v8508 = vlaneseq
        %v8509 = vshrl.u32 %v8508, 7
        %v8510 = vsub.s32 %v8507, %v8509
        %v8511 = vrot.slane %v8504, %v8510
        %v8513 = vunpack.c.l.s4 1966171168
        %v8514 = vunpack.c.0.s8 %v8513
        %v8515 = vlaneseq
        %v8516 = vshrl.u32 %v8515, 7
        %v8517 = vsub.s32 %v8514, %v8516
        %v8518 = vrot.slane %v8200, %v8517
        %v8520 = vunpack.c.l.s4 1966171168
        %v8521 = vunpack.c.0.s8 %v8520
        %v8522 = vlaneseq
        %v8523 = vshrl.u32 %v8522, 7
        %v8524 = vsub.s32 %v8521, %v8523
        %v8525 = vrot.slane %v8518, %v8524
        %v8527 = vunpack.c.l.s4 1966171168
        %v8528 = vunpack.c.0.s8 %v8527
        %v8529 = vlaneseq
        %v8530 = vshrl.u32 %v8529, 7
        %v8531 = vsub.s32 %v8528, %v8530
        %v8532 = vrot.slane %v8201, %v8531
        %v8534 = vunpack.c.l.s4 1966171168
        %v8535 = vunpack.c.0.s8 %v8534
        %v8536 = vlaneseq
        %v8537 = vshrl.u32 %v8536, 7
        %v8538 = vsub.s32 %v8535, %v8537
        %v8539 = vrot.slane %v8532, %v8538
        %v8541 = vunpack.c.l.s4 1966171168
        %v8542 = vunpack.c.0.s8 %v8541
        %v8543 = vlaneseq
        %v8544 = vshrl.u32 %v8543, 7
        %v8545 = vsub.s32 %v8542, %v8544
        %v8546 = vrot.slane %v8202, %v8545
        %v8548 = vunpack.c.l.s4 1966171168
        %v8549 = vunpack.c.0.s8 %v8548
        %v8550 = vlaneseq
        %v8551 = vshrl.u32 %v8550, 7
        %v8552 = vsub.s32 %v8549, %v8551
        %v8553 = vrot.slane %v8546, %v8552
        %v8555 = vunpack.c.l.s4 1966171168
        %v8556 = vunpack.c.0.s8 %v8555
        %v8557 = vlaneseq
        %v8558 = vshrl.u32 %v8557, 7
        %v8559 = vsub.s32 %v8556, %v8558
        %v8560 = vrot.slane %v8203, %v8559
        %v8562 = vunpack.c.l.s4 1966171168
        %v8563 = vunpack.c.0.s8 %v8562
        %v8564 = vlaneseq
        %v8565 = vshrl.u32 %v8564, 7
        %v8566 = vsub.s32 %v8563, %v8565
        %v8567 = vrot.slane %v8560, %v8566
        %v8569 = vunpack.c.l.s4 1966171168
        %v8570 = vunpack.c.0.s8 %v8569
        %v8571 = vlaneseq
        %v8572 = vshrl.u32 %v8571, 7
        %v8573 = vsub.s32 %v8570, %v8572
        %v8574 = vrot.slane %v8204, %v8573
        %v8576 = vunpack.c.l.s4 1966171168
        %v8577 = vunpack.c.0.s8 %v8576
        %v8578 = vlaneseq
        %v8579 = vshrl.u32 %v8578, 7
        %v8580 = vsub.s32 %v8577, %v8579
        %v8581 = vrot.slane %v8574, %v8580
        %v8583 = vunpack.c.l.s4 1966171168
        %v8584 = vunpack.c.0.s8 %v8583
        %v8585 = vlaneseq
        %v8586 = vshrl.u32 %v8585, 7
        %v8587 = vsub.s32 %v8584, %v8586
        %v8588 = vrot.slane %v8205, %v8587
        %v8590 = vunpack.c.l.s4 1966171168
        %v8591 = vunpack.c.0.s8 %v8590
        %v8592 = vlaneseq
        %v8593 = vshrl.u32 %v8592, 7
        %v8594 = vsub.s32 %v8591, %v8593
        %v8595 = vrot.slane %v8588, %v8594
        %v8597 = vunpack.c.l.s4 1966171168
        %v8598 = vunpack.c.0.s8 %v8597
        %v8599 = vlaneseq
        %v8600 = vshrl.u32 %v8599, 7
        %v8601 = vsub.s32 %v8598, %v8600
        %v8602 = vrot.slane %v8206, %v8601
        %v8604 = vunpack.c.l.s4 1966171168
        %v8605 = vunpack.c.0.s8 %v8604
        %v8606 = vlaneseq
        %v8607 = vshrl.u32 %v8606, 7
        %v8608 = vsub.s32 %v8605, %v8607
        %v8609 = vrot.slane %v8602, %v8608
        %v8611 = vunpack.c.l.s4 1966171168
        %v8612 = vunpack.c.0.s8 %v8611
        %v8613 = vlaneseq
        %v8614 = vshrl.u32 %v8613, 7
        %v8615 = vsub.s32 %v8612, %v8614
        %v8616 = vrot.slane %v8207, %v8615
        %v8618 = vunpack.c.l.s4 1966171168
        %v8619 = vunpack.c.0.s8 %v8618
        %v8620 = vlaneseq
        %v8621 = vshrl.u32 %v8620, 7
        %v8622 = vsub.s32 %v8619, %v8621
        %v8623 = vrot.slane %v8616, %v8622
        %v8625 = vunpack.c.l.s4 1966171168
        %v8626 = vunpack.c.0.s8 %v8625
        %v8627 = vlaneseq
        %v8628 = vshrl.u32 %v8627, 7
        %v8629 = vsub.s32 %v8626, %v8628
        %v8630 = vrot.slane %v8208, %v8629
        %v8632 = vunpack.c.l.s4 1966171168
        %v8633 = vunpack.c.0.s8 %v8632
        %v8634 = vlaneseq
        %v8635 = vshrl.u32 %v8634, 7
        %v8636 = vsub.s32 %v8633, %v8635
        %v8637 = vrot.slane %v8630, %v8636
        %v8639 = vunpack.c.l.s4 1966171168
        %v8640 = vunpack.c.0.s8 %v8639
        %v8641 = vlaneseq
        %v8642 = vshrl.u32 %v8641, 7
        %v8643 = vsub.s32 %v8640, %v8642
        %v8644 = vrot.slane %v8209, %v8643
        %v8646 = vunpack.c.l.s4 1966171168
        %v8647 = vunpack.c.0.s8 %v8646
        %v8648 = vlaneseq
        %v8649 = vshrl.u32 %v8648, 7
        %v8650 = vsub.s32 %v8647, %v8649
        %v8651 = vrot.slane %v8644, %v8650
        %v8653 = vunpack.c.l.s4 1966171168
        %v8654 = vunpack.c.0.s8 %v8653
        %v8655 = vlaneseq
        %v8656 = vshrl.u32 %v8655, 7
        %v8657 = vsub.s32 %v8654, %v8656
        %v8658 = vrot.slane %v8210, %v8657
        %v8660 = vunpack.c.l.s4 1966171168
        %v8661 = vunpack.c.0.s8 %v8660
        %v8662 = vlaneseq
        %v8663 = vshrl.u32 %v8662, 7
        %v8664 = vsub.s32 %v8661, %v8663
        %v8665 = vrot.slane %v8658, %v8664
        %v8667 = vunpack.c.l.s4 1966171168
        %v8668 = vunpack.c.0.s8 %v8667
        %v8669 = vlaneseq
        %v8670 = vshrl.u32 %v8669, 7
        %v8671 = vsub.s32 %v8668, %v8670
        %v8672 = vrot.slane %v8211, %v8671
        %v8674 = vunpack.c.l.s4 1966171168
        %v8675 = vunpack.c.0.s8 %v8674
        %v8676 = vlaneseq
        %v8677 = vshrl.u32 %v8676, 7
        %v8678 = vsub.s32 %v8675, %v8677
        %v8679 = vrot.slane %v8672, %v8678
        %v8681 = vunpack.c.l.s4 1966171168
        %v8682 = vunpack.c.0.s8 %v8681
        %v8683 = vlaneseq
        %v8684 = vshrl.u32 %v8683, 7
        %v8685 = vsub.s32 %v8682, %v8684
        %v8686 = vrot.slane %v8212, %v8685
        %v8688 = vunpack.c.l.s4 1966171168
        %v8689 = vunpack.c.0.s8 %v8688
        %v8690 = vlaneseq
        %v8691 = vshrl.u32 %v8690, 7
        %v8692 = vsub.s32 %v8689, %v8691
        %v8693 = vrot.slane %v8686, %v8692
        %v8695 = vunpack.c.l.s4 1966171168
        %v8696 = vunpack.c.0.s8 %v8695
        %v8697 = vlaneseq
        %v8698 = vshrl.u32 %v8697, 7
        %v8699 = vsub.s32 %v8696, %v8698
        %v8700 = vrot.slane %v8213, %v8699
        %v8702 = vunpack.c.l.s4 1966171168
        %v8703 = vunpack.c.0.s8 %v8702
        %v8704 = vlaneseq
        %v8705 = vshrl.u32 %v8704, 7
        %v8706 = vsub.s32 %v8703, %v8705
        %v8707 = vrot.slane %v8700, %v8706
        %v8709 = vunpack.c.l.s4 1966171168
        %v8710 = vunpack.c.0.s8 %v8709
        %v8711 = vlaneseq
        %v8712 = vshrl.u32 %v8711, 7
        %v8713 = vsub.s32 %v8710, %v8712
        %v8714 = vrot.slane %v8214, %v8713
        %v8716 = vunpack.c.l.s4 1966171168
        %v8717 = vunpack.c.0.s8 %v8716
        %v8718 = vlaneseq
        %v8719 = vshrl.u32 %v8718, 7
        %v8720 = vsub.s32 %v8717, %v8719
        %v8721 = vrot.slane %v8714, %v8720
        %v8723 = vunpack.c.l.s4 1966171168
        %v8724 = vunpack.c.0.s8 %v8723
        %v8725 = vlaneseq
        %v8726 = vshrl.u32 %v8725, 7
        %v8727 = vsub.s32 %v8724, %v8726
        %v8728 = vrot.slane %v8215, %v8727
        %v8730 = vunpack.c.l.s4 1966171168
        %v8731 = vunpack.c.0.s8 %v8730
        %v8732 = vlaneseq
        %v8733 = vshrl.u32 %v8732, 7
        %v8734 = vsub.s32 %v8731, %v8733
        %v8735 = vrot.slane %v8728, %v8734
        %v8737 = vunpack.c.l.s4 1966171168
        %v8738 = vunpack.c.0.s8 %v8737
        %v8739 = vlaneseq
        %v8740 = vshrl.u32 %v8739, 7
        %v8741 = vsub.s32 %v8738, %v8740
        %v8742 = vrot.slane %v8216, %v8741
        %v8744 = vunpack.c.l.s4 1966171168
        %v8745 = vunpack.c.0.s8 %v8744
        %v8746 = vlaneseq
        %v8747 = vshrl.u32 %v8746, 7
        %v8748 = vsub.s32 %v8745, %v8747
        %v8749 = vrot.slane %v8742, %v8748
        %v8751 = vunpack.c.l.s4 1966171168
        %v8752 = vunpack.c.0.s8 %v8751
        %v8753 = vlaneseq
        %v8754 = vshrl.u32 %v8753, 7
        %v8755 = vsub.s32 %v8752, %v8754
        %v8756 = vrot.slane %v8217, %v8755
        %v8758 = vunpack.c.l.s4 1966171168
        %v8759 = vunpack.c.0.s8 %v8758
        %v8760 = vlaneseq
        %v8761 = vshrl.u32 %v8760, 7
        %v8762 = vsub.s32 %v8759, %v8761
        %v8763 = vrot.slane %v8756, %v8762
        %v8765 = vunpack.c.l.s4 1966171168
        %v8766 = vunpack.c.0.s8 %v8765
        %v8767 = vlaneseq
        %v8768 = vshrl.u32 %v8767, 7
        %v8769 = vsub.s32 %v8766, %v8768
        %v8770 = vrot.slane %v8218, %v8769
        %v8772 = vunpack.c.l.s4 1966171168
        %v8773 = vunpack.c.0.s8 %v8772
        %v8774 = vlaneseq
        %v8775 = vshrl.u32 %v8774, 7
        %v8776 = vsub.s32 %v8773, %v8775
        %v8777 = vrot.slane %v8770, %v8776
        %v8779 = vunpack.c.l.s4 1966171168
        %v8780 = vunpack.c.0.s8 %v8779
        %v8781 = vlaneseq
        %v8782 = vshrl.u32 %v8781, 7
        %v8783 = vsub.s32 %v8780, %v8782
        %v8784 = vrot.slane %v8219, %v8783
        %v8786 = vunpack.c.l.s4 1966171168
        %v8787 = vunpack.c.0.s8 %v8786
        %v8788 = vlaneseq
        %v8789 = vshrl.u32 %v8788, 7
        %v8790 = vsub.s32 %v8787, %v8789
        %v8791 = vrot.slane %v8784, %v8790
        %v8793 = vunpack.c.l.s4 1966171168
        %v8794 = vunpack.c.0.s8 %v8793
        %v8795 = vlaneseq
        %v8796 = vshrl.u32 %v8795, 7
        %v8797 = vsub.s32 %v8794, %v8796
        %v8798 = vrot.slane %v8220, %v8797
        %v8800 = vunpack.c.l.s4 1966171168
        %v8801 = vunpack.c.0.s8 %v8800
        %v8802 = vlaneseq
        %v8803 = vshrl.u32 %v8802, 7
        %v8804 = vsub.s32 %v8801, %v8803
        %v8805 = vrot.slane %v8798, %v8804
        %v8807 = vunpack.c.l.s4 1966171168
        %v8808 = vunpack.c.0.s8 %v8807
        %v8809 = vlaneseq
        %v8810 = vshrl.u32 %v8809, 7
        %v8811 = vsub.s32 %v8808, %v8810
        %v8812 = vrot.slane %v8221, %v8811
        %v8814 = vunpack.c.l.s4 1966171168
        %v8815 = vunpack.c.0.s8 %v8814
        %v8816 = vlaneseq
        %v8817 = vshrl.u32 %v8816, 7
        %v8818 = vsub.s32 %v8815, %v8817
        %v8819 = vrot.slane %v8812, %v8818
        %v8821 = vunpack.c.l.s4 1966171168
        %v8822 = vunpack.c.0.s8 %v8821
        %v8823 = vlaneseq
        %v8824 = vshrl.u32 %v8823, 7
        %v8825 = vsub.s32 %v8822, %v8824
        %v8826 = vrot.slane %v8222, %v8825
        %v8828 = vunpack.c.l.s4 1966171168
        %v8829 = vunpack.c.0.s8 %v8828
        %v8830 = vlaneseq
        %v8831 = vshrl.u32 %v8830, 7
        %v8832 = vsub.s32 %v8829, %v8831
        %v8833 = vrot.slane %v8826, %v8832
        %v8835 = vunpack.c.l.s4 1966171168
        %v8836 = vunpack.c.0.s8 %v8835
        %v8837 = vlaneseq
        %v8838 = vshrl.u32 %v8837, 7
        %v8839 = vsub.s32 %v8836, %v8838
        %v8840 = vrot.slane %v8223, %v8839
        %v8842 = vunpack.c.l.s4 1966171168
        %v8843 = vunpack.c.0.s8 %v8842
        %v8844 = vlaneseq
        %v8845 = vshrl.u32 %v8844, 7
        %v8846 = vsub.s32 %v8843, %v8845
        %v8847 = vrot.slane %v8840, %v8846
        %v8849 = vunpack.c.l.s4 1966171168
        %v8850 = vunpack.c.0.s8 %v8849
        %v8851 = vlaneseq
        %v8852 = vshrl.u32 %v8851, 7
        %v8853 = vsub.s32 %v8850, %v8852
        %v8854 = vrot.slane %v8224, %v8853
        %v8856 = vunpack.c.l.s4 1966171168
        %v8857 = vunpack.c.0.s8 %v8856
        %v8858 = vlaneseq
        %v8859 = vshrl.u32 %v8858, 7
        %v8860 = vsub.s32 %v8857, %v8859
        %v8861 = vrot.slane %v8854, %v8860
        %v8863 = vunpack.c.l.s4 1966171168
        %v8864 = vunpack.c.0.s8 %v8863
        %v8865 = vlaneseq
        %v8866 = vshrl.u32 %v8865, 7
        %v8867 = vsub.s32 %v8864, %v8866
        %v8868 = vrot.slane %v8225, %v8867
        %v8870 = vunpack.c.l.s4 1966171168
        %v8871 = vunpack.c.0.s8 %v8870
        %v8872 = vlaneseq
        %v8873 = vshrl.u32 %v8872, 7
        %v8874 = vsub.s32 %v8871, %v8873
        %v8875 = vrot.slane %v8868, %v8874
        %v8877 = vunpack.c.l.s4 1966171168
        %v8878 = vunpack.c.0.s8 %v8877
        %v8879 = vlaneseq
        %v8880 = vshrl.u32 %v8879, 7
        %v8881 = vsub.s32 %v8878, %v8880
        %v8882 = vrot.slane %v8226, %v8881
        %v8884 = vunpack.c.l.s4 1966171168
        %v8885 = vunpack.c.0.s8 %v8884
        %v8886 = vlaneseq
        %v8887 = vshrl.u32 %v8886, 7
        %v8888 = vsub.s32 %v8885, %v8887
        %v8889 = vrot.slane %v8882, %v8888
        %v8891 = vunpack.c.l.s4 1966171168
        %v8892 = vunpack.c.0.s8 %v8891
        %v8893 = vlaneseq
        %v8894 = vshrl.u32 %v8893, 7
        %v8895 = vsub.s32 %v8892, %v8894
        %v8896 = vrot.slane %v8227, %v8895
        %v8898 = vunpack.c.l.s4 1966171168
        %v8899 = vunpack.c.0.s8 %v8898
        %v8900 = vlaneseq
        %v8901 = vshrl.u32 %v8900, 7
        %v8902 = vsub.s32 %v8899, %v8901
        %v8903 = vrot.slane %v8896, %v8902
        %v8905 = vunpack.c.l.s4 1966171168
        %v8906 = vunpack.c.0.s8 %v8905
        %v8907 = vlaneseq
        %v8908 = vshrl.u32 %v8907, 7
        %v8909 = vsub.s32 %v8906, %v8908
        %v8910 = vrot.slane %v8228, %v8909
        %v8912 = vunpack.c.l.s4 1966171168
        %v8913 = vunpack.c.0.s8 %v8912
        %v8914 = vlaneseq
        %v8915 = vshrl.u32 %v8914, 7
        %v8916 = vsub.s32 %v8913, %v8915
        %v8917 = vrot.slane %v8910, %v8916
        %v8919 = vunpack.c.l.s4 1966171168
        %v8920 = vunpack.c.0.s8 %v8919
        %v8921 = vlaneseq
        %v8922 = vshrl.u32 %v8921, 7
        %v8923 = vsub.s32 %v8920, %v8922
        %v8924 = vrot.slane %v8229, %v8923
        %v8926 = vunpack.c.l.s4 1966171168
        %v8927 = vunpack.c.0.s8 %v8926
        %v8928 = vlaneseq
        %v8929 = vshrl.u32 %v8928, 7
        %v8930 = vsub.s32 %v8927, %v8929
        %v8931 = vrot.slane %v8924, %v8930
        %v8933 = vunpack.c.l.s4 1966171168
        %v8934 = vunpack.c.0.s8 %v8933
        %v8935 = vlaneseq
        %v8936 = vshrl.u32 %v8935, 7
        %v8937 = vsub.s32 %v8934, %v8936
        %v8938 = vrot.slane %v8230, %v8937
        %v8940 = vunpack.c.l.s4 1966171168
        %v8941 = vunpack.c.0.s8 %v8940
        %v8942 = vlaneseq
        %v8943 = vshrl.u32 %v8942, 7
        %v8944 = vsub.s32 %v8941, %v8943
        %v8945 = vrot.slane %v8938, %v8944
        %v8947 = vunpack.c.l.s4 1966171168
        %v8948 = vunpack.c.0.s8 %v8947
        %v8949 = vlaneseq
        %v8950 = vshrl.u32 %v8949, 7
        %v8951 = vsub.s32 %v8948, %v8950
        %v8952 = vrot.slane %v8231, %v8951
        %v8954 = vunpack.c.l.s4 1966171168
        %v8955 = vunpack.c.0.s8 %v8954
        %v8956 = vlaneseq
        %v8957 = vshrl.u32 %v8956, 7
        %v8958 = vsub.s32 %v8955, %v8957
        %v8959 = vrot.slane %v8952, %v8958
        %v8961 = vunpack.c.l.s4 1966171168
        %v8962 = vunpack.c.0.s8 %v8961
        %v8963 = vlaneseq
        %v8964 = vshrl.u32 %v8963, 7
        %v8965 = vsub.s32 %v8962, %v8964
        %v8966 = vrot.slane %v8232, %v8965
        %v8968 = vunpack.c.l.s4 1966171168
        %v8969 = vunpack.c.0.s8 %v8968
        %v8970 = vlaneseq
        %v8971 = vshrl.u32 %v8970, 7
        %v8972 = vsub.s32 %v8969, %v8971
        %v8973 = vrot.slane %v8966, %v8972
        %v8975 = vunpack.c.l.s4 1966171168
        %v8976 = vunpack.c.0.s8 %v8975
        %v8977 = vlaneseq
        %v8978 = vshrl.u32 %v8977, 7
        %v8979 = vsub.s32 %v8976, %v8978
        %v8980 = vrot.slane %v8233, %v8979
        %v8982 = vunpack.c.l.s4 1966171168
        %v8983 = vunpack.c.0.s8 %v8982
        %v8984 = vlaneseq
        %v8985 = vshrl.u32 %v8984, 7
        %v8986 = vsub.s32 %v8983, %v8985
        %v8987 = vrot.slane %v8980, %v8986
        %v8989 = vunpack.c.l.s4 1966171168
        %v8990 = vunpack.c.0.s8 %v8989
        %v8991 = vlaneseq
        %v8992 = vshrl.u32 %v8991, 7
        %v8993 = vsub.s32 %v8990, %v8992
        %v8994 = vrot.slane %v8234, %v8993
        %v8996 = vunpack.c.l.s4 1966171168
        %v8997 = vunpack.c.0.s8 %v8996
        %v8998 = vlaneseq
        %v8999 = vshrl.u32 %v8998, 7
        %v9000 = vsub.s32 %v8997, %v8999
        %v9001 = vrot.slane %v8994, %v9000
        %v9003 = vunpack.c.l.s4 1966171168
        %v9004 = vunpack.c.0.s8 %v9003
        %v9005 = vlaneseq
        %v9006 = vshrl.u32 %v9005, 7
        %v9007 = vsub.s32 %v9004, %v9006
        %v9008 = vrot.slane %v8235, %v9007
        %v9010 = vunpack.c.l.s4 1966171168
        %v9011 = vunpack.c.0.s8 %v9010
        %v9012 = vlaneseq
        %v9013 = vshrl.u32 %v9012, 7
        %v9014 = vsub.s32 %v9011, %v9013
        %v9015 = vrot.slane %v9008, %v9014
        %v9017 = vunpack.c.l.s4 1966171168
        %v9018 = vunpack.c.0.s8 %v9017
        %v9019 = vlaneseq
        %v9020 = vshrl.u32 %v9019, 7
        %v9021 = vsub.s32 %v9018, %v9020
        %v9022 = vrot.slane %v8236, %v9021
        %v9024 = vunpack.c.l.s4 1966171168
        %v9025 = vunpack.c.0.s8 %v9024
        %v9026 = vlaneseq
        %v9027 = vshrl.u32 %v9026, 7
        %v9028 = vsub.s32 %v9025, %v9027
        %v9029 = vrot.slane %v9022, %v9028
        %v9031 = vunpack.c.l.s4 1966171168
        %v9032 = vunpack.c.0.s8 %v9031
        %v9033 = vlaneseq
        %v9034 = vshrl.u32 %v9033, 7
        %v9035 = vsub.s32 %v9032, %v9034
        %v9036 = vrot.slane %v8237, %v9035
        %v9038 = vunpack.c.l.s4 1966171168
        %v9039 = vunpack.c.0.s8 %v9038
        %v9040 = vlaneseq
        %v9041 = vshrl.u32 %v9040, 7
        %v9042 = vsub.s32 %v9039, %v9041
        %v9043 = vrot.slane %v9036, %v9042
        %v9045 = vunpack.c.l.s4 1966171168
        %v9046 = vunpack.c.0.s8 %v9045
        %v9047 = vlaneseq
        %v9048 = vshrl.u32 %v9047, 7
        %v9049 = vsub.s32 %v9046, %v9048
        %v9050 = vrot.slane %v8238, %v9049
        %v9052 = vunpack.c.l.s4 1966171168
        %v9053 = vunpack.c.0.s8 %v9052
        %v9054 = vlaneseq
        %v9055 = vshrl.u32 %v9054, 7
        %v9056 = vsub.s32 %v9053, %v9055
        %v9057 = vrot.slane %v9050, %v9056
        %v9059 = vunpack.c.l.s4 1966171168
        %v9060 = vunpack.c.0.s8 %v9059
        %v9061 = vlaneseq
        %v9062 = vshrl.u32 %v9061, 7
        %v9063 = vsub.s32 %v9060, %v9062
        %v9064 = vrot.slane %v8239, %v9063
        %v9066 = vunpack.c.l.s4 1966171168
        %v9067 = vunpack.c.0.s8 %v9066
        %v9068 = vlaneseq
        %v9069 = vshrl.u32 %v9068, 7
        %v9070 = vsub.s32 %v9067, %v9069
        %v9071 = vrot.slane %v9064, %v9070
        %v9073 = vunpack.c.l.s4 1966171168
        %v9074 = vunpack.c.0.s8 %v9073
        %v9075 = vlaneseq
        %v9076 = vshrl.u32 %v9075, 7
        %v9077 = vsub.s32 %v9074, %v9076
        %v9078 = vrot.slane %v8240, %v9077
        %v9080 = vunpack.c.l.s4 1966171168
        %v9081 = vunpack.c.0.s8 %v9080
        %v9082 = vlaneseq
        %v9083 = vshrl.u32 %v9082, 7
        %v9084 = vsub.s32 %v9081, %v9083
        %v9085 = vrot.slane %v9078, %v9084
        %v9087 = vunpack.c.l.s4 1966171168
        %v9088 = vunpack.c.0.s8 %v9087
        %v9089 = vlaneseq
        %v9090 = vshrl.u32 %v9089, 7
        %v9091 = vsub.s32 %v9088, %v9090
        %v9092 = vrot.slane %v8241, %v9091
        %v9094 = vunpack.c.l.s4 1966171168
        %v9095 = vunpack.c.0.s8 %v9094
        %v9096 = vlaneseq
        %v9097 = vshrl.u32 %v9096, 7
        %v9098 = vsub.s32 %v9095, %v9097
        %v9099 = vrot.slane %v9092, %v9098
        %v9101 = vunpack.c.l.s4 1966171168
        %v9102 = vunpack.c.0.s8 %v9101
        %v9103 = vlaneseq
        %v9104 = vshrl.u32 %v9103, 7
        %v9105 = vsub.s32 %v9102, %v9104
        %v9106 = vrot.slane %v8242, %v9105
        %v9108 = vunpack.c.l.s4 1966171168
        %v9109 = vunpack.c.0.s8 %v9108
        %v9110 = vlaneseq
        %v9111 = vshrl.u32 %v9110, 7
        %v9112 = vsub.s32 %v9109, %v9111
        %v9113 = vrot.slane %v9106, %v9112
        %v9115 = vunpack.c.l.s4 1966171168
        %v9116 = vunpack.c.0.s8 %v9115
        %v9117 = vlaneseq
        %v9118 = vshrl.u32 %v9117, 7
        %v9119 = vsub.s32 %v9116, %v9118
        %v9120 = vrot.slane %v8243, %v9119
        %v9122 = vunpack.c.l.s4 1966171168
        %v9123 = vunpack.c.0.s8 %v9122
        %v9124 = vlaneseq
        %v9125 = vshrl.u32 %v9124, 7
        %v9126 = vsub.s32 %v9123, %v9125
        %v9127 = vrot.slane %v9120, %v9126
        %v9129 = vunpack.c.l.s4 1966171168
        %v9130 = vunpack.c.0.s8 %v9129
        %v9131 = vlaneseq
        %v9132 = vshrl.u32 %v9131, 7
        %v9133 = vsub.s32 %v9130, %v9132
        %v9134 = vrot.slane %v8244, %v9133
        %v9136 = vunpack.c.l.s4 1966171168
        %v9137 = vunpack.c.0.s8 %v9136
        %v9138 = vlaneseq
        %v9139 = vshrl.u32 %v9138, 7
        %v9140 = vsub.s32 %v9137, %v9139
        %v9141 = vrot.slane %v9134, %v9140
        %v9143 = vunpack.c.l.s4 1966171168
        %v9144 = vunpack.c.0.s8 %v9143
        %v9145 = vlaneseq
        %v9146 = vshrl.u32 %v9145, 7
        %v9147 = vsub.s32 %v9144, %v9146
        %v9148 = vrot.slane %v8245, %v9147
        %v9150 = vunpack.c.l.s4 1966171168
        %v9151 = vunpack.c.0.s8 %v9150
        %v9152 = vlaneseq
        %v9153 = vshrl.u32 %v9152, 7
        %v9154 = vsub.s32 %v9151, %v9153
        %v9155 = vrot.slane %v9148, %v9154
        %v9157 = vunpack.c.l.s4 1966171168
        %v9158 = vunpack.c.0.s8 %v9157
        %v9159 = vlaneseq
        %v9160 = vshrl.u32 %v9159, 7
        %v9161 = vsub.s32 %v9158, %v9160
        %v9162 = vrot.slane %v8246, %v9161
        %v9164 = vunpack.c.l.s4 1966171168
        %v9165 = vunpack.c.0.s8 %v9164
        %v9166 = vlaneseq
        %v9167 = vshrl.u32 %v9166, 7
        %v9168 = vsub.s32 %v9165, %v9167
        %v9169 = vrot.slane %v9162, %v9168
        %v9171 = vunpack.c.l.s4 1966171168
        %v9172 = vunpack.c.0.s8 %v9171
        %v9173 = vlaneseq
        %v9174 = vshrl.u32 %v9173, 7
        %v9175 = vsub.s32 %v9172, %v9174
        %v9176 = vrot.slane %v8247, %v9175
        %v9178 = vunpack.c.l.s4 1966171168
        %v9179 = vunpack.c.0.s8 %v9178
        %v9180 = vlaneseq
        %v9181 = vshrl.u32 %v9180, 7
        %v9182 = vsub.s32 %v9179, %v9181
        %v9183 = vrot.slane %v9176, %v9182
        %v9185 = vunpack.c.l.s4 1966171168
        %v9186 = vunpack.c.0.s8 %v9185
        %v9187 = vlaneseq
        %v9188 = vshrl.u32 %v9187, 7
        %v9189 = vsub.s32 %v9186, %v9188
        %v9190 = vrot.slane %v8248, %v9189
        %v9192 = vunpack.c.l.s4 1966171168
        %v9193 = vunpack.c.0.s8 %v9192
        %v9194 = vlaneseq
        %v9195 = vshrl.u32 %v9194, 7
        %v9196 = vsub.s32 %v9193, %v9195
        %v9197 = vrot.slane %v9190, %v9196
        %v9199 = vunpack.c.l.s4 1966171168
        %v9200 = vunpack.c.0.s8 %v9199
        %v9201 = vlaneseq
        %v9202 = vshrl.u32 %v9201, 7
        %v9203 = vsub.s32 %v9200, %v9202
        %v9204 = vrot.slane %v8249, %v9203
        %v9206 = vunpack.c.l.s4 1966171168
        %v9207 = vunpack.c.0.s8 %v9206
        %v9208 = vlaneseq
        %v9209 = vshrl.u32 %v9208, 7
        %v9210 = vsub.s32 %v9207, %v9209
        %v9211 = vrot.slane %v9204, %v9210
        %v9212 = vunpack.c.l.b16 %v8329
        %v9213 = vunpack.c.l.b16 %v8343
        %v9214 = vunpack.c.l.b16 %v8357
        %v9215 = vunpack.c.l.b16 %v8371
        %v9216 = vunpack.c.l.b16 %v8385
        %v9217 = vunpack.c.l.b16 %v8399
        %v9218 = vunpack.c.l.b16 %v8413
        %v9219 = vunpack.c.l.b16 %v8427
        %v9220 = vunpack.c.l.b16 %v8441
        %v9221 = vunpack.c.l.b16 %v8455
        %v9222 = vunpack.c.l.b16 %v8469
        %v9223 = vunpack.c.l.b16 %v8483
        %v9224 = vunpack.c.l.b16 %v8497
        %v9225 = vunpack.c.l.b16 %v8511
        %v9226 = vunpack.c.l.b16 %v8525
        %v9227 = vunpack.c.l.b16 %v8539
        %v9228 = vunpack.c.l.b16 %v8553
        %v9229 = vunpack.c.l.b16 %v8567
        %v9230 = vunpack.c.l.b16 %v8581
        %v9231 = vunpack.c.l.b16 %v8595
        %v9232 = vunpack.c.l.b16 %v8609
        %v9233 = vunpack.c.l.b16 %v8623
        %v9234 = vunpack.c.l.b16 %v8637
        %v9235 = vunpack.c.l.b16 %v8651
        %v9236 = vunpack.c.l.b16 %v8665
        %v9237 = vunpack.c.l.b16 %v8679
        %v9238 = vunpack.c.l.b16 %v8693
        %v9239 = vunpack.c.l.b16 %v8707
        %v9240 = vunpack.c.l.b16 %v8721
        %v9241 = vunpack.c.l.b16 %v8735
        %v9242 = vunpack.c.l.b16 %v8749
        %v9243 = vunpack.c.l.b16 %v8763
        %v9244 = vunpack.c.l.b16 %v8777
        %v9245 = vunpack.c.l.b16 %v8791
        %v9246 = vunpack.c.l.b16 %v8805
        %v9247 = vunpack.c.l.b16 %v8819
        %v9248 = vunpack.c.l.b16 %v8833
        %v9249 = vunpack.c.l.b16 %v8847
        %v9250 = vunpack.c.l.b16 %v8861
        %v9251 = vunpack.c.l.b16 %v8875
        %v9252 = vunpack.c.l.b16 %v8889
        %v9253 = vunpack.c.l.b16 %v8903
        %v9254 = vunpack.c.l.b16 %v8917
        %v9255 = vunpack.c.l.b16 %v8931
        %v9256 = vunpack.c.l.b16 %v8945
        %v9257 = vunpack.c.l.b16 %v8959
        %v9258 = vunpack.c.l.b16 %v8973
        %v9259 = vunpack.c.l.b16 %v8987
        %v9260 = vunpack.c.l.b16 %v9001
        %v9261 = vunpack.c.l.b16 %v9015
        %v9262 = vunpack.c.l.b16 %v9029
        %v9263 = vunpack.c.l.b16 %v9043
        %v9264 = vunpack.c.l.b16 %v9057
        %v9265 = vunpack.c.l.b16 %v9071
        %v9266 = vunpack.c.l.b16 %v9085
        %v9267 = vunpack.c.l.b16 %v9099
        %v9268 = vunpack.c.l.b16 %v9113
        %v9269 = vunpack.c.l.b16 %v9127
        %v9270 = vunpack.c.l.b16 %v9141
        %v9271 = vunpack.c.l.b16 %v9155
        %v9272 = vunpack.c.l.b16 %v9169
        %v9273 = vunpack.c.l.b16 %v9183
        %v9274 = vunpack.c.l.b16 %v9197
        %v9275 = vunpack.c.l.b16 %v9211
        %v9276 = vrot.slane %v9212, 1
        %v9277 = vsel %vm1312, %v9213, %v9276
        %v9278 = vrot.slane %v9214, 7
        %v9279 = vsel %vm1315, %v9278, %v9277
        %v9280 = vrot.slane %v9215, 6
        %v9281 = vsel %vm1318, %v9280, %v9279
        %v9282 = vrot.slane %v9216, 5
        %v9283 = vsel %vm1321, %v9282, %v9281
        %v9284 = vrot.slane %v9217, 4
        %v9285 = vsel %vm1324, %v9284, %v9283
        %v9286 = vrot.slane %v9218, 3
        %v9287 = vsel %vm1327, %v9286, %v9285
        %v9288 = vrot.slane %v9219, 2
        %v9289 = vsel %vm1330, %v9288, %v9287
        %v9290 = vrot.slane %v9220, 1
        %v9291 = vsel %vm1312, %v9221, %v9290
        %v9292 = vrot.slane %v9222, 7
        %v9293 = vsel %vm1315, %v9292, %v9291
        %v9294 = vrot.slane %v9223, 6
        %v9295 = vsel %vm1318, %v9294, %v9293
        %v9296 = vrot.slane %v9224, 5
        %v9297 = vsel %vm1321, %v9296, %v9295
        %v9298 = vrot.slane %v9225, 4
        %v9299 = vsel %vm1324, %v9298, %v9297
        %v9300 = vrot.slane %v9226, 3
        %v9301 = vsel %vm1327, %v9300, %v9299
        %v9302 = vrot.slane %v9227, 2
        %v9303 = vsel %vm1330, %v9302, %v9301
        %v9304 = vrot.slane %v9228, 1
        %v9305 = vsel %vm1312, %v9229, %v9304
        %v9306 = vrot.slane %v9230, 7
        %v9307 = vsel %vm1315, %v9306, %v9305
        %v9308 = vrot.slane %v9231, 6
        %v9309 = vsel %vm1318, %v9308, %v9307
        %v9310 = vrot.slane %v9232, 5
        %v9311 = vsel %vm1321, %v9310, %v9309
        %v9312 = vrot.slane %v9233, 4
        %v9313 = vsel %vm1324, %v9312, %v9311
        %v9314 = vrot.slane %v9234, 3
        %v9315 = vsel %vm1327, %v9314, %v9313
        %v9316 = vrot.slane %v9235, 2
        %v9317 = vsel %vm1330, %v9316, %v9315
        %v9318 = vrot.slane %v9236, 1
        %v9319 = vsel %vm1312, %v9237, %v9318
        %v9320 = vrot.slane %v9238, 7
        %v9321 = vsel %vm1315, %v9320, %v9319
        %v9322 = vrot.slane %v9239, 6
        %v9323 = vsel %vm1318, %v9322, %v9321
        %v9324 = vrot.slane %v9240, 5
        %v9325 = vsel %vm1321, %v9324, %v9323
        %v9326 = vrot.slane %v9241, 4
        %v9327 = vsel %vm1324, %v9326, %v9325
        %v9328 = vrot.slane %v9242, 3
        %v9329 = vsel %vm1327, %v9328, %v9327
        %v9330 = vrot.slane %v9243, 2
        %v9331 = vsel %vm1330, %v9330, %v9329
        %v9332 = vrot.slane %v9244, 1
        %v9333 = vsel %vm1312, %v9245, %v9332
        %v9334 = vrot.slane %v9246, 7
        %v9335 = vsel %vm1315, %v9334, %v9333
        %v9336 = vrot.slane %v9247, 6
        %v9337 = vsel %vm1318, %v9336, %v9335
        %v9338 = vrot.slane %v9248, 5
        %v9339 = vsel %vm1321, %v9338, %v9337
        %v9340 = vrot.slane %v9249, 4
        %v9341 = vsel %vm1324, %v9340, %v9339
        %v9342 = vrot.slane %v9250, 3
        %v9343 = vsel %vm1327, %v9342, %v9341
        %v9344 = vrot.slane %v9251, 2
        %v9345 = vsel %vm1330, %v9344, %v9343
        %v9346 = vrot.slane %v9252, 1
        %v9347 = vsel %vm1312, %v9253, %v9346
        %v9348 = vrot.slane %v9254, 7
        %v9349 = vsel %vm1315, %v9348, %v9347
        %v9350 = vrot.slane %v9255, 6
        %v9351 = vsel %vm1318, %v9350, %v9349
        %v9352 = vrot.slane %v9256, 5
        %v9353 = vsel %vm1321, %v9352, %v9351
        %v9354 = vrot.slane %v9257, 4
        %v9355 = vsel %vm1324, %v9354, %v9353
        %v9356 = vrot.slane %v9258, 3
        %v9357 = vsel %vm1327, %v9356, %v9355
        %v9358 = vrot.slane %v9259, 2
        %v9359 = vsel %vm1330, %v9358, %v9357
        %v9360 = vrot.slane %v9260, 1
        %v9361 = vsel %vm1312, %v9261, %v9360
        %v9362 = vrot.slane %v9262, 7
        %v9363 = vsel %vm1315, %v9362, %v9361
        %v9364 = vrot.slane %v9263, 6
        %v9365 = vsel %vm1318, %v9364, %v9363
        %v9366 = vrot.slane %v9264, 5
        %v9367 = vsel %vm1321, %v9366, %v9365
        %v9368 = vrot.slane %v9265, 4
        %v9369 = vsel %vm1324, %v9368, %v9367
        %v9370 = vrot.slane %v9266, 3
        %v9371 = vsel %vm1327, %v9370, %v9369
        %v9372 = vrot.slane %v9267, 2
        %v9373 = vsel %vm1330, %v9372, %v9371
        %v9374 = vrot.slane %v9268, 1
        %v9375 = vsel %vm1312, %v9269, %v9374
        %v9376 = vrot.slane %v9270, 7
        %v9377 = vsel %vm1315, %v9376, %v9375
        %v9378 = vrot.slane %v9271, 6
        %v9379 = vsel %vm1318, %v9378, %v9377
        %v9380 = vrot.slane %v9272, 5
        %v9381 = vsel %vm1321, %v9380, %v9379
        %v9382 = vrot.slane %v9273, 4
        %v9383 = vsel %vm1324, %v9382, %v9381
        %v9384 = vrot.slane %v9274, 3
        %v9385 = vsel %vm1327, %v9384, %v9383
        %v9386 = vrot.slane %v9275, 2
        %v9387 = vsel %vm1330, %v9386, %v9385
        %v9388 = vpack.c.b16 %v9303, %v9289
        %v9389 = vpack.c.b16 %v9331, %v9317
        %v9390 = vpack.c.b16 %v9359, %v9345
        %v9391 = vpack.c.b16 %v9387, %v9373
        %v9393 = vsel %vm1434, %v9388, 0
        %v9396 = vsel %vm1434, %v9389, 0
        %v9399 = vsel %vm1434, %v9390, 0
        %v9402 = vsel %vm1434, %v9391, 0
        %v9405 = vsel %vm1447, %v8251, 0
        %9407 = vmatprep.subr.bf16.mxu0 0
        %9408 = vmatpush1.bf16.msra.mxu0 0
        %9409 = vmatprep.subr.bf16.mxu0 0
        %9410 = vmatpush1.bf16.msra.mxu0 0
        %9411 = vmatprep.subr.bf16.mxu0 0
        %9412 = vmatpush1.bf16.msra.mxu0 0
        %9413 = vmatprep.subr.bf16.mxu0 0
        %9414 = vmatpush1.bf16.msra.mxu0 0
        %9415 = vmatprep.subr.bf16.mxu0 0
        %9416 = vmatpush1.bf16.msra.mxu0 0
        %9417 = vmatprep.subr.bf16.mxu0 0
        %9418 = vmatpush1.bf16.msra.mxu0 0
        %9419 = vmatprep.subr.bf16.mxu0 0
        %9420 = vmatpush1.bf16.msra.mxu0 0
        %9421 = vmatprep.subr.bf16.mxu0 0
        %9422 = vmatpush1.bf16.msra.mxu0 %v9405
        %9423 = vmatprep.subr.bf16.mxu0 0
        %9424 = vmatpush2.bf16.msra.mxu0 0
        %9425 = vmatprep.subr.bf16.mxu0 0
        %9426 = vmatpush2.bf16.msra.mxu0 0
        %9427 = vmatprep.subr.bf16.mxu0 0
        %9428 = vmatpush2.bf16.msra.mxu0 0
        %9429 = vmatprep.subr.bf16.mxu0 0
        %9430 = vmatpush2.bf16.msra.mxu0 0
        %9431 = vmatprep.subr.bf16.mxu0 0
        %9432 = vmatpush2.bf16.msra.mxu0 0
        %9433 = vmatprep.subr.bf16.mxu0 0
        %9434 = vmatpush2.bf16.msra.mxu0 0
        %9435 = vmatprep.subr.bf16.mxu0 0
        %9436 = vmatpush2.bf16.msra.mxu0 0
        %9437 = vmatprep.subr.bf16.mxu0 0
        %9438 = vmatpush2.bf16.msra.mxu0 0
        %9439 = vmatprep.mubr.bf16.mxu0 0
        %9440 = vmatmul.mubr.bf16.gmra.mxu0 %v9393
        %v9441 = vpop.f32.mrf.mxu0
        %v9442 = vadd.f32 0.0, %v9441
        %v9443 = vpop.f32.mrf.mxu0
        %v9444 = vpop.f32.mrf.mxu0
        %v9445 = vadd.f32 0.0, %v9444
        %v9446 = vpop.f32.mrf.mxu0
        %9447 = vmatprep.mubr.bf16.mxu0 0
        %9448 = vmatmul.mubr.bf16.gmra.mxu0 %v9396
        %v9449 = vpop.f32.mrf.mxu0
        %v9450 = vadd.f32 0.0, %v9449
        %v9451 = vpop.f32.mrf.mxu0
        %v9452 = vpop.f32.mrf.mxu0
        %v9453 = vadd.f32 0.0, %v9452
        %v9454 = vpop.f32.mrf.mxu0
        %9455 = vmatprep.mubr.bf16.mxu0 0
        %9456 = vmatmul.mubr.bf16.gmra.mxu0 %v9399
        %v9457 = vpop.f32.mrf.mxu0
        %v9458 = vadd.f32 0.0, %v9457
        %v9459 = vpop.f32.mrf.mxu0
        %v9460 = vpop.f32.mrf.mxu0
        %v9461 = vadd.f32 0.0, %v9460
        %v9462 = vpop.f32.mrf.mxu0
        %9463 = vmatprep.mubr.bf16.mxu0 0
        %9464 = vmatmul.mubr.bf16.gmra.mxu0 %v9402
        %v9465 = vpop.f32.mrf.mxu0
        %v9466 = vadd.f32 0.0, %v9465
        %v9467 = vpop.f32.mrf.mxu0
        %v9468 = vpop.f32.mrf.mxu0
        %v9469 = vadd.f32 0.0, %v9468
        %v9470 = vpop.f32.mrf.mxu0
        %9471 = vdwg.mxu0
        %v9472 = vadd.f32 %v8178, %v9442
        %v9473 = vadd.f32 %v8179, %v9445
        %v9474 = vadd.f32 %v8180, %v9450
        %v9475 = vadd.f32 %v8181, %v9453
        %v9476 = vadd.f32 %v8182, %v9458
        %v9477 = vadd.f32 %v8183, %v9461
        %v9478 = vadd.f32 %v8184, %v9466
        %v9479 = vadd.f32 %v8185, %v9469
        %s9480 = scalar_lea.vmem %s209, 19
        %v9481 = vld [vmem:[%s9480] sm:$0x1]
        %v9482 = vld [vmem:[%s9480 + $0x1] sm:$0x1]
        %v9483 = vld [vmem:[%s9480 + $0x2] sm:$0x1]
        %v9484 = vld [vmem:[%s9480 + $0x3] sm:$0x1]
        %v9485 = vld [vmem:[%s9480 + $0x4] sm:$0x1]
        %v9486 = vld [vmem:[%s9480 + $0x5] sm:$0x1]
        %v9487 = vld [vmem:[%s9480 + $0x6] sm:$0x1]
        %v9488 = vld [vmem:[%s9480 + $0x7] sm:$0x1]
        %v9489 = vld [vmem:[%s9480 + $0x12] sm:$0x1]
        %v9490 = vld [vmem:[%s9480 + $0x13] sm:$0x1]
        %v9491 = vld [vmem:[%s9480 + $0x14] sm:$0x1]
        %v9492 = vld [vmem:[%s9480 + $0x15] sm:$0x1]
        %v9493 = vld [vmem:[%s9480 + $0x16] sm:$0x1]
        %v9494 = vld [vmem:[%s9480 + $0x17] sm:$0x1]
        %v9495 = vld [vmem:[%s9480 + $0x18] sm:$0x1]
        %v9496 = vld [vmem:[%s9480 + $0x19] sm:$0x1]
        %v9497 = vld [vmem:[%s9480 + $0x24] sm:$0x1]
        %v9498 = vld [vmem:[%s9480 + $0x25] sm:$0x1]
        %v9499 = vld [vmem:[%s9480 + $0x26] sm:$0x1]
        %v9500 = vld [vmem:[%s9480 + $0x27] sm:$0x1]
        %v9501 = vld [vmem:[%s9480 + $0x28] sm:$0x1]
        %v9502 = vld [vmem:[%s9480 + $0x29] sm:$0x1]
        %v9503 = vld [vmem:[%s9480 + $0x2a] sm:$0x1]
        %v9504 = vld [vmem:[%s9480 + $0x2b] sm:$0x1]
        %v9505 = vld [vmem:[%s9480 + $0x36] sm:$0x1]
        %v9506 = vld [vmem:[%s9480 + $0x37] sm:$0x1]
        %v9507 = vld [vmem:[%s9480 + $0x38] sm:$0x1]
        %v9508 = vld [vmem:[%s9480 + $0x39] sm:$0x1]
        %v9509 = vld [vmem:[%s9480 + $0x3a] sm:$0x1]
        %v9510 = vld [vmem:[%s9480 + $0x3b] sm:$0x1]
        %v9511 = vld [vmem:[%s9480 + $0x3c] sm:$0x1]
        %v9512 = vld [vmem:[%s9480 + $0x3d] sm:$0x1]
        %v9513 = vld [vmem:[%s9480 + $0x48] sm:$0x1]
        %v9514 = vld [vmem:[%s9480 + $0x49] sm:$0x1]
        %v9515 = vld [vmem:[%s9480 + $0x4a] sm:$0x1]
        %v9516 = vld [vmem:[%s9480 + $0x4b] sm:$0x1]
        %v9517 = vld [vmem:[%s9480 + $0x4c] sm:$0x1]
        %v9518 = vld [vmem:[%s9480 + $0x4d] sm:$0x1]
        %v9519 = vld [vmem:[%s9480 + $0x4e] sm:$0x1]
        %v9520 = vld [vmem:[%s9480 + $0x4f] sm:$0x1]
        %v9521 = vld [vmem:[%s9480 + $0x5a] sm:$0x1]
        %v9522 = vld [vmem:[%s9480 + $0x5b] sm:$0x1]
        %v9523 = vld [vmem:[%s9480 + $0x5c] sm:$0x1]
        %v9524 = vld [vmem:[%s9480 + $0x5d] sm:$0x1]
        %v9525 = vld [vmem:[%s9480 + $0x5e] sm:$0x1]
        %v9526 = vld [vmem:[%s9480 + $0x5f] sm:$0x1]
        %v9527 = vld [vmem:[%s9480 + $0x60] sm:$0x1]
        %v9528 = vld [vmem:[%s9480 + $0x61] sm:$0x1]
        %v9529 = vld [vmem:[%s9480 + $0x6c] sm:$0x1]
        %v9530 = vld [vmem:[%s9480 + $0x6d] sm:$0x1]
        %v9531 = vld [vmem:[%s9480 + $0x6e] sm:$0x1]
        %v9532 = vld [vmem:[%s9480 + $0x6f] sm:$0x1]
        %v9533 = vld [vmem:[%s9480 + $0x70] sm:$0x1]
        %v9534 = vld [vmem:[%s9480 + $0x71] sm:$0x1]
        %v9535 = vld [vmem:[%s9480 + $0x72] sm:$0x1]
        %v9536 = vld [vmem:[%s9480 + $0x73] sm:$0x1]
        %v9537 = vld [vmem:[%s9480 + $0x7e] sm:$0x1]
        %v9538 = vld [vmem:[%s9480 + $0x7f] sm:$0x1]
        %v9539 = vld [vmem:[%s9480 + $0x80] sm:$0x1]
        %v9540 = vld [vmem:[%s9480 + $0x81] sm:$0x1]
        %v9541 = vld [vmem:[%s9480 + $0x82] sm:$0x1]
        %v9542 = vld [vmem:[%s9480 + $0x83] sm:$0x1]
        %v9543 = vld [vmem:[%s9480 + $0x84] sm:$0x1]
        %v9544 = vld [vmem:[%s9480 + $0x85] sm:$0x1]
        %s9545 = scalar_lea.vmem %s214, 16
        %v9546 = vld [vmem:[%s9545] sm:$0x3]
        %v9612 = vunpack.c.l.s4 1966171168
        %v9613 = vunpack.c.0.s8 %v9612
        %v9614 = vlaneseq
        %v9615 = vshrl.u32 %v9614, 7
        %v9616 = vsub.s32 %v9613, %v9615
        %v9617 = vrot.slane %v9481, %v9616
        %v9619 = vunpack.c.l.s4 1966171168
        %v9620 = vunpack.c.0.s8 %v9619
        %v9621 = vlaneseq
        %v9622 = vshrl.u32 %v9621, 7
        %v9623 = vsub.s32 %v9620, %v9622
        %v9624 = vrot.slane %v9617, %v9623
        %v9626 = vunpack.c.l.s4 1966171168
        %v9627 = vunpack.c.0.s8 %v9626
        %v9628 = vlaneseq
        %v9629 = vshrl.u32 %v9628, 7
        %v9630 = vsub.s32 %v9627, %v9629
        %v9631 = vrot.slane %v9482, %v9630
        %v9633 = vunpack.c.l.s4 1966171168
        %v9634 = vunpack.c.0.s8 %v9633
        %v9635 = vlaneseq
        %v9636 = vshrl.u32 %v9635, 7
        %v9637 = vsub.s32 %v9634, %v9636
        %v9638 = vrot.slane %v9631, %v9637
        %v9640 = vunpack.c.l.s4 1966171168
        %v9641 = vunpack.c.0.s8 %v9640
        %v9642 = vlaneseq
        %v9643 = vshrl.u32 %v9642, 7
        %v9644 = vsub.s32 %v9641, %v9643
        %v9645 = vrot.slane %v9483, %v9644
        %v9647 = vunpack.c.l.s4 1966171168
        %v9648 = vunpack.c.0.s8 %v9647
        %v9649 = vlaneseq
        %v9650 = vshrl.u32 %v9649, 7
        %v9651 = vsub.s32 %v9648, %v9650
        %v9652 = vrot.slane %v9645, %v9651
        %v9654 = vunpack.c.l.s4 1966171168
        %v9655 = vunpack.c.0.s8 %v9654
        %v9656 = vlaneseq
        %v9657 = vshrl.u32 %v9656, 7
        %v9658 = vsub.s32 %v9655, %v9657
        %v9659 = vrot.slane %v9484, %v9658
        %v9661 = vunpack.c.l.s4 1966171168
        %v9662 = vunpack.c.0.s8 %v9661
        %v9663 = vlaneseq
        %v9664 = vshrl.u32 %v9663, 7
        %v9665 = vsub.s32 %v9662, %v9664
        %v9666 = vrot.slane %v9659, %v9665
        %v9668 = vunpack.c.l.s4 1966171168
        %v9669 = vunpack.c.0.s8 %v9668
        %v9670 = vlaneseq
        %v9671 = vshrl.u32 %v9670, 7
        %v9672 = vsub.s32 %v9669, %v9671
        %v9673 = vrot.slane %v9485, %v9672
        %v9675 = vunpack.c.l.s4 1966171168
        %v9676 = vunpack.c.0.s8 %v9675
        %v9677 = vlaneseq
        %v9678 = vshrl.u32 %v9677, 7
        %v9679 = vsub.s32 %v9676, %v9678
        %v9680 = vrot.slane %v9673, %v9679
        %v9682 = vunpack.c.l.s4 1966171168
        %v9683 = vunpack.c.0.s8 %v9682
        %v9684 = vlaneseq
        %v9685 = vshrl.u32 %v9684, 7
        %v9686 = vsub.s32 %v9683, %v9685
        %v9687 = vrot.slane %v9486, %v9686
        %v9689 = vunpack.c.l.s4 1966171168
        %v9690 = vunpack.c.0.s8 %v9689
        %v9691 = vlaneseq
        %v9692 = vshrl.u32 %v9691, 7
        %v9693 = vsub.s32 %v9690, %v9692
        %v9694 = vrot.slane %v9687, %v9693
        %v9696 = vunpack.c.l.s4 1966171168
        %v9697 = vunpack.c.0.s8 %v9696
        %v9698 = vlaneseq
        %v9699 = vshrl.u32 %v9698, 7
        %v9700 = vsub.s32 %v9697, %v9699
        %v9701 = vrot.slane %v9487, %v9700
        %v9703 = vunpack.c.l.s4 1966171168
        %v9704 = vunpack.c.0.s8 %v9703
        %v9705 = vlaneseq
        %v9706 = vshrl.u32 %v9705, 7
        %v9707 = vsub.s32 %v9704, %v9706
        %v9708 = vrot.slane %v9701, %v9707
        %v9710 = vunpack.c.l.s4 1966171168
        %v9711 = vunpack.c.0.s8 %v9710
        %v9712 = vlaneseq
        %v9713 = vshrl.u32 %v9712, 7
        %v9714 = vsub.s32 %v9711, %v9713
        %v9715 = vrot.slane %v9488, %v9714
        %v9717 = vunpack.c.l.s4 1966171168
        %v9718 = vunpack.c.0.s8 %v9717
        %v9719 = vlaneseq
        %v9720 = vshrl.u32 %v9719, 7
        %v9721 = vsub.s32 %v9718, %v9720
        %v9722 = vrot.slane %v9715, %v9721
        %v9724 = vunpack.c.l.s4 1966171168
        %v9725 = vunpack.c.0.s8 %v9724
        %v9726 = vlaneseq
        %v9727 = vshrl.u32 %v9726, 7
        %v9728 = vsub.s32 %v9725, %v9727
        %v9729 = vrot.slane %v9489, %v9728
        %v9731 = vunpack.c.l.s4 1966171168
        %v9732 = vunpack.c.0.s8 %v9731
        %v9733 = vlaneseq
        %v9734 = vshrl.u32 %v9733, 7
        %v9735 = vsub.s32 %v9732, %v9734
        %v9736 = vrot.slane %v9729, %v9735
        %v9738 = vunpack.c.l.s4 1966171168
        %v9739 = vunpack.c.0.s8 %v9738
        %v9740 = vlaneseq
        %v9741 = vshrl.u32 %v9740, 7
        %v9742 = vsub.s32 %v9739, %v9741
        %v9743 = vrot.slane %v9490, %v9742
        %v9745 = vunpack.c.l.s4 1966171168
        %v9746 = vunpack.c.0.s8 %v9745
        %v9747 = vlaneseq
        %v9748 = vshrl.u32 %v9747, 7
        %v9749 = vsub.s32 %v9746, %v9748
        %v9750 = vrot.slane %v9743, %v9749
        %v9752 = vunpack.c.l.s4 1966171168
        %v9753 = vunpack.c.0.s8 %v9752
        %v9754 = vlaneseq
        %v9755 = vshrl.u32 %v9754, 7
        %v9756 = vsub.s32 %v9753, %v9755
        %v9757 = vrot.slane %v9491, %v9756
        %v9759 = vunpack.c.l.s4 1966171168
        %v9760 = vunpack.c.0.s8 %v9759
        %v9761 = vlaneseq
        %v9762 = vshrl.u32 %v9761, 7
        %v9763 = vsub.s32 %v9760, %v9762
        %v9764 = vrot.slane %v9757, %v9763
        %v9766 = vunpack.c.l.s4 1966171168
        %v9767 = vunpack.c.0.s8 %v9766
        %v9768 = vlaneseq
        %v9769 = vshrl.u32 %v9768, 7
        %v9770 = vsub.s32 %v9767, %v9769
        %v9771 = vrot.slane %v9492, %v9770
        %v9773 = vunpack.c.l.s4 1966171168
        %v9774 = vunpack.c.0.s8 %v9773
        %v9775 = vlaneseq
        %v9776 = vshrl.u32 %v9775, 7
        %v9777 = vsub.s32 %v9774, %v9776
        %v9778 = vrot.slane %v9771, %v9777
        %v9780 = vunpack.c.l.s4 1966171168
        %v9781 = vunpack.c.0.s8 %v9780
        %v9782 = vlaneseq
        %v9783 = vshrl.u32 %v9782, 7
        %v9784 = vsub.s32 %v9781, %v9783
        %v9785 = vrot.slane %v9493, %v9784
        %v9787 = vunpack.c.l.s4 1966171168
        %v9788 = vunpack.c.0.s8 %v9787
        %v9789 = vlaneseq
        %v9790 = vshrl.u32 %v9789, 7
        %v9791 = vsub.s32 %v9788, %v9790
        %v9792 = vrot.slane %v9785, %v9791
        %v9794 = vunpack.c.l.s4 1966171168
        %v9795 = vunpack.c.0.s8 %v9794
        %v9796 = vlaneseq
        %v9797 = vshrl.u32 %v9796, 7
        %v9798 = vsub.s32 %v9795, %v9797
        %v9799 = vrot.slane %v9494, %v9798
        %v9801 = vunpack.c.l.s4 1966171168
        %v9802 = vunpack.c.0.s8 %v9801
        %v9803 = vlaneseq
        %v9804 = vshrl.u32 %v9803, 7
        %v9805 = vsub.s32 %v9802, %v9804
        %v9806 = vrot.slane %v9799, %v9805
        %v9808 = vunpack.c.l.s4 1966171168
        %v9809 = vunpack.c.0.s8 %v9808
        %v9810 = vlaneseq
        %v9811 = vshrl.u32 %v9810, 7
        %v9812 = vsub.s32 %v9809, %v9811
        %v9813 = vrot.slane %v9495, %v9812
        %v9815 = vunpack.c.l.s4 1966171168
        %v9816 = vunpack.c.0.s8 %v9815
        %v9817 = vlaneseq
        %v9818 = vshrl.u32 %v9817, 7
        %v9819 = vsub.s32 %v9816, %v9818
        %v9820 = vrot.slane %v9813, %v9819
        %v9822 = vunpack.c.l.s4 1966171168
        %v9823 = vunpack.c.0.s8 %v9822
        %v9824 = vlaneseq
        %v9825 = vshrl.u32 %v9824, 7
        %v9826 = vsub.s32 %v9823, %v9825
        %v9827 = vrot.slane %v9496, %v9826
        %v9829 = vunpack.c.l.s4 1966171168
        %v9830 = vunpack.c.0.s8 %v9829
        %v9831 = vlaneseq
        %v9832 = vshrl.u32 %v9831, 7
        %v9833 = vsub.s32 %v9830, %v9832
        %v9834 = vrot.slane %v9827, %v9833
        %v9836 = vunpack.c.l.s4 1966171168
        %v9837 = vunpack.c.0.s8 %v9836
        %v9838 = vlaneseq
        %v9839 = vshrl.u32 %v9838, 7
        %v9840 = vsub.s32 %v9837, %v9839
        %v9841 = vrot.slane %v9497, %v9840
        %v9843 = vunpack.c.l.s4 1966171168
        %v9844 = vunpack.c.0.s8 %v9843
        %v9845 = vlaneseq
        %v9846 = vshrl.u32 %v9845, 7
        %v9847 = vsub.s32 %v9844, %v9846
        %v9848 = vrot.slane %v9841, %v9847
        %v9850 = vunpack.c.l.s4 1966171168
        %v9851 = vunpack.c.0.s8 %v9850
        %v9852 = vlaneseq
        %v9853 = vshrl.u32 %v9852, 7
        %v9854 = vsub.s32 %v9851, %v9853
        %v9855 = vrot.slane %v9498, %v9854
        %v9857 = vunpack.c.l.s4 1966171168
        %v9858 = vunpack.c.0.s8 %v9857
        %v9859 = vlaneseq
        %v9860 = vshrl.u32 %v9859, 7
        %v9861 = vsub.s32 %v9858, %v9860
        %v9862 = vrot.slane %v9855, %v9861
        %v9864 = vunpack.c.l.s4 1966171168
        %v9865 = vunpack.c.0.s8 %v9864
        %v9866 = vlaneseq
        %v9867 = vshrl.u32 %v9866, 7
        %v9868 = vsub.s32 %v9865, %v9867
        %v9869 = vrot.slane %v9499, %v9868
        %v9871 = vunpack.c.l.s4 1966171168
        %v9872 = vunpack.c.0.s8 %v9871
        %v9873 = vlaneseq
        %v9874 = vshrl.u32 %v9873, 7
        %v9875 = vsub.s32 %v9872, %v9874
        %v9876 = vrot.slane %v9869, %v9875
        %v9878 = vunpack.c.l.s4 1966171168
        %v9879 = vunpack.c.0.s8 %v9878
        %v9880 = vlaneseq
        %v9881 = vshrl.u32 %v9880, 7
        %v9882 = vsub.s32 %v9879, %v9881
        %v9883 = vrot.slane %v9500, %v9882
        %v9885 = vunpack.c.l.s4 1966171168
        %v9886 = vunpack.c.0.s8 %v9885
        %v9887 = vlaneseq
        %v9888 = vshrl.u32 %v9887, 7
        %v9889 = vsub.s32 %v9886, %v9888
        %v9890 = vrot.slane %v9883, %v9889
        %v9892 = vunpack.c.l.s4 1966171168
        %v9893 = vunpack.c.0.s8 %v9892
        %v9894 = vlaneseq
        %v9895 = vshrl.u32 %v9894, 7
        %v9896 = vsub.s32 %v9893, %v9895
        %v9897 = vrot.slane %v9501, %v9896
        %v9899 = vunpack.c.l.s4 1966171168
        %v9900 = vunpack.c.0.s8 %v9899
        %v9901 = vlaneseq
        %v9902 = vshrl.u32 %v9901, 7
        %v9903 = vsub.s32 %v9900, %v9902
        %v9904 = vrot.slane %v9897, %v9903
        %v9906 = vunpack.c.l.s4 1966171168
        %v9907 = vunpack.c.0.s8 %v9906
        %v9908 = vlaneseq
        %v9909 = vshrl.u32 %v9908, 7
        %v9910 = vsub.s32 %v9907, %v9909
        %v9911 = vrot.slane %v9502, %v9910
        %v9913 = vunpack.c.l.s4 1966171168
        %v9914 = vunpack.c.0.s8 %v9913
        %v9915 = vlaneseq
        %v9916 = vshrl.u32 %v9915, 7
        %v9917 = vsub.s32 %v9914, %v9916
        %v9918 = vrot.slane %v9911, %v9917
        %v9920 = vunpack.c.l.s4 1966171168
        %v9921 = vunpack.c.0.s8 %v9920
        %v9922 = vlaneseq
        %v9923 = vshrl.u32 %v9922, 7
        %v9924 = vsub.s32 %v9921, %v9923
        %v9925 = vrot.slane %v9503, %v9924
        %v9927 = vunpack.c.l.s4 1966171168
        %v9928 = vunpack.c.0.s8 %v9927
        %v9929 = vlaneseq
        %v9930 = vshrl.u32 %v9929, 7
        %v9931 = vsub.s32 %v9928, %v9930
        %v9932 = vrot.slane %v9925, %v9931
        %v9934 = vunpack.c.l.s4 1966171168
        %v9935 = vunpack.c.0.s8 %v9934
        %v9936 = vlaneseq
        %v9937 = vshrl.u32 %v9936, 7
        %v9938 = vsub.s32 %v9935, %v9937
        %v9939 = vrot.slane %v9504, %v9938
        %v9941 = vunpack.c.l.s4 1966171168
        %v9942 = vunpack.c.0.s8 %v9941
        %v9943 = vlaneseq
        %v9944 = vshrl.u32 %v9943, 7
        %v9945 = vsub.s32 %v9942, %v9944
        %v9946 = vrot.slane %v9939, %v9945
        %v9948 = vunpack.c.l.s4 1966171168
        %v9949 = vunpack.c.0.s8 %v9948
        %v9950 = vlaneseq
        %v9951 = vshrl.u32 %v9950, 7
        %v9952 = vsub.s32 %v9949, %v9951
        %v9953 = vrot.slane %v9505, %v9952
        %v9955 = vunpack.c.l.s4 1966171168
        %v9956 = vunpack.c.0.s8 %v9955
        %v9957 = vlaneseq
        %v9958 = vshrl.u32 %v9957, 7
        %v9959 = vsub.s32 %v9956, %v9958
        %v9960 = vrot.slane %v9953, %v9959
        %v9962 = vunpack.c.l.s4 1966171168
        %v9963 = vunpack.c.0.s8 %v9962
        %v9964 = vlaneseq
        %v9965 = vshrl.u32 %v9964, 7
        %v9966 = vsub.s32 %v9963, %v9965
        %v9967 = vrot.slane %v9506, %v9966
        %v9969 = vunpack.c.l.s4 1966171168
        %v9970 = vunpack.c.0.s8 %v9969
        %v9971 = vlaneseq
        %v9972 = vshrl.u32 %v9971, 7
        %v9973 = vsub.s32 %v9970, %v9972
        %v9974 = vrot.slane %v9967, %v9973
        %v9976 = vunpack.c.l.s4 1966171168
        %v9977 = vunpack.c.0.s8 %v9976
        %v9978 = vlaneseq
        %v9979 = vshrl.u32 %v9978, 7
        %v9980 = vsub.s32 %v9977, %v9979
        %v9981 = vrot.slane %v9507, %v9980
        %v9983 = vunpack.c.l.s4 1966171168
        %v9984 = vunpack.c.0.s8 %v9983
        %v9985 = vlaneseq
        %v9986 = vshrl.u32 %v9985, 7
        %v9987 = vsub.s32 %v9984, %v9986
        %v9988 = vrot.slane %v9981, %v9987
        %v9990 = vunpack.c.l.s4 1966171168
        %v9991 = vunpack.c.0.s8 %v9990
        %v9992 = vlaneseq
        %v9993 = vshrl.u32 %v9992, 7
        %v9994 = vsub.s32 %v9991, %v9993
        %v9995 = vrot.slane %v9508, %v9994
        %v9997 = vunpack.c.l.s4 1966171168
        %v9998 = vunpack.c.0.s8 %v9997
        %v9999 = vlaneseq
        %v10000 = vshrl.u32 %v9999, 7
        %v10001 = vsub.s32 %v9998, %v10000
        %v10002 = vrot.slane %v9995, %v10001
        %v10004 = vunpack.c.l.s4 1966171168
        %v10005 = vunpack.c.0.s8 %v10004
        %v10006 = vlaneseq
        %v10007 = vshrl.u32 %v10006, 7
        %v10008 = vsub.s32 %v10005, %v10007
        %v10009 = vrot.slane %v9509, %v10008
        %v10011 = vunpack.c.l.s4 1966171168
        %v10012 = vunpack.c.0.s8 %v10011
        %v10013 = vlaneseq
        %v10014 = vshrl.u32 %v10013, 7
        %v10015 = vsub.s32 %v10012, %v10014
        %v10016 = vrot.slane %v10009, %v10015
        %v10018 = vunpack.c.l.s4 1966171168
        %v10019 = vunpack.c.0.s8 %v10018
        %v10020 = vlaneseq
        %v10021 = vshrl.u32 %v10020, 7
        %v10022 = vsub.s32 %v10019, %v10021
        %v10023 = vrot.slane %v9510, %v10022
        %v10025 = vunpack.c.l.s4 1966171168
        %v10026 = vunpack.c.0.s8 %v10025
        %v10027 = vlaneseq
        %v10028 = vshrl.u32 %v10027, 7
        %v10029 = vsub.s32 %v10026, %v10028
        %v10030 = vrot.slane %v10023, %v10029
        %v10032 = vunpack.c.l.s4 1966171168
        %v10033 = vunpack.c.0.s8 %v10032
        %v10034 = vlaneseq
        %v10035 = vshrl.u32 %v10034, 7
        %v10036 = vsub.s32 %v10033, %v10035
        %v10037 = vrot.slane %v9511, %v10036
        %v10039 = vunpack.c.l.s4 1966171168
        %v10040 = vunpack.c.0.s8 %v10039
        %v10041 = vlaneseq
        %v10042 = vshrl.u32 %v10041, 7
        %v10043 = vsub.s32 %v10040, %v10042
        %v10044 = vrot.slane %v10037, %v10043
        %v10046 = vunpack.c.l.s4 1966171168
        %v10047 = vunpack.c.0.s8 %v10046
        %v10048 = vlaneseq
        %v10049 = vshrl.u32 %v10048, 7
        %v10050 = vsub.s32 %v10047, %v10049
        %v10051 = vrot.slane %v9512, %v10050
        %v10053 = vunpack.c.l.s4 1966171168
        %v10054 = vunpack.c.0.s8 %v10053
        %v10055 = vlaneseq
        %v10056 = vshrl.u32 %v10055, 7
        %v10057 = vsub.s32 %v10054, %v10056
        %v10058 = vrot.slane %v10051, %v10057
        %v10060 = vunpack.c.l.s4 1966171168
        %v10061 = vunpack.c.0.s8 %v10060
        %v10062 = vlaneseq
        %v10063 = vshrl.u32 %v10062, 7
        %v10064 = vsub.s32 %v10061, %v10063
        %v10065 = vrot.slane %v9513, %v10064
        %v10067 = vunpack.c.l.s4 1966171168
        %v10068 = vunpack.c.0.s8 %v10067
        %v10069 = vlaneseq
        %v10070 = vshrl.u32 %v10069, 7
        %v10071 = vsub.s32 %v10068, %v10070
        %v10072 = vrot.slane %v10065, %v10071
        %v10074 = vunpack.c.l.s4 1966171168
        %v10075 = vunpack.c.0.s8 %v10074
        %v10076 = vlaneseq
        %v10077 = vshrl.u32 %v10076, 7
        %v10078 = vsub.s32 %v10075, %v10077
        %v10079 = vrot.slane %v9514, %v10078
        %v10081 = vunpack.c.l.s4 1966171168
        %v10082 = vunpack.c.0.s8 %v10081
        %v10083 = vlaneseq
        %v10084 = vshrl.u32 %v10083, 7
        %v10085 = vsub.s32 %v10082, %v10084
        %v10086 = vrot.slane %v10079, %v10085
        %v10088 = vunpack.c.l.s4 1966171168
        %v10089 = vunpack.c.0.s8 %v10088
        %v10090 = vlaneseq
        %v10091 = vshrl.u32 %v10090, 7
        %v10092 = vsub.s32 %v10089, %v10091
        %v10093 = vrot.slane %v9515, %v10092
        %v10095 = vunpack.c.l.s4 1966171168
        %v10096 = vunpack.c.0.s8 %v10095
        %v10097 = vlaneseq
        %v10098 = vshrl.u32 %v10097, 7
        %v10099 = vsub.s32 %v10096, %v10098
        %v10100 = vrot.slane %v10093, %v10099
        %v10102 = vunpack.c.l.s4 1966171168
        %v10103 = vunpack.c.0.s8 %v10102
        %v10104 = vlaneseq
        %v10105 = vshrl.u32 %v10104, 7
        %v10106 = vsub.s32 %v10103, %v10105
        %v10107 = vrot.slane %v9516, %v10106
        %v10109 = vunpack.c.l.s4 1966171168
        %v10110 = vunpack.c.0.s8 %v10109
        %v10111 = vlaneseq
        %v10112 = vshrl.u32 %v10111, 7
        %v10113 = vsub.s32 %v10110, %v10112
        %v10114 = vrot.slane %v10107, %v10113
        %v10116 = vunpack.c.l.s4 1966171168
        %v10117 = vunpack.c.0.s8 %v10116
        %v10118 = vlaneseq
        %v10119 = vshrl.u32 %v10118, 7
        %v10120 = vsub.s32 %v10117, %v10119
        %v10121 = vrot.slane %v9517, %v10120
        %v10123 = vunpack.c.l.s4 1966171168
        %v10124 = vunpack.c.0.s8 %v10123
        %v10125 = vlaneseq
        %v10126 = vshrl.u32 %v10125, 7
        %v10127 = vsub.s32 %v10124, %v10126
        %v10128 = vrot.slane %v10121, %v10127
        %v10130 = vunpack.c.l.s4 1966171168
        %v10131 = vunpack.c.0.s8 %v10130
        %v10132 = vlaneseq
        %v10133 = vshrl.u32 %v10132, 7
        %v10134 = vsub.s32 %v10131, %v10133
        %v10135 = vrot.slane %v9518, %v10134
        %v10137 = vunpack.c.l.s4 1966171168
        %v10138 = vunpack.c.0.s8 %v10137
        %v10139 = vlaneseq
        %v10140 = vshrl.u32 %v10139, 7
        %v10141 = vsub.s32 %v10138, %v10140
        %v10142 = vrot.slane %v10135, %v10141
        %v10144 = vunpack.c.l.s4 1966171168
        %v10145 = vunpack.c.0.s8 %v10144
        %v10146 = vlaneseq
        %v10147 = vshrl.u32 %v10146, 7
        %v10148 = vsub.s32 %v10145, %v10147
        %v10149 = vrot.slane %v9519, %v10148
        %v10151 = vunpack.c.l.s4 1966171168
        %v10152 = vunpack.c.0.s8 %v10151
        %v10153 = vlaneseq
        %v10154 = vshrl.u32 %v10153, 7
        %v10155 = vsub.s32 %v10152, %v10154
        %v10156 = vrot.slane %v10149, %v10155
        %v10158 = vunpack.c.l.s4 1966171168
        %v10159 = vunpack.c.0.s8 %v10158
        %v10160 = vlaneseq
        %v10161 = vshrl.u32 %v10160, 7
        %v10162 = vsub.s32 %v10159, %v10161
        %v10163 = vrot.slane %v9520, %v10162
        %v10165 = vunpack.c.l.s4 1966171168
        %v10166 = vunpack.c.0.s8 %v10165
        %v10167 = vlaneseq
        %v10168 = vshrl.u32 %v10167, 7
        %v10169 = vsub.s32 %v10166, %v10168
        %v10170 = vrot.slane %v10163, %v10169
        %v10172 = vunpack.c.l.s4 1966171168
        %v10173 = vunpack.c.0.s8 %v10172
        %v10174 = vlaneseq
        %v10175 = vshrl.u32 %v10174, 7
        %v10176 = vsub.s32 %v10173, %v10175
        %v10177 = vrot.slane %v9521, %v10176
        %v10179 = vunpack.c.l.s4 1966171168
        %v10180 = vunpack.c.0.s8 %v10179
        %v10181 = vlaneseq
        %v10182 = vshrl.u32 %v10181, 7
        %v10183 = vsub.s32 %v10180, %v10182
        %v10184 = vrot.slane %v10177, %v10183
        %v10186 = vunpack.c.l.s4 1966171168
        %v10187 = vunpack.c.0.s8 %v10186
        %v10188 = vlaneseq
        %v10189 = vshrl.u32 %v10188, 7
        %v10190 = vsub.s32 %v10187, %v10189
        %v10191 = vrot.slane %v9522, %v10190
        %v10193 = vunpack.c.l.s4 1966171168
        %v10194 = vunpack.c.0.s8 %v10193
        %v10195 = vlaneseq
        %v10196 = vshrl.u32 %v10195, 7
        %v10197 = vsub.s32 %v10194, %v10196
        %v10198 = vrot.slane %v10191, %v10197
        %v10200 = vunpack.c.l.s4 1966171168
        %v10201 = vunpack.c.0.s8 %v10200
        %v10202 = vlaneseq
        %v10203 = vshrl.u32 %v10202, 7
        %v10204 = vsub.s32 %v10201, %v10203
        %v10205 = vrot.slane %v9523, %v10204
        %v10207 = vunpack.c.l.s4 1966171168
        %v10208 = vunpack.c.0.s8 %v10207
        %v10209 = vlaneseq
        %v10210 = vshrl.u32 %v10209, 7
        %v10211 = vsub.s32 %v10208, %v10210
        %v10212 = vrot.slane %v10205, %v10211
        %v10214 = vunpack.c.l.s4 1966171168
        %v10215 = vunpack.c.0.s8 %v10214
        %v10216 = vlaneseq
        %v10217 = vshrl.u32 %v10216, 7
        %v10218 = vsub.s32 %v10215, %v10217
        %v10219 = vrot.slane %v9524, %v10218
        %v10221 = vunpack.c.l.s4 1966171168
        %v10222 = vunpack.c.0.s8 %v10221
        %v10223 = vlaneseq
        %v10224 = vshrl.u32 %v10223, 7
        %v10225 = vsub.s32 %v10222, %v10224
        %v10226 = vrot.slane %v10219, %v10225
        %v10228 = vunpack.c.l.s4 1966171168
        %v10229 = vunpack.c.0.s8 %v10228
        %v10230 = vlaneseq
        %v10231 = vshrl.u32 %v10230, 7
        %v10232 = vsub.s32 %v10229, %v10231
        %v10233 = vrot.slane %v9525, %v10232
        %v10235 = vunpack.c.l.s4 1966171168
        %v10236 = vunpack.c.0.s8 %v10235
        %v10237 = vlaneseq
        %v10238 = vshrl.u32 %v10237, 7
        %v10239 = vsub.s32 %v10236, %v10238
        %v10240 = vrot.slane %v10233, %v10239
        %v10242 = vunpack.c.l.s4 1966171168
        %v10243 = vunpack.c.0.s8 %v10242
        %v10244 = vlaneseq
        %v10245 = vshrl.u32 %v10244, 7
        %v10246 = vsub.s32 %v10243, %v10245
        %v10247 = vrot.slane %v9526, %v10246
        %v10249 = vunpack.c.l.s4 1966171168
        %v10250 = vunpack.c.0.s8 %v10249
        %v10251 = vlaneseq
        %v10252 = vshrl.u32 %v10251, 7
        %v10253 = vsub.s32 %v10250, %v10252
        %v10254 = vrot.slane %v10247, %v10253
        %v10256 = vunpack.c.l.s4 1966171168
        %v10257 = vunpack.c.0.s8 %v10256
        %v10258 = vlaneseq
        %v10259 = vshrl.u32 %v10258, 7
        %v10260 = vsub.s32 %v10257, %v10259
        %v10261 = vrot.slane %v9527, %v10260
        %v10263 = vunpack.c.l.s4 1966171168
        %v10264 = vunpack.c.0.s8 %v10263
        %v10265 = vlaneseq
        %v10266 = vshrl.u32 %v10265, 7
        %v10267 = vsub.s32 %v10264, %v10266
        %v10268 = vrot.slane %v10261, %v10267
        %v10270 = vunpack.c.l.s4 1966171168
        %v10271 = vunpack.c.0.s8 %v10270
        %v10272 = vlaneseq
        %v10273 = vshrl.u32 %v10272, 7
        %v10274 = vsub.s32 %v10271, %v10273
        %v10275 = vrot.slane %v9528, %v10274
        %v10277 = vunpack.c.l.s4 1966171168
        %v10278 = vunpack.c.0.s8 %v10277
        %v10279 = vlaneseq
        %v10280 = vshrl.u32 %v10279, 7
        %v10281 = vsub.s32 %v10278, %v10280
        %v10282 = vrot.slane %v10275, %v10281
        %v10284 = vunpack.c.l.s4 1966171168
        %v10285 = vunpack.c.0.s8 %v10284
        %v10286 = vlaneseq
        %v10287 = vshrl.u32 %v10286, 7
        %v10288 = vsub.s32 %v10285, %v10287
        %v10289 = vrot.slane %v9529, %v10288
        %v10291 = vunpack.c.l.s4 1966171168
        %v10292 = vunpack.c.0.s8 %v10291
        %v10293 = vlaneseq
        %v10294 = vshrl.u32 %v10293, 7
        %v10295 = vsub.s32 %v10292, %v10294
        %v10296 = vrot.slane %v10289, %v10295
        %v10298 = vunpack.c.l.s4 1966171168
        %v10299 = vunpack.c.0.s8 %v10298
        %v10300 = vlaneseq
        %v10301 = vshrl.u32 %v10300, 7
        %v10302 = vsub.s32 %v10299, %v10301
        %v10303 = vrot.slane %v9530, %v10302
        %v10305 = vunpack.c.l.s4 1966171168
        %v10306 = vunpack.c.0.s8 %v10305
        %v10307 = vlaneseq
        %v10308 = vshrl.u32 %v10307, 7
        %v10309 = vsub.s32 %v10306, %v10308
        %v10310 = vrot.slane %v10303, %v10309
        %v10312 = vunpack.c.l.s4 1966171168
        %v10313 = vunpack.c.0.s8 %v10312
        %v10314 = vlaneseq
        %v10315 = vshrl.u32 %v10314, 7
        %v10316 = vsub.s32 %v10313, %v10315
        %v10317 = vrot.slane %v9531, %v10316
        %v10319 = vunpack.c.l.s4 1966171168
        %v10320 = vunpack.c.0.s8 %v10319
        %v10321 = vlaneseq
        %v10322 = vshrl.u32 %v10321, 7
        %v10323 = vsub.s32 %v10320, %v10322
        %v10324 = vrot.slane %v10317, %v10323
        %v10326 = vunpack.c.l.s4 1966171168
        %v10327 = vunpack.c.0.s8 %v10326
        %v10328 = vlaneseq
        %v10329 = vshrl.u32 %v10328, 7
        %v10330 = vsub.s32 %v10327, %v10329
        %v10331 = vrot.slane %v9532, %v10330
        %v10333 = vunpack.c.l.s4 1966171168
        %v10334 = vunpack.c.0.s8 %v10333
        %v10335 = vlaneseq
        %v10336 = vshrl.u32 %v10335, 7
        %v10337 = vsub.s32 %v10334, %v10336
        %v10338 = vrot.slane %v10331, %v10337
        %v10340 = vunpack.c.l.s4 1966171168
        %v10341 = vunpack.c.0.s8 %v10340
        %v10342 = vlaneseq
        %v10343 = vshrl.u32 %v10342, 7
        %v10344 = vsub.s32 %v10341, %v10343
        %v10345 = vrot.slane %v9533, %v10344
        %v10347 = vunpack.c.l.s4 1966171168
        %v10348 = vunpack.c.0.s8 %v10347
        %v10349 = vlaneseq
        %v10350 = vshrl.u32 %v10349, 7
        %v10351 = vsub.s32 %v10348, %v10350
        %v10352 = vrot.slane %v10345, %v10351
        %v10354 = vunpack.c.l.s4 1966171168
        %v10355 = vunpack.c.0.s8 %v10354
        %v10356 = vlaneseq
        %v10357 = vshrl.u32 %v10356, 7
        %v10358 = vsub.s32 %v10355, %v10357
        %v10359 = vrot.slane %v9534, %v10358
        %v10361 = vunpack.c.l.s4 1966171168
        %v10362 = vunpack.c.0.s8 %v10361
        %v10363 = vlaneseq
        %v10364 = vshrl.u32 %v10363, 7
        %v10365 = vsub.s32 %v10362, %v10364
        %v10366 = vrot.slane %v10359, %v10365
        %v10368 = vunpack.c.l.s4 1966171168
        %v10369 = vunpack.c.0.s8 %v10368
        %v10370 = vlaneseq
        %v10371 = vshrl.u32 %v10370, 7
        %v10372 = vsub.s32 %v10369, %v10371
        %v10373 = vrot.slane %v9535, %v10372
        %v10375 = vunpack.c.l.s4 1966171168
        %v10376 = vunpack.c.0.s8 %v10375
        %v10377 = vlaneseq
        %v10378 = vshrl.u32 %v10377, 7
        %v10379 = vsub.s32 %v10376, %v10378
        %v10380 = vrot.slane %v10373, %v10379
        %v10382 = vunpack.c.l.s4 1966171168
        %v10383 = vunpack.c.0.s8 %v10382
        %v10384 = vlaneseq
        %v10385 = vshrl.u32 %v10384, 7
        %v10386 = vsub.s32 %v10383, %v10385
        %v10387 = vrot.slane %v9536, %v10386
        %v10389 = vunpack.c.l.s4 1966171168
        %v10390 = vunpack.c.0.s8 %v10389
        %v10391 = vlaneseq
        %v10392 = vshrl.u32 %v10391, 7
        %v10393 = vsub.s32 %v10390, %v10392
        %v10394 = vrot.slane %v10387, %v10393
        %v10396 = vunpack.c.l.s4 1966171168
        %v10397 = vunpack.c.0.s8 %v10396
        %v10398 = vlaneseq
        %v10399 = vshrl.u32 %v10398, 7
        %v10400 = vsub.s32 %v10397, %v10399
        %v10401 = vrot.slane %v9537, %v10400
        %v10403 = vunpack.c.l.s4 1966171168
        %v10404 = vunpack.c.0.s8 %v10403
        %v10405 = vlaneseq
        %v10406 = vshrl.u32 %v10405, 7
        %v10407 = vsub.s32 %v10404, %v10406
        %v10408 = vrot.slane %v10401, %v10407
        %v10410 = vunpack.c.l.s4 1966171168
        %v10411 = vunpack.c.0.s8 %v10410
        %v10412 = vlaneseq
        %v10413 = vshrl.u32 %v10412, 7
        %v10414 = vsub.s32 %v10411, %v10413
        %v10415 = vrot.slane %v9538, %v10414
        %v10417 = vunpack.c.l.s4 1966171168
        %v10418 = vunpack.c.0.s8 %v10417
        %v10419 = vlaneseq
        %v10420 = vshrl.u32 %v10419, 7
        %v10421 = vsub.s32 %v10418, %v10420
        %v10422 = vrot.slane %v10415, %v10421
        %v10424 = vunpack.c.l.s4 1966171168
        %v10425 = vunpack.c.0.s8 %v10424
        %v10426 = vlaneseq
        %v10427 = vshrl.u32 %v10426, 7
        %v10428 = vsub.s32 %v10425, %v10427
        %v10429 = vrot.slane %v9539, %v10428
        %v10431 = vunpack.c.l.s4 1966171168
        %v10432 = vunpack.c.0.s8 %v10431
        %v10433 = vlaneseq
        %v10434 = vshrl.u32 %v10433, 7
        %v10435 = vsub.s32 %v10432, %v10434
        %v10436 = vrot.slane %v10429, %v10435
        %v10438 = vunpack.c.l.s4 1966171168
        %v10439 = vunpack.c.0.s8 %v10438
        %v10440 = vlaneseq
        %v10441 = vshrl.u32 %v10440, 7
        %v10442 = vsub.s32 %v10439, %v10441
        %v10443 = vrot.slane %v9540, %v10442
        %v10445 = vunpack.c.l.s4 1966171168
        %v10446 = vunpack.c.0.s8 %v10445
        %v10447 = vlaneseq
        %v10448 = vshrl.u32 %v10447, 7
        %v10449 = vsub.s32 %v10446, %v10448
        %v10450 = vrot.slane %v10443, %v10449
        %v10452 = vunpack.c.l.s4 1966171168
        %v10453 = vunpack.c.0.s8 %v10452
        %v10454 = vlaneseq
        %v10455 = vshrl.u32 %v10454, 7
        %v10456 = vsub.s32 %v10453, %v10455
        %v10457 = vrot.slane %v9541, %v10456
        %v10459 = vunpack.c.l.s4 1966171168
        %v10460 = vunpack.c.0.s8 %v10459
        %v10461 = vlaneseq
        %v10462 = vshrl.u32 %v10461, 7
        %v10463 = vsub.s32 %v10460, %v10462
        %v10464 = vrot.slane %v10457, %v10463
        %v10466 = vunpack.c.l.s4 1966171168
        %v10467 = vunpack.c.0.s8 %v10466
        %v10468 = vlaneseq
        %v10469 = vshrl.u32 %v10468, 7
        %v10470 = vsub.s32 %v10467, %v10469
        %v10471 = vrot.slane %v9542, %v10470
        %v10473 = vunpack.c.l.s4 1966171168
        %v10474 = vunpack.c.0.s8 %v10473
        %v10475 = vlaneseq
        %v10476 = vshrl.u32 %v10475, 7
        %v10477 = vsub.s32 %v10474, %v10476
        %v10478 = vrot.slane %v10471, %v10477
        %v10480 = vunpack.c.l.s4 1966171168
        %v10481 = vunpack.c.0.s8 %v10480
        %v10482 = vlaneseq
        %v10483 = vshrl.u32 %v10482, 7
        %v10484 = vsub.s32 %v10481, %v10483
        %v10485 = vrot.slane %v9543, %v10484
        %v10487 = vunpack.c.l.s4 1966171168
        %v10488 = vunpack.c.0.s8 %v10487
        %v10489 = vlaneseq
        %v10490 = vshrl.u32 %v10489, 7
        %v10491 = vsub.s32 %v10488, %v10490
        %v10492 = vrot.slane %v10485, %v10491
        %v10494 = vunpack.c.l.s4 1966171168
        %v10495 = vunpack.c.0.s8 %v10494
        %v10496 = vlaneseq
        %v10497 = vshrl.u32 %v10496, 7
        %v10498 = vsub.s32 %v10495, %v10497
        %v10499 = vrot.slane %v9544, %v10498
        %v10501 = vunpack.c.l.s4 1966171168
        %v10502 = vunpack.c.0.s8 %v10501
        %v10503 = vlaneseq
        %v10504 = vshrl.u32 %v10503, 7
        %v10505 = vsub.s32 %v10502, %v10504
        %v10506 = vrot.slane %v10499, %v10505
        %v10507 = vunpack.c.l.b16 %v9624
        %v10508 = vunpack.c.l.b16 %v9638
        %v10509 = vunpack.c.l.b16 %v9652
        %v10510 = vunpack.c.l.b16 %v9666
        %v10511 = vunpack.c.l.b16 %v9680
        %v10512 = vunpack.c.l.b16 %v9694
        %v10513 = vunpack.c.l.b16 %v9708
        %v10514 = vunpack.c.l.b16 %v9722
        %v10515 = vunpack.c.l.b16 %v9736
        %v10516 = vunpack.c.l.b16 %v9750
        %v10517 = vunpack.c.l.b16 %v9764
        %v10518 = vunpack.c.l.b16 %v9778
        %v10519 = vunpack.c.l.b16 %v9792
        %v10520 = vunpack.c.l.b16 %v9806
        %v10521 = vunpack.c.l.b16 %v9820
        %v10522 = vunpack.c.l.b16 %v9834
        %v10523 = vunpack.c.l.b16 %v9848
        %v10524 = vunpack.c.l.b16 %v9862
        %v10525 = vunpack.c.l.b16 %v9876
        %v10526 = vunpack.c.l.b16 %v9890
        %v10527 = vunpack.c.l.b16 %v9904
        %v10528 = vunpack.c.l.b16 %v9918
        %v10529 = vunpack.c.l.b16 %v9932
        %v10530 = vunpack.c.l.b16 %v9946
        %v10531 = vunpack.c.l.b16 %v9960
        %v10532 = vunpack.c.l.b16 %v9974
        %v10533 = vunpack.c.l.b16 %v9988
        %v10534 = vunpack.c.l.b16 %v10002
        %v10535 = vunpack.c.l.b16 %v10016
        %v10536 = vunpack.c.l.b16 %v10030
        %v10537 = vunpack.c.l.b16 %v10044
        %v10538 = vunpack.c.l.b16 %v10058
        %v10539 = vunpack.c.l.b16 %v10072
        %v10540 = vunpack.c.l.b16 %v10086
        %v10541 = vunpack.c.l.b16 %v10100
        %v10542 = vunpack.c.l.b16 %v10114
        %v10543 = vunpack.c.l.b16 %v10128
        %v10544 = vunpack.c.l.b16 %v10142
        %v10545 = vunpack.c.l.b16 %v10156
        %v10546 = vunpack.c.l.b16 %v10170
        %v10547 = vunpack.c.l.b16 %v10184
        %v10548 = vunpack.c.l.b16 %v10198
        %v10549 = vunpack.c.l.b16 %v10212
        %v10550 = vunpack.c.l.b16 %v10226
        %v10551 = vunpack.c.l.b16 %v10240
        %v10552 = vunpack.c.l.b16 %v10254
        %v10553 = vunpack.c.l.b16 %v10268
        %v10554 = vunpack.c.l.b16 %v10282
        %v10555 = vunpack.c.l.b16 %v10296
        %v10556 = vunpack.c.l.b16 %v10310
        %v10557 = vunpack.c.l.b16 %v10324
        %v10558 = vunpack.c.l.b16 %v10338
        %v10559 = vunpack.c.l.b16 %v10352
        %v10560 = vunpack.c.l.b16 %v10366
        %v10561 = vunpack.c.l.b16 %v10380
        %v10562 = vunpack.c.l.b16 %v10394
        %v10563 = vunpack.c.l.b16 %v10408
        %v10564 = vunpack.c.l.b16 %v10422
        %v10565 = vunpack.c.l.b16 %v10436
        %v10566 = vunpack.c.l.b16 %v10450
        %v10567 = vunpack.c.l.b16 %v10464
        %v10568 = vunpack.c.l.b16 %v10478
        %v10569 = vunpack.c.l.b16 %v10492
        %v10570 = vunpack.c.l.b16 %v10506
        %v10571 = vrot.slane %v10508, 7
        %v10572 = vsel %vm1312, %v10571, %v10507
        %v10573 = vrot.slane %v10509, 6
        %v10574 = vsel %vm1315, %v10573, %v10572
        %v10575 = vrot.slane %v10510, 5
        %v10576 = vsel %vm1318, %v10575, %v10574
        %v10577 = vrot.slane %v10511, 4
        %v10578 = vsel %vm1321, %v10577, %v10576
        %v10579 = vrot.slane %v10512, 3
        %v10580 = vsel %vm1324, %v10579, %v10578
        %v10581 = vrot.slane %v10513, 2
        %v10582 = vsel %vm1327, %v10581, %v10580
        %v10583 = vrot.slane %v10514, 1
        %v10584 = vsel %vm1330, %v10583, %v10582
        %v10585 = vrot.slane %v10516, 7
        %v10586 = vsel %vm1312, %v10585, %v10515
        %v10587 = vrot.slane %v10517, 6
        %v10588 = vsel %vm1315, %v10587, %v10586
        %v10589 = vrot.slane %v10518, 5
        %v10590 = vsel %vm1318, %v10589, %v10588
        %v10591 = vrot.slane %v10519, 4
        %v10592 = vsel %vm1321, %v10591, %v10590
        %v10593 = vrot.slane %v10520, 3
        %v10594 = vsel %vm1324, %v10593, %v10592
        %v10595 = vrot.slane %v10521, 2
        %v10596 = vsel %vm1327, %v10595, %v10594
        %v10597 = vrot.slane %v10522, 1
        %v10598 = vsel %vm1330, %v10597, %v10596
        %v10599 = vrot.slane %v10524, 7
        %v10600 = vsel %vm1312, %v10599, %v10523
        %v10601 = vrot.slane %v10525, 6
        %v10602 = vsel %vm1315, %v10601, %v10600
        %v10603 = vrot.slane %v10526, 5
        %v10604 = vsel %vm1318, %v10603, %v10602
        %v10605 = vrot.slane %v10527, 4
        %v10606 = vsel %vm1321, %v10605, %v10604
        %v10607 = vrot.slane %v10528, 3
        %v10608 = vsel %vm1324, %v10607, %v10606
        %v10609 = vrot.slane %v10529, 2
        %v10610 = vsel %vm1327, %v10609, %v10608
        %v10611 = vrot.slane %v10530, 1
        %v10612 = vsel %vm1330, %v10611, %v10610
        %v10613 = vrot.slane %v10532, 7
        %v10614 = vsel %vm1312, %v10613, %v10531
        %v10615 = vrot.slane %v10533, 6
        %v10616 = vsel %vm1315, %v10615, %v10614
        %v10617 = vrot.slane %v10534, 5
        %v10618 = vsel %vm1318, %v10617, %v10616
        %v10619 = vrot.slane %v10535, 4
        %v10620 = vsel %vm1321, %v10619, %v10618
        %v10621 = vrot.slane %v10536, 3
        %v10622 = vsel %vm1324, %v10621, %v10620
        %v10623 = vrot.slane %v10537, 2
        %v10624 = vsel %vm1327, %v10623, %v10622
        %v10625 = vrot.slane %v10538, 1
        %v10626 = vsel %vm1330, %v10625, %v10624
        %v10627 = vrot.slane %v10540, 7
        %v10628 = vsel %vm1312, %v10627, %v10539
        %v10629 = vrot.slane %v10541, 6
        %v10630 = vsel %vm1315, %v10629, %v10628
        %v10631 = vrot.slane %v10542, 5
        %v10632 = vsel %vm1318, %v10631, %v10630
        %v10633 = vrot.slane %v10543, 4
        %v10634 = vsel %vm1321, %v10633, %v10632
        %v10635 = vrot.slane %v10544, 3
        %v10636 = vsel %vm1324, %v10635, %v10634
        %v10637 = vrot.slane %v10545, 2
        %v10638 = vsel %vm1327, %v10637, %v10636
        %v10639 = vrot.slane %v10546, 1
        %v10640 = vsel %vm1330, %v10639, %v10638
        %v10641 = vrot.slane %v10548, 7
        %v10642 = vsel %vm1312, %v10641, %v10547
        %v10643 = vrot.slane %v10549, 6
        %v10644 = vsel %vm1315, %v10643, %v10642
        %v10645 = vrot.slane %v10550, 5
        %v10646 = vsel %vm1318, %v10645, %v10644
        %v10647 = vrot.slane %v10551, 4
        %v10648 = vsel %vm1321, %v10647, %v10646
        %v10649 = vrot.slane %v10552, 3
        %v10650 = vsel %vm1324, %v10649, %v10648
        %v10651 = vrot.slane %v10553, 2
        %v10652 = vsel %vm1327, %v10651, %v10650
        %v10653 = vrot.slane %v10554, 1
        %v10654 = vsel %vm1330, %v10653, %v10652
        %v10655 = vrot.slane %v10556, 7
        %v10656 = vsel %vm1312, %v10655, %v10555
        %v10657 = vrot.slane %v10557, 6
        %v10658 = vsel %vm1315, %v10657, %v10656
        %v10659 = vrot.slane %v10558, 5
        %v10660 = vsel %vm1318, %v10659, %v10658
        %v10661 = vrot.slane %v10559, 4
        %v10662 = vsel %vm1321, %v10661, %v10660
        %v10663 = vrot.slane %v10560, 3
        %v10664 = vsel %vm1324, %v10663, %v10662
        %v10665 = vrot.slane %v10561, 2
        %v10666 = vsel %vm1327, %v10665, %v10664
        %v10667 = vrot.slane %v10562, 1
        %v10668 = vsel %vm1330, %v10667, %v10666
        %v10669 = vrot.slane %v10564, 7
        %v10670 = vsel %vm1312, %v10669, %v10563
        %v10671 = vrot.slane %v10565, 6
        %v10672 = vsel %vm1315, %v10671, %v10670
        %v10673 = vrot.slane %v10566, 5
        %v10674 = vsel %vm1318, %v10673, %v10672
        %v10675 = vrot.slane %v10567, 4
        %v10676 = vsel %vm1321, %v10675, %v10674
        %v10677 = vrot.slane %v10568, 3
        %v10678 = vsel %vm1324, %v10677, %v10676
        %v10679 = vrot.slane %v10569, 2
        %v10680 = vsel %vm1327, %v10679, %v10678
        %v10681 = vrot.slane %v10570, 1
        %v10682 = vsel %vm1330, %v10681, %v10680
        %v10683 = vpack.c.b16 %v10598, %v10584
        %v10684 = vpack.c.b16 %v10626, %v10612
        %v10685 = vpack.c.b16 %v10654, %v10640
        %v10686 = vpack.c.b16 %v10682, %v10668
        %v10688 = vsel %vm1434, %v10683, 0
        %v10691 = vsel %vm1434, %v10684, 0
        %v10694 = vsel %vm1434, %v10685, 0
        %v10697 = vsel %vm1434, %v10686, 0
        %v10700 = vsel %vm1447, %v9546, 0
        %10702 = vmatprep.subr.bf16.mxu0 0
        %10703 = vmatpush1.bf16.msra.mxu0 0
        %10704 = vmatprep.subr.bf16.mxu0 0
        %10705 = vmatpush1.bf16.msra.mxu0 0
        %10706 = vmatprep.subr.bf16.mxu0 0
        %10707 = vmatpush1.bf16.msra.mxu0 0
        %10708 = vmatprep.subr.bf16.mxu0 0
        %10709 = vmatpush1.bf16.msra.mxu0 0
        %10710 = vmatprep.subr.bf16.mxu0 0
        %10711 = vmatpush1.bf16.msra.mxu0 0
        %10712 = vmatprep.subr.bf16.mxu0 0
        %10713 = vmatpush1.bf16.msra.mxu0 0
        %10714 = vmatprep.subr.bf16.mxu0 0
        %10715 = vmatpush1.bf16.msra.mxu0 0
        %10716 = vmatprep.subr.bf16.mxu0 0
        %10717 = vmatpush1.bf16.msra.mxu0 %v10700
        %10718 = vmatprep.subr.bf16.mxu0 0
        %10719 = vmatpush2.bf16.msra.mxu0 0
        %10720 = vmatprep.subr.bf16.mxu0 0
        %10721 = vmatpush2.bf16.msra.mxu0 0
        %10722 = vmatprep.subr.bf16.mxu0 0
        %10723 = vmatpush2.bf16.msra.mxu0 0
        %10724 = vmatprep.subr.bf16.mxu0 0
        %10725 = vmatpush2.bf16.msra.mxu0 0
        %10726 = vmatprep.subr.bf16.mxu0 0
        %10727 = vmatpush2.bf16.msra.mxu0 0
        %10728 = vmatprep.subr.bf16.mxu0 0
        %10729 = vmatpush2.bf16.msra.mxu0 0
        %10730 = vmatprep.subr.bf16.mxu0 0
        %10731 = vmatpush2.bf16.msra.mxu0 0
        %10732 = vmatprep.subr.bf16.mxu0 0
        %10733 = vmatpush2.bf16.msra.mxu0 0
        %10734 = vmatprep.mubr.bf16.mxu0 0
        %10735 = vmatmul.mubr.bf16.gmra.mxu0 %v10688
        %v10736 = vpop.f32.mrf.mxu0
        %v10737 = vadd.f32 0.0, %v10736
        %v10738 = vpop.f32.mrf.mxu0
        %v10739 = vpop.f32.mrf.mxu0
        %v10740 = vadd.f32 0.0, %v10739
        %v10741 = vpop.f32.mrf.mxu0
        %10742 = vmatprep.mubr.bf16.mxu0 0
        %10743 = vmatmul.mubr.bf16.gmra.mxu0 %v10691
        %v10744 = vpop.f32.mrf.mxu0
        %v10745 = vadd.f32 0.0, %v10744
        %v10746 = vpop.f32.mrf.mxu0
        %v10747 = vpop.f32.mrf.mxu0
        %v10748 = vadd.f32 0.0, %v10747
        %v10749 = vpop.f32.mrf.mxu0
        %10750 = vmatprep.mubr.bf16.mxu0 0
        %10751 = vmatmul.mubr.bf16.gmra.mxu0 %v10694
        %v10752 = vpop.f32.mrf.mxu0
        %v10753 = vadd.f32 0.0, %v10752
        %v10754 = vpop.f32.mrf.mxu0
        %v10755 = vpop.f32.mrf.mxu0
        %v10756 = vadd.f32 0.0, %v10755
        %v10757 = vpop.f32.mrf.mxu0
        %10758 = vmatprep.mubr.bf16.mxu0 0
        %10759 = vmatmul.mubr.bf16.gmra.mxu0 %v10697
        %v10760 = vpop.f32.mrf.mxu0
        %v10761 = vadd.f32 0.0, %v10760
        %v10762 = vpop.f32.mrf.mxu0
        %v10763 = vpop.f32.mrf.mxu0
        %v10764 = vadd.f32 0.0, %v10763
        %v10765 = vpop.f32.mrf.mxu0
        %10766 = vdwg.mxu0
        %v10767 = vadd.f32 %v9472, %v10737
        %v10768 = vadd.f32 %v9473, %v10740
        %v10769 = vadd.f32 %v9474, %v10745
        %v10770 = vadd.f32 %v9475, %v10748
        %v10771 = vadd.f32 %v9476, %v10753
        %v10772 = vadd.f32 %v9477, %v10756
        %v10773 = vadd.f32 %v9478, %v10761
        %v10774 = vadd.f32 %v9479, %v10764
        %v10775 = vld [vmem:[%s218] sm:$0x3]
        %v10776 = vlaneseq
        %v10777 = vshrl.u32 %v10776, 7
        %v10778 = vsub.s32 0, %v10777
        %v10779 = vrot.slane %v10775, %v10778
        %v10780 = vmul.f32 %v10767, %v10779
        %v10781 = vmul.f32 %v10768, %v10779
        %v10782 = vmul.f32 %v10769, %v10779
        %v10783 = vmul.f32 %v10770, %v10779
        %v10784 = vmul.f32 %v10771, %v10779
        %v10785 = vmul.f32 %v10772, %v10779
        %v10786 = vmul.f32 %v10773, %v10779
        %v10787 = vmul.f32 %v10774, %v10779
        %v10788 = vlaneseq
        %v10789 = vshrl.u32 %v10788, 7
        %v10790 = vsub.s32 1, %v10789
        %v10791 = vrot.slane %v10775, %v10790
        %v10792 = vadd.f32 %v10780, %v10791
        %v10793 = vadd.f32 %v10781, %v10791
        %v10794 = vadd.f32 %v10782, %v10791
        %v10795 = vadd.f32 %v10783, %v10791
        %v10796 = vadd.f32 %v10784, %v10791
        %v10797 = vadd.f32 %v10785, %v10791
        %v10798 = vadd.f32 %v10786, %v10791
        %v10799 = vadd.f32 %v10787, %v10791
        %v10800 = vmax.f32 %v10792, 0.0
        %v10801 = vmax.f32 %v10793, 0.0
        %v10802 = vmax.f32 %v10794, 0.0
        %v10803 = vmax.f32 %v10795, 0.0
        %v10804 = vmax.f32 %v10796, 0.0
        %v10805 = vmax.f32 %v10797, 0.0
        %v10806 = vmax.f32 %v10798, 0.0
        %v10807 = vmax.f32 %v10799, 0.0
        %v10808 = vpack.c.bf16 %v10801, %v10800
        %v10809 = vpack.c.bf16 %v10803, %v10802
        %v10810 = vpack.c.bf16 %v10805, %v10804
        %v10811 = vpack.c.bf16 %v10807, %v10806
        %v10816 = vunpack.c.l.b16 %v10808
        %v10817 = vunpack.c.h.b16 %v10808
        %v10818 = vunpack.c.l.b16 %v10809
        %v10819 = vunpack.c.h.b16 %v10809
        %v10820 = vunpack.c.l.b16 %v10810
        %v10821 = vunpack.c.h.b16 %v10810
        %v10822 = vunpack.c.l.b16 %v10811
        %v10823 = vunpack.c.h.b16 %v10811
        %v10824 = vpack.c.b16 %v10816, %v10816
        %v10825 = vpack.c.b16 %v10817, %v10817
        %v10826 = vpack.c.b16 %v10818, %v10818
        %v10827 = vpack.c.b16 %v10819, %v10819
        %v10828 = vpack.c.b16 %v10820, %v10820
        %v10829 = vpack.c.b16 %v10821, %v10821
        %v10830 = vpack.c.b16 %v10822, %v10822
        %v10831 = vpack.c.b16 %v10823, %v10823
        %10840 = vst [vmem:[%s204] sm:$0xf] %v10824
        %10841 = vst [vmem:[%s204 + $0x4] sm:$0xf] %v10825
        %10842 = vst [vmem:[%s204 + $0x8] sm:$0xf] %v10826
        %10843 = vst [vmem:[%s204 + $0xc] sm:$0xf] %v10827
        %10844 = vst [vmem:[%s204 + $0x10] sm:$0xf] %v10828
        %10845 = vst [vmem:[%s204 + $0x14] sm:$0xf] %v10829
        %10846 = vst [vmem:[%s204 + $0x18] sm:$0xf] %v10830
        %10847 = vst [vmem:[%s204 + $0x1c] sm:$0xf] %v10831
        %s10848 = sand.u32 %s117, 1
        %s10849 = scalar_lea.sflag [#allocation3], %s10848
        %s10850 = sand.u32 %s117, 1
        %s10851 = smul.addr %s10850, 32
        %s10852 = scalar_lea.vmem [#allocation2], %s10851
        // Predicated region
        $region33: #{tpu_custom_call.1} parent=31 // pred_check
          %p10853 = pneg %p127
        $region34: #{tpu_custom_call.1} parent=31 // pred_check_branch
          %10855 = sbr.rel (%p10853) target = $region36
        $region35: #{tpu_custom_call.1} parent=31 // pred_region
          %s10857 = ssub.s32 512, 512
          %10858 = vsyncadd %s10849, %s10857
          %s10859 = smul.addr %s21, 8
          %s10860 = sadd.s32 %s22, %s10859
          %s10861 = smul.addr %s10860, 64
          %s10862 = scalar_lea.hbm %s3, %s10861
          %s10863 = sshll.u32 %s10852, 4
          %s10864 = int_to_ptr.vmem [resolvable:$true] %s10863
          %10869 = dma.vmem_to_hbm [thread:$0]  %s10864, 512, %s10862, %s10849, 64, 64, 4
        $region36: #{tpu_custom_call.1} parent=31 // pred_fallthru
          _
      $region32: #{tpu_custom_call.1} parent=5 // pred_fallthru
        _
      %p10870 = scmp.le.s32.totalorder 2, %s12
      // Predicated region
      $region37: #{tpu_custom_call.1} parent=5 // pred_check
        %p10871 = pneg %p10870
      $region38: #{tpu_custom_call.1} parent=5 // pred_check_branch
        %10873 = sbr.rel (%p10871) target = $region40
      $region39: #{tpu_custom_call.1} parent=5 // pred_region
        %s10874 = ssub.s32 %s12, 2
        // Predicated region
        $region41: #{tpu_custom_call.1} parent=39 // pred_check
          %p10875 = pneg %p133
        $region42: #{tpu_custom_call.1} parent=39 // pred_check_branch
          %10877 = sbr.rel (%p10875) target = $region44
        $region43: #{tpu_custom_call.1} parent=39 // pred_region
          %s10878 = sand.u32 %s118, 1
          %s10879 = scalar_lea.sflag [#allocation3], %s10878
          %s10880 = sand.u32 %s118, 1
          %s10881 = smul.addr %s10880, 32
          %s10882 = scalar_lea.vmem [#allocation2], %s10881
          %10883 = dma.done %s10879, 512
        $region44: #{tpu_custom_call.1} parent=39 // pred_fallthru
          _
      $region40: #{tpu_custom_call.1} parent=5 // pred_fallthru
        _
    $region6: #{tpu_custom_call.1} parent=1 // loop_footer
      %s16 = sadd.s32 1, %s12
    $region7: #{tpu_custom_call.1} parent=1 // loop_footer_branch
      %11 = sbr.rel target = $region3
    $region8: #{tpu_custom_call.1} parent=1 // loop_exit
      _
    %10884 = vsyncpa [#allocation3], 1
    %s10885 = scalar_lea.sflag [#allocation3], 1
    %10886 = vsyncpa %s10885, 1

</llo_original>
